<compile_context>
chip_gen: v6e
topology: v6e:2x2x1
jax: 0.10.0
libtpu: 0.0.40
codegen_flags: <defaults>
</compile_context>

<pallas_src>
import functools
import numpy as np
import jax
import jax.numpy as jnp
from jax.experimental import pallas as pl
from jax.experimental.pallas import tpu as pltpu


def funct2_kernel(w1_ref, b1_ref, w2_ref, b2_ref, x_ref, o_ref, *, y, dim, n_hidden):
    # x: (H, W, TN) f32 -- lattice H major, lattice W on sublanes, batch on lanes.
    x = x_ref[...]
    H, W, TN = x.shape

    # circular nearest-neighbour sum (torch dims 1/2 -> kernel axes 0/1)
    up    = jnp.concatenate([x[H - 1:], x[:H - 1]], axis=0)    # roll +1 along axis 0 (major)
    down  = jnp.concatenate([x[1:], x[:1]], axis=0)            # roll -1 along axis 0 (major)
    left  = jnp.roll(x, 1, axis=1)                             # roll +1 along axis 1 (sublane)
    right = jnp.roll(x, -1, axis=1)                            # roll -1 along axis 1 (sublane)
    x1 = (up + down) + (left + right)

    # sx = roll(x,+y,dim) + roll(x,-y,dim)
    ax = dim - 1                                               # torch dim -> kernel axis
    size = H if ax == 0 else W
    s = y % size
    if s == 0:
        sx = 2.0 * x
    elif ax == 0:
        sx = (jnp.concatenate([x[H - s:], x[:H - s]], axis=0)
              + jnp.concatenate([x[s:], x[:s]], axis=0))
    else:
        sx = jnp.roll(x, s, axis=1) + jnp.roll(x, -s, axis=1)

    f0 = x * x
    f1 = x1 * x
    f2 = sx * x

    # Linear(3 -> n_hidden) + tanh -> Linear(n_hidden -> 1), summed over the lattice.
    acc = None                                                 # (W, TN)
    for j in range(n_hidden):
        z = (w1_ref[3 * j + 0] * f0 + w1_ref[3 * j + 1] * f1
             + w1_ref[3 * j + 2] * f2 + b1_ref[j])             # scalar bias, no jnp.full
        part = w2_ref[j] * jnp.sum(jnp.tanh(z), axis=0)        # major-axis reduce (VPU)
        acc = part if acc is None else acc + part

    total = jnp.sum(acc, axis=0, keepdims=True)                # (1, TN) sublane reduce (XLU)
    o_ref[...] = (total + float(H * W) * b2_ref[0]).reshape(1, 1, TN)


@functools.partial(jax.jit, static_argnames=("y", "dim", "tile_n"))
def funct2_forward(x, params, y=0, dim=2, tile_n=128):
    w1, b1, w2, b2 = params                # (Hn,3), (Hn,), (1,Hn), (1,)
    B, H, W = x.shape
    n_hidden = b1.shape[0]

    n_pad = pl.cdiv(B, tile_n) * tile_n
    G = n_pad // tile_n

    # batch -> lane axis, zero-pad batch to a multiple of the lane tile
    xt = jnp.transpose(x.astype(jnp.float32), (1, 2, 0))       # (H, W, B)
    xt = jnp.pad(xt, ((0, 0), (0, 0), (0, n_pad - B)))

    kernel = functools.partial(funct2_kernel, y=y, dim=dim, n_hidden=n_hidden)
    smem = pl.BlockSpec(memory_space=pltpu.MemorySpace.SMEM)

    out = pl.pallas_call(
        kernel,
        out_shape=jax.ShapeDtypeStruct((G, 1, tile_n), jnp.float32),
        grid=(G,),
        in_specs=[smem, smem, smem, smem,
                  pl.BlockSpec((H, W, tile_n), lambda g: (0, 0, g))],
        out_specs=pl.BlockSpec((1, 1, tile_n), lambda g: (g, 0, 0)),
        compiler_params=pltpu.CompilerParams(
            dimension_semantics=("parallel",)),
    )(w1.reshape(-1).astype(jnp.float32), b1.astype(jnp.float32),
      w2.reshape(-1).astype(jnp.float32), b2.astype(jnp.float32), xt)

    return out.reshape(n_pad)[:B]


# ---------------- pure-JAX reference (for correctness check) ----------------
def forward_ref(x, params, y=0, dim=2):
    w1, b1, w2, b2 = params
    x = x.astype(jnp.float32)
    x1 = (jnp.roll(x, 1, axis=1) + jnp.roll(x, -1, axis=1)
          + jnp.roll(x, 1, axis=2) + jnp.roll(x, -1, axis=2))
    sx = jnp.roll(x, y, axis=dim) + jnp.roll(x, -y, axis=dim)
    f = jnp.stack([x * x, x1 * x, sx * x], axis=-1)            # (B,H,W,3)
    h = jnp.tanh(jnp.einsum("bhwk,jk->bhwj", f, w1,
                            precision=jax.lax.Precision.HIGHEST) + b1)
    o = jnp.einsum("bhwj,oj->bhwo", h, w2,
                   precision=jax.lax.Precision.HIGHEST) + b2
    return o[..., 0].sum(axis=(1, 2))


if __name__ == "__main__":
    B, L, HID = 2, 16, 32
    key = jax.random.PRNGKey(0)
    ks = jax.random.split(key, 5)

    def xavier(k, shape):
        fan_out, fan_in = shape
        bound = float(np.sqrt(6.0 / (fan_in + fan_out)))
        return jax.random.uniform(k, shape, jnp.float32, -bound, bound)

    # deterministic synthetic parameters (shapes as Funct2.__init__ with conv_layers=[32])
    w1 = xavier(ks[0], (HID, 3))
    b1 = jax.random.uniform(ks[1], (HID,), jnp.float32,
                            -1.0 / float(np.sqrt(3.0)), 1.0 / float(np.sqrt(3.0)))
    w2 = xavier(ks[2], (1, HID))
    b2 = jax.random.uniform(ks[3], (1,), jnp.float32,
                            -1.0 / float(np.sqrt(HID)), 1.0 / float(np.sqrt(HID)))
    params = (w1, b1, w2, b2)

    x = jax.random.normal(ks[4], (B, L, L), jnp.float32)

    yk = jax.block_until_ready(funct2_forward(x, params))
    y_ref = np.asarray(forward_ref(x, params))
    np.testing.assert_allclose(np.asarray(yk), y_ref, rtol=2e-4, atol=1e-3)
    assert yk.shape == (B,)
    print("KERNEL_OK")
</pallas_src>

<mosaic_0001>
module attributes {stable_mosaic.version = 11 : i64} {
  func.func @funct2_kernel(%arg0: i32, %arg1: memref<96xf32, #tpu.memory_space<smem>>, %arg2: memref<32xf32, #tpu.memory_space<smem>>, %arg3: memref<32xf32, #tpu.memory_space<smem>>, %arg4: memref<1xf32, #tpu.memory_space<smem>>, %arg5: memref<16x16x128xf32, #tpu.memory_space<vmem>>, %arg6: memref<1x1x128xf32, #tpu.memory_space<vmem>>) attributes {dimension_semantics = [#tpu.dimension_semantics<parallel>], iteration_bounds = array<i64: 1>, scalar_prefetch = 0 : i64, scratch_operands = 0 : i64, tpu.core_type = #tpu.core_type<tc>, window_params = [{transform_indices = @transform_0, window_bounds = array<i64: 96>}, {transform_indices = @transform_1, window_bounds = array<i64: 32>}, {transform_indices = @transform_2, window_bounds = array<i64: 32>}, {transform_indices = @transform_3, window_bounds = array<i64: 1>}, {transform_indices = @transform_4, window_bounds = array<i64: 16, 16, 128>}, {transform_indices = @transform_5, window_bounds = array<i64: 1, 1, 128>}]} {
    %c0 = arith.constant 0 : index
    %c0_0 = arith.constant 0 : index
    %c0_1 = arith.constant 0 : index
    %0 = vector.load %arg5[%c0, %c0_0, %c0_1] : memref<16x16x128xf32, #tpu.memory_space<vmem>>, vector<16x16x128xf32>
    %1 = vector.extract_strided_slice %0 {offsets = [15, 0, 0], sizes = [1, 16, 128], strides = [1, 1, 1]} : vector<16x16x128xf32> to vector<1x16x128xf32>
    %2 = vector.extract_strided_slice %0 {offsets = [0, 0, 0], sizes = [15, 16, 128], strides = [1, 1, 1]} : vector<16x16x128xf32> to vector<15x16x128xf32>
    %3 = tpu.concatenate %1, %2 in 0 : vector<1x16x128xf32>, vector<15x16x128xf32> -> vector<16x16x128xf32>
    %4 = vector.extract_strided_slice %0 {offsets = [1, 0, 0], sizes = [15, 16, 128], strides = [1, 1, 1]} : vector<16x16x128xf32> to vector<15x16x128xf32>
    %5 = vector.extract_strided_slice %0 {offsets = [0, 0, 0], sizes = [1, 16, 128], strides = [1, 1, 1]} : vector<16x16x128xf32> to vector<1x16x128xf32>
    %6 = tpu.concatenate %4, %5 in 0 : vector<15x16x128xf32>, vector<1x16x128xf32> -> vector<16x16x128xf32>
    %7 = vector.extract_strided_slice %0 {offsets = [0, 15, 0], sizes = [16, 1, 128], strides = [1, 1, 1]} : vector<16x16x128xf32> to vector<16x1x128xf32>
    %8 = vector.extract_strided_slice %0 {offsets = [0, 0, 0], sizes = [16, 15, 128], strides = [1, 1, 1]} : vector<16x16x128xf32> to vector<16x15x128xf32>
    %9 = tpu.concatenate %7, %8 in 1 : vector<16x1x128xf32>, vector<16x15x128xf32> -> vector<16x16x128xf32>
    %10 = vector.extract_strided_slice %0 {offsets = [0, 1, 0], sizes = [16, 15, 128], strides = [1, 1, 1]} : vector<16x16x128xf32> to vector<16x15x128xf32>
    %11 = vector.extract_strided_slice %0 {offsets = [0, 0, 0], sizes = [16, 1, 128], strides = [1, 1, 1]} : vector<16x16x128xf32> to vector<16x1x128xf32>
    %12 = tpu.concatenate %10, %11 in 1 : vector<16x15x128xf32>, vector<16x1x128xf32> -> vector<16x16x128xf32>
    %13 = arith.addf %3, %6 : vector<16x16x128xf32>
    %14 = arith.addf %9, %12 : vector<16x16x128xf32>
    %15 = arith.addf %13, %14 : vector<16x16x128xf32>
    %cst = arith.constant 2.000000e+00 : f32
    %16 = vector.broadcast %cst : f32 to vector<16x16x128xf32>
    %17 = arith.mulf %16, %0 : vector<16x16x128xf32>
    %18 = arith.mulf %0, %0 : vector<16x16x128xf32>
    %19 = arith.mulf %15, %0 : vector<16x16x128xf32>
    %20 = arith.mulf %17, %0 : vector<16x16x128xf32>
    %c0_2 = arith.constant 0 : index
    %21 = memref.load %arg1[%c0_2] : memref<96xf32, #tpu.memory_space<smem>>
    %22 = vector.broadcast %21 : f32 to vector<16x16x128xf32>
    %23 = arith.mulf %22, %18 : vector<16x16x128xf32>
    %c1 = arith.constant 1 : index
    %24 = memref.load %arg1[%c1] : memref<96xf32, #tpu.memory_space<smem>>
    %25 = vector.broadcast %24 : f32 to vector<16x16x128xf32>
    %26 = arith.mulf %25, %19 : vector<16x16x128xf32>
    %27 = arith.addf %23, %26 : vector<16x16x128xf32>
    %c2 = arith.constant 2 : index
    %28 = memref.load %arg1[%c2] : memref<96xf32, #tpu.memory_space<smem>>
    %29 = vector.broadcast %28 : f32 to vector<16x16x128xf32>
    %30 = arith.mulf %29, %20 : vector<16x16x128xf32>
    %31 = arith.addf %27, %30 : vector<16x16x128xf32>
    %c0_3 = arith.constant 0 : index
    %32 = memref.load %arg2[%c0_3] : memref<32xf32, #tpu.memory_space<smem>>
    %33 = vector.broadcast %32 : f32 to vector<16x16x128xf32>
    %34 = arith.addf %31, %33 : vector<16x16x128xf32>
    %c0_4 = arith.constant 0 : index
    %35 = memref.load %arg3[%c0_4] : memref<32xf32, #tpu.memory_space<smem>>
    %36 = math.tanh %34 : vector<16x16x128xf32>
    %cst_5 = arith.constant dense<0.000000e+00> : vector<16x128xf32>
    %37 = vector.multi_reduction <add>, %36, %cst_5 [0] : vector<16x16x128xf32> to vector<16x128xf32>
    %38 = vector.broadcast %35 : f32 to vector<16x128xf32>
    %39 = arith.mulf %38, %37 : vector<16x128xf32>
    %c3 = arith.constant 3 : index
    %40 = memref.load %arg1[%c3] : memref<96xf32, #tpu.memory_space<smem>>
    %41 = vector.broadcast %40 : f32 to vector<16x16x128xf32>
    %42 = arith.mulf %41, %18 : vector<16x16x128xf32>
    %c4 = arith.constant 4 : index
    %43 = memref.load %arg1[%c4] : memref<96xf32, #tpu.memory_space<smem>>
    %44 = vector.broadcast %43 : f32 to vector<16x16x128xf32>
    %45 = arith.mulf %44, %19 : vector<16x16x128xf32>
    %46 = arith.addf %42, %45 : vector<16x16x128xf32>
    %c5 = arith.constant 5 : index
    %47 = memref.load %arg1[%c5] : memref<96xf32, #tpu.memory_space<smem>>
    %48 = vector.broadcast %47 : f32 to vector<16x16x128xf32>
    %49 = arith.mulf %48, %20 : vector<16x16x128xf32>
    %50 = arith.addf %46, %49 : vector<16x16x128xf32>
    %c1_6 = arith.constant 1 : index
    %51 = memref.load %arg2[%c1_6] : memref<32xf32, #tpu.memory_space<smem>>
    %52 = vector.broadcast %51 : f32 to vector<16x16x128xf32>
    %53 = arith.addf %50, %52 : vector<16x16x128xf32>
    %c1_7 = arith.constant 1 : index
    %54 = memref.load %arg3[%c1_7] : memref<32xf32, #tpu.memory_space<smem>>
    %55 = math.tanh %53 : vector<16x16x128xf32>
    %cst_8 = arith.constant dense<0.000000e+00> : vector<16x128xf32>
    %56 = vector.multi_reduction <add>, %55, %cst_8 [0] : vector<16x16x128xf32> to vector<16x128xf32>
    %57 = vector.broadcast %54 : f32 to vector<16x128xf32>
    %58 = arith.mulf %57, %56 : vector<16x128xf32>
    %59 = arith.addf %39, %58 : vector<16x128xf32>
    %c6 = arith.constant 6 : index
    %60 = memref.load %arg1[%c6] : memref<96xf32, #tpu.memory_space<smem>>
    %61 = vector.broadcast %60 : f32 to vector<16x16x128xf32>
    %62 = arith.mulf %61, %18 : vector<16x16x128xf32>
    %c7 = arith.constant 7 : index
    %63 = memref.load %arg1[%c7] : memref<96xf32, #tpu.memory_space<smem>>
    %64 = vector.broadcast %63 : f32 to vector<16x16x128xf32>
    %65 = arith.mulf %64, %19 : vector<16x16x128xf32>
    %66 = arith.addf %62, %65 : vector<16x16x128xf32>
    %c8 = arith.constant 8 : index
    %67 = memref.load %arg1[%c8] : memref<96xf32, #tpu.memory_space<smem>>
    %68 = vector.broadcast %67 : f32 to vector<16x16x128xf32>
    %69 = arith.mulf %68, %20 : vector<16x16x128xf32>
    %70 = arith.addf %66, %69 : vector<16x16x128xf32>
    %c2_9 = arith.constant 2 : index
    %71 = memref.load %arg2[%c2_9] : memref<32xf32, #tpu.memory_space<smem>>
    %72 = vector.broadcast %71 : f32 to vector<16x16x128xf32>
    %73 = arith.addf %70, %72 : vector<16x16x128xf32>
    %c2_10 = arith.constant 2 : index
    %74 = memref.load %arg3[%c2_10] : memref<32xf32, #tpu.memory_space<smem>>
    %75 = math.tanh %73 : vector<16x16x128xf32>
    %cst_11 = arith.constant dense<0.000000e+00> : vector<16x128xf32>
    %76 = vector.multi_reduction <add>, %75, %cst_11 [0] : vector<16x16x128xf32> to vector<16x128xf32>
    %77 = vector.broadcast %74 : f32 to vector<16x128xf32>
    %78 = arith.mulf %77, %76 : vector<16x128xf32>
    %79 = arith.addf %59, %78 : vector<16x128xf32>
    %c9 = arith.constant 9 : index
    %80 = memref.load %arg1[%c9] : memref<96xf32, #tpu.memory_space<smem>>
    %81 = vector.broadcast %80 : f32 to vector<16x16x128xf32>
    %82 = arith.mulf %81, %18 : vector<16x16x128xf32>
    %c10 = arith.constant 10 : index
    %83 = memref.load %arg1[%c10] : memref<96xf32, #tpu.memory_space<smem>>
    %84 = vector.broadcast %83 : f32 to vector<16x16x128xf32>
    %85 = arith.mulf %84, %19 : vector<16x16x128xf32>
    %86 = arith.addf %82, %85 : vector<16x16x128xf32>
    %c11 = arith.constant 11 : index
    %87 = memref.load %arg1[%c11] : memref<96xf32, #tpu.memory_space<smem>>
    %88 = vector.broadcast %87 : f32 to vector<16x16x128xf32>
    %89 = arith.mulf %88, %20 : vector<16x16x128xf32>
    %90 = arith.addf %86, %89 : vector<16x16x128xf32>
    %c3_12 = arith.constant 3 : index
    %91 = memref.load %arg2[%c3_12] : memref<32xf32, #tpu.memory_space<smem>>
    %92 = vector.broadcast %91 : f32 to vector<16x16x128xf32>
    %93 = arith.addf %90, %92 : vector<16x16x128xf32>
    %c3_13 = arith.constant 3 : index
    %94 = memref.load %arg3[%c3_13] : memref<32xf32, #tpu.memory_space<smem>>
    %95 = math.tanh %93 : vector<16x16x128xf32>
    %cst_14 = arith.constant dense<0.000000e+00> : vector<16x128xf32>
    %96 = vector.multi_reduction <add>, %95, %cst_14 [0] : vector<16x16x128xf32> to vector<16x128xf32>
    %97 = vector.broadcast %94 : f32 to vector<16x128xf32>
    %98 = arith.mulf %97, %96 : vector<16x128xf32>
    %99 = arith.addf %79, %98 : vector<16x128xf32>
    %c12 = arith.constant 12 : index
    %100 = memref.load %arg1[%c12] : memref<96xf32, #tpu.memory_space<smem>>
    %101 = vector.broadcast %100 : f32 to vector<16x16x128xf32>
    %102 = arith.mulf %101, %18 : vector<16x16x128xf32>
    %c13 = arith.constant 13 : index
    %103 = memref.load %arg1[%c13] : memref<96xf32, #tpu.memory_space<smem>>
    %104 = vector.broadcast %103 : f32 to vector<16x16x128xf32>
    %105 = arith.mulf %104, %19 : vector<16x16x128xf32>
    %106 = arith.addf %102, %105 : vector<16x16x128xf32>
    %c14 = arith.constant 14 : index
    %107 = memref.load %arg1[%c14] : memref<96xf32, #tpu.memory_space<smem>>
    %108 = vector.broadcast %107 : f32 to vector<16x16x128xf32>
    %109 = arith.mulf %108, %20 : vector<16x16x128xf32>
    %110 = arith.addf %106, %109 : vector<16x16x128xf32>
    %c4_15 = arith.constant 4 : index
    %111 = memref.load %arg2[%c4_15] : memref<32xf32, #tpu.memory_space<smem>>
    %112 = vector.broadcast %111 : f32 to vector<16x16x128xf32>
    %113 = arith.addf %110, %112 : vector<16x16x128xf32>
    %c4_16 = arith.constant 4 : index
    %114 = memref.load %arg3[%c4_16] : memref<32xf32, #tpu.memory_space<smem>>
    %115 = math.tanh %113 : vector<16x16x128xf32>
    %cst_17 = arith.constant dense<0.000000e+00> : vector<16x128xf32>
    %116 = vector.multi_reduction <add>, %115, %cst_17 [0] : vector<16x16x128xf32> to vector<16x128xf32>
    %117 = vector.broadcast %114 : f32 to vector<16x128xf32>
    %118 = arith.mulf %117, %116 : vector<16x128xf32>
    %119 = arith.addf %99, %118 : vector<16x128xf32>
    %c15 = arith.constant 15 : index
    %120 = memref.load %arg1[%c15] : memref<96xf32, #tpu.memory_space<smem>>
    %121 = vector.broadcast %120 : f32 to vector<16x16x128xf32>
    %122 = arith.mulf %121, %18 : vector<16x16x128xf32>
    %c16 = arith.constant 16 : index
    %123 = memref.load %arg1[%c16] : memref<96xf32, #tpu.memory_space<smem>>
    %124 = vector.broadcast %123 : f32 to vector<16x16x128xf32>
    %125 = arith.mulf %124, %19 : vector<16x16x128xf32>
    %126 = arith.addf %122, %125 : vector<16x16x128xf32>
    %c17 = arith.constant 17 : index
    %127 = memref.load %arg1[%c17] : memref<96xf32, #tpu.memory_space<smem>>
    %128 = vector.broadcast %127 : f32 to vector<16x16x128xf32>
    %129 = arith.mulf %128, %20 : vector<16x16x128xf32>
    %130 = arith.addf %126, %129 : vector<16x16x128xf32>
    %c5_18 = arith.constant 5 : index
    %131 = memref.load %arg2[%c5_18] : memref<32xf32, #tpu.memory_space<smem>>
    %132 = vector.broadcast %131 : f32 to vector<16x16x128xf32>
    %133 = arith.addf %130, %132 : vector<16x16x128xf32>
    %c5_19 = arith.constant 5 : index
    %134 = memref.load %arg3[%c5_19] : memref<32xf32, #tpu.memory_space<smem>>
    %135 = math.tanh %133 : vector<16x16x128xf32>
    %cst_20 = arith.constant dense<0.000000e+00> : vector<16x128xf32>
    %136 = vector.multi_reduction <add>, %135, %cst_20 [0] : vector<16x16x128xf32> to vector<16x128xf32>
    %137 = vector.broadcast %134 : f32 to vector<16x128xf32>
    %138 = arith.mulf %137, %136 : vector<16x128xf32>
    %139 = arith.addf %119, %138 : vector<16x128xf32>
    %c18 = arith.constant 18 : index
    %140 = memref.load %arg1[%c18] : memref<96xf32, #tpu.memory_space<smem>>
    %141 = vector.broadcast %140 : f32 to vector<16x16x128xf32>
    %142 = arith.mulf %141, %18 : vector<16x16x128xf32>
    %c19 = arith.constant 19 : index
    %143 = memref.load %arg1[%c19] : memref<96xf32, #tpu.memory_space<smem>>
    %144 = vector.broadcast %143 : f32 to vector<16x16x128xf32>
    %145 = arith.mulf %144, %19 : vector<16x16x128xf32>
    %146 = arith.addf %142, %145 : vector<16x16x128xf32>
    %c20 = arith.constant 20 : index
    %147 = memref.load %arg1[%c20] : memref<96xf32, #tpu.memory_space<smem>>
    %148 = vector.broadcast %147 : f32 to vector<16x16x128xf32>
    %149 = arith.mulf %148, %20 : vector<16x16x128xf32>
    %150 = arith.addf %146, %149 : vector<16x16x128xf32>
    %c6_21 = arith.constant 6 : index
    %151 = memref.load %arg2[%c6_21] : memref<32xf32, #tpu.memory_space<smem>>
    %152 = vector.broadcast %151 : f32 to vector<16x16x128xf32>
    %153 = arith.addf %150, %152 : vector<16x16x128xf32>
    %c6_22 = arith.constant 6 : index
    %154 = memref.load %arg3[%c6_22] : memref<32xf32, #tpu.memory_space<smem>>
    %155 = math.tanh %153 : vector<16x16x128xf32>
    %cst_23 = arith.constant dense<0.000000e+00> : vector<16x128xf32>
    %156 = vector.multi_reduction <add>, %155, %cst_23 [0] : vector<16x16x128xf32> to vector<16x128xf32>
    %157 = vector.broadcast %154 : f32 to vector<16x128xf32>
    %158 = arith.mulf %157, %156 : vector<16x128xf32>
    %159 = arith.addf %139, %158 : vector<16x128xf32>
    %c21 = arith.constant 21 : index
    %160 = memref.load %arg1[%c21] : memref<96xf32, #tpu.memory_space<smem>>
    %161 = vector.broadcast %160 : f32 to vector<16x16x128xf32>
    %162 = arith.mulf %161, %18 : vector<16x16x128xf32>
    %c22 = arith.constant 22 : index
    %163 = memref.load %arg1[%c22] : memref<96xf32, #tpu.memory_space<smem>>
    %164 = vector.broadcast %163 : f32 to vector<16x16x128xf32>
    %165 = arith.mulf %164, %19 : vector<16x16x128xf32>
    %166 = arith.addf %162, %165 : vector<16x16x128xf32>
    %c23 = arith.constant 23 : index
    %167 = memref.load %arg1[%c23] : memref<96xf32, #tpu.memory_space<smem>>
    %168 = vector.broadcast %167 : f32 to vector<16x16x128xf32>
    %169 = arith.mulf %168, %20 : vector<16x16x128xf32>
    %170 = arith.addf %166, %169 : vector<16x16x128xf32>
    %c7_24 = arith.constant 7 : index
    %171 = memref.load %arg2[%c7_24] : memref<32xf32, #tpu.memory_space<smem>>
    %172 = vector.broadcast %171 : f32 to vector<16x16x128xf32>
    %173 = arith.addf %170, %172 : vector<16x16x128xf32>
    %c7_25 = arith.constant 7 : index
    %174 = memref.load %arg3[%c7_25] : memref<32xf32, #tpu.memory_space<smem>>
    %175 = math.tanh %173 : vector<16x16x128xf32>
    %cst_26 = arith.constant dense<0.000000e+00> : vector<16x128xf32>
    %176 = vector.multi_reduction <add>, %175, %cst_26 [0] : vector<16x16x128xf32> to vector<16x128xf32>
    %177 = vector.broadcast %174 : f32 to vector<16x128xf32>
    %178 = arith.mulf %177, %176 : vector<16x128xf32>
    %179 = arith.addf %159, %178 : vector<16x128xf32>
    %c24 = arith.constant 24 : index
    %180 = memref.load %arg1[%c24] : memref<96xf32, #tpu.memory_space<smem>>
    %181 = vector.broadcast %180 : f32 to vector<16x16x128xf32>
    %182 = arith.mulf %181, %18 : vector<16x16x128xf32>
    %c25 = arith.constant 25 : index
    %183 = memref.load %arg1[%c25] : memref<96xf32, #tpu.memory_space<smem>>
    %184 = vector.broadcast %183 : f32 to vector<16x16x128xf32>
    %185 = arith.mulf %184, %19 : vector<16x16x128xf32>
    %186 = arith.addf %182, %185 : vector<16x16x128xf32>
    %c26 = arith.constant 26 : index
    %187 = memref.load %arg1[%c26] : memref<96xf32, #tpu.memory_space<smem>>
    %188 = vector.broadcast %187 : f32 to vector<16x16x128xf32>
    %189 = arith.mulf %188, %20 : vector<16x16x128xf32>
    %190 = arith.addf %186, %189 : vector<16x16x128xf32>
    %c8_27 = arith.constant 8 : index
    %191 = memref.load %arg2[%c8_27] : memref<32xf32, #tpu.memory_space<smem>>
    %192 = vector.broadcast %191 : f32 to vector<16x16x128xf32>
    %193 = arith.addf %190, %192 : vector<16x16x128xf32>
    %c8_28 = arith.constant 8 : index
    %194 = memref.load %arg3[%c8_28] : memref<32xf32, #tpu.memory_space<smem>>
    %195 = math.tanh %193 : vector<16x16x128xf32>
    %cst_29 = arith.constant dense<0.000000e+00> : vector<16x128xf32>
    %196 = vector.multi_reduction <add>, %195, %cst_29 [0] : vector<16x16x128xf32> to vector<16x128xf32>
    %197 = vector.broadcast %194 : f32 to vector<16x128xf32>
    %198 = arith.mulf %197, %196 : vector<16x128xf32>
    %199 = arith.addf %179, %198 : vector<16x128xf32>
    %c27 = arith.constant 27 : index
    %200 = memref.load %arg1[%c27] : memref<96xf32, #tpu.memory_space<smem>>
    %201 = vector.broadcast %200 : f32 to vector<16x16x128xf32>
    %202 = arith.mulf %201, %18 : vector<16x16x128xf32>
    %c28 = arith.constant 28 : index
    %203 = memref.load %arg1[%c28] : memref<96xf32, #tpu.memory_space<smem>>
    %204 = vector.broadcast %203 : f32 to vector<16x16x128xf32>
    %205 = arith.mulf %204, %19 : vector<16x16x128xf32>
    %206 = arith.addf %202, %205 : vector<16x16x128xf32>
    %c29 = arith.constant 29 : index
    %207 = memref.load %arg1[%c29] : memref<96xf32, #tpu.memory_space<smem>>
    %208 = vector.broadcast %207 : f32 to vector<16x16x128xf32>
    %209 = arith.mulf %208, %20 : vector<16x16x128xf32>
    %210 = arith.addf %206, %209 : vector<16x16x128xf32>
    %c9_30 = arith.constant 9 : index
    %211 = memref.load %arg2[%c9_30] : memref<32xf32, #tpu.memory_space<smem>>
    %212 = vector.broadcast %211 : f32 to vector<16x16x128xf32>
    %213 = arith.addf %210, %212 : vector<16x16x128xf32>
    %c9_31 = arith.constant 9 : index
    %214 = memref.load %arg3[%c9_31] : memref<32xf32, #tpu.memory_space<smem>>
    %215 = math.tanh %213 : vector<16x16x128xf32>
    %cst_32 = arith.constant dense<0.000000e+00> : vector<16x128xf32>
    %216 = vector.multi_reduction <add>, %215, %cst_32 [0] : vector<16x16x128xf32> to vector<16x128xf32>
    %217 = vector.broadcast %214 : f32 to vector<16x128xf32>
    %218 = arith.mulf %217, %216 : vector<16x128xf32>
    %219 = arith.addf %199, %218 : vector<16x128xf32>
    %c30 = arith.constant 30 : index
    %220 = memref.load %arg1[%c30] : memref<96xf32, #tpu.memory_space<smem>>
    %221 = vector.broadcast %220 : f32 to vector<16x16x128xf32>
    %222 = arith.mulf %221, %18 : vector<16x16x128xf32>
    %c31 = arith.constant 31 : index
    %223 = memref.load %arg1[%c31] : memref<96xf32, #tpu.memory_space<smem>>
    %224 = vector.broadcast %223 : f32 to vector<16x16x128xf32>
    %225 = arith.mulf %224, %19 : vector<16x16x128xf32>
    %226 = arith.addf %222, %225 : vector<16x16x128xf32>
    %c32 = arith.constant 32 : index
    %227 = memref.load %arg1[%c32] : memref<96xf32, #tpu.memory_space<smem>>
    %228 = vector.broadcast %227 : f32 to vector<16x16x128xf32>
    %229 = arith.mulf %228, %20 : vector<16x16x128xf32>
    %230 = arith.addf %226, %229 : vector<16x16x128xf32>
    %c10_33 = arith.constant 10 : index
    %231 = memref.load %arg2[%c10_33] : memref<32xf32, #tpu.memory_space<smem>>
    %232 = vector.broadcast %231 : f32 to vector<16x16x128xf32>
    %233 = arith.addf %230, %232 : vector<16x16x128xf32>
    %c10_34 = arith.constant 10 : index
    %234 = memref.load %arg3[%c10_34] : memref<32xf32, #tpu.memory_space<smem>>
    %235 = math.tanh %233 : vector<16x16x128xf32>
    %cst_35 = arith.constant dense<0.000000e+00> : vector<16x128xf32>
    %236 = vector.multi_reduction <add>, %235, %cst_35 [0] : vector<16x16x128xf32> to vector<16x128xf32>
    %237 = vector.broadcast %234 : f32 to vector<16x128xf32>
    %238 = arith.mulf %237, %236 : vector<16x128xf32>
    %239 = arith.addf %219, %238 : vector<16x128xf32>
    %c33 = arith.constant 33 : index
    %240 = memref.load %arg1[%c33] : memref<96xf32, #tpu.memory_space<smem>>
    %241 = vector.broadcast %240 : f32 to vector<16x16x128xf32>
    %242 = arith.mulf %241, %18 : vector<16x16x128xf32>
    %c34 = arith.constant 34 : index
    %243 = memref.load %arg1[%c34] : memref<96xf32, #tpu.memory_space<smem>>
    %244 = vector.broadcast %243 : f32 to vector<16x16x128xf32>
    %245 = arith.mulf %244, %19 : vector<16x16x128xf32>
    %246 = arith.addf %242, %245 : vector<16x16x128xf32>
    %c35 = arith.constant 35 : index
    %247 = memref.load %arg1[%c35] : memref<96xf32, #tpu.memory_space<smem>>
    %248 = vector.broadcast %247 : f32 to vector<16x16x128xf32>
    %249 = arith.mulf %248, %20 : vector<16x16x128xf32>
    %250 = arith.addf %246, %249 : vector<16x16x128xf32>
    %c11_36 = arith.constant 11 : index
    %251 = memref.load %arg2[%c11_36] : memref<32xf32, #tpu.memory_space<smem>>
    %252 = vector.broadcast %251 : f32 to vector<16x16x128xf32>
    %253 = arith.addf %250, %252 : vector<16x16x128xf32>
    %c11_37 = arith.constant 11 : index
    %254 = memref.load %arg3[%c11_37] : memref<32xf32, #tpu.memory_space<smem>>
    %255 = math.tanh %253 : vector<16x16x128xf32>
    %cst_38 = arith.constant dense<0.000000e+00> : vector<16x128xf32>
    %256 = vector.multi_reduction <add>, %255, %cst_38 [0] : vector<16x16x128xf32> to vector<16x128xf32>
    %257 = vector.broadcast %254 : f32 to vector<16x128xf32>
    %258 = arith.mulf %257, %256 : vector<16x128xf32>
    %259 = arith.addf %239, %258 : vector<16x128xf32>
    %c36 = arith.constant 36 : index
    %260 = memref.load %arg1[%c36] : memref<96xf32, #tpu.memory_space<smem>>
    %261 = vector.broadcast %260 : f32 to vector<16x16x128xf32>
    %262 = arith.mulf %261, %18 : vector<16x16x128xf32>
    %c37 = arith.constant 37 : index
    %263 = memref.load %arg1[%c37] : memref<96xf32, #tpu.memory_space<smem>>
    %264 = vector.broadcast %263 : f32 to vector<16x16x128xf32>
    %265 = arith.mulf %264, %19 : vector<16x16x128xf32>
    %266 = arith.addf %262, %265 : vector<16x16x128xf32>
    %c38 = arith.constant 38 : index
    %267 = memref.load %arg1[%c38] : memref<96xf32, #tpu.memory_space<smem>>
    %268 = vector.broadcast %267 : f32 to vector<16x16x128xf32>
    %269 = arith.mulf %268, %20 : vector<16x16x128xf32>
    %270 = arith.addf %266, %269 : vector<16x16x128xf32>
    %c12_39 = arith.constant 12 : index
    %271 = memref.load %arg2[%c12_39] : memref<32xf32, #tpu.memory_space<smem>>
    %272 = vector.broadcast %271 : f32 to vector<16x16x128xf32>
    %273 = arith.addf %270, %272 : vector<16x16x128xf32>
    %c12_40 = arith.constant 12 : index
    %274 = memref.load %arg3[%c12_40] : memref<32xf32, #tpu.memory_space<smem>>
    %275 = math.tanh %273 : vector<16x16x128xf32>
    %cst_41 = arith.constant dense<0.000000e+00> : vector<16x128xf32>
    %276 = vector.multi_reduction <add>, %275, %cst_41 [0] : vector<16x16x128xf32> to vector<16x128xf32>
    %277 = vector.broadcast %274 : f32 to vector<16x128xf32>
    %278 = arith.mulf %277, %276 : vector<16x128xf32>
    %279 = arith.addf %259, %278 : vector<16x128xf32>
    %c39 = arith.constant 39 : index
    %280 = memref.load %arg1[%c39] : memref<96xf32, #tpu.memory_space<smem>>
    %281 = vector.broadcast %280 : f32 to vector<16x16x128xf32>
    %282 = arith.mulf %281, %18 : vector<16x16x128xf32>
    %c40 = arith.constant 40 : index
    %283 = memref.load %arg1[%c40] : memref<96xf32, #tpu.memory_space<smem>>
    %284 = vector.broadcast %283 : f32 to vector<16x16x128xf32>
    %285 = arith.mulf %284, %19 : vector<16x16x128xf32>
    %286 = arith.addf %282, %285 : vector<16x16x128xf32>
    %c41 = arith.constant 41 : index
    %287 = memref.load %arg1[%c41] : memref<96xf32, #tpu.memory_space<smem>>
    %288 = vector.broadcast %287 : f32 to vector<16x16x128xf32>
    %289 = arith.mulf %288, %20 : vector<16x16x128xf32>
    %290 = arith.addf %286, %289 : vector<16x16x128xf32>
    %c13_42 = arith.constant 13 : index
    %291 = memref.load %arg2[%c13_42] : memref<32xf32, #tpu.memory_space<smem>>
    %292 = vector.broadcast %291 : f32 to vector<16x16x128xf32>
    %293 = arith.addf %290, %292 : vector<16x16x128xf32>
    %c13_43 = arith.constant 13 : index
    %294 = memref.load %arg3[%c13_43] : memref<32xf32, #tpu.memory_space<smem>>
    %295 = math.tanh %293 : vector<16x16x128xf32>
    %cst_44 = arith.constant dense<0.000000e+00> : vector<16x128xf32>
    %296 = vector.multi_reduction <add>, %295, %cst_44 [0] : vector<16x16x128xf32> to vector<16x128xf32>
    %297 = vector.broadcast %294 : f32 to vector<16x128xf32>
    %298 = arith.mulf %297, %296 : vector<16x128xf32>
    %299 = arith.addf %279, %298 : vector<16x128xf32>
    %c42 = arith.constant 42 : index
    %300 = memref.load %arg1[%c42] : memref<96xf32, #tpu.memory_space<smem>>
    %301 = vector.broadcast %300 : f32 to vector<16x16x128xf32>
    %302 = arith.mulf %301, %18 : vector<16x16x128xf32>
    %c43 = arith.constant 43 : index
    %303 = memref.load %arg1[%c43] : memref<96xf32, #tpu.memory_space<smem>>
    %304 = vector.broadcast %303 : f32 to vector<16x16x128xf32>
    %305 = arith.mulf %304, %19 : vector<16x16x128xf32>
    %306 = arith.addf %302, %305 : vector<16x16x128xf32>
    %c44 = arith.constant 44 : index
    %307 = memref.load %arg1[%c44] : memref<96xf32, #tpu.memory_space<smem>>
    %308 = vector.broadcast %307 : f32 to vector<16x16x128xf32>
    %309 = arith.mulf %308, %20 : vector<16x16x128xf32>
    %310 = arith.addf %306, %309 : vector<16x16x128xf32>
    %c14_45 = arith.constant 14 : index
    %311 = memref.load %arg2[%c14_45] : memref<32xf32, #tpu.memory_space<smem>>
    %312 = vector.broadcast %311 : f32 to vector<16x16x128xf32>
    %313 = arith.addf %310, %312 : vector<16x16x128xf32>
    %c14_46 = arith.constant 14 : index
    %314 = memref.load %arg3[%c14_46] : memref<32xf32, #tpu.memory_space<smem>>
    %315 = math.tanh %313 : vector<16x16x128xf32>
    %cst_47 = arith.constant dense<0.000000e+00> : vector<16x128xf32>
    %316 = vector.multi_reduction <add>, %315, %cst_47 [0] : vector<16x16x128xf32> to vector<16x128xf32>
    %317 = vector.broadcast %314 : f32 to vector<16x128xf32>
    %318 = arith.mulf %317, %316 : vector<16x128xf32>
    %319 = arith.addf %299, %318 : vector<16x128xf32>
    %c45 = arith.constant 45 : index
    %320 = memref.load %arg1[%c45] : memref<96xf32, #tpu.memory_space<smem>>
    %321 = vector.broadcast %320 : f32 to vector<16x16x128xf32>
    %322 = arith.mulf %321, %18 : vector<16x16x128xf32>
    %c46 = arith.constant 46 : index
    %323 = memref.load %arg1[%c46] : memref<96xf32, #tpu.memory_space<smem>>
    %324 = vector.broadcast %323 : f32 to vector<16x16x128xf32>
    %325 = arith.mulf %324, %19 : vector<16x16x128xf32>
    %326 = arith.addf %322, %325 : vector<16x16x128xf32>
    %c47 = arith.constant 47 : index
    %327 = memref.load %arg1[%c47] : memref<96xf32, #tpu.memory_space<smem>>
    %328 = vector.broadcast %327 : f32 to vector<16x16x128xf32>
    %329 = arith.mulf %328, %20 : vector<16x16x128xf32>
    %330 = arith.addf %326, %329 : vector<16x16x128xf32>
    %c15_48 = arith.constant 15 : index
    %331 = memref.load %arg2[%c15_48] : memref<32xf32, #tpu.memory_space<smem>>
    %332 = vector.broadcast %331 : f32 to vector<16x16x128xf32>
    %333 = arith.addf %330, %332 : vector<16x16x128xf32>
    %c15_49 = arith.constant 15 : index
    %334 = memref.load %arg3[%c15_49] : memref<32xf32, #tpu.memory_space<smem>>
    %335 = math.tanh %333 : vector<16x16x128xf32>
    %cst_50 = arith.constant dense<0.000000e+00> : vector<16x128xf32>
    %336 = vector.multi_reduction <add>, %335, %cst_50 [0] : vector<16x16x128xf32> to vector<16x128xf32>
    %337 = vector.broadcast %334 : f32 to vector<16x128xf32>
    %338 = arith.mulf %337, %336 : vector<16x128xf32>
    %339 = arith.addf %319, %338 : vector<16x128xf32>
    %c48 = arith.constant 48 : index
    %340 = memref.load %arg1[%c48] : memref<96xf32, #tpu.memory_space<smem>>
    %341 = vector.broadcast %340 : f32 to vector<16x16x128xf32>
    %342 = arith.mulf %341, %18 : vector<16x16x128xf32>
    %c49 = arith.constant 49 : index
    %343 = memref.load %arg1[%c49] : memref<96xf32, #tpu.memory_space<smem>>
    %344 = vector.broadcast %343 : f32 to vector<16x16x128xf32>
    %345 = arith.mulf %344, %19 : vector<16x16x128xf32>
    %346 = arith.addf %342, %345 : vector<16x16x128xf32>
    %c50 = arith.constant 50 : index
    %347 = memref.load %arg1[%c50] : memref<96xf32, #tpu.memory_space<smem>>
    %348 = vector.broadcast %347 : f32 to vector<16x16x128xf32>
    %349 = arith.mulf %348, %20 : vector<16x16x128xf32>
    %350 = arith.addf %346, %349 : vector<16x16x128xf32>
    %c16_51 = arith.constant 16 : index
    %351 = memref.load %arg2[%c16_51] : memref<32xf32, #tpu.memory_space<smem>>
    %352 = vector.broadcast %351 : f32 to vector<16x16x128xf32>
    %353 = arith.addf %350, %352 : vector<16x16x128xf32>
    %c16_52 = arith.constant 16 : index
    %354 = memref.load %arg3[%c16_52] : memref<32xf32, #tpu.memory_space<smem>>
    %355 = math.tanh %353 : vector<16x16x128xf32>
    %cst_53 = arith.constant dense<0.000000e+00> : vector<16x128xf32>
    %356 = vector.multi_reduction <add>, %355, %cst_53 [0] : vector<16x16x128xf32> to vector<16x128xf32>
    %357 = vector.broadcast %354 : f32 to vector<16x128xf32>
    %358 = arith.mulf %357, %356 : vector<16x128xf32>
    %359 = arith.addf %339, %358 : vector<16x128xf32>
    %c51 = arith.constant 51 : index
    %360 = memref.load %arg1[%c51] : memref<96xf32, #tpu.memory_space<smem>>
    %361 = vector.broadcast %360 : f32 to vector<16x16x128xf32>
    %362 = arith.mulf %361, %18 : vector<16x16x128xf32>
    %c52 = arith.constant 52 : index
    %363 = memref.load %arg1[%c52] : memref<96xf32, #tpu.memory_space<smem>>
    %364 = vector.broadcast %363 : f32 to vector<16x16x128xf32>
    %365 = arith.mulf %364, %19 : vector<16x16x128xf32>
    %366 = arith.addf %362, %365 : vector<16x16x128xf32>
    %c53 = arith.constant 53 : index
    %367 = memref.load %arg1[%c53] : memref<96xf32, #tpu.memory_space<smem>>
    %368 = vector.broadcast %367 : f32 to vector<16x16x128xf32>
    %369 = arith.mulf %368, %20 : vector<16x16x128xf32>
    %370 = arith.addf %366, %369 : vector<16x16x128xf32>
    %c17_54 = arith.constant 17 : index
    %371 = memref.load %arg2[%c17_54] : memref<32xf32, #tpu.memory_space<smem>>
    %372 = vector.broadcast %371 : f32 to vector<16x16x128xf32>
    %373 = arith.addf %370, %372 : vector<16x16x128xf32>
    %c17_55 = arith.constant 17 : index
    %374 = memref.load %arg3[%c17_55] : memref<32xf32, #tpu.memory_space<smem>>
    %375 = math.tanh %373 : vector<16x16x128xf32>
    %cst_56 = arith.constant dense<0.000000e+00> : vector<16x128xf32>
    %376 = vector.multi_reduction <add>, %375, %cst_56 [0] : vector<16x16x128xf32> to vector<16x128xf32>
    %377 = vector.broadcast %374 : f32 to vector<16x128xf32>
    %378 = arith.mulf %377, %376 : vector<16x128xf32>
    %379 = arith.addf %359, %378 : vector<16x128xf32>
    %c54 = arith.constant 54 : index
    %380 = memref.load %arg1[%c54] : memref<96xf32, #tpu.memory_space<smem>>
    %381 = vector.broadcast %380 : f32 to vector<16x16x128xf32>
    %382 = arith.mulf %381, %18 : vector<16x16x128xf32>
    %c55 = arith.constant 55 : index
    %383 = memref.load %arg1[%c55] : memref<96xf32, #tpu.memory_space<smem>>
    %384 = vector.broadcast %383 : f32 to vector<16x16x128xf32>
    %385 = arith.mulf %384, %19 : vector<16x16x128xf32>
    %386 = arith.addf %382, %385 : vector<16x16x128xf32>
    %c56 = arith.constant 56 : index
    %387 = memref.load %arg1[%c56] : memref<96xf32, #tpu.memory_space<smem>>
    %388 = vector.broadcast %387 : f32 to vector<16x16x128xf32>
    %389 = arith.mulf %388, %20 : vector<16x16x128xf32>
    %390 = arith.addf %386, %389 : vector<16x16x128xf32>
    %c18_57 = arith.constant 18 : index
    %391 = memref.load %arg2[%c18_57] : memref<32xf32, #tpu.memory_space<smem>>
    %392 = vector.broadcast %391 : f32 to vector<16x16x128xf32>
    %393 = arith.addf %390, %392 : vector<16x16x128xf32>
    %c18_58 = arith.constant 18 : index
    %394 = memref.load %arg3[%c18_58] : memref<32xf32, #tpu.memory_space<smem>>
    %395 = math.tanh %393 : vector<16x16x128xf32>
    %cst_59 = arith.constant dense<0.000000e+00> : vector<16x128xf32>
    %396 = vector.multi_reduction <add>, %395, %cst_59 [0] : vector<16x16x128xf32> to vector<16x128xf32>
    %397 = vector.broadcast %394 : f32 to vector<16x128xf32>
    %398 = arith.mulf %397, %396 : vector<16x128xf32>
    %399 = arith.addf %379, %398 : vector<16x128xf32>
    %c57 = arith.constant 57 : index
    %400 = memref.load %arg1[%c57] : memref<96xf32, #tpu.memory_space<smem>>
    %401 = vector.broadcast %400 : f32 to vector<16x16x128xf32>
    %402 = arith.mulf %401, %18 : vector<16x16x128xf32>
    %c58 = arith.constant 58 : index
    %403 = memref.load %arg1[%c58] : memref<96xf32, #tpu.memory_space<smem>>
    %404 = vector.broadcast %403 : f32 to vector<16x16x128xf32>
    %405 = arith.mulf %404, %19 : vector<16x16x128xf32>
    %406 = arith.addf %402, %405 : vector<16x16x128xf32>
    %c59 = arith.constant 59 : index
    %407 = memref.load %arg1[%c59] : memref<96xf32, #tpu.memory_space<smem>>
    %408 = vector.broadcast %407 : f32 to vector<16x16x128xf32>
    %409 = arith.mulf %408, %20 : vector<16x16x128xf32>
    %410 = arith.addf %406, %409 : vector<16x16x128xf32>
    %c19_60 = arith.constant 19 : index
    %411 = memref.load %arg2[%c19_60] : memref<32xf32, #tpu.memory_space<smem>>
    %412 = vector.broadcast %411 : f32 to vector<16x16x128xf32>
    %413 = arith.addf %410, %412 : vector<16x16x128xf32>
    %c19_61 = arith.constant 19 : index
    %414 = memref.load %arg3[%c19_61] : memref<32xf32, #tpu.memory_space<smem>>
    %415 = math.tanh %413 : vector<16x16x128xf32>
    %cst_62 = arith.constant dense<0.000000e+00> : vector<16x128xf32>
    %416 = vector.multi_reduction <add>, %415, %cst_62 [0] : vector<16x16x128xf32> to vector<16x128xf32>
    %417 = vector.broadcast %414 : f32 to vector<16x128xf32>
    %418 = arith.mulf %417, %416 : vector<16x128xf32>
    %419 = arith.addf %399, %418 : vector<16x128xf32>
    %c60 = arith.constant 60 : index
    %420 = memref.load %arg1[%c60] : memref<96xf32, #tpu.memory_space<smem>>
    %421 = vector.broadcast %420 : f32 to vector<16x16x128xf32>
    %422 = arith.mulf %421, %18 : vector<16x16x128xf32>
    %c61 = arith.constant 61 : index
    %423 = memref.load %arg1[%c61] : memref<96xf32, #tpu.memory_space<smem>>
    %424 = vector.broadcast %423 : f32 to vector<16x16x128xf32>
    %425 = arith.mulf %424, %19 : vector<16x16x128xf32>
    %426 = arith.addf %422, %425 : vector<16x16x128xf32>
    %c62 = arith.constant 62 : index
    %427 = memref.load %arg1[%c62] : memref<96xf32, #tpu.memory_space<smem>>
    %428 = vector.broadcast %427 : f32 to vector<16x16x128xf32>
    %429 = arith.mulf %428, %20 : vector<16x16x128xf32>
    %430 = arith.addf %426, %429 : vector<16x16x128xf32>
    %c20_63 = arith.constant 20 : index
    %431 = memref.load %arg2[%c20_63] : memref<32xf32, #tpu.memory_space<smem>>
    %432 = vector.broadcast %431 : f32 to vector<16x16x128xf32>
    %433 = arith.addf %430, %432 : vector<16x16x128xf32>
    %c20_64 = arith.constant 20 : index
    %434 = memref.load %arg3[%c20_64] : memref<32xf32, #tpu.memory_space<smem>>
    %435 = math.tanh %433 : vector<16x16x128xf32>
    %cst_65 = arith.constant dense<0.000000e+00> : vector<16x128xf32>
    %436 = vector.multi_reduction <add>, %435, %cst_65 [0] : vector<16x16x128xf32> to vector<16x128xf32>
    %437 = vector.broadcast %434 : f32 to vector<16x128xf32>
    %438 = arith.mulf %437, %436 : vector<16x128xf32>
    %439 = arith.addf %419, %438 : vector<16x128xf32>
    %c63 = arith.constant 63 : index
    %440 = memref.load %arg1[%c63] : memref<96xf32, #tpu.memory_space<smem>>
    %441 = vector.broadcast %440 : f32 to vector<16x16x128xf32>
    %442 = arith.mulf %441, %18 : vector<16x16x128xf32>
    %c64 = arith.constant 64 : index
    %443 = memref.load %arg1[%c64] : memref<96xf32, #tpu.memory_space<smem>>
    %444 = vector.broadcast %443 : f32 to vector<16x16x128xf32>
    %445 = arith.mulf %444, %19 : vector<16x16x128xf32>
    %446 = arith.addf %442, %445 : vector<16x16x128xf32>
    %c65 = arith.constant 65 : index
    %447 = memref.load %arg1[%c65] : memref<96xf32, #tpu.memory_space<smem>>
    %448 = vector.broadcast %447 : f32 to vector<16x16x128xf32>
    %449 = arith.mulf %448, %20 : vector<16x16x128xf32>
    %450 = arith.addf %446, %449 : vector<16x16x128xf32>
    %c21_66 = arith.constant 21 : index
    %451 = memref.load %arg2[%c21_66] : memref<32xf32, #tpu.memory_space<smem>>
    %452 = vector.broadcast %451 : f32 to vector<16x16x128xf32>
    %453 = arith.addf %450, %452 : vector<16x16x128xf32>
    %c21_67 = arith.constant 21 : index
    %454 = memref.load %arg3[%c21_67] : memref<32xf32, #tpu.memory_space<smem>>
    %455 = math.tanh %453 : vector<16x16x128xf32>
    %cst_68 = arith.constant dense<0.000000e+00> : vector<16x128xf32>
    %456 = vector.multi_reduction <add>, %455, %cst_68 [0] : vector<16x16x128xf32> to vector<16x128xf32>
    %457 = vector.broadcast %454 : f32 to vector<16x128xf32>
    %458 = arith.mulf %457, %456 : vector<16x128xf32>
    %459 = arith.addf %439, %458 : vector<16x128xf32>
    %c66 = arith.constant 66 : index
    %460 = memref.load %arg1[%c66] : memref<96xf32, #tpu.memory_space<smem>>
    %461 = vector.broadcast %460 : f32 to vector<16x16x128xf32>
    %462 = arith.mulf %461, %18 : vector<16x16x128xf32>
    %c67 = arith.constant 67 : index
    %463 = memref.load %arg1[%c67] : memref<96xf32, #tpu.memory_space<smem>>
    %464 = vector.broadcast %463 : f32 to vector<16x16x128xf32>
    %465 = arith.mulf %464, %19 : vector<16x16x128xf32>
    %466 = arith.addf %462, %465 : vector<16x16x128xf32>
    %c68 = arith.constant 68 : index
    %467 = memref.load %arg1[%c68] : memref<96xf32, #tpu.memory_space<smem>>
    %468 = vector.broadcast %467 : f32 to vector<16x16x128xf32>
    %469 = arith.mulf %468, %20 : vector<16x16x128xf32>
    %470 = arith.addf %466, %469 : vector<16x16x128xf32>
    %c22_69 = arith.constant 22 : index
    %471 = memref.load %arg2[%c22_69] : memref<32xf32, #tpu.memory_space<smem>>
    %472 = vector.broadcast %471 : f32 to vector<16x16x128xf32>
    %473 = arith.addf %470, %472 : vector<16x16x128xf32>
    %c22_70 = arith.constant 22 : index
    %474 = memref.load %arg3[%c22_70] : memref<32xf32, #tpu.memory_space<smem>>
    %475 = math.tanh %473 : vector<16x16x128xf32>
    %cst_71 = arith.constant dense<0.000000e+00> : vector<16x128xf32>
    %476 = vector.multi_reduction <add>, %475, %cst_71 [0] : vector<16x16x128xf32> to vector<16x128xf32>
    %477 = vector.broadcast %474 : f32 to vector<16x128xf32>
    %478 = arith.mulf %477, %476 : vector<16x128xf32>
    %479 = arith.addf %459, %478 : vector<16x128xf32>
    %c69 = arith.constant 69 : index
    %480 = memref.load %arg1[%c69] : memref<96xf32, #tpu.memory_space<smem>>
    %481 = vector.broadcast %480 : f32 to vector<16x16x128xf32>
    %482 = arith.mulf %481, %18 : vector<16x16x128xf32>
    %c70 = arith.constant 70 : index
    %483 = memref.load %arg1[%c70] : memref<96xf32, #tpu.memory_space<smem>>
    %484 = vector.broadcast %483 : f32 to vector<16x16x128xf32>
    %485 = arith.mulf %484, %19 : vector<16x16x128xf32>
    %486 = arith.addf %482, %485 : vector<16x16x128xf32>
    %c71 = arith.constant 71 : index
    %487 = memref.load %arg1[%c71] : memref<96xf32, #tpu.memory_space<smem>>
    %488 = vector.broadcast %487 : f32 to vector<16x16x128xf32>
    %489 = arith.mulf %488, %20 : vector<16x16x128xf32>
    %490 = arith.addf %486, %489 : vector<16x16x128xf32>
    %c23_72 = arith.constant 23 : index
    %491 = memref.load %arg2[%c23_72] : memref<32xf32, #tpu.memory_space<smem>>
    %492 = vector.broadcast %491 : f32 to vector<16x16x128xf32>
    %493 = arith.addf %490, %492 : vector<16x16x128xf32>
    %c23_73 = arith.constant 23 : index
    %494 = memref.load %arg3[%c23_73] : memref<32xf32, #tpu.memory_space<smem>>
    %495 = math.tanh %493 : vector<16x16x128xf32>
    %cst_74 = arith.constant dense<0.000000e+00> : vector<16x128xf32>
    %496 = vector.multi_reduction <add>, %495, %cst_74 [0] : vector<16x16x128xf32> to vector<16x128xf32>
    %497 = vector.broadcast %494 : f32 to vector<16x128xf32>
    %498 = arith.mulf %497, %496 : vector<16x128xf32>
    %499 = arith.addf %479, %498 : vector<16x128xf32>
    %c72 = arith.constant 72 : index
    %500 = memref.load %arg1[%c72] : memref<96xf32, #tpu.memory_space<smem>>
    %501 = vector.broadcast %500 : f32 to vector<16x16x128xf32>
    %502 = arith.mulf %501, %18 : vector<16x16x128xf32>
    %c73 = arith.constant 73 : index
    %503 = memref.load %arg1[%c73] : memref<96xf32, #tpu.memory_space<smem>>
    %504 = vector.broadcast %503 : f32 to vector<16x16x128xf32>
    %505 = arith.mulf %504, %19 : vector<16x16x128xf32>
    %506 = arith.addf %502, %505 : vector<16x16x128xf32>
    %c74 = arith.constant 74 : index
    %507 = memref.load %arg1[%c74] : memref<96xf32, #tpu.memory_space<smem>>
    %508 = vector.broadcast %507 : f32 to vector<16x16x128xf32>
    %509 = arith.mulf %508, %20 : vector<16x16x128xf32>
    %510 = arith.addf %506, %509 : vector<16x16x128xf32>
    %c24_75 = arith.constant 24 : index
    %511 = memref.load %arg2[%c24_75] : memref<32xf32, #tpu.memory_space<smem>>
    %512 = vector.broadcast %511 : f32 to vector<16x16x128xf32>
    %513 = arith.addf %510, %512 : vector<16x16x128xf32>
    %c24_76 = arith.constant 24 : index
    %514 = memref.load %arg3[%c24_76] : memref<32xf32, #tpu.memory_space<smem>>
    %515 = math.tanh %513 : vector<16x16x128xf32>
    %cst_77 = arith.constant dense<0.000000e+00> : vector<16x128xf32>
    %516 = vector.multi_reduction <add>, %515, %cst_77 [0] : vector<16x16x128xf32> to vector<16x128xf32>
    %517 = vector.broadcast %514 : f32 to vector<16x128xf32>
    %518 = arith.mulf %517, %516 : vector<16x128xf32>
    %519 = arith.addf %499, %518 : vector<16x128xf32>
    %c75 = arith.constant 75 : index
    %520 = memref.load %arg1[%c75] : memref<96xf32, #tpu.memory_space<smem>>
    %521 = vector.broadcast %520 : f32 to vector<16x16x128xf32>
    %522 = arith.mulf %521, %18 : vector<16x16x128xf32>
    %c76 = arith.constant 76 : index
    %523 = memref.load %arg1[%c76] : memref<96xf32, #tpu.memory_space<smem>>
    %524 = vector.broadcast %523 : f32 to vector<16x16x128xf32>
    %525 = arith.mulf %524, %19 : vector<16x16x128xf32>
    %526 = arith.addf %522, %525 : vector<16x16x128xf32>
    %c77 = arith.constant 77 : index
    %527 = memref.load %arg1[%c77] : memref<96xf32, #tpu.memory_space<smem>>
    %528 = vector.broadcast %527 : f32 to vector<16x16x128xf32>
    %529 = arith.mulf %528, %20 : vector<16x16x128xf32>
    %530 = arith.addf %526, %529 : vector<16x16x128xf32>
    %c25_78 = arith.constant 25 : index
    %531 = memref.load %arg2[%c25_78] : memref<32xf32, #tpu.memory_space<smem>>
    %532 = vector.broadcast %531 : f32 to vector<16x16x128xf32>
    %533 = arith.addf %530, %532 : vector<16x16x128xf32>
    %c25_79 = arith.constant 25 : index
    %534 = memref.load %arg3[%c25_79] : memref<32xf32, #tpu.memory_space<smem>>
    %535 = math.tanh %533 : vector<16x16x128xf32>
    %cst_80 = arith.constant dense<0.000000e+00> : vector<16x128xf32>
    %536 = vector.multi_reduction <add>, %535, %cst_80 [0] : vector<16x16x128xf32> to vector<16x128xf32>
    %537 = vector.broadcast %534 : f32 to vector<16x128xf32>
    %538 = arith.mulf %537, %536 : vector<16x128xf32>
    %539 = arith.addf %519, %538 : vector<16x128xf32>
    %c78 = arith.constant 78 : index
    %540 = memref.load %arg1[%c78] : memref<96xf32, #tpu.memory_space<smem>>
    %541 = vector.broadcast %540 : f32 to vector<16x16x128xf32>
    %542 = arith.mulf %541, %18 : vector<16x16x128xf32>
    %c79 = arith.constant 79 : index
    %543 = memref.load %arg1[%c79] : memref<96xf32, #tpu.memory_space<smem>>
    %544 = vector.broadcast %543 : f32 to vector<16x16x128xf32>
    %545 = arith.mulf %544, %19 : vector<16x16x128xf32>
    %546 = arith.addf %542, %545 : vector<16x16x128xf32>
    %c80 = arith.constant 80 : index
    %547 = memref.load %arg1[%c80] : memref<96xf32, #tpu.memory_space<smem>>
    %548 = vector.broadcast %547 : f32 to vector<16x16x128xf32>
    %549 = arith.mulf %548, %20 : vector<16x16x128xf32>
    %550 = arith.addf %546, %549 : vector<16x16x128xf32>
    %c26_81 = arith.constant 26 : index
    %551 = memref.load %arg2[%c26_81] : memref<32xf32, #tpu.memory_space<smem>>
    %552 = vector.broadcast %551 : f32 to vector<16x16x128xf32>
    %553 = arith.addf %550, %552 : vector<16x16x128xf32>
    %c26_82 = arith.constant 26 : index
    %554 = memref.load %arg3[%c26_82] : memref<32xf32, #tpu.memory_space<smem>>
    %555 = math.tanh %553 : vector<16x16x128xf32>
    %cst_83 = arith.constant dense<0.000000e+00> : vector<16x128xf32>
    %556 = vector.multi_reduction <add>, %555, %cst_83 [0] : vector<16x16x128xf32> to vector<16x128xf32>
    %557 = vector.broadcast %554 : f32 to vector<16x128xf32>
    %558 = arith.mulf %557, %556 : vector<16x128xf32>
    %559 = arith.addf %539, %558 : vector<16x128xf32>
    %c81 = arith.constant 81 : index
    %560 = memref.load %arg1[%c81] : memref<96xf32, #tpu.memory_space<smem>>
    %561 = vector.broadcast %560 : f32 to vector<16x16x128xf32>
    %562 = arith.mulf %561, %18 : vector<16x16x128xf32>
    %c82 = arith.constant 82 : index
    %563 = memref.load %arg1[%c82] : memref<96xf32, #tpu.memory_space<smem>>
    %564 = vector.broadcast %563 : f32 to vector<16x16x128xf32>
    %565 = arith.mulf %564, %19 : vector<16x16x128xf32>
    %566 = arith.addf %562, %565 : vector<16x16x128xf32>
    %c83 = arith.constant 83 : index
    %567 = memref.load %arg1[%c83] : memref<96xf32, #tpu.memory_space<smem>>
    %568 = vector.broadcast %567 : f32 to vector<16x16x128xf32>
    %569 = arith.mulf %568, %20 : vector<16x16x128xf32>
    %570 = arith.addf %566, %569 : vector<16x16x128xf32>
    %c27_84 = arith.constant 27 : index
    %571 = memref.load %arg2[%c27_84] : memref<32xf32, #tpu.memory_space<smem>>
    %572 = vector.broadcast %571 : f32 to vector<16x16x128xf32>
    %573 = arith.addf %570, %572 : vector<16x16x128xf32>
    %c27_85 = arith.constant 27 : index
    %574 = memref.load %arg3[%c27_85] : memref<32xf32, #tpu.memory_space<smem>>
    %575 = math.tanh %573 : vector<16x16x128xf32>
    %cst_86 = arith.constant dense<0.000000e+00> : vector<16x128xf32>
    %576 = vector.multi_reduction <add>, %575, %cst_86 [0] : vector<16x16x128xf32> to vector<16x128xf32>
    %577 = vector.broadcast %574 : f32 to vector<16x128xf32>
    %578 = arith.mulf %577, %576 : vector<16x128xf32>
    %579 = arith.addf %559, %578 : vector<16x128xf32>
    %c84 = arith.constant 84 : index
    %580 = memref.load %arg1[%c84] : memref<96xf32, #tpu.memory_space<smem>>
    %581 = vector.broadcast %580 : f32 to vector<16x16x128xf32>
    %582 = arith.mulf %581, %18 : vector<16x16x128xf32>
    %c85 = arith.constant 85 : index
    %583 = memref.load %arg1[%c85] : memref<96xf32, #tpu.memory_space<smem>>
    %584 = vector.broadcast %583 : f32 to vector<16x16x128xf32>
    %585 = arith.mulf %584, %19 : vector<16x16x128xf32>
    %586 = arith.addf %582, %585 : vector<16x16x128xf32>
    %c86 = arith.constant 86 : index
    %587 = memref.load %arg1[%c86] : memref<96xf32, #tpu.memory_space<smem>>
    %588 = vector.broadcast %587 : f32 to vector<16x16x128xf32>
    %589 = arith.mulf %588, %20 : vector<16x16x128xf32>
    %590 = arith.addf %586, %589 : vector<16x16x128xf32>
    %c28_87 = arith.constant 28 : index
    %591 = memref.load %arg2[%c28_87] : memref<32xf32, #tpu.memory_space<smem>>
    %592 = vector.broadcast %591 : f32 to vector<16x16x128xf32>
    %593 = arith.addf %590, %592 : vector<16x16x128xf32>
    %c28_88 = arith.constant 28 : index
    %594 = memref.load %arg3[%c28_88] : memref<32xf32, #tpu.memory_space<smem>>
    %595 = math.tanh %593 : vector<16x16x128xf32>
    %cst_89 = arith.constant dense<0.000000e+00> : vector<16x128xf32>
    %596 = vector.multi_reduction <add>, %595, %cst_89 [0] : vector<16x16x128xf32> to vector<16x128xf32>
    %597 = vector.broadcast %594 : f32 to vector<16x128xf32>
    %598 = arith.mulf %597, %596 : vector<16x128xf32>
    %599 = arith.addf %579, %598 : vector<16x128xf32>
    %c87 = arith.constant 87 : index
    %600 = memref.load %arg1[%c87] : memref<96xf32, #tpu.memory_space<smem>>
    %601 = vector.broadcast %600 : f32 to vector<16x16x128xf32>
    %602 = arith.mulf %601, %18 : vector<16x16x128xf32>
    %c88 = arith.constant 88 : index
    %603 = memref.load %arg1[%c88] : memref<96xf32, #tpu.memory_space<smem>>
    %604 = vector.broadcast %603 : f32 to vector<16x16x128xf32>
    %605 = arith.mulf %604, %19 : vector<16x16x128xf32>
    %606 = arith.addf %602, %605 : vector<16x16x128xf32>
    %c89 = arith.constant 89 : index
    %607 = memref.load %arg1[%c89] : memref<96xf32, #tpu.memory_space<smem>>
    %608 = vector.broadcast %607 : f32 to vector<16x16x128xf32>
    %609 = arith.mulf %608, %20 : vector<16x16x128xf32>
    %610 = arith.addf %606, %609 : vector<16x16x128xf32>
    %c29_90 = arith.constant 29 : index
    %611 = memref.load %arg2[%c29_90] : memref<32xf32, #tpu.memory_space<smem>>
    %612 = vector.broadcast %611 : f32 to vector<16x16x128xf32>
    %613 = arith.addf %610, %612 : vector<16x16x128xf32>
    %c29_91 = arith.constant 29 : index
    %614 = memref.load %arg3[%c29_91] : memref<32xf32, #tpu.memory_space<smem>>
    %615 = math.tanh %613 : vector<16x16x128xf32>
    %cst_92 = arith.constant dense<0.000000e+00> : vector<16x128xf32>
    %616 = vector.multi_reduction <add>, %615, %cst_92 [0] : vector<16x16x128xf32> to vector<16x128xf32>
    %617 = vector.broadcast %614 : f32 to vector<16x128xf32>
    %618 = arith.mulf %617, %616 : vector<16x128xf32>
    %619 = arith.addf %599, %618 : vector<16x128xf32>
    %c90 = arith.constant 90 : index
    %620 = memref.load %arg1[%c90] : memref<96xf32, #tpu.memory_space<smem>>
    %621 = vector.broadcast %620 : f32 to vector<16x16x128xf32>
    %622 = arith.mulf %621, %18 : vector<16x16x128xf32>
    %c91 = arith.constant 91 : index
    %623 = memref.load %arg1[%c91] : memref<96xf32, #tpu.memory_space<smem>>
    %624 = vector.broadcast %623 : f32 to vector<16x16x128xf32>
    %625 = arith.mulf %624, %19 : vector<16x16x128xf32>
    %626 = arith.addf %622, %625 : vector<16x16x128xf32>
    %c92 = arith.constant 92 : index
    %627 = memref.load %arg1[%c92] : memref<96xf32, #tpu.memory_space<smem>>
    %628 = vector.broadcast %627 : f32 to vector<16x16x128xf32>
    %629 = arith.mulf %628, %20 : vector<16x16x128xf32>
    %630 = arith.addf %626, %629 : vector<16x16x128xf32>
    %c30_93 = arith.constant 30 : index
    %631 = memref.load %arg2[%c30_93] : memref<32xf32, #tpu.memory_space<smem>>
    %632 = vector.broadcast %631 : f32 to vector<16x16x128xf32>
    %633 = arith.addf %630, %632 : vector<16x16x128xf32>
    %c30_94 = arith.constant 30 : index
    %634 = memref.load %arg3[%c30_94] : memref<32xf32, #tpu.memory_space<smem>>
    %635 = math.tanh %633 : vector<16x16x128xf32>
    %cst_95 = arith.constant dense<0.000000e+00> : vector<16x128xf32>
    %636 = vector.multi_reduction <add>, %635, %cst_95 [0] : vector<16x16x128xf32> to vector<16x128xf32>
    %637 = vector.broadcast %634 : f32 to vector<16x128xf32>
    %638 = arith.mulf %637, %636 : vector<16x128xf32>
    %639 = arith.addf %619, %638 : vector<16x128xf32>
    %c93 = arith.constant 93 : index
    %640 = memref.load %arg1[%c93] : memref<96xf32, #tpu.memory_space<smem>>
    %641 = vector.broadcast %640 : f32 to vector<16x16x128xf32>
    %642 = arith.mulf %641, %18 : vector<16x16x128xf32>
    %c94 = arith.constant 94 : index
    %643 = memref.load %arg1[%c94] : memref<96xf32, #tpu.memory_space<smem>>
    %644 = vector.broadcast %643 : f32 to vector<16x16x128xf32>
    %645 = arith.mulf %644, %19 : vector<16x16x128xf32>
    %646 = arith.addf %642, %645 : vector<16x16x128xf32>
    %c95 = arith.constant 95 : index
    %647 = memref.load %arg1[%c95] : memref<96xf32, #tpu.memory_space<smem>>
    %648 = vector.broadcast %647 : f32 to vector<16x16x128xf32>
    %649 = arith.mulf %648, %20 : vector<16x16x128xf32>
    %650 = arith.addf %646, %649 : vector<16x16x128xf32>
    %c31_96 = arith.constant 31 : index
    %651 = memref.load %arg2[%c31_96] : memref<32xf32, #tpu.memory_space<smem>>
    %652 = vector.broadcast %651 : f32 to vector<16x16x128xf32>
    %653 = arith.addf %650, %652 : vector<16x16x128xf32>
    %c31_97 = arith.constant 31 : index
    %654 = memref.load %arg3[%c31_97] : memref<32xf32, #tpu.memory_space<smem>>
    %655 = math.tanh %653 : vector<16x16x128xf32>
    %cst_98 = arith.constant dense<0.000000e+00> : vector<16x128xf32>
    %656 = vector.multi_reduction <add>, %655, %cst_98 [0] : vector<16x16x128xf32> to vector<16x128xf32>
    %657 = vector.broadcast %654 : f32 to vector<16x128xf32>
    %658 = arith.mulf %657, %656 : vector<16x128xf32>
    %659 = arith.addf %639, %658 : vector<16x128xf32>
    %cst_99 = arith.constant dense<0.000000e+00> : vector<128xf32>
    %660 = vector.multi_reduction <add>, %659, %cst_99 [0] : vector<16x128xf32> to vector<128xf32>
    %661 = vector.shape_cast %660 : vector<128xf32> to vector<1x128xf32>
    %c0_100 = arith.constant 0 : index
    %662 = memref.load %arg4[%c0_100] : memref<1xf32, #tpu.memory_space<smem>>
    %cst_101 = arith.constant 2.560000e+02 : f32
    %663 = arith.mulf %cst_101, %662 : f32
    %664 = vector.broadcast %663 : f32 to vector<1x128xf32>
    %665 = arith.addf %661, %664 : vector<1x128xf32>
    %666 = vector.shape_cast %665 : vector<1x128xf32> to vector<1x1x128xf32>
    %c0_102 = arith.constant 0 : index
    %c0_103 = arith.constant 0 : index
    %c0_104 = arith.constant 0 : index
    %667 = vector.load %arg6[%c0_102, %c0_103, %c0_104] : memref<1x1x128xf32, #tpu.memory_space<vmem>>, vector<1x1x128xf32>
    tpu.vector_store %arg6[%c0_102, %c0_103, %c0_104], %666 {strides = array<i32>} : memref<1x1x128xf32, #tpu.memory_space<vmem>>, vector<1x1x128xf32>,
    return
  }
  func.func @transform_0(%arg0: i32) -> i32 {
    %c0_i32 = arith.constant 0 : i32
    %c0_i32_0 = arith.constant 0 : i32
    return %c0_i32 : i32
  }
  func.func @transform_1(%arg0: i32) -> i32 {
    %c0_i32 = arith.constant 0 : i32
    %c0_i32_0 = arith.constant 0 : i32
    return %c0_i32 : i32
  }
  func.func @transform_2(%arg0: i32) -> i32 {
    %c0_i32 = arith.constant 0 : i32
    %c0_i32_0 = arith.constant 0 : i32
    return %c0_i32 : i32
  }
  func.func @transform_3(%arg0: i32) -> i32 {
    %c0_i32 = arith.constant 0 : i32
    %c0_i32_0 = arith.constant 0 : i32
    return %c0_i32 : i32
  }
  func.func @transform_4(%arg0: i32) -> (i32, i32, i32) {
    %c0_i32 = arith.constant 0 : i32
    %c0_i32_0 = arith.constant 0 : i32
    %c0_i32_1 = arith.constant 0 : i32
    return %c0_i32, %c0_i32_0, %arg0 : i32, i32, i32
  }
  func.func @transform_5(%arg0: i32) -> (i32, i32, i32) {
    %c0_i32 = arith.constant 0 : i32
    %c0_i32_0 = arith.constant 0 : i32
    %c0_i32_1 = arith.constant 0 : i32
    return %arg0, %c0_i32, %c0_i32_0 : i32, i32, i32
  }
}

</mosaic_0001>

<llo_original>
// kernel: funct2_forward.1
$region0: #{funct2_forward.1}
  #allocation0 [shape = 'u32[]', space=smem, size = 0x4, offset = 0x4, fixed_abs, tag = 'smem constant byte address 0x4 - core index']
  #allocation1 [shape = 'u32[144,128]{1,0:T(1,128)}', space=vmem, size = 0x12000, scoped, tag = 'internal scratch']
  #allocation2 [shape = 'f32[1]{0:T(128)S(6)}', space=smem, size = 0x200, scoped, tag = 'scoped memory for funct2_forward.1']
  %s0 = inlined_call_operand.vmem [shape: f32[96], index: 0, kind: input, shape index: {}]
  %s1 = inlined_call_operand.vmem [shape: f32[32], index: 1, kind: input, shape index: {}]
  %s2 = inlined_call_operand.vmem [shape: f32[32], index: 2, kind: input, shape index: {}]
  %s3 = inlined_call_operand.<no memory space> [shape: f32[1], index: 3, kind: input, shape index: {}]
  %s4 = inlined_call_operand.vmem [shape: f32[16,16,128], index: 4, kind: input, shape index: {}]
  %s5 = inlined_call_operand.vmem [shape: f32[1,1,128], index: 5, kind: output, shape index: {}]
  %s6 = sld [smem:[#allocation0]]
  $region42: #{funct2_forward.1} parent=0
    _
  %s8 = ssub.s32 1, %s6
  %s9 = scalar_select 0, %s8, %s6
  %10 = sst [smem:[#allocation2]] %s3
  $region1: #{funct2_forward.1} parent=0
    #allocation3 [shape = 'u8[512]{0}', space=smem, size = 0x200, scoped, tag = 'input window, operand 0, single buffered']
    #allocation4 [shape = 's32[1]{0}', space=sflag, size = 0x4, scoped, tag = 'scoped memory for funct2_forward.1']
    #allocation5 [shape = 'u8[512]{0}', space=smem, size = 0x200, scoped, tag = 'input window, operand 1, single buffered']
    #allocation6 [shape = 's32[1]{0}', space=sflag, size = 0x4, scoped, tag = 'scoped memory for funct2_forward.1']
    #allocation7 [shape = 'u8[512]{0}', space=smem, size = 0x200, scoped, tag = 'input window, operand 2, single buffered']
    %11 = vsyncpa [#allocation4], 0
    %12 = vsyncpa [#allocation6], 0
    // Predicated region
    $region2: #{funct2_forward.1} parent=1 // pred_check
      _
    $region3: #{funct2_forward.1} parent=1 // pred_check_branch
      %14 = sbr.rel (0) target = $region5
    $region4: #{funct2_forward.1} parent=1 // pred_region
      %s16 = ssub.s32 16, 16
      %17 = vsyncadd [#allocation4], %s16
      %s19 = sshll.u32 %s0, 4
      %s20 = int_to_ptr.vmem [resolvable:$true] %s19
      %22 = dma.vmem_to_smem %s20, 16, [#allocation3], [#allocation4]
    $region5: #{funct2_forward.1} parent=1 // pred_fallthru
      _
    // Predicated region
    $region6: #{funct2_forward.1} parent=1 // pred_check
      _
    $region7: #{funct2_forward.1} parent=1 // pred_check_branch
      %24 = sbr.rel (0) target = $region9
    $region8: #{funct2_forward.1} parent=1 // pred_region
      %s26 = ssub.s32 16, 16
      %27 = vsyncadd [#allocation6], %s26
      %s29 = sshll.u32 %s1, 4
      %s30 = int_to_ptr.vmem [resolvable:$true] %s29
      %32 = dma.vmem_to_smem %s30, 16, [#allocation5], [#allocation6]
    $region9: #{funct2_forward.1} parent=1 // pred_fallthru
      _
    // Predicated region
    $region10: #{funct2_forward.1} parent=1 // pred_check
      _
    $region11: #{funct2_forward.1} parent=1 // pred_check_branch
      %34 = sbr.rel (0) target = $region13
    $region12: #{funct2_forward.1} parent=1 // pred_region
      %s36 = ssub.s32 16, 16
      %37 = vsyncadd [#allocation6], %s36
      %s39 = sshll.u32 %s2, 4
      %s40 = int_to_ptr.vmem [resolvable:$true] %s39
      %42 = dma.vmem_to_smem %s40, 16, [#allocation7], [#allocation6]
    $region13: #{funct2_forward.1} parent=1 // pred_fallthru
      _
    // Predicated region
    $region14: #{funct2_forward.1} parent=1 // pred_check
      _
    $region15: #{funct2_forward.1} parent=1 // pred_check_branch
      %44 = sbr.rel (0) target = $region17
    $region16: #{funct2_forward.1} parent=1 // pred_region
      _
    $region17: #{funct2_forward.1} parent=1 // pred_fallthru
      _
    // Predicated region
    $region18: #{funct2_forward.1} parent=1 // pred_check
      _
    $region19: #{funct2_forward.1} parent=1 // pred_check_branch
      %46 = sbr.rel (0) target = $region21
    $region20: #{funct2_forward.1} parent=1 // pred_region
      _
    $region21: #{funct2_forward.1} parent=1 // pred_fallthru
      _
    // Predicated region
    $region22: #{funct2_forward.1} parent=1 // pred_check
      _
    $region23: #{funct2_forward.1} parent=1 // pred_check_branch
      %48 = sbr.rel (0) target = $region25
    $region24: #{funct2_forward.1} parent=1 // pred_region
      %49 = dma.done [#allocation4], 16
    $region25: #{funct2_forward.1} parent=1 // pred_fallthru
      _
    // Predicated region
    $region26: #{funct2_forward.1} parent=1 // pred_check
      _
    $region27: #{funct2_forward.1} parent=1 // pred_check_branch
      %51 = sbr.rel (0) target = $region29
    $region28: #{funct2_forward.1} parent=1 // pred_region
      %52 = dma.done [#allocation6], 16
    $region29: #{funct2_forward.1} parent=1 // pred_fallthru
      _
    // Predicated region
    $region30: #{funct2_forward.1} parent=1 // pred_check
      _
    $region31: #{funct2_forward.1} parent=1 // pred_check_branch
      %54 = sbr.rel (0) target = $region33
    $region32: #{funct2_forward.1} parent=1 // pred_region
      %55 = dma.done [#allocation6], 16
    $region33: #{funct2_forward.1} parent=1 // pred_fallthru
      _
    %56 = sfence
    %v57 = vld [vmem:[%s4] sm:$0xff]
    %v58 = vld [vmem:[%s4 + $0x8] sm:$0xff]
    %v59 = vld [vmem:[%s4 + $0x10] sm:$0xff]
    %v60 = vld [vmem:[%s4 + $0x18] sm:$0xff]
    %v61 = vld [vmem:[%s4 + $0x20] sm:$0xff]
    %v62 = vld [vmem:[%s4 + $0x28] sm:$0xff]
    %v63 = vld [vmem:[%s4 + $0x30] sm:$0xff]
    %v64 = vld [vmem:[%s4 + $0x38] sm:$0xff]
    %v65 = vld [vmem:[%s4 + $0x40] sm:$0xff]
    %v66 = vld [vmem:[%s4 + $0x48] sm:$0xff]
    %v67 = vld [vmem:[%s4 + $0x50] sm:$0xff]
    %v68 = vld [vmem:[%s4 + $0x58] sm:$0xff]
    %v69 = vld [vmem:[%s4 + $0x60] sm:$0xff]
    %v70 = vld [vmem:[%s4 + $0x68] sm:$0xff]
    %v71 = vld [vmem:[%s4 + $0x70] sm:$0xff]
    %v72 = vld [vmem:[%s4 + $0x78] sm:$0xff]
    %v73 = vld [vmem:[%s4 + $0x80] sm:$0xff]
    %v74 = vld [vmem:[%s4 + $0x88] sm:$0xff]
    %v75 = vld [vmem:[%s4 + $0x90] sm:$0xff]
    %v76 = vld [vmem:[%s4 + $0x98] sm:$0xff]
    %v77 = vld [vmem:[%s4 + $0xa0] sm:$0xff]
    %v78 = vld [vmem:[%s4 + $0xa8] sm:$0xff]
    %v79 = vld [vmem:[%s4 + $0xb0] sm:$0xff]
    %v80 = vld [vmem:[%s4 + $0xb8] sm:$0xff]
    %v81 = vld [vmem:[%s4 + $0xc0] sm:$0xff]
    %v82 = vld [vmem:[%s4 + $0xc8] sm:$0xff]
    %v83 = vld [vmem:[%s4 + $0xd0] sm:$0xff]
    %v84 = vld [vmem:[%s4 + $0xd8] sm:$0xff]
    %v85 = vld [vmem:[%s4 + $0xe0] sm:$0xff]
    %v86 = vld [vmem:[%s4 + $0xe8] sm:$0xff]
    %v87 = vld [vmem:[%s4 + $0xf0] sm:$0xff]
    %v88 = vld [vmem:[%s4 + $0xf8] sm:$0xff]
    %v105 = vrot.slane %v58, 7
    %v106 = vrot.slane %v60, 7
    %v107 = vrot.slane %v62, 7
    %v108 = vrot.slane %v64, 7
    %v109 = vrot.slane %v66, 7
    %v110 = vrot.slane %v68, 7
    %v111 = vrot.slane %v70, 7
    %v112 = vrot.slane %v72, 7
    %v113 = vrot.slane %v74, 7
    %v114 = vrot.slane %v76, 7
    %v115 = vrot.slane %v78, 7
    %v116 = vrot.slane %v80, 7
    %v117 = vrot.slane %v82, 7
    %v118 = vrot.slane %v84, 7
    %v119 = vrot.slane %v86, 7
    %v120 = vrot.slane %v88, 7
    %vm153 = vcmask 1040384
    %v154 = vrot.slane %v57, 7
    %v155 = vsel %vm153, %v154, %v105
    %v156 = vrot.slane %v59, 7
    %v157 = vsel %vm153, %v156, %v106
    %v158 = vrot.slane %v61, 7
    %v159 = vsel %vm153, %v158, %v107
    %v160 = vrot.slane %v63, 7
    %v161 = vsel %vm153, %v160, %v108
    %v162 = vrot.slane %v65, 7
    %v163 = vsel %vm153, %v162, %v109
    %v164 = vrot.slane %v67, 7
    %v165 = vsel %vm153, %v164, %v110
    %v166 = vrot.slane %v69, 7
    %v167 = vsel %vm153, %v166, %v111
    %v168 = vrot.slane %v71, 7
    %v169 = vsel %vm153, %v168, %v112
    %v170 = vrot.slane %v73, 7
    %v171 = vsel %vm153, %v170, %v113
    %v172 = vrot.slane %v75, 7
    %v173 = vsel %vm153, %v172, %v114
    %v174 = vrot.slane %v77, 7
    %v175 = vsel %vm153, %v174, %v115
    %v176 = vrot.slane %v79, 7
    %v177 = vsel %vm153, %v176, %v116
    %v178 = vrot.slane %v81, 7
    %v179 = vsel %vm153, %v178, %v117
    %v180 = vrot.slane %v83, 7
    %v181 = vsel %vm153, %v180, %v118
    %v182 = vrot.slane %v85, 7
    %v183 = vsel %vm153, %v182, %v119
    %v184 = vrot.slane %v87, 7
    %v185 = vsel %vm153, %v184, %v120
    %v218 = vsel %vm153, %v105, %v154
    %v219 = vsel %vm153, %v106, %v156
    %v220 = vsel %vm153, %v107, %v158
    %v221 = vsel %vm153, %v108, %v160
    %v222 = vsel %vm153, %v109, %v162
    %v223 = vsel %vm153, %v110, %v164
    %v224 = vsel %vm153, %v111, %v166
    %v225 = vsel %vm153, %v112, %v168
    %v226 = vsel %vm153, %v113, %v170
    %v227 = vsel %vm153, %v114, %v172
    %v228 = vsel %vm153, %v115, %v174
    %v229 = vsel %vm153, %v116, %v176
    %v230 = vsel %vm153, %v117, %v178
    %v231 = vsel %vm153, %v118, %v180
    %v232 = vsel %vm153, %v119, %v182
    %v233 = vsel %vm153, %v120, %v184
    %vm234 = vcmask 1046528
    %v235 = vrot.slane %v57, 1
    %v236 = vrot.slane %v58, 1
    %v237 = vsel %vm234, %v235, %v236
    %v238 = vrot.slane %v59, 1
    %v239 = vrot.slane %v60, 1
    %v240 = vsel %vm234, %v238, %v239
    %v241 = vrot.slane %v61, 1
    %v242 = vrot.slane %v62, 1
    %v243 = vsel %vm234, %v241, %v242
    %v244 = vrot.slane %v63, 1
    %v245 = vrot.slane %v64, 1
    %v246 = vsel %vm234, %v244, %v245
    %v247 = vrot.slane %v65, 1
    %v248 = vrot.slane %v66, 1
    %v249 = vsel %vm234, %v247, %v248
    %v250 = vrot.slane %v67, 1
    %v251 = vrot.slane %v68, 1
    %v252 = vsel %vm234, %v250, %v251
    %v253 = vrot.slane %v69, 1
    %v254 = vrot.slane %v70, 1
    %v255 = vsel %vm234, %v253, %v254
    %v256 = vrot.slane %v71, 1
    %v257 = vrot.slane %v72, 1
    %v258 = vsel %vm234, %v256, %v257
    %v259 = vrot.slane %v73, 1
    %v260 = vrot.slane %v74, 1
    %v261 = vsel %vm234, %v259, %v260
    %v262 = vrot.slane %v75, 1
    %v263 = vrot.slane %v76, 1
    %v264 = vsel %vm234, %v262, %v263
    %v265 = vrot.slane %v77, 1
    %v266 = vrot.slane %v78, 1
    %v267 = vsel %vm234, %v265, %v266
    %v268 = vrot.slane %v79, 1
    %v269 = vrot.slane %v80, 1
    %v270 = vsel %vm234, %v268, %v269
    %v271 = vrot.slane %v81, 1
    %v272 = vrot.slane %v82, 1
    %v273 = vsel %vm234, %v271, %v272
    %v274 = vrot.slane %v83, 1
    %v275 = vrot.slane %v84, 1
    %v276 = vsel %vm234, %v274, %v275
    %v277 = vrot.slane %v85, 1
    %v278 = vrot.slane %v86, 1
    %v279 = vsel %vm234, %v277, %v278
    %v280 = vrot.slane %v87, 1
    %v281 = vrot.slane %v88, 1
    %v282 = vsel %vm234, %v280, %v281
    %v331 = vsel %vm234, %v236, %v235
    %v332 = vsel %vm234, %v239, %v238
    %v333 = vsel %vm234, %v242, %v241
    %v334 = vsel %vm234, %v245, %v244
    %v335 = vsel %vm234, %v248, %v247
    %v336 = vsel %vm234, %v251, %v250
    %v337 = vsel %vm234, %v254, %v253
    %v338 = vsel %vm234, %v257, %v256
    %v339 = vsel %vm234, %v260, %v259
    %v340 = vsel %vm234, %v263, %v262
    %v341 = vsel %vm234, %v266, %v265
    %v342 = vsel %vm234, %v269, %v268
    %v343 = vsel %vm234, %v272, %v271
    %v344 = vsel %vm234, %v275, %v274
    %v345 = vsel %vm234, %v278, %v277
    %v346 = vsel %vm234, %v281, %v280
    %v347 = vadd.f32 %v87, %v59
    %v348 = vadd.f32 %v88, %v60
    %v349 = vadd.f32 %v57, %v61
    %v350 = vadd.f32 %v58, %v62
    %v351 = vadd.f32 %v59, %v63
    %v352 = vadd.f32 %v60, %v64
    %v353 = vadd.f32 %v61, %v65
    %v354 = vadd.f32 %v62, %v66
    %v355 = vadd.f32 %v63, %v67
    %v356 = vadd.f32 %v64, %v68
    %v357 = vadd.f32 %v65, %v69
    %v358 = vadd.f32 %v66, %v70
    %v359 = vadd.f32 %v67, %v71
    %v360 = vadd.f32 %v68, %v72
    %v361 = vadd.f32 %v69, %v73
    %v362 = vadd.f32 %v70, %v74
    %v363 = vadd.f32 %v71, %v75
    %v364 = vadd.f32 %v72, %v76
    %v365 = vadd.f32 %v73, %v77
    %v366 = vadd.f32 %v74, %v78
    %v367 = vadd.f32 %v75, %v79
    %v368 = vadd.f32 %v76, %v80
    %v369 = vadd.f32 %v77, %v81
    %v370 = vadd.f32 %v78, %v82
    %v371 = vadd.f32 %v79, %v83
    %v372 = vadd.f32 %v80, %v84
    %v373 = vadd.f32 %v81, %v85
    %v374 = vadd.f32 %v82, %v86
    %v375 = vadd.f32 %v83, %v87
    %v376 = vadd.f32 %v84, %v88
    %v377 = vadd.f32 %v85, %v57
    %v378 = vadd.f32 %v86, %v58
    %v379 = vadd.f32 %v218, %v237
    %v380 = vadd.f32 %v155, %v331
    %v381 = vadd.f32 %v219, %v240
    %v382 = vadd.f32 %v157, %v332
    %v383 = vadd.f32 %v220, %v243
    %v384 = vadd.f32 %v159, %v333
    %v385 = vadd.f32 %v221, %v246
    %v386 = vadd.f32 %v161, %v334
    %v387 = vadd.f32 %v222, %v249
    %v388 = vadd.f32 %v163, %v335
    %v389 = vadd.f32 %v223, %v252
    %v390 = vadd.f32 %v165, %v336
    %v391 = vadd.f32 %v224, %v255
    %v392 = vadd.f32 %v167, %v337
    %v393 = vadd.f32 %v225, %v258
    %v394 = vadd.f32 %v169, %v338
    %v395 = vadd.f32 %v226, %v261
    %v396 = vadd.f32 %v171, %v339
    %v397 = vadd.f32 %v227, %v264
    %v398 = vadd.f32 %v173, %v340
    %v399 = vadd.f32 %v228, %v267
    %v400 = vadd.f32 %v175, %v341
    %v401 = vadd.f32 %v229, %v270
    %v402 = vadd.f32 %v177, %v342
    %v403 = vadd.f32 %v230, %v273
    %v404 = vadd.f32 %v179, %v343
    %v405 = vadd.f32 %v231, %v276
    %v406 = vadd.f32 %v181, %v344
    %v407 = vadd.f32 %v232, %v279
    %v408 = vadd.f32 %v183, %v345
    %v409 = vadd.f32 %v233, %v282
    %v410 = vadd.f32 %v185, %v346
    %v411 = vadd.f32 %v347, %v379
    %v412 = vadd.f32 %v348, %v380
    %v413 = vadd.f32 %v349, %v381
    %v414 = vadd.f32 %v350, %v382
    %v415 = vadd.f32 %v351, %v383
    %v416 = vadd.f32 %v352, %v384
    %v417 = vadd.f32 %v353, %v385
    %v418 = vadd.f32 %v354, %v386
    %v419 = vadd.f32 %v355, %v387
    %v420 = vadd.f32 %v356, %v388
    %v421 = vadd.f32 %v357, %v389
    %v422 = vadd.f32 %v358, %v390
    %v423 = vadd.f32 %v359, %v391
    %v424 = vadd.f32 %v360, %v392
    %v425 = vadd.f32 %v361, %v393
    %v426 = vadd.f32 %v362, %v394
    %v427 = vadd.f32 %v363, %v395
    %v428 = vadd.f32 %v364, %v396
    %v429 = vadd.f32 %v365, %v397
    %v430 = vadd.f32 %v366, %v398
    %v431 = vadd.f32 %v367, %v399
    %v432 = vadd.f32 %v368, %v400
    %v433 = vadd.f32 %v369, %v401
    %v434 = vadd.f32 %v370, %v402
    %v435 = vadd.f32 %v371, %v403
    %v436 = vadd.f32 %v372, %v404
    %v437 = vadd.f32 %v373, %v405
    %v438 = vadd.f32 %v374, %v406
    %v439 = vadd.f32 %v375, %v407
    %v440 = vadd.f32 %v376, %v408
    %v441 = vadd.f32 %v377, %v409
    %v442 = vadd.f32 %v378, %v410
    %v443 = vmul.f32 %v57, 2.0
    %v444 = vmul.f32 %v58, 2.0
    %v445 = vmul.f32 %v59, 2.0
    %v446 = vmul.f32 %v60, 2.0
    %v447 = vmul.f32 %v61, 2.0
    %v448 = vmul.f32 %v62, 2.0
    %v449 = vmul.f32 %v63, 2.0
    %v450 = vmul.f32 %v64, 2.0
    %v451 = vmul.f32 %v65, 2.0
    %v452 = vmul.f32 %v66, 2.0
    %v453 = vmul.f32 %v67, 2.0
    %v454 = vmul.f32 %v68, 2.0
    %v455 = vmul.f32 %v69, 2.0
    %v456 = vmul.f32 %v70, 2.0
    %v457 = vmul.f32 %v71, 2.0
    %v458 = vmul.f32 %v72, 2.0
    %v459 = vmul.f32 %v73, 2.0
    %v460 = vmul.f32 %v74, 2.0
    %v461 = vmul.f32 %v75, 2.0
    %v462 = vmul.f32 %v76, 2.0
    %v463 = vmul.f32 %v77, 2.0
    %v464 = vmul.f32 %v78, 2.0
    %v465 = vmul.f32 %v79, 2.0
    %v466 = vmul.f32 %v80, 2.0
    %v467 = vmul.f32 %v81, 2.0
    %v468 = vmul.f32 %v82, 2.0
    %v469 = vmul.f32 %v83, 2.0
    %v470 = vmul.f32 %v84, 2.0
    %v471 = vmul.f32 %v85, 2.0
    %v472 = vmul.f32 %v86, 2.0
    %v473 = vmul.f32 %v87, 2.0
    %v474 = vmul.f32 %v88, 2.0
    %v475 = vmul.f32 %v57, %v57
    %v476 = vmul.f32 %v58, %v58
    %v477 = vmul.f32 %v59, %v59
    %v478 = vmul.f32 %v60, %v60
    %v479 = vmul.f32 %v61, %v61
    %v480 = vmul.f32 %v62, %v62
    %v481 = vmul.f32 %v63, %v63
    %v482 = vmul.f32 %v64, %v64
    %v483 = vmul.f32 %v65, %v65
    %v484 = vmul.f32 %v66, %v66
    %v485 = vmul.f32 %v67, %v67
    %v486 = vmul.f32 %v68, %v68
    %v487 = vmul.f32 %v69, %v69
    %v488 = vmul.f32 %v70, %v70
    %v489 = vmul.f32 %v71, %v71
    %v490 = vmul.f32 %v72, %v72
    %v491 = vmul.f32 %v73, %v73
    %v492 = vmul.f32 %v74, %v74
    %v493 = vmul.f32 %v75, %v75
    %v494 = vmul.f32 %v76, %v76
    %v495 = vmul.f32 %v77, %v77
    %v496 = vmul.f32 %v78, %v78
    %v497 = vmul.f32 %v79, %v79
    %v498 = vmul.f32 %v80, %v80
    %v499 = vmul.f32 %v81, %v81
    %v500 = vmul.f32 %v82, %v82
    %v501 = vmul.f32 %v83, %v83
    %v502 = vmul.f32 %v84, %v84
    %v503 = vmul.f32 %v85, %v85
    %v504 = vmul.f32 %v86, %v86
    %v505 = vmul.f32 %v87, %v87
    %v506 = vmul.f32 %v88, %v88
    %v507 = vmul.f32 %v411, %v57
    %v508 = vmul.f32 %v412, %v58
    %v509 = vmul.f32 %v413, %v59
    %v510 = vmul.f32 %v414, %v60
    %v511 = vmul.f32 %v415, %v61
    %v512 = vmul.f32 %v416, %v62
    %v513 = vmul.f32 %v417, %v63
    %v514 = vmul.f32 %v418, %v64
    %v515 = vmul.f32 %v419, %v65
    %v516 = vmul.f32 %v420, %v66
    %v517 = vmul.f32 %v421, %v67
    %v518 = vmul.f32 %v422, %v68
    %v519 = vmul.f32 %v423, %v69
    %v520 = vmul.f32 %v424, %v70
    %v521 = vmul.f32 %v425, %v71
    %v522 = vmul.f32 %v426, %v72
    %v523 = vmul.f32 %v427, %v73
    %v524 = vmul.f32 %v428, %v74
    %v525 = vmul.f32 %v429, %v75
    %v526 = vmul.f32 %v430, %v76
    %v527 = vmul.f32 %v431, %v77
    %v528 = vmul.f32 %v432, %v78
    %v529 = vmul.f32 %v433, %v79
    %v530 = vmul.f32 %v434, %v80
    %v531 = vmul.f32 %v435, %v81
    %v532 = vmul.f32 %v436, %v82
    %v533 = vmul.f32 %v437, %v83
    %v534 = vmul.f32 %v438, %v84
    %v535 = vmul.f32 %v439, %v85
    %v536 = vmul.f32 %v440, %v86
    %v537 = vmul.f32 %v441, %v87
    %v538 = vmul.f32 %v442, %v88
    %v539 = vmul.f32 %v443, %v57
    %v540 = vmul.f32 %v444, %v58
    %v541 = vmul.f32 %v445, %v59
    %v542 = vmul.f32 %v446, %v60
    %v543 = vmul.f32 %v447, %v61
    %v544 = vmul.f32 %v448, %v62
    %v545 = vmul.f32 %v449, %v63
    %v546 = vmul.f32 %v450, %v64
    %v547 = vmul.f32 %v451, %v65
    %v548 = vmul.f32 %v452, %v66
    %v549 = vmul.f32 %v453, %v67
    %v550 = vmul.f32 %v454, %v68
    %v551 = vmul.f32 %v455, %v69
    %v552 = vmul.f32 %v456, %v70
    %v553 = vmul.f32 %v457, %v71
    %v554 = vmul.f32 %v458, %v72
    %v555 = vmul.f32 %v459, %v73
    %v556 = vmul.f32 %v460, %v74
    %v557 = vmul.f32 %v461, %v75
    %v558 = vmul.f32 %v462, %v76
    %v559 = vmul.f32 %v463, %v77
    %v560 = vmul.f32 %v464, %v78
    %v561 = vmul.f32 %v465, %v79
    %v562 = vmul.f32 %v466, %v80
    %v563 = vmul.f32 %v467, %v81
    %v564 = vmul.f32 %v468, %v82
    %v565 = vmul.f32 %v469, %v83
    %v566 = vmul.f32 %v470, %v84
    %v567 = vmul.f32 %v471, %v85
    %v568 = vmul.f32 %v472, %v86
    %v569 = vmul.f32 %v473, %v87
    %v570 = vmul.f32 %v474, %v88
    %s571 = sld [smem:[#allocation3]]
    %v572 = vstv %s571
    %v573 = vmul.f32 %v572, %v475
    %v574 = vmul.f32 %v572, %v476
    %v575 = vmul.f32 %v572, %v477
    %v576 = vmul.f32 %v572, %v478
    %v577 = vmul.f32 %v572, %v479
    %v578 = vmul.f32 %v572, %v480
    %v579 = vmul.f32 %v572, %v481
    %v580 = vmul.f32 %v572, %v482
    %v581 = vmul.f32 %v572, %v483
    %v582 = vmul.f32 %v572, %v484
    %v583 = vmul.f32 %v572, %v485
    %v584 = vmul.f32 %v572, %v486
    %v585 = vmul.f32 %v572, %v487
    %v586 = vmul.f32 %v572, %v488
    %v587 = vmul.f32 %v572, %v489
    %v588 = vmul.f32 %v572, %v490
    %v589 = vmul.f32 %v572, %v491
    %v590 = vmul.f32 %v572, %v492
    %v591 = vmul.f32 %v572, %v493
    %v592 = vmul.f32 %v572, %v494
    %v593 = vmul.f32 %v572, %v495
    %v594 = vmul.f32 %v572, %v496
    %v595 = vmul.f32 %v572, %v497
    %v596 = vmul.f32 %v572, %v498
    %v597 = vmul.f32 %v572, %v499
    %v598 = vmul.f32 %v572, %v500
    %v599 = vmul.f32 %v572, %v501
    %v600 = vmul.f32 %v572, %v502
    %v601 = vmul.f32 %v572, %v503
    %v602 = vmul.f32 %v572, %v504
    %v603 = vmul.f32 %v572, %v505
    %v604 = vmul.f32 %v572, %v506
    %s605 = sld [smem:[#allocation3 + $0x1]]
    %v606 = vstv %s605
    %v607 = vmul.f32 %v606, %v507
    %v608 = vmul.f32 %v606, %v508
    %v609 = vmul.f32 %v606, %v509
    %v610 = vmul.f32 %v606, %v510
    %v611 = vmul.f32 %v606, %v511
    %v612 = vmul.f32 %v606, %v512
    %v613 = vmul.f32 %v606, %v513
    %v614 = vmul.f32 %v606, %v514
    %v615 = vmul.f32 %v606, %v515
    %v616 = vmul.f32 %v606, %v516
    %v617 = vmul.f32 %v606, %v517
    %v618 = vmul.f32 %v606, %v518
    %v619 = vmul.f32 %v606, %v519
    %v620 = vmul.f32 %v606, %v520
    %v621 = vmul.f32 %v606, %v521
    %v622 = vmul.f32 %v606, %v522
    %v623 = vmul.f32 %v606, %v523
    %v624 = vmul.f32 %v606, %v524
    %v625 = vmul.f32 %v606, %v525
    %v626 = vmul.f32 %v606, %v526
    %v627 = vmul.f32 %v606, %v527
    %v628 = vmul.f32 %v606, %v528
    %v629 = vmul.f32 %v606, %v529
    %v630 = vmul.f32 %v606, %v530
    %v631 = vmul.f32 %v606, %v531
    %v632 = vmul.f32 %v606, %v532
    %v633 = vmul.f32 %v606, %v533
    %v634 = vmul.f32 %v606, %v534
    %v635 = vmul.f32 %v606, %v535
    %v636 = vmul.f32 %v606, %v536
    %v637 = vmul.f32 %v606, %v537
    %v638 = vmul.f32 %v606, %v538
    %v639 = vadd.f32 %v573, %v607
    %v640 = vadd.f32 %v574, %v608
    %v641 = vadd.f32 %v575, %v609
    %v642 = vadd.f32 %v576, %v610
    %v643 = vadd.f32 %v577, %v611
    %v644 = vadd.f32 %v578, %v612
    %v645 = vadd.f32 %v579, %v613
    %v646 = vadd.f32 %v580, %v614
    %v647 = vadd.f32 %v581, %v615
    %v648 = vadd.f32 %v582, %v616
    %v649 = vadd.f32 %v583, %v617
    %v650 = vadd.f32 %v584, %v618
    %v651 = vadd.f32 %v585, %v619
    %v652 = vadd.f32 %v586, %v620
    %v653 = vadd.f32 %v587, %v621
    %v654 = vadd.f32 %v588, %v622
    %v655 = vadd.f32 %v589, %v623
    %v656 = vadd.f32 %v590, %v624
    %v657 = vadd.f32 %v591, %v625
    %v658 = vadd.f32 %v592, %v626
    %v659 = vadd.f32 %v593, %v627
    %v660 = vadd.f32 %v594, %v628
    %v661 = vadd.f32 %v595, %v629
    %v662 = vadd.f32 %v596, %v630
    %v663 = vadd.f32 %v597, %v631
    %v664 = vadd.f32 %v598, %v632
    %v665 = vadd.f32 %v599, %v633
    %v666 = vadd.f32 %v600, %v634
    %v667 = vadd.f32 %v601, %v635
    %v668 = vadd.f32 %v602, %v636
    %v669 = vadd.f32 %v603, %v637
    %v670 = vadd.f32 %v604, %v638
    %s671 = sld [smem:[#allocation3 + $0x2]]
    %v672 = vstv %s671
    %v673 = vmul.f32 %v672, %v539
    %v674 = vmul.f32 %v672, %v540
    %v675 = vmul.f32 %v672, %v541
    %v676 = vmul.f32 %v672, %v542
    %v677 = vmul.f32 %v672, %v543
    %v678 = vmul.f32 %v672, %v544
    %v679 = vmul.f32 %v672, %v545
    %v680 = vmul.f32 %v672, %v546
    %v681 = vmul.f32 %v672, %v547
    %v682 = vmul.f32 %v672, %v548
    %v683 = vmul.f32 %v672, %v549
    %v684 = vmul.f32 %v672, %v550
    %v685 = vmul.f32 %v672, %v551
    %v686 = vmul.f32 %v672, %v552
    %v687 = vmul.f32 %v672, %v553
    %v688 = vmul.f32 %v672, %v554
    %v689 = vmul.f32 %v672, %v555
    %v690 = vmul.f32 %v672, %v556
    %v691 = vmul.f32 %v672, %v557
    %v692 = vmul.f32 %v672, %v558
    %v693 = vmul.f32 %v672, %v559
    %v694 = vmul.f32 %v672, %v560
    %v695 = vmul.f32 %v672, %v561
    %v696 = vmul.f32 %v672, %v562
    %v697 = vmul.f32 %v672, %v563
    %v698 = vmul.f32 %v672, %v564
    %v699 = vmul.f32 %v672, %v565
    %v700 = vmul.f32 %v672, %v566
    %v701 = vmul.f32 %v672, %v567
    %v702 = vmul.f32 %v672, %v568
    %v703 = vmul.f32 %v672, %v569
    %v704 = vmul.f32 %v672, %v570
    %v705 = vadd.f32 %v639, %v673
    %v706 = vadd.f32 %v640, %v674
    %v707 = vadd.f32 %v641, %v675
    %v708 = vadd.f32 %v642, %v676
    %v709 = vadd.f32 %v643, %v677
    %v710 = vadd.f32 %v644, %v678
    %v711 = vadd.f32 %v645, %v679
    %v712 = vadd.f32 %v646, %v680
    %v713 = vadd.f32 %v647, %v681
    %v714 = vadd.f32 %v648, %v682
    %v715 = vadd.f32 %v649, %v683
    %v716 = vadd.f32 %v650, %v684
    %v717 = vadd.f32 %v651, %v685
    %v718 = vadd.f32 %v652, %v686
    %v719 = vadd.f32 %v653, %v687
    %v720 = vadd.f32 %v654, %v688
    %v721 = vadd.f32 %v655, %v689
    %v722 = vadd.f32 %v656, %v690
    %v723 = vadd.f32 %v657, %v691
    %v724 = vadd.f32 %v658, %v692
    %v725 = vadd.f32 %v659, %v693
    %v726 = vadd.f32 %v660, %v694
    %v727 = vadd.f32 %v661, %v695
    %v728 = vadd.f32 %v662, %v696
    %v729 = vadd.f32 %v663, %v697
    %v730 = vadd.f32 %v664, %v698
    %v731 = vadd.f32 %v665, %v699
    %v732 = vadd.f32 %v666, %v700
    %v733 = vadd.f32 %v667, %v701
    %v734 = vadd.f32 %v668, %v702
    %v735 = vadd.f32 %v669, %v703
    %v736 = vadd.f32 %v670, %v704
    %s737 = sld [smem:[#allocation5]]
    %v738 = vstv %s737
    %v739 = vadd.f32 %v705, %v738
    %v740 = vadd.f32 %v706, %v738
    %v741 = vadd.f32 %v707, %v738
    %v742 = vadd.f32 %v708, %v738
    %v743 = vadd.f32 %v709, %v738
    %v744 = vadd.f32 %v710, %v738
    %v745 = vadd.f32 %v711, %v738
    %v746 = vadd.f32 %v712, %v738
    %v747 = vadd.f32 %v713, %v738
    %v748 = vadd.f32 %v714, %v738
    %v749 = vadd.f32 %v715, %v738
    %v750 = vadd.f32 %v716, %v738
    %v751 = vadd.f32 %v717, %v738
    %v752 = vadd.f32 %v718, %v738
    %v753 = vadd.f32 %v719, %v738
    %v754 = vadd.f32 %v720, %v738
    %v755 = vadd.f32 %v721, %v738
    %v756 = vadd.f32 %v722, %v738
    %v757 = vadd.f32 %v723, %v738
    %v758 = vadd.f32 %v724, %v738
    %v759 = vadd.f32 %v725, %v738
    %v760 = vadd.f32 %v726, %v738
    %v761 = vadd.f32 %v727, %v738
    %v762 = vadd.f32 %v728, %v738
    %v763 = vadd.f32 %v729, %v738
    %v764 = vadd.f32 %v730, %v738
    %v765 = vadd.f32 %v731, %v738
    %v766 = vadd.f32 %v732, %v738
    %v767 = vadd.f32 %v733, %v738
    %v768 = vadd.f32 %v734, %v738
    %v769 = vadd.f32 %v735, %v738
    %v770 = vadd.f32 %v736, %v738
    %s771 = sld [smem:[#allocation7]]
    %v772 = vtanh.pop %v739
    %v773 = vtanh.pop %v740
    %v774 = vtanh.pop %v741
    %v775 = vtanh.pop %v742
    %v776 = vtanh.pop %v743
    %v777 = vtanh.pop %v744
    %v778 = vtanh.pop %v745
    %v779 = vtanh.pop %v746
    %v780 = vtanh.pop %v747
    %v781 = vtanh.pop %v748
    %v782 = vtanh.pop %v749
    %v783 = vtanh.pop %v750
    %v784 = vtanh.pop %v751
    %v785 = vtanh.pop %v752
    %v786 = vtanh.pop %v753
    %v787 = vtanh.pop %v754
    %v788 = vtanh.pop %v755
    %v789 = vtanh.pop %v756
    %v790 = vtanh.pop %v757
    %v791 = vtanh.pop %v758
    %v792 = vtanh.pop %v759
    %v793 = vtanh.pop %v760
    %v794 = vtanh.pop %v761
    %v795 = vtanh.pop %v762
    %v796 = vtanh.pop %v763
    %v797 = vtanh.pop %v764
    %v798 = vtanh.pop %v765
    %v799 = vtanh.pop %v766
    %v800 = vtanh.pop %v767
    %v801 = vtanh.pop %v768
    %v802 = vtanh.pop %v769
    %v803 = vtanh.pop %v770
    %v804 = vadd.f32 %v772, %v774
    %v805 = vadd.f32 %v804, %v776
    %v806 = vadd.f32 %v805, %v778
    %v807 = vadd.f32 %v806, %v780
    %v808 = vadd.f32 %v807, %v782
    %v809 = vadd.f32 %v808, %v784
    %v810 = vadd.f32 %v809, %v786
    %v811 = vadd.f32 %v810, %v788
    %v812 = vadd.f32 %v811, %v790
    %v813 = vadd.f32 %v812, %v792
    %v814 = vadd.f32 %v813, %v794
    %v815 = vadd.f32 %v814, %v796
    %v816 = vadd.f32 %v815, %v798
    %v817 = vadd.f32 %v816, %v800
    %v818 = vadd.f32 %v817, %v802
    %v819 = vadd.f32 %v773, %v775
    %v820 = vadd.f32 %v819, %v777
    %v821 = vadd.f32 %v820, %v779
    %v822 = vadd.f32 %v821, %v781
    %v823 = vadd.f32 %v822, %v783
    %v824 = vadd.f32 %v823, %v785
    %v825 = vadd.f32 %v824, %v787
    %v826 = vadd.f32 %v825, %v789
    %v827 = vadd.f32 %v826, %v791
    %v828 = vadd.f32 %v827, %v793
    %v829 = vadd.f32 %v828, %v795
    %v830 = vadd.f32 %v829, %v797
    %v831 = vadd.f32 %v830, %v799
    %v832 = vadd.f32 %v831, %v801
    %v833 = vadd.f32 %v832, %v803
    %v834 = vstv %s771
    %v835 = vmul.f32 %v834, %v818
    %v836 = vmul.f32 %v834, %v833
    %s837 = sld [smem:[#allocation3 + $0x3]]
    %v838 = vstv %s837
    %v839 = vmul.f32 %v838, %v475
    %v840 = vmul.f32 %v838, %v476
    %v841 = vmul.f32 %v838, %v477
    %v842 = vmul.f32 %v838, %v478
    %v843 = vmul.f32 %v838, %v479
    %v844 = vmul.f32 %v838, %v480
    %v845 = vmul.f32 %v838, %v481
    %v846 = vmul.f32 %v838, %v482
    %v847 = vmul.f32 %v838, %v483
    %v848 = vmul.f32 %v838, %v484
    %v849 = vmul.f32 %v838, %v485
    %v850 = vmul.f32 %v838, %v486
    %v851 = vmul.f32 %v838, %v487
    %v852 = vmul.f32 %v838, %v488
    %v853 = vmul.f32 %v838, %v489
    %v854 = vmul.f32 %v838, %v490
    %v855 = vmul.f32 %v838, %v491
    %v856 = vmul.f32 %v838, %v492
    %v857 = vmul.f32 %v838, %v493
    %v858 = vmul.f32 %v838, %v494
    %v859 = vmul.f32 %v838, %v495
    %v860 = vmul.f32 %v838, %v496
    %v861 = vmul.f32 %v838, %v497
    %v862 = vmul.f32 %v838, %v498
    %v863 = vmul.f32 %v838, %v499
    %v864 = vmul.f32 %v838, %v500
    %v865 = vmul.f32 %v838, %v501
    %v866 = vmul.f32 %v838, %v502
    %v867 = vmul.f32 %v838, %v503
    %v868 = vmul.f32 %v838, %v504
    %v869 = vmul.f32 %v838, %v505
    %v870 = vmul.f32 %v838, %v506
    %s871 = sld [smem:[#allocation3 + $0x4]]
    %v872 = vstv %s871
    %v873 = vmul.f32 %v872, %v507
    %v874 = vmul.f32 %v872, %v508
    %v875 = vmul.f32 %v872, %v509
    %v876 = vmul.f32 %v872, %v510
    %v877 = vmul.f32 %v872, %v511
    %v878 = vmul.f32 %v872, %v512
    %v879 = vmul.f32 %v872, %v513
    %v880 = vmul.f32 %v872, %v514
    %v881 = vmul.f32 %v872, %v515
    %v882 = vmul.f32 %v872, %v516
    %v883 = vmul.f32 %v872, %v517
    %v884 = vmul.f32 %v872, %v518
    %v885 = vmul.f32 %v872, %v519
    %v886 = vmul.f32 %v872, %v520
    %v887 = vmul.f32 %v872, %v521
    %v888 = vmul.f32 %v872, %v522
    %v889 = vmul.f32 %v872, %v523
    %v890 = vmul.f32 %v872, %v524
    %v891 = vmul.f32 %v872, %v525
    %v892 = vmul.f32 %v872, %v526
    %v893 = vmul.f32 %v872, %v527
    %v894 = vmul.f32 %v872, %v528
    %v895 = vmul.f32 %v872, %v529
    %v896 = vmul.f32 %v872, %v530
    %v897 = vmul.f32 %v872, %v531
    %v898 = vmul.f32 %v872, %v532
    %v899 = vmul.f32 %v872, %v533
    %v900 = vmul.f32 %v872, %v534
    %v901 = vmul.f32 %v872, %v535
    %v902 = vmul.f32 %v872, %v536
    %v903 = vmul.f32 %v872, %v537
    %v904 = vmul.f32 %v872, %v538
    %v905 = vadd.f32 %v839, %v873
    %v906 = vadd.f32 %v840, %v874
    %v907 = vadd.f32 %v841, %v875
    %v908 = vadd.f32 %v842, %v876
    %v909 = vadd.f32 %v843, %v877
    %v910 = vadd.f32 %v844, %v878
    %v911 = vadd.f32 %v845, %v879
    %v912 = vadd.f32 %v846, %v880
    %v913 = vadd.f32 %v847, %v881
    %v914 = vadd.f32 %v848, %v882
    %v915 = vadd.f32 %v849, %v883
    %v916 = vadd.f32 %v850, %v884
    %v917 = vadd.f32 %v851, %v885
    %v918 = vadd.f32 %v852, %v886
    %v919 = vadd.f32 %v853, %v887
    %v920 = vadd.f32 %v854, %v888
    %v921 = vadd.f32 %v855, %v889
    %v922 = vadd.f32 %v856, %v890
    %v923 = vadd.f32 %v857, %v891
    %v924 = vadd.f32 %v858, %v892
    %v925 = vadd.f32 %v859, %v893
    %v926 = vadd.f32 %v860, %v894
    %v927 = vadd.f32 %v861, %v895
    %v928 = vadd.f32 %v862, %v896
    %v929 = vadd.f32 %v863, %v897
    %v930 = vadd.f32 %v864, %v898
    %v931 = vadd.f32 %v865, %v899
    %v932 = vadd.f32 %v866, %v900
    %v933 = vadd.f32 %v867, %v901
    %v934 = vadd.f32 %v868, %v902
    %v935 = vadd.f32 %v869, %v903
    %v936 = vadd.f32 %v870, %v904
    %s937 = sld [smem:[#allocation3 + $0x5]]
    %v938 = vstv %s937
    %v939 = vmul.f32 %v938, %v539
    %v940 = vmul.f32 %v938, %v540
    %v941 = vmul.f32 %v938, %v541
    %v942 = vmul.f32 %v938, %v542
    %v943 = vmul.f32 %v938, %v543
    %v944 = vmul.f32 %v938, %v544
    %v945 = vmul.f32 %v938, %v545
    %v946 = vmul.f32 %v938, %v546
    %v947 = vmul.f32 %v938, %v547
    %v948 = vmul.f32 %v938, %v548
    %v949 = vmul.f32 %v938, %v549
    %v950 = vmul.f32 %v938, %v550
    %v951 = vmul.f32 %v938, %v551
    %v952 = vmul.f32 %v938, %v552
    %v953 = vmul.f32 %v938, %v553
    %v954 = vmul.f32 %v938, %v554
    %v955 = vmul.f32 %v938, %v555
    %v956 = vmul.f32 %v938, %v556
    %v957 = vmul.f32 %v938, %v557
    %v958 = vmul.f32 %v938, %v558
    %v959 = vmul.f32 %v938, %v559
    %v960 = vmul.f32 %v938, %v560
    %v961 = vmul.f32 %v938, %v561
    %v962 = vmul.f32 %v938, %v562
    %v963 = vmul.f32 %v938, %v563
    %v964 = vmul.f32 %v938, %v564
    %v965 = vmul.f32 %v938, %v565
    %v966 = vmul.f32 %v938, %v566
    %v967 = vmul.f32 %v938, %v567
    %v968 = vmul.f32 %v938, %v568
    %v969 = vmul.f32 %v938, %v569
    %v970 = vmul.f32 %v938, %v570
    %v971 = vadd.f32 %v905, %v939
    %v972 = vadd.f32 %v906, %v940
    %v973 = vadd.f32 %v907, %v941
    %v974 = vadd.f32 %v908, %v942
    %v975 = vadd.f32 %v909, %v943
    %v976 = vadd.f32 %v910, %v944
    %v977 = vadd.f32 %v911, %v945
    %v978 = vadd.f32 %v912, %v946
    %v979 = vadd.f32 %v913, %v947
    %v980 = vadd.f32 %v914, %v948
    %v981 = vadd.f32 %v915, %v949
    %v982 = vadd.f32 %v916, %v950
    %v983 = vadd.f32 %v917, %v951
    %v984 = vadd.f32 %v918, %v952
    %v985 = vadd.f32 %v919, %v953
    %v986 = vadd.f32 %v920, %v954
    %v987 = vadd.f32 %v921, %v955
    %v988 = vadd.f32 %v922, %v956
    %v989 = vadd.f32 %v923, %v957
    %v990 = vadd.f32 %v924, %v958
    %v991 = vadd.f32 %v925, %v959
    %v992 = vadd.f32 %v926, %v960
    %v993 = vadd.f32 %v927, %v961
    %v994 = vadd.f32 %v928, %v962
    %v995 = vadd.f32 %v929, %v963
    %v996 = vadd.f32 %v930, %v964
    %v997 = vadd.f32 %v931, %v965
    %v998 = vadd.f32 %v932, %v966
    %v999 = vadd.f32 %v933, %v967
    %v1000 = vadd.f32 %v934, %v968
    %v1001 = vadd.f32 %v935, %v969
    %v1002 = vadd.f32 %v936, %v970
    %s1003 = sld [smem:[#allocation5 + $0x1]]
    %v1004 = vstv %s1003
    %v1005 = vadd.f32 %v971, %v1004
    %v1006 = vadd.f32 %v972, %v1004
    %v1007 = vadd.f32 %v973, %v1004
    %v1008 = vadd.f32 %v974, %v1004
    %v1009 = vadd.f32 %v975, %v1004
    %v1010 = vadd.f32 %v976, %v1004
    %v1011 = vadd.f32 %v977, %v1004
    %v1012 = vadd.f32 %v978, %v1004
    %v1013 = vadd.f32 %v979, %v1004
    %v1014 = vadd.f32 %v980, %v1004
    %v1015 = vadd.f32 %v981, %v1004
    %v1016 = vadd.f32 %v982, %v1004
    %v1017 = vadd.f32 %v983, %v1004
    %v1018 = vadd.f32 %v984, %v1004
    %v1019 = vadd.f32 %v985, %v1004
    %v1020 = vadd.f32 %v986, %v1004
    %v1021 = vadd.f32 %v987, %v1004
    %v1022 = vadd.f32 %v988, %v1004
    %v1023 = vadd.f32 %v989, %v1004
    %v1024 = vadd.f32 %v990, %v1004
    %v1025 = vadd.f32 %v991, %v1004
    %v1026 = vadd.f32 %v992, %v1004
    %v1027 = vadd.f32 %v993, %v1004
    %v1028 = vadd.f32 %v994, %v1004
    %v1029 = vadd.f32 %v995, %v1004
    %v1030 = vadd.f32 %v996, %v1004
    %v1031 = vadd.f32 %v997, %v1004
    %v1032 = vadd.f32 %v998, %v1004
    %v1033 = vadd.f32 %v999, %v1004
    %v1034 = vadd.f32 %v1000, %v1004
    %v1035 = vadd.f32 %v1001, %v1004
    %v1036 = vadd.f32 %v1002, %v1004
    %s1037 = sld [smem:[#allocation7 + $0x1]]
    %v1038 = vtanh.pop %v1005
    %v1039 = vtanh.pop %v1006
    %v1040 = vtanh.pop %v1007
    %v1041 = vtanh.pop %v1008
    %v1042 = vtanh.pop %v1009
    %v1043 = vtanh.pop %v1010
    %v1044 = vtanh.pop %v1011
    %v1045 = vtanh.pop %v1012
    %v1046 = vtanh.pop %v1013
    %v1047 = vtanh.pop %v1014
    %v1048 = vtanh.pop %v1015
    %v1049 = vtanh.pop %v1016
    %v1050 = vtanh.pop %v1017
    %v1051 = vtanh.pop %v1018
    %v1052 = vtanh.pop %v1019
    %v1053 = vtanh.pop %v1020
    %v1054 = vtanh.pop %v1021
    %v1055 = vtanh.pop %v1022
    %v1056 = vtanh.pop %v1023
    %v1057 = vtanh.pop %v1024
    %v1058 = vtanh.pop %v1025
    %v1059 = vtanh.pop %v1026
    %v1060 = vtanh.pop %v1027
    %v1061 = vtanh.pop %v1028
    %v1062 = vtanh.pop %v1029
    %v1063 = vtanh.pop %v1030
    %v1064 = vtanh.pop %v1031
    %v1065 = vtanh.pop %v1032
    %v1066 = vtanh.pop %v1033
    %v1067 = vtanh.pop %v1034
    %v1068 = vtanh.pop %v1035
    %v1069 = vtanh.pop %v1036
    %v1070 = vadd.f32 %v1038, %v1040
    %v1071 = vadd.f32 %v1070, %v1042
    %v1072 = vadd.f32 %v1071, %v1044
    %v1073 = vadd.f32 %v1072, %v1046
    %v1074 = vadd.f32 %v1073, %v1048
    %v1075 = vadd.f32 %v1074, %v1050
    %v1076 = vadd.f32 %v1075, %v1052
    %v1077 = vadd.f32 %v1076, %v1054
    %v1078 = vadd.f32 %v1077, %v1056
    %v1079 = vadd.f32 %v1078, %v1058
    %v1080 = vadd.f32 %v1079, %v1060
    %v1081 = vadd.f32 %v1080, %v1062
    %v1082 = vadd.f32 %v1081, %v1064
    %v1083 = vadd.f32 %v1082, %v1066
    %v1084 = vadd.f32 %v1083, %v1068
    %v1085 = vadd.f32 %v1039, %v1041
    %v1086 = vadd.f32 %v1085, %v1043
    %v1087 = vadd.f32 %v1086, %v1045
    %v1088 = vadd.f32 %v1087, %v1047
    %v1089 = vadd.f32 %v1088, %v1049
    %v1090 = vadd.f32 %v1089, %v1051
    %v1091 = vadd.f32 %v1090, %v1053
    %v1092 = vadd.f32 %v1091, %v1055
    %v1093 = vadd.f32 %v1092, %v1057
    %v1094 = vadd.f32 %v1093, %v1059
    %v1095 = vadd.f32 %v1094, %v1061
    %v1096 = vadd.f32 %v1095, %v1063
    %v1097 = vadd.f32 %v1096, %v1065
    %v1098 = vadd.f32 %v1097, %v1067
    %v1099 = vadd.f32 %v1098, %v1069
    %v1100 = vstv %s1037
    %v1101 = vmul.f32 %v1100, %v1084
    %v1102 = vmul.f32 %v1100, %v1099
    %v1103 = vadd.f32 %v835, %v1101
    %v1104 = vadd.f32 %v836, %v1102
    %s1105 = sld [smem:[#allocation3 + $0x6]]
    %v1106 = vstv %s1105
    %v1107 = vmul.f32 %v1106, %v475
    %v1108 = vmul.f32 %v1106, %v476
    %v1109 = vmul.f32 %v1106, %v477
    %v1110 = vmul.f32 %v1106, %v478
    %v1111 = vmul.f32 %v1106, %v479
    %v1112 = vmul.f32 %v1106, %v480
    %v1113 = vmul.f32 %v1106, %v481
    %v1114 = vmul.f32 %v1106, %v482
    %v1115 = vmul.f32 %v1106, %v483
    %v1116 = vmul.f32 %v1106, %v484
    %v1117 = vmul.f32 %v1106, %v485
    %v1118 = vmul.f32 %v1106, %v486
    %v1119 = vmul.f32 %v1106, %v487
    %v1120 = vmul.f32 %v1106, %v488
    %v1121 = vmul.f32 %v1106, %v489
    %v1122 = vmul.f32 %v1106, %v490
    %v1123 = vmul.f32 %v1106, %v491
    %v1124 = vmul.f32 %v1106, %v492
    %v1125 = vmul.f32 %v1106, %v493
    %v1126 = vmul.f32 %v1106, %v494
    %v1127 = vmul.f32 %v1106, %v495
    %v1128 = vmul.f32 %v1106, %v496
    %v1129 = vmul.f32 %v1106, %v497
    %v1130 = vmul.f32 %v1106, %v498
    %v1131 = vmul.f32 %v1106, %v499
    %v1132 = vmul.f32 %v1106, %v500
    %v1133 = vmul.f32 %v1106, %v501
    %v1134 = vmul.f32 %v1106, %v502
    %v1135 = vmul.f32 %v1106, %v503
    %v1136 = vmul.f32 %v1106, %v504
    %v1137 = vmul.f32 %v1106, %v505
    %v1138 = vmul.f32 %v1106, %v506
    %s1139 = sld [smem:[#allocation3 + $0x7]]
    %v1140 = vstv %s1139
    %v1141 = vmul.f32 %v1140, %v507
    %v1142 = vmul.f32 %v1140, %v508
    %v1143 = vmul.f32 %v1140, %v509
    %v1144 = vmul.f32 %v1140, %v510
    %v1145 = vmul.f32 %v1140, %v511
    %v1146 = vmul.f32 %v1140, %v512
    %v1147 = vmul.f32 %v1140, %v513
    %v1148 = vmul.f32 %v1140, %v514
    %v1149 = vmul.f32 %v1140, %v515
    %v1150 = vmul.f32 %v1140, %v516
    %v1151 = vmul.f32 %v1140, %v517
    %v1152 = vmul.f32 %v1140, %v518
    %v1153 = vmul.f32 %v1140, %v519
    %v1154 = vmul.f32 %v1140, %v520
    %v1155 = vmul.f32 %v1140, %v521
    %v1156 = vmul.f32 %v1140, %v522
    %v1157 = vmul.f32 %v1140, %v523
    %v1158 = vmul.f32 %v1140, %v524
    %v1159 = vmul.f32 %v1140, %v525
    %v1160 = vmul.f32 %v1140, %v526
    %v1161 = vmul.f32 %v1140, %v527
    %v1162 = vmul.f32 %v1140, %v528
    %v1163 = vmul.f32 %v1140, %v529
    %v1164 = vmul.f32 %v1140, %v530
    %v1165 = vmul.f32 %v1140, %v531
    %v1166 = vmul.f32 %v1140, %v532
    %v1167 = vmul.f32 %v1140, %v533
    %v1168 = vmul.f32 %v1140, %v534
    %v1169 = vmul.f32 %v1140, %v535
    %v1170 = vmul.f32 %v1140, %v536
    %v1171 = vmul.f32 %v1140, %v537
    %v1172 = vmul.f32 %v1140, %v538
    %v1173 = vadd.f32 %v1107, %v1141
    %v1174 = vadd.f32 %v1108, %v1142
    %v1175 = vadd.f32 %v1109, %v1143
    %v1176 = vadd.f32 %v1110, %v1144
    %v1177 = vadd.f32 %v1111, %v1145
    %v1178 = vadd.f32 %v1112, %v1146
    %v1179 = vadd.f32 %v1113, %v1147
    %v1180 = vadd.f32 %v1114, %v1148
    %v1181 = vadd.f32 %v1115, %v1149
    %v1182 = vadd.f32 %v1116, %v1150
    %v1183 = vadd.f32 %v1117, %v1151
    %v1184 = vadd.f32 %v1118, %v1152
    %v1185 = vadd.f32 %v1119, %v1153
    %v1186 = vadd.f32 %v1120, %v1154
    %v1187 = vadd.f32 %v1121, %v1155
    %v1188 = vadd.f32 %v1122, %v1156
    %v1189 = vadd.f32 %v1123, %v1157
    %v1190 = vadd.f32 %v1124, %v1158
    %v1191 = vadd.f32 %v1125, %v1159
    %v1192 = vadd.f32 %v1126, %v1160
    %v1193 = vadd.f32 %v1127, %v1161
    %v1194 = vadd.f32 %v1128, %v1162
    %v1195 = vadd.f32 %v1129, %v1163
    %v1196 = vadd.f32 %v1130, %v1164
    %v1197 = vadd.f32 %v1131, %v1165
    %v1198 = vadd.f32 %v1132, %v1166
    %v1199 = vadd.f32 %v1133, %v1167
    %v1200 = vadd.f32 %v1134, %v1168
    %v1201 = vadd.f32 %v1135, %v1169
    %v1202 = vadd.f32 %v1136, %v1170
    %v1203 = vadd.f32 %v1137, %v1171
    %v1204 = vadd.f32 %v1138, %v1172
    %s1205 = sld [smem:[#allocation3 + $0x8]]
    %v1206 = vstv %s1205
    %v1207 = vmul.f32 %v1206, %v539
    %v1208 = vmul.f32 %v1206, %v540
    %v1209 = vmul.f32 %v1206, %v541
    %v1210 = vmul.f32 %v1206, %v542
    %v1211 = vmul.f32 %v1206, %v543
    %v1212 = vmul.f32 %v1206, %v544
    %v1213 = vmul.f32 %v1206, %v545
    %v1214 = vmul.f32 %v1206, %v546
    %v1215 = vmul.f32 %v1206, %v547
    %v1216 = vmul.f32 %v1206, %v548
    %v1217 = vmul.f32 %v1206, %v549
    %v1218 = vmul.f32 %v1206, %v550
    %v1219 = vmul.f32 %v1206, %v551
    %v1220 = vmul.f32 %v1206, %v552
    %v1221 = vmul.f32 %v1206, %v553
    %v1222 = vmul.f32 %v1206, %v554
    %v1223 = vmul.f32 %v1206, %v555
    %v1224 = vmul.f32 %v1206, %v556
    %v1225 = vmul.f32 %v1206, %v557
    %v1226 = vmul.f32 %v1206, %v558
    %v1227 = vmul.f32 %v1206, %v559
    %v1228 = vmul.f32 %v1206, %v560
    %v1229 = vmul.f32 %v1206, %v561
    %v1230 = vmul.f32 %v1206, %v562
    %v1231 = vmul.f32 %v1206, %v563
    %v1232 = vmul.f32 %v1206, %v564
    %v1233 = vmul.f32 %v1206, %v565
    %v1234 = vmul.f32 %v1206, %v566
    %v1235 = vmul.f32 %v1206, %v567
    %v1236 = vmul.f32 %v1206, %v568
    %v1237 = vmul.f32 %v1206, %v569
    %v1238 = vmul.f32 %v1206, %v570
    %v1239 = vadd.f32 %v1173, %v1207
    %v1240 = vadd.f32 %v1174, %v1208
    %v1241 = vadd.f32 %v1175, %v1209
    %v1242 = vadd.f32 %v1176, %v1210
    %v1243 = vadd.f32 %v1177, %v1211
    %v1244 = vadd.f32 %v1178, %v1212
    %v1245 = vadd.f32 %v1179, %v1213
    %v1246 = vadd.f32 %v1180, %v1214
    %v1247 = vadd.f32 %v1181, %v1215
    %v1248 = vadd.f32 %v1182, %v1216
    %v1249 = vadd.f32 %v1183, %v1217
    %v1250 = vadd.f32 %v1184, %v1218
    %v1251 = vadd.f32 %v1185, %v1219
    %v1252 = vadd.f32 %v1186, %v1220
    %v1253 = vadd.f32 %v1187, %v1221
    %v1254 = vadd.f32 %v1188, %v1222
    %v1255 = vadd.f32 %v1189, %v1223
    %v1256 = vadd.f32 %v1190, %v1224
    %v1257 = vadd.f32 %v1191, %v1225
    %v1258 = vadd.f32 %v1192, %v1226
    %v1259 = vadd.f32 %v1193, %v1227
    %v1260 = vadd.f32 %v1194, %v1228
    %v1261 = vadd.f32 %v1195, %v1229
    %v1262 = vadd.f32 %v1196, %v1230
    %v1263 = vadd.f32 %v1197, %v1231
    %v1264 = vadd.f32 %v1198, %v1232
    %v1265 = vadd.f32 %v1199, %v1233
    %v1266 = vadd.f32 %v1200, %v1234
    %v1267 = vadd.f32 %v1201, %v1235
    %v1268 = vadd.f32 %v1202, %v1236
    %v1269 = vadd.f32 %v1203, %v1237
    %v1270 = vadd.f32 %v1204, %v1238
    %s1271 = sld [smem:[#allocation5 + $0x2]]
    %v1272 = vstv %s1271
    %v1273 = vadd.f32 %v1239, %v1272
    %v1274 = vadd.f32 %v1240, %v1272
    %v1275 = vadd.f32 %v1241, %v1272
    %v1276 = vadd.f32 %v1242, %v1272
    %v1277 = vadd.f32 %v1243, %v1272
    %v1278 = vadd.f32 %v1244, %v1272
    %v1279 = vadd.f32 %v1245, %v1272
    %v1280 = vadd.f32 %v1246, %v1272
    %v1281 = vadd.f32 %v1247, %v1272
    %v1282 = vadd.f32 %v1248, %v1272
    %v1283 = vadd.f32 %v1249, %v1272
    %v1284 = vadd.f32 %v1250, %v1272
    %v1285 = vadd.f32 %v1251, %v1272
    %v1286 = vadd.f32 %v1252, %v1272
    %v1287 = vadd.f32 %v1253, %v1272
    %v1288 = vadd.f32 %v1254, %v1272
    %v1289 = vadd.f32 %v1255, %v1272
    %v1290 = vadd.f32 %v1256, %v1272
    %v1291 = vadd.f32 %v1257, %v1272
    %v1292 = vadd.f32 %v1258, %v1272
    %v1293 = vadd.f32 %v1259, %v1272
    %v1294 = vadd.f32 %v1260, %v1272
    %v1295 = vadd.f32 %v1261, %v1272
    %v1296 = vadd.f32 %v1262, %v1272
    %v1297 = vadd.f32 %v1263, %v1272
    %v1298 = vadd.f32 %v1264, %v1272
    %v1299 = vadd.f32 %v1265, %v1272
    %v1300 = vadd.f32 %v1266, %v1272
    %v1301 = vadd.f32 %v1267, %v1272
    %v1302 = vadd.f32 %v1268, %v1272
    %v1303 = vadd.f32 %v1269, %v1272
    %v1304 = vadd.f32 %v1270, %v1272
    %s1305 = sld [smem:[#allocation7 + $0x2]]
    %v1306 = vtanh.pop %v1273
    %v1307 = vtanh.pop %v1274
    %v1308 = vtanh.pop %v1275
    %v1309 = vtanh.pop %v1276
    %v1310 = vtanh.pop %v1277
    %v1311 = vtanh.pop %v1278
    %v1312 = vtanh.pop %v1279
    %v1313 = vtanh.pop %v1280
    %v1314 = vtanh.pop %v1281
    %v1315 = vtanh.pop %v1282
    %v1316 = vtanh.pop %v1283
    %v1317 = vtanh.pop %v1284
    %v1318 = vtanh.pop %v1285
    %v1319 = vtanh.pop %v1286
    %v1320 = vtanh.pop %v1287
    %v1321 = vtanh.pop %v1288
    %v1322 = vtanh.pop %v1289
    %v1323 = vtanh.pop %v1290
    %v1324 = vtanh.pop %v1291
    %v1325 = vtanh.pop %v1292
    %v1326 = vtanh.pop %v1293
    %v1327 = vtanh.pop %v1294
    %v1328 = vtanh.pop %v1295
    %v1329 = vtanh.pop %v1296
    %v1330 = vtanh.pop %v1297
    %v1331 = vtanh.pop %v1298
    %v1332 = vtanh.pop %v1299
    %v1333 = vtanh.pop %v1300
    %v1334 = vtanh.pop %v1301
    %v1335 = vtanh.pop %v1302
    %v1336 = vtanh.pop %v1303
    %v1337 = vtanh.pop %v1304
    %v1338 = vadd.f32 %v1306, %v1308
    %v1339 = vadd.f32 %v1338, %v1310
    %v1340 = vadd.f32 %v1339, %v1312
    %v1341 = vadd.f32 %v1340, %v1314
    %v1342 = vadd.f32 %v1341, %v1316
    %v1343 = vadd.f32 %v1342, %v1318
    %v1344 = vadd.f32 %v1343, %v1320
    %v1345 = vadd.f32 %v1344, %v1322
    %v1346 = vadd.f32 %v1345, %v1324
    %v1347 = vadd.f32 %v1346, %v1326
    %v1348 = vadd.f32 %v1347, %v1328
    %v1349 = vadd.f32 %v1348, %v1330
    %v1350 = vadd.f32 %v1349, %v1332
    %v1351 = vadd.f32 %v1350, %v1334
    %v1352 = vadd.f32 %v1351, %v1336
    %v1353 = vadd.f32 %v1307, %v1309
    %v1354 = vadd.f32 %v1353, %v1311
    %v1355 = vadd.f32 %v1354, %v1313
    %v1356 = vadd.f32 %v1355, %v1315
    %v1357 = vadd.f32 %v1356, %v1317
    %v1358 = vadd.f32 %v1357, %v1319
    %v1359 = vadd.f32 %v1358, %v1321
    %v1360 = vadd.f32 %v1359, %v1323
    %v1361 = vadd.f32 %v1360, %v1325
    %v1362 = vadd.f32 %v1361, %v1327
    %v1363 = vadd.f32 %v1362, %v1329
    %v1364 = vadd.f32 %v1363, %v1331
    %v1365 = vadd.f32 %v1364, %v1333
    %v1366 = vadd.f32 %v1365, %v1335
    %v1367 = vadd.f32 %v1366, %v1337
    %v1368 = vstv %s1305
    %v1369 = vmul.f32 %v1368, %v1352
    %v1370 = vmul.f32 %v1368, %v1367
    %v1371 = vadd.f32 %v1103, %v1369
    %v1372 = vadd.f32 %v1104, %v1370
    %s1373 = sld [smem:[#allocation3 + $0x9]]
    %v1374 = vstv %s1373
    %v1375 = vmul.f32 %v1374, %v475
    %v1376 = vmul.f32 %v1374, %v476
    %v1377 = vmul.f32 %v1374, %v477
    %v1378 = vmul.f32 %v1374, %v478
    %v1379 = vmul.f32 %v1374, %v479
    %v1380 = vmul.f32 %v1374, %v480
    %v1381 = vmul.f32 %v1374, %v481
    %v1382 = vmul.f32 %v1374, %v482
    %v1383 = vmul.f32 %v1374, %v483
    %v1384 = vmul.f32 %v1374, %v484
    %v1385 = vmul.f32 %v1374, %v485
    %v1386 = vmul.f32 %v1374, %v486
    %v1387 = vmul.f32 %v1374, %v487
    %v1388 = vmul.f32 %v1374, %v488
    %v1389 = vmul.f32 %v1374, %v489
    %v1390 = vmul.f32 %v1374, %v490
    %v1391 = vmul.f32 %v1374, %v491
    %v1392 = vmul.f32 %v1374, %v492
    %v1393 = vmul.f32 %v1374, %v493
    %v1394 = vmul.f32 %v1374, %v494
    %v1395 = vmul.f32 %v1374, %v495
    %v1396 = vmul.f32 %v1374, %v496
    %v1397 = vmul.f32 %v1374, %v497
    %v1398 = vmul.f32 %v1374, %v498
    %v1399 = vmul.f32 %v1374, %v499
    %v1400 = vmul.f32 %v1374, %v500
    %v1401 = vmul.f32 %v1374, %v501
    %v1402 = vmul.f32 %v1374, %v502
    %v1403 = vmul.f32 %v1374, %v503
    %v1404 = vmul.f32 %v1374, %v504
    %v1405 = vmul.f32 %v1374, %v505
    %v1406 = vmul.f32 %v1374, %v506
    %s1407 = sld [smem:[#allocation3 + $0xa]]
    %v1408 = vstv %s1407
    %v1409 = vmul.f32 %v1408, %v507
    %v1410 = vmul.f32 %v1408, %v508
    %v1411 = vmul.f32 %v1408, %v509
    %v1412 = vmul.f32 %v1408, %v510
    %v1413 = vmul.f32 %v1408, %v511
    %v1414 = vmul.f32 %v1408, %v512
    %v1415 = vmul.f32 %v1408, %v513
    %v1416 = vmul.f32 %v1408, %v514
    %v1417 = vmul.f32 %v1408, %v515
    %v1418 = vmul.f32 %v1408, %v516
    %v1419 = vmul.f32 %v1408, %v517
    %v1420 = vmul.f32 %v1408, %v518
    %v1421 = vmul.f32 %v1408, %v519
    %v1422 = vmul.f32 %v1408, %v520
    %v1423 = vmul.f32 %v1408, %v521
    %v1424 = vmul.f32 %v1408, %v522
    %v1425 = vmul.f32 %v1408, %v523
    %v1426 = vmul.f32 %v1408, %v524
    %v1427 = vmul.f32 %v1408, %v525
    %v1428 = vmul.f32 %v1408, %v526
    %v1429 = vmul.f32 %v1408, %v527
    %v1430 = vmul.f32 %v1408, %v528
    %v1431 = vmul.f32 %v1408, %v529
    %v1432 = vmul.f32 %v1408, %v530
    %v1433 = vmul.f32 %v1408, %v531
    %v1434 = vmul.f32 %v1408, %v532
    %v1435 = vmul.f32 %v1408, %v533
    %v1436 = vmul.f32 %v1408, %v534
    %v1437 = vmul.f32 %v1408, %v535
    %v1438 = vmul.f32 %v1408, %v536
    %v1439 = vmul.f32 %v1408, %v537
    %v1440 = vmul.f32 %v1408, %v538
    %v1441 = vadd.f32 %v1375, %v1409
    %v1442 = vadd.f32 %v1376, %v1410
    %v1443 = vadd.f32 %v1377, %v1411
    %v1444 = vadd.f32 %v1378, %v1412
    %v1445 = vadd.f32 %v1379, %v1413
    %v1446 = vadd.f32 %v1380, %v1414
    %v1447 = vadd.f32 %v1381, %v1415
    %v1448 = vadd.f32 %v1382, %v1416
    %v1449 = vadd.f32 %v1383, %v1417
    %v1450 = vadd.f32 %v1384, %v1418
    %v1451 = vadd.f32 %v1385, %v1419
    %v1452 = vadd.f32 %v1386, %v1420
    %v1453 = vadd.f32 %v1387, %v1421
    %v1454 = vadd.f32 %v1388, %v1422
    %v1455 = vadd.f32 %v1389, %v1423
    %v1456 = vadd.f32 %v1390, %v1424
    %v1457 = vadd.f32 %v1391, %v1425
    %v1458 = vadd.f32 %v1392, %v1426
    %v1459 = vadd.f32 %v1393, %v1427
    %v1460 = vadd.f32 %v1394, %v1428
    %v1461 = vadd.f32 %v1395, %v1429
    %v1462 = vadd.f32 %v1396, %v1430
    %v1463 = vadd.f32 %v1397, %v1431
    %v1464 = vadd.f32 %v1398, %v1432
    %v1465 = vadd.f32 %v1399, %v1433
    %v1466 = vadd.f32 %v1400, %v1434
    %v1467 = vadd.f32 %v1401, %v1435
    %v1468 = vadd.f32 %v1402, %v1436
    %v1469 = vadd.f32 %v1403, %v1437
    %v1470 = vadd.f32 %v1404, %v1438
    %v1471 = vadd.f32 %v1405, %v1439
    %v1472 = vadd.f32 %v1406, %v1440
    %s1473 = sld [smem:[#allocation3 + $0xb]]
    %v1474 = vstv %s1473
    %v1475 = vmul.f32 %v1474, %v539
    %v1476 = vmul.f32 %v1474, %v540
    %v1477 = vmul.f32 %v1474, %v541
    %v1478 = vmul.f32 %v1474, %v542
    %v1479 = vmul.f32 %v1474, %v543
    %v1480 = vmul.f32 %v1474, %v544
    %v1481 = vmul.f32 %v1474, %v545
    %v1482 = vmul.f32 %v1474, %v546
    %v1483 = vmul.f32 %v1474, %v547
    %v1484 = vmul.f32 %v1474, %v548
    %v1485 = vmul.f32 %v1474, %v549
    %v1486 = vmul.f32 %v1474, %v550
    %v1487 = vmul.f32 %v1474, %v551
    %v1488 = vmul.f32 %v1474, %v552
    %v1489 = vmul.f32 %v1474, %v553
    %v1490 = vmul.f32 %v1474, %v554
    %v1491 = vmul.f32 %v1474, %v555
    %v1492 = vmul.f32 %v1474, %v556
    %v1493 = vmul.f32 %v1474, %v557
    %v1494 = vmul.f32 %v1474, %v558
    %v1495 = vmul.f32 %v1474, %v559
    %v1496 = vmul.f32 %v1474, %v560
    %v1497 = vmul.f32 %v1474, %v561
    %v1498 = vmul.f32 %v1474, %v562
    %v1499 = vmul.f32 %v1474, %v563
    %v1500 = vmul.f32 %v1474, %v564
    %v1501 = vmul.f32 %v1474, %v565
    %v1502 = vmul.f32 %v1474, %v566
    %v1503 = vmul.f32 %v1474, %v567
    %v1504 = vmul.f32 %v1474, %v568
    %v1505 = vmul.f32 %v1474, %v569
    %v1506 = vmul.f32 %v1474, %v570
    %v1507 = vadd.f32 %v1441, %v1475
    %v1508 = vadd.f32 %v1442, %v1476
    %v1509 = vadd.f32 %v1443, %v1477
    %v1510 = vadd.f32 %v1444, %v1478
    %v1511 = vadd.f32 %v1445, %v1479
    %v1512 = vadd.f32 %v1446, %v1480
    %v1513 = vadd.f32 %v1447, %v1481
    %v1514 = vadd.f32 %v1448, %v1482
    %v1515 = vadd.f32 %v1449, %v1483
    %v1516 = vadd.f32 %v1450, %v1484
    %v1517 = vadd.f32 %v1451, %v1485
    %v1518 = vadd.f32 %v1452, %v1486
    %v1519 = vadd.f32 %v1453, %v1487
    %v1520 = vadd.f32 %v1454, %v1488
    %v1521 = vadd.f32 %v1455, %v1489
    %v1522 = vadd.f32 %v1456, %v1490
    %v1523 = vadd.f32 %v1457, %v1491
    %v1524 = vadd.f32 %v1458, %v1492
    %v1525 = vadd.f32 %v1459, %v1493
    %v1526 = vadd.f32 %v1460, %v1494
    %v1527 = vadd.f32 %v1461, %v1495
    %v1528 = vadd.f32 %v1462, %v1496
    %v1529 = vadd.f32 %v1463, %v1497
    %v1530 = vadd.f32 %v1464, %v1498
    %v1531 = vadd.f32 %v1465, %v1499
    %v1532 = vadd.f32 %v1466, %v1500
    %v1533 = vadd.f32 %v1467, %v1501
    %v1534 = vadd.f32 %v1468, %v1502
    %v1535 = vadd.f32 %v1469, %v1503
    %v1536 = vadd.f32 %v1470, %v1504
    %v1537 = vadd.f32 %v1471, %v1505
    %v1538 = vadd.f32 %v1472, %v1506
    %s1539 = sld [smem:[#allocation5 + $0x3]]
    %v1540 = vstv %s1539
    %v1541 = vadd.f32 %v1507, %v1540
    %v1542 = vadd.f32 %v1508, %v1540
    %v1543 = vadd.f32 %v1509, %v1540
    %v1544 = vadd.f32 %v1510, %v1540
    %v1545 = vadd.f32 %v1511, %v1540
    %v1546 = vadd.f32 %v1512, %v1540
    %v1547 = vadd.f32 %v1513, %v1540
    %v1548 = vadd.f32 %v1514, %v1540
    %v1549 = vadd.f32 %v1515, %v1540
    %v1550 = vadd.f32 %v1516, %v1540
    %v1551 = vadd.f32 %v1517, %v1540
    %v1552 = vadd.f32 %v1518, %v1540
    %v1553 = vadd.f32 %v1519, %v1540
    %v1554 = vadd.f32 %v1520, %v1540
    %v1555 = vadd.f32 %v1521, %v1540
    %v1556 = vadd.f32 %v1522, %v1540
    %v1557 = vadd.f32 %v1523, %v1540
    %v1558 = vadd.f32 %v1524, %v1540
    %v1559 = vadd.f32 %v1525, %v1540
    %v1560 = vadd.f32 %v1526, %v1540
    %v1561 = vadd.f32 %v1527, %v1540
    %v1562 = vadd.f32 %v1528, %v1540
    %v1563 = vadd.f32 %v1529, %v1540
    %v1564 = vadd.f32 %v1530, %v1540
    %v1565 = vadd.f32 %v1531, %v1540
    %v1566 = vadd.f32 %v1532, %v1540
    %v1567 = vadd.f32 %v1533, %v1540
    %v1568 = vadd.f32 %v1534, %v1540
    %v1569 = vadd.f32 %v1535, %v1540
    %v1570 = vadd.f32 %v1536, %v1540
    %v1571 = vadd.f32 %v1537, %v1540
    %v1572 = vadd.f32 %v1538, %v1540
    %s1573 = sld [smem:[#allocation7 + $0x3]]
    %v1574 = vtanh.pop %v1541
    %v1575 = vtanh.pop %v1542
    %v1576 = vtanh.pop %v1543
    %v1577 = vtanh.pop %v1544
    %v1578 = vtanh.pop %v1545
    %v1579 = vtanh.pop %v1546
    %v1580 = vtanh.pop %v1547
    %v1581 = vtanh.pop %v1548
    %v1582 = vtanh.pop %v1549
    %v1583 = vtanh.pop %v1550
    %v1584 = vtanh.pop %v1551
    %v1585 = vtanh.pop %v1552
    %v1586 = vtanh.pop %v1553
    %v1587 = vtanh.pop %v1554
    %v1588 = vtanh.pop %v1555
    %v1589 = vtanh.pop %v1556
    %v1590 = vtanh.pop %v1557
    %v1591 = vtanh.pop %v1558
    %v1592 = vtanh.pop %v1559
    %v1593 = vtanh.pop %v1560
    %v1594 = vtanh.pop %v1561
    %v1595 = vtanh.pop %v1562
    %v1596 = vtanh.pop %v1563
    %v1597 = vtanh.pop %v1564
    %v1598 = vtanh.pop %v1565
    %v1599 = vtanh.pop %v1566
    %v1600 = vtanh.pop %v1567
    %v1601 = vtanh.pop %v1568
    %v1602 = vtanh.pop %v1569
    %v1603 = vtanh.pop %v1570
    %v1604 = vtanh.pop %v1571
    %v1605 = vtanh.pop %v1572
    %v1606 = vadd.f32 %v1574, %v1576
    %v1607 = vadd.f32 %v1606, %v1578
    %v1608 = vadd.f32 %v1607, %v1580
    %v1609 = vadd.f32 %v1608, %v1582
    %v1610 = vadd.f32 %v1609, %v1584
    %v1611 = vadd.f32 %v1610, %v1586
    %v1612 = vadd.f32 %v1611, %v1588
    %v1613 = vadd.f32 %v1612, %v1590
    %v1614 = vadd.f32 %v1613, %v1592
    %v1615 = vadd.f32 %v1614, %v1594
    %v1616 = vadd.f32 %v1615, %v1596
    %v1617 = vadd.f32 %v1616, %v1598
    %v1618 = vadd.f32 %v1617, %v1600
    %v1619 = vadd.f32 %v1618, %v1602
    %v1620 = vadd.f32 %v1619, %v1604
    %v1621 = vadd.f32 %v1575, %v1577
    %v1622 = vadd.f32 %v1621, %v1579
    %v1623 = vadd.f32 %v1622, %v1581
    %v1624 = vadd.f32 %v1623, %v1583
    %v1625 = vadd.f32 %v1624, %v1585
    %v1626 = vadd.f32 %v1625, %v1587
    %v1627 = vadd.f32 %v1626, %v1589
    %v1628 = vadd.f32 %v1627, %v1591
    %v1629 = vadd.f32 %v1628, %v1593
    %v1630 = vadd.f32 %v1629, %v1595
    %v1631 = vadd.f32 %v1630, %v1597
    %v1632 = vadd.f32 %v1631, %v1599
    %v1633 = vadd.f32 %v1632, %v1601
    %v1634 = vadd.f32 %v1633, %v1603
    %v1635 = vadd.f32 %v1634, %v1605
    %v1636 = vstv %s1573
    %v1637 = vmul.f32 %v1636, %v1620
    %v1638 = vmul.f32 %v1636, %v1635
    %v1639 = vadd.f32 %v1371, %v1637
    %v1640 = vadd.f32 %v1372, %v1638
    %s1641 = sld [smem:[#allocation3 + $0xc]]
    %v1642 = vstv %s1641
    %v1643 = vmul.f32 %v1642, %v475
    %v1644 = vmul.f32 %v1642, %v476
    %v1645 = vmul.f32 %v1642, %v477
    %v1646 = vmul.f32 %v1642, %v478
    %v1647 = vmul.f32 %v1642, %v479
    %v1648 = vmul.f32 %v1642, %v480
    %v1649 = vmul.f32 %v1642, %v481
    %v1650 = vmul.f32 %v1642, %v482
    %v1651 = vmul.f32 %v1642, %v483
    %v1652 = vmul.f32 %v1642, %v484
    %v1653 = vmul.f32 %v1642, %v485
    %v1654 = vmul.f32 %v1642, %v486
    %v1655 = vmul.f32 %v1642, %v487
    %v1656 = vmul.f32 %v1642, %v488
    %v1657 = vmul.f32 %v1642, %v489
    %v1658 = vmul.f32 %v1642, %v490
    %v1659 = vmul.f32 %v1642, %v491
    %v1660 = vmul.f32 %v1642, %v492
    %v1661 = vmul.f32 %v1642, %v493
    %v1662 = vmul.f32 %v1642, %v494
    %v1663 = vmul.f32 %v1642, %v495
    %v1664 = vmul.f32 %v1642, %v496
    %v1665 = vmul.f32 %v1642, %v497
    %v1666 = vmul.f32 %v1642, %v498
    %v1667 = vmul.f32 %v1642, %v499
    %v1668 = vmul.f32 %v1642, %v500
    %v1669 = vmul.f32 %v1642, %v501
    %v1670 = vmul.f32 %v1642, %v502
    %v1671 = vmul.f32 %v1642, %v503
    %v1672 = vmul.f32 %v1642, %v504
    %v1673 = vmul.f32 %v1642, %v505
    %v1674 = vmul.f32 %v1642, %v506
    %s1675 = sld [smem:[#allocation3 + $0xd]]
    %v1676 = vstv %s1675
    %v1677 = vmul.f32 %v1676, %v507
    %v1678 = vmul.f32 %v1676, %v508
    %v1679 = vmul.f32 %v1676, %v509
    %v1680 = vmul.f32 %v1676, %v510
    %v1681 = vmul.f32 %v1676, %v511
    %v1682 = vmul.f32 %v1676, %v512
    %v1683 = vmul.f32 %v1676, %v513
    %v1684 = vmul.f32 %v1676, %v514
    %v1685 = vmul.f32 %v1676, %v515
    %v1686 = vmul.f32 %v1676, %v516
    %v1687 = vmul.f32 %v1676, %v517
    %v1688 = vmul.f32 %v1676, %v518
    %v1689 = vmul.f32 %v1676, %v519
    %v1690 = vmul.f32 %v1676, %v520
    %v1691 = vmul.f32 %v1676, %v521
    %v1692 = vmul.f32 %v1676, %v522
    %v1693 = vmul.f32 %v1676, %v523
    %v1694 = vmul.f32 %v1676, %v524
    %v1695 = vmul.f32 %v1676, %v525
    %v1696 = vmul.f32 %v1676, %v526
    %v1697 = vmul.f32 %v1676, %v527
    %v1698 = vmul.f32 %v1676, %v528
    %v1699 = vmul.f32 %v1676, %v529
    %v1700 = vmul.f32 %v1676, %v530
    %v1701 = vmul.f32 %v1676, %v531
    %v1702 = vmul.f32 %v1676, %v532
    %v1703 = vmul.f32 %v1676, %v533
    %v1704 = vmul.f32 %v1676, %v534
    %v1705 = vmul.f32 %v1676, %v535
    %v1706 = vmul.f32 %v1676, %v536
    %v1707 = vmul.f32 %v1676, %v537
    %v1708 = vmul.f32 %v1676, %v538
    %v1709 = vadd.f32 %v1643, %v1677
    %v1710 = vadd.f32 %v1644, %v1678
    %v1711 = vadd.f32 %v1645, %v1679
    %v1712 = vadd.f32 %v1646, %v1680
    %v1713 = vadd.f32 %v1647, %v1681
    %v1714 = vadd.f32 %v1648, %v1682
    %v1715 = vadd.f32 %v1649, %v1683
    %v1716 = vadd.f32 %v1650, %v1684
    %v1717 = vadd.f32 %v1651, %v1685
    %v1718 = vadd.f32 %v1652, %v1686
    %v1719 = vadd.f32 %v1653, %v1687
    %v1720 = vadd.f32 %v1654, %v1688
    %v1721 = vadd.f32 %v1655, %v1689
    %v1722 = vadd.f32 %v1656, %v1690
    %v1723 = vadd.f32 %v1657, %v1691
    %v1724 = vadd.f32 %v1658, %v1692
    %v1725 = vadd.f32 %v1659, %v1693
    %v1726 = vadd.f32 %v1660, %v1694
    %v1727 = vadd.f32 %v1661, %v1695
    %v1728 = vadd.f32 %v1662, %v1696
    %v1729 = vadd.f32 %v1663, %v1697
    %v1730 = vadd.f32 %v1664, %v1698
    %v1731 = vadd.f32 %v1665, %v1699
    %v1732 = vadd.f32 %v1666, %v1700
    %v1733 = vadd.f32 %v1667, %v1701
    %v1734 = vadd.f32 %v1668, %v1702
    %v1735 = vadd.f32 %v1669, %v1703
    %v1736 = vadd.f32 %v1670, %v1704
    %v1737 = vadd.f32 %v1671, %v1705
    %v1738 = vadd.f32 %v1672, %v1706
    %v1739 = vadd.f32 %v1673, %v1707
    %v1740 = vadd.f32 %v1674, %v1708
    %s1741 = sld [smem:[#allocation3 + $0xe]]
    %v1742 = vstv %s1741
    %v1743 = vmul.f32 %v1742, %v539
    %v1744 = vmul.f32 %v1742, %v540
    %v1745 = vmul.f32 %v1742, %v541
    %v1746 = vmul.f32 %v1742, %v542
    %v1747 = vmul.f32 %v1742, %v543
    %v1748 = vmul.f32 %v1742, %v544
    %v1749 = vmul.f32 %v1742, %v545
    %v1750 = vmul.f32 %v1742, %v546
    %v1751 = vmul.f32 %v1742, %v547
    %v1752 = vmul.f32 %v1742, %v548
    %v1753 = vmul.f32 %v1742, %v549
    %v1754 = vmul.f32 %v1742, %v550
    %v1755 = vmul.f32 %v1742, %v551
    %v1756 = vmul.f32 %v1742, %v552
    %v1757 = vmul.f32 %v1742, %v553
    %v1758 = vmul.f32 %v1742, %v554
    %v1759 = vmul.f32 %v1742, %v555
    %v1760 = vmul.f32 %v1742, %v556
    %v1761 = vmul.f32 %v1742, %v557
    %v1762 = vmul.f32 %v1742, %v558
    %v1763 = vmul.f32 %v1742, %v559
    %v1764 = vmul.f32 %v1742, %v560
    %v1765 = vmul.f32 %v1742, %v561
    %v1766 = vmul.f32 %v1742, %v562
    %v1767 = vmul.f32 %v1742, %v563
    %v1768 = vmul.f32 %v1742, %v564
    %v1769 = vmul.f32 %v1742, %v565
    %v1770 = vmul.f32 %v1742, %v566
    %v1771 = vmul.f32 %v1742, %v567
    %v1772 = vmul.f32 %v1742, %v568
    %v1773 = vmul.f32 %v1742, %v569
    %v1774 = vmul.f32 %v1742, %v570
    %v1775 = vadd.f32 %v1709, %v1743
    %v1776 = vadd.f32 %v1710, %v1744
    %v1777 = vadd.f32 %v1711, %v1745
    %v1778 = vadd.f32 %v1712, %v1746
    %v1779 = vadd.f32 %v1713, %v1747
    %v1780 = vadd.f32 %v1714, %v1748
    %v1781 = vadd.f32 %v1715, %v1749
    %v1782 = vadd.f32 %v1716, %v1750
    %v1783 = vadd.f32 %v1717, %v1751
    %v1784 = vadd.f32 %v1718, %v1752
    %v1785 = vadd.f32 %v1719, %v1753
    %v1786 = vadd.f32 %v1720, %v1754
    %v1787 = vadd.f32 %v1721, %v1755
    %v1788 = vadd.f32 %v1722, %v1756
    %v1789 = vadd.f32 %v1723, %v1757
    %v1790 = vadd.f32 %v1724, %v1758
    %v1791 = vadd.f32 %v1725, %v1759
    %v1792 = vadd.f32 %v1726, %v1760
    %v1793 = vadd.f32 %v1727, %v1761
    %v1794 = vadd.f32 %v1728, %v1762
    %v1795 = vadd.f32 %v1729, %v1763
    %v1796 = vadd.f32 %v1730, %v1764
    %v1797 = vadd.f32 %v1731, %v1765
    %v1798 = vadd.f32 %v1732, %v1766
    %v1799 = vadd.f32 %v1733, %v1767
    %v1800 = vadd.f32 %v1734, %v1768
    %v1801 = vadd.f32 %v1735, %v1769
    %v1802 = vadd.f32 %v1736, %v1770
    %v1803 = vadd.f32 %v1737, %v1771
    %v1804 = vadd.f32 %v1738, %v1772
    %v1805 = vadd.f32 %v1739, %v1773
    %v1806 = vadd.f32 %v1740, %v1774
    %s1807 = sld [smem:[#allocation5 + $0x4]]
    %v1808 = vstv %s1807
    %v1809 = vadd.f32 %v1775, %v1808
    %v1810 = vadd.f32 %v1776, %v1808
    %v1811 = vadd.f32 %v1777, %v1808
    %v1812 = vadd.f32 %v1778, %v1808
    %v1813 = vadd.f32 %v1779, %v1808
    %v1814 = vadd.f32 %v1780, %v1808
    %v1815 = vadd.f32 %v1781, %v1808
    %v1816 = vadd.f32 %v1782, %v1808
    %v1817 = vadd.f32 %v1783, %v1808
    %v1818 = vadd.f32 %v1784, %v1808
    %v1819 = vadd.f32 %v1785, %v1808
    %v1820 = vadd.f32 %v1786, %v1808
    %v1821 = vadd.f32 %v1787, %v1808
    %v1822 = vadd.f32 %v1788, %v1808
    %v1823 = vadd.f32 %v1789, %v1808
    %v1824 = vadd.f32 %v1790, %v1808
    %v1825 = vadd.f32 %v1791, %v1808
    %v1826 = vadd.f32 %v1792, %v1808
    %v1827 = vadd.f32 %v1793, %v1808
    %v1828 = vadd.f32 %v1794, %v1808
    %v1829 = vadd.f32 %v1795, %v1808
    %v1830 = vadd.f32 %v1796, %v1808
    %v1831 = vadd.f32 %v1797, %v1808
    %v1832 = vadd.f32 %v1798, %v1808
    %v1833 = vadd.f32 %v1799, %v1808
    %v1834 = vadd.f32 %v1800, %v1808
    %v1835 = vadd.f32 %v1801, %v1808
    %v1836 = vadd.f32 %v1802, %v1808
    %v1837 = vadd.f32 %v1803, %v1808
    %v1838 = vadd.f32 %v1804, %v1808
    %v1839 = vadd.f32 %v1805, %v1808
    %v1840 = vadd.f32 %v1806, %v1808
    %s1841 = sld [smem:[#allocation7 + $0x4]]
    %v1842 = vtanh.pop %v1809
    %v1843 = vtanh.pop %v1810
    %v1844 = vtanh.pop %v1811
    %v1845 = vtanh.pop %v1812
    %v1846 = vtanh.pop %v1813
    %v1847 = vtanh.pop %v1814
    %v1848 = vtanh.pop %v1815
    %v1849 = vtanh.pop %v1816
    %v1850 = vtanh.pop %v1817
    %v1851 = vtanh.pop %v1818
    %v1852 = vtanh.pop %v1819
    %v1853 = vtanh.pop %v1820
    %v1854 = vtanh.pop %v1821
    %v1855 = vtanh.pop %v1822
    %v1856 = vtanh.pop %v1823
    %v1857 = vtanh.pop %v1824
    %v1858 = vtanh.pop %v1825
    %v1859 = vtanh.pop %v1826
    %v1860 = vtanh.pop %v1827
    %v1861 = vtanh.pop %v1828
    %v1862 = vtanh.pop %v1829
    %v1863 = vtanh.pop %v1830
    %v1864 = vtanh.pop %v1831
    %v1865 = vtanh.pop %v1832
    %v1866 = vtanh.pop %v1833
    %v1867 = vtanh.pop %v1834
    %v1868 = vtanh.pop %v1835
    %v1869 = vtanh.pop %v1836
    %v1870 = vtanh.pop %v1837
    %v1871 = vtanh.pop %v1838
    %v1872 = vtanh.pop %v1839
    %v1873 = vtanh.pop %v1840
    %v1874 = vadd.f32 %v1842, %v1844
    %v1875 = vadd.f32 %v1874, %v1846
    %v1876 = vadd.f32 %v1875, %v1848
    %v1877 = vadd.f32 %v1876, %v1850
    %v1878 = vadd.f32 %v1877, %v1852
    %v1879 = vadd.f32 %v1878, %v1854
    %v1880 = vadd.f32 %v1879, %v1856
    %v1881 = vadd.f32 %v1880, %v1858
    %v1882 = vadd.f32 %v1881, %v1860
    %v1883 = vadd.f32 %v1882, %v1862
    %v1884 = vadd.f32 %v1883, %v1864
    %v1885 = vadd.f32 %v1884, %v1866
    %v1886 = vadd.f32 %v1885, %v1868
    %v1887 = vadd.f32 %v1886, %v1870
    %v1888 = vadd.f32 %v1887, %v1872
    %v1889 = vadd.f32 %v1843, %v1845
    %v1890 = vadd.f32 %v1889, %v1847
    %v1891 = vadd.f32 %v1890, %v1849
    %v1892 = vadd.f32 %v1891, %v1851
    %v1893 = vadd.f32 %v1892, %v1853
    %v1894 = vadd.f32 %v1893, %v1855
    %v1895 = vadd.f32 %v1894, %v1857
    %v1896 = vadd.f32 %v1895, %v1859
    %v1897 = vadd.f32 %v1896, %v1861
    %v1898 = vadd.f32 %v1897, %v1863
    %v1899 = vadd.f32 %v1898, %v1865
    %v1900 = vadd.f32 %v1899, %v1867
    %v1901 = vadd.f32 %v1900, %v1869
    %v1902 = vadd.f32 %v1901, %v1871
    %v1903 = vadd.f32 %v1902, %v1873
    %v1904 = vstv %s1841
    %v1905 = vmul.f32 %v1904, %v1888
    %v1906 = vmul.f32 %v1904, %v1903
    %v1907 = vadd.f32 %v1639, %v1905
    %v1908 = vadd.f32 %v1640, %v1906
    %s1909 = sld [smem:[#allocation3 + $0xf]]
    %v1910 = vstv %s1909
    %v1911 = vmul.f32 %v1910, %v475
    %v1912 = vmul.f32 %v1910, %v476
    %v1913 = vmul.f32 %v1910, %v477
    %v1914 = vmul.f32 %v1910, %v478
    %v1915 = vmul.f32 %v1910, %v479
    %v1916 = vmul.f32 %v1910, %v480
    %v1917 = vmul.f32 %v1910, %v481
    %v1918 = vmul.f32 %v1910, %v482
    %v1919 = vmul.f32 %v1910, %v483
    %v1920 = vmul.f32 %v1910, %v484
    %v1921 = vmul.f32 %v1910, %v485
    %v1922 = vmul.f32 %v1910, %v486
    %v1923 = vmul.f32 %v1910, %v487
    %v1924 = vmul.f32 %v1910, %v488
    %v1925 = vmul.f32 %v1910, %v489
    %v1926 = vmul.f32 %v1910, %v490
    %v1927 = vmul.f32 %v1910, %v491
    %v1928 = vmul.f32 %v1910, %v492
    %v1929 = vmul.f32 %v1910, %v493
    %v1930 = vmul.f32 %v1910, %v494
    %v1931 = vmul.f32 %v1910, %v495
    %v1932 = vmul.f32 %v1910, %v496
    %v1933 = vmul.f32 %v1910, %v497
    %v1934 = vmul.f32 %v1910, %v498
    %v1935 = vmul.f32 %v1910, %v499
    %v1936 = vmul.f32 %v1910, %v500
    %v1937 = vmul.f32 %v1910, %v501
    %v1938 = vmul.f32 %v1910, %v502
    %v1939 = vmul.f32 %v1910, %v503
    %v1940 = vmul.f32 %v1910, %v504
    %v1941 = vmul.f32 %v1910, %v505
    %v1942 = vmul.f32 %v1910, %v506
    %s1943 = sld [smem:[#allocation3 + $0x10]]
    %v1944 = vstv %s1943
    %v1945 = vmul.f32 %v1944, %v507
    %v1946 = vmul.f32 %v1944, %v508
    %v1947 = vmul.f32 %v1944, %v509
    %v1948 = vmul.f32 %v1944, %v510
    %v1949 = vmul.f32 %v1944, %v511
    %v1950 = vmul.f32 %v1944, %v512
    %v1951 = vmul.f32 %v1944, %v513
    %v1952 = vmul.f32 %v1944, %v514
    %v1953 = vmul.f32 %v1944, %v515
    %v1954 = vmul.f32 %v1944, %v516
    %v1955 = vmul.f32 %v1944, %v517
    %v1956 = vmul.f32 %v1944, %v518
    %v1957 = vmul.f32 %v1944, %v519
    %v1958 = vmul.f32 %v1944, %v520
    %v1959 = vmul.f32 %v1944, %v521
    %v1960 = vmul.f32 %v1944, %v522
    %v1961 = vmul.f32 %v1944, %v523
    %v1962 = vmul.f32 %v1944, %v524
    %v1963 = vmul.f32 %v1944, %v525
    %v1964 = vmul.f32 %v1944, %v526
    %v1965 = vmul.f32 %v1944, %v527
    %v1966 = vmul.f32 %v1944, %v528
    %v1967 = vmul.f32 %v1944, %v529
    %v1968 = vmul.f32 %v1944, %v530
    %v1969 = vmul.f32 %v1944, %v531
    %v1970 = vmul.f32 %v1944, %v532
    %v1971 = vmul.f32 %v1944, %v533
    %v1972 = vmul.f32 %v1944, %v534
    %v1973 = vmul.f32 %v1944, %v535
    %v1974 = vmul.f32 %v1944, %v536
    %v1975 = vmul.f32 %v1944, %v537
    %v1976 = vmul.f32 %v1944, %v538
    %v1977 = vadd.f32 %v1911, %v1945
    %v1978 = vadd.f32 %v1912, %v1946
    %v1979 = vadd.f32 %v1913, %v1947
    %v1980 = vadd.f32 %v1914, %v1948
    %v1981 = vadd.f32 %v1915, %v1949
    %v1982 = vadd.f32 %v1916, %v1950
    %v1983 = vadd.f32 %v1917, %v1951
    %v1984 = vadd.f32 %v1918, %v1952
    %v1985 = vadd.f32 %v1919, %v1953
    %v1986 = vadd.f32 %v1920, %v1954
    %v1987 = vadd.f32 %v1921, %v1955
    %v1988 = vadd.f32 %v1922, %v1956
    %v1989 = vadd.f32 %v1923, %v1957
    %v1990 = vadd.f32 %v1924, %v1958
    %v1991 = vadd.f32 %v1925, %v1959
    %v1992 = vadd.f32 %v1926, %v1960
    %v1993 = vadd.f32 %v1927, %v1961
    %v1994 = vadd.f32 %v1928, %v1962
    %v1995 = vadd.f32 %v1929, %v1963
    %v1996 = vadd.f32 %v1930, %v1964
    %v1997 = vadd.f32 %v1931, %v1965
    %v1998 = vadd.f32 %v1932, %v1966
    %v1999 = vadd.f32 %v1933, %v1967
    %v2000 = vadd.f32 %v1934, %v1968
    %v2001 = vadd.f32 %v1935, %v1969
    %v2002 = vadd.f32 %v1936, %v1970
    %v2003 = vadd.f32 %v1937, %v1971
    %v2004 = vadd.f32 %v1938, %v1972
    %v2005 = vadd.f32 %v1939, %v1973
    %v2006 = vadd.f32 %v1940, %v1974
    %v2007 = vadd.f32 %v1941, %v1975
    %v2008 = vadd.f32 %v1942, %v1976
    %s2009 = sld [smem:[#allocation3 + $0x11]]
    %v2010 = vstv %s2009
    %v2011 = vmul.f32 %v2010, %v539
    %v2012 = vmul.f32 %v2010, %v540
    %v2013 = vmul.f32 %v2010, %v541
    %v2014 = vmul.f32 %v2010, %v542
    %v2015 = vmul.f32 %v2010, %v543
    %v2016 = vmul.f32 %v2010, %v544
    %v2017 = vmul.f32 %v2010, %v545
    %v2018 = vmul.f32 %v2010, %v546
    %v2019 = vmul.f32 %v2010, %v547
    %v2020 = vmul.f32 %v2010, %v548
    %v2021 = vmul.f32 %v2010, %v549
    %v2022 = vmul.f32 %v2010, %v550
    %v2023 = vmul.f32 %v2010, %v551
    %v2024 = vmul.f32 %v2010, %v552
    %v2025 = vmul.f32 %v2010, %v553
    %v2026 = vmul.f32 %v2010, %v554
    %v2027 = vmul.f32 %v2010, %v555
    %v2028 = vmul.f32 %v2010, %v556
    %v2029 = vmul.f32 %v2010, %v557
    %v2030 = vmul.f32 %v2010, %v558
    %v2031 = vmul.f32 %v2010, %v559
    %v2032 = vmul.f32 %v2010, %v560
    %v2033 = vmul.f32 %v2010, %v561
    %v2034 = vmul.f32 %v2010, %v562
    %v2035 = vmul.f32 %v2010, %v563
    %v2036 = vmul.f32 %v2010, %v564
    %v2037 = vmul.f32 %v2010, %v565
    %v2038 = vmul.f32 %v2010, %v566
    %v2039 = vmul.f32 %v2010, %v567
    %v2040 = vmul.f32 %v2010, %v568
    %v2041 = vmul.f32 %v2010, %v569
    %v2042 = vmul.f32 %v2010, %v570
    %v2043 = vadd.f32 %v1977, %v2011
    %v2044 = vadd.f32 %v1978, %v2012
    %v2045 = vadd.f32 %v1979, %v2013
    %v2046 = vadd.f32 %v1980, %v2014
    %v2047 = vadd.f32 %v1981, %v2015
    %v2048 = vadd.f32 %v1982, %v2016
    %v2049 = vadd.f32 %v1983, %v2017
    %v2050 = vadd.f32 %v1984, %v2018
    %v2051 = vadd.f32 %v1985, %v2019
    %v2052 = vadd.f32 %v1986, %v2020
    %v2053 = vadd.f32 %v1987, %v2021
    %v2054 = vadd.f32 %v1988, %v2022
    %v2055 = vadd.f32 %v1989, %v2023
    %v2056 = vadd.f32 %v1990, %v2024
    %v2057 = vadd.f32 %v1991, %v2025
    %v2058 = vadd.f32 %v1992, %v2026
    %v2059 = vadd.f32 %v1993, %v2027
    %v2060 = vadd.f32 %v1994, %v2028
    %v2061 = vadd.f32 %v1995, %v2029
    %v2062 = vadd.f32 %v1996, %v2030
    %v2063 = vadd.f32 %v1997, %v2031
    %v2064 = vadd.f32 %v1998, %v2032
    %v2065 = vadd.f32 %v1999, %v2033
    %v2066 = vadd.f32 %v2000, %v2034
    %v2067 = vadd.f32 %v2001, %v2035
    %v2068 = vadd.f32 %v2002, %v2036
    %v2069 = vadd.f32 %v2003, %v2037
    %v2070 = vadd.f32 %v2004, %v2038
    %v2071 = vadd.f32 %v2005, %v2039
    %v2072 = vadd.f32 %v2006, %v2040
    %v2073 = vadd.f32 %v2007, %v2041
    %v2074 = vadd.f32 %v2008, %v2042
    %s2075 = sld [smem:[#allocation5 + $0x5]]
    %v2076 = vstv %s2075
    %v2077 = vadd.f32 %v2043, %v2076
    %v2078 = vadd.f32 %v2044, %v2076
    %v2079 = vadd.f32 %v2045, %v2076
    %v2080 = vadd.f32 %v2046, %v2076
    %v2081 = vadd.f32 %v2047, %v2076
    %v2082 = vadd.f32 %v2048, %v2076
    %v2083 = vadd.f32 %v2049, %v2076
    %v2084 = vadd.f32 %v2050, %v2076
    %v2085 = vadd.f32 %v2051, %v2076
    %v2086 = vadd.f32 %v2052, %v2076
    %v2087 = vadd.f32 %v2053, %v2076
    %v2088 = vadd.f32 %v2054, %v2076
    %v2089 = vadd.f32 %v2055, %v2076
    %v2090 = vadd.f32 %v2056, %v2076
    %v2091 = vadd.f32 %v2057, %v2076
    %v2092 = vadd.f32 %v2058, %v2076
    %v2093 = vadd.f32 %v2059, %v2076
    %v2094 = vadd.f32 %v2060, %v2076
    %v2095 = vadd.f32 %v2061, %v2076
    %v2096 = vadd.f32 %v2062, %v2076
    %v2097 = vadd.f32 %v2063, %v2076
    %v2098 = vadd.f32 %v2064, %v2076
    %v2099 = vadd.f32 %v2065, %v2076
    %v2100 = vadd.f32 %v2066, %v2076
    %v2101 = vadd.f32 %v2067, %v2076
    %v2102 = vadd.f32 %v2068, %v2076
    %v2103 = vadd.f32 %v2069, %v2076
    %v2104 = vadd.f32 %v2070, %v2076
    %v2105 = vadd.f32 %v2071, %v2076
    %v2106 = vadd.f32 %v2072, %v2076
    %v2107 = vadd.f32 %v2073, %v2076
    %v2108 = vadd.f32 %v2074, %v2076
    %s2109 = sld [smem:[#allocation7 + $0x5]]
    %v2110 = vtanh.pop %v2077
    %v2111 = vtanh.pop %v2078
    %v2112 = vtanh.pop %v2079
    %v2113 = vtanh.pop %v2080
    %v2114 = vtanh.pop %v2081
    %v2115 = vtanh.pop %v2082
    %v2116 = vtanh.pop %v2083
    %v2117 = vtanh.pop %v2084
    %v2118 = vtanh.pop %v2085
    %v2119 = vtanh.pop %v2086
    %v2120 = vtanh.pop %v2087
    %v2121 = vtanh.pop %v2088
    %v2122 = vtanh.pop %v2089
    %v2123 = vtanh.pop %v2090
    %v2124 = vtanh.pop %v2091
    %v2125 = vtanh.pop %v2092
    %v2126 = vtanh.pop %v2093
    %v2127 = vtanh.pop %v2094
    %v2128 = vtanh.pop %v2095
    %v2129 = vtanh.pop %v2096
    %v2130 = vtanh.pop %v2097
    %v2131 = vtanh.pop %v2098
    %v2132 = vtanh.pop %v2099
    %v2133 = vtanh.pop %v2100
    %v2134 = vtanh.pop %v2101
    %v2135 = vtanh.pop %v2102
    %v2136 = vtanh.pop %v2103
    %v2137 = vtanh.pop %v2104
    %v2138 = vtanh.pop %v2105
    %v2139 = vtanh.pop %v2106
    %v2140 = vtanh.pop %v2107
    %v2141 = vtanh.pop %v2108
    %v2142 = vadd.f32 %v2110, %v2112
    %v2143 = vadd.f32 %v2142, %v2114
    %v2144 = vadd.f32 %v2143, %v2116
    %v2145 = vadd.f32 %v2144, %v2118
    %v2146 = vadd.f32 %v2145, %v2120
    %v2147 = vadd.f32 %v2146, %v2122
    %v2148 = vadd.f32 %v2147, %v2124
    %v2149 = vadd.f32 %v2148, %v2126
    %v2150 = vadd.f32 %v2149, %v2128
    %v2151 = vadd.f32 %v2150, %v2130
    %v2152 = vadd.f32 %v2151, %v2132
    %v2153 = vadd.f32 %v2152, %v2134
    %v2154 = vadd.f32 %v2153, %v2136
    %v2155 = vadd.f32 %v2154, %v2138
    %v2156 = vadd.f32 %v2155, %v2140
    %v2157 = vadd.f32 %v2111, %v2113
    %v2158 = vadd.f32 %v2157, %v2115
    %v2159 = vadd.f32 %v2158, %v2117
    %v2160 = vadd.f32 %v2159, %v2119
    %v2161 = vadd.f32 %v2160, %v2121
    %v2162 = vadd.f32 %v2161, %v2123
    %v2163 = vadd.f32 %v2162, %v2125
    %v2164 = vadd.f32 %v2163, %v2127
    %v2165 = vadd.f32 %v2164, %v2129
    %v2166 = vadd.f32 %v2165, %v2131
    %v2167 = vadd.f32 %v2166, %v2133
    %v2168 = vadd.f32 %v2167, %v2135
    %v2169 = vadd.f32 %v2168, %v2137
    %v2170 = vadd.f32 %v2169, %v2139
    %v2171 = vadd.f32 %v2170, %v2141
    %v2172 = vstv %s2109
    %v2173 = vmul.f32 %v2172, %v2156
    %v2174 = vmul.f32 %v2172, %v2171
    %v2175 = vadd.f32 %v1907, %v2173
    %v2176 = vadd.f32 %v1908, %v2174
    %s2177 = sld [smem:[#allocation3 + $0x12]]
    %v2178 = vstv %s2177
    %v2179 = vmul.f32 %v2178, %v475
    %v2180 = vmul.f32 %v2178, %v476
    %v2181 = vmul.f32 %v2178, %v477
    %v2182 = vmul.f32 %v2178, %v478
    %v2183 = vmul.f32 %v2178, %v479
    %v2184 = vmul.f32 %v2178, %v480
    %v2185 = vmul.f32 %v2178, %v481
    %v2186 = vmul.f32 %v2178, %v482
    %v2187 = vmul.f32 %v2178, %v483
    %v2188 = vmul.f32 %v2178, %v484
    %v2189 = vmul.f32 %v2178, %v485
    %v2190 = vmul.f32 %v2178, %v486
    %v2191 = vmul.f32 %v2178, %v487
    %v2192 = vmul.f32 %v2178, %v488
    %v2193 = vmul.f32 %v2178, %v489
    %v2194 = vmul.f32 %v2178, %v490
    %v2195 = vmul.f32 %v2178, %v491
    %v2196 = vmul.f32 %v2178, %v492
    %v2197 = vmul.f32 %v2178, %v493
    %v2198 = vmul.f32 %v2178, %v494
    %v2199 = vmul.f32 %v2178, %v495
    %v2200 = vmul.f32 %v2178, %v496
    %v2201 = vmul.f32 %v2178, %v497
    %v2202 = vmul.f32 %v2178, %v498
    %v2203 = vmul.f32 %v2178, %v499
    %v2204 = vmul.f32 %v2178, %v500
    %v2205 = vmul.f32 %v2178, %v501
    %v2206 = vmul.f32 %v2178, %v502
    %v2207 = vmul.f32 %v2178, %v503
    %v2208 = vmul.f32 %v2178, %v504
    %v2209 = vmul.f32 %v2178, %v505
    %v2210 = vmul.f32 %v2178, %v506
    %s2211 = sld [smem:[#allocation3 + $0x13]]
    %v2212 = vstv %s2211
    %v2213 = vmul.f32 %v2212, %v507
    %v2214 = vmul.f32 %v2212, %v508
    %v2215 = vmul.f32 %v2212, %v509
    %v2216 = vmul.f32 %v2212, %v510
    %v2217 = vmul.f32 %v2212, %v511
    %v2218 = vmul.f32 %v2212, %v512
    %v2219 = vmul.f32 %v2212, %v513
    %v2220 = vmul.f32 %v2212, %v514
    %v2221 = vmul.f32 %v2212, %v515
    %v2222 = vmul.f32 %v2212, %v516
    %v2223 = vmul.f32 %v2212, %v517
    %v2224 = vmul.f32 %v2212, %v518
    %v2225 = vmul.f32 %v2212, %v519
    %v2226 = vmul.f32 %v2212, %v520
    %v2227 = vmul.f32 %v2212, %v521
    %v2228 = vmul.f32 %v2212, %v522
    %v2229 = vmul.f32 %v2212, %v523
    %v2230 = vmul.f32 %v2212, %v524
    %v2231 = vmul.f32 %v2212, %v525
    %v2232 = vmul.f32 %v2212, %v526
    %v2233 = vmul.f32 %v2212, %v527
    %v2234 = vmul.f32 %v2212, %v528
    %v2235 = vmul.f32 %v2212, %v529
    %v2236 = vmul.f32 %v2212, %v530
    %v2237 = vmul.f32 %v2212, %v531
    %v2238 = vmul.f32 %v2212, %v532
    %v2239 = vmul.f32 %v2212, %v533
    %v2240 = vmul.f32 %v2212, %v534
    %v2241 = vmul.f32 %v2212, %v535
    %v2242 = vmul.f32 %v2212, %v536
    %v2243 = vmul.f32 %v2212, %v537
    %v2244 = vmul.f32 %v2212, %v538
    %v2245 = vadd.f32 %v2179, %v2213
    %v2246 = vadd.f32 %v2180, %v2214
    %v2247 = vadd.f32 %v2181, %v2215
    %v2248 = vadd.f32 %v2182, %v2216
    %v2249 = vadd.f32 %v2183, %v2217
    %v2250 = vadd.f32 %v2184, %v2218
    %v2251 = vadd.f32 %v2185, %v2219
    %v2252 = vadd.f32 %v2186, %v2220
    %v2253 = vadd.f32 %v2187, %v2221
    %v2254 = vadd.f32 %v2188, %v2222
    %v2255 = vadd.f32 %v2189, %v2223
    %v2256 = vadd.f32 %v2190, %v2224
    %v2257 = vadd.f32 %v2191, %v2225
    %v2258 = vadd.f32 %v2192, %v2226
    %v2259 = vadd.f32 %v2193, %v2227
    %v2260 = vadd.f32 %v2194, %v2228
    %v2261 = vadd.f32 %v2195, %v2229
    %v2262 = vadd.f32 %v2196, %v2230
    %v2263 = vadd.f32 %v2197, %v2231
    %v2264 = vadd.f32 %v2198, %v2232
    %v2265 = vadd.f32 %v2199, %v2233
    %v2266 = vadd.f32 %v2200, %v2234
    %v2267 = vadd.f32 %v2201, %v2235
    %v2268 = vadd.f32 %v2202, %v2236
    %v2269 = vadd.f32 %v2203, %v2237
    %v2270 = vadd.f32 %v2204, %v2238
    %v2271 = vadd.f32 %v2205, %v2239
    %v2272 = vadd.f32 %v2206, %v2240
    %v2273 = vadd.f32 %v2207, %v2241
    %v2274 = vadd.f32 %v2208, %v2242
    %v2275 = vadd.f32 %v2209, %v2243
    %v2276 = vadd.f32 %v2210, %v2244
    %s2277 = sld [smem:[#allocation3 + $0x14]]
    %v2278 = vstv %s2277
    %v2279 = vmul.f32 %v2278, %v539
    %v2280 = vmul.f32 %v2278, %v540
    %v2281 = vmul.f32 %v2278, %v541
    %v2282 = vmul.f32 %v2278, %v542
    %v2283 = vmul.f32 %v2278, %v543
    %v2284 = vmul.f32 %v2278, %v544
    %v2285 = vmul.f32 %v2278, %v545
    %v2286 = vmul.f32 %v2278, %v546
    %v2287 = vmul.f32 %v2278, %v547
    %v2288 = vmul.f32 %v2278, %v548
    %v2289 = vmul.f32 %v2278, %v549
    %v2290 = vmul.f32 %v2278, %v550
    %v2291 = vmul.f32 %v2278, %v551
    %v2292 = vmul.f32 %v2278, %v552
    %v2293 = vmul.f32 %v2278, %v553
    %v2294 = vmul.f32 %v2278, %v554
    %v2295 = vmul.f32 %v2278, %v555
    %v2296 = vmul.f32 %v2278, %v556
    %v2297 = vmul.f32 %v2278, %v557
    %v2298 = vmul.f32 %v2278, %v558
    %v2299 = vmul.f32 %v2278, %v559
    %v2300 = vmul.f32 %v2278, %v560
    %v2301 = vmul.f32 %v2278, %v561
    %v2302 = vmul.f32 %v2278, %v562
    %v2303 = vmul.f32 %v2278, %v563
    %v2304 = vmul.f32 %v2278, %v564
    %v2305 = vmul.f32 %v2278, %v565
    %v2306 = vmul.f32 %v2278, %v566
    %v2307 = vmul.f32 %v2278, %v567
    %v2308 = vmul.f32 %v2278, %v568
    %v2309 = vmul.f32 %v2278, %v569
    %v2310 = vmul.f32 %v2278, %v570
    %v2311 = vadd.f32 %v2245, %v2279
    %v2312 = vadd.f32 %v2246, %v2280
    %v2313 = vadd.f32 %v2247, %v2281
    %v2314 = vadd.f32 %v2248, %v2282
    %v2315 = vadd.f32 %v2249, %v2283
    %v2316 = vadd.f32 %v2250, %v2284
    %v2317 = vadd.f32 %v2251, %v2285
    %v2318 = vadd.f32 %v2252, %v2286
    %v2319 = vadd.f32 %v2253, %v2287
    %v2320 = vadd.f32 %v2254, %v2288
    %v2321 = vadd.f32 %v2255, %v2289
    %v2322 = vadd.f32 %v2256, %v2290
    %v2323 = vadd.f32 %v2257, %v2291
    %v2324 = vadd.f32 %v2258, %v2292
    %v2325 = vadd.f32 %v2259, %v2293
    %v2326 = vadd.f32 %v2260, %v2294
    %v2327 = vadd.f32 %v2261, %v2295
    %v2328 = vadd.f32 %v2262, %v2296
    %v2329 = vadd.f32 %v2263, %v2297
    %v2330 = vadd.f32 %v2264, %v2298
    %v2331 = vadd.f32 %v2265, %v2299
    %v2332 = vadd.f32 %v2266, %v2300
    %v2333 = vadd.f32 %v2267, %v2301
    %v2334 = vadd.f32 %v2268, %v2302
    %v2335 = vadd.f32 %v2269, %v2303
    %v2336 = vadd.f32 %v2270, %v2304
    %v2337 = vadd.f32 %v2271, %v2305
    %v2338 = vadd.f32 %v2272, %v2306
    %v2339 = vadd.f32 %v2273, %v2307
    %v2340 = vadd.f32 %v2274, %v2308
    %v2341 = vadd.f32 %v2275, %v2309
    %v2342 = vadd.f32 %v2276, %v2310
    %s2343 = sld [smem:[#allocation5 + $0x6]]
    %v2344 = vstv %s2343
    %v2345 = vadd.f32 %v2311, %v2344
    %v2346 = vadd.f32 %v2312, %v2344
    %v2347 = vadd.f32 %v2313, %v2344
    %v2348 = vadd.f32 %v2314, %v2344
    %v2349 = vadd.f32 %v2315, %v2344
    %v2350 = vadd.f32 %v2316, %v2344
    %v2351 = vadd.f32 %v2317, %v2344
    %v2352 = vadd.f32 %v2318, %v2344
    %v2353 = vadd.f32 %v2319, %v2344
    %v2354 = vadd.f32 %v2320, %v2344
    %v2355 = vadd.f32 %v2321, %v2344
    %v2356 = vadd.f32 %v2322, %v2344
    %v2357 = vadd.f32 %v2323, %v2344
    %v2358 = vadd.f32 %v2324, %v2344
    %v2359 = vadd.f32 %v2325, %v2344
    %v2360 = vadd.f32 %v2326, %v2344
    %v2361 = vadd.f32 %v2327, %v2344
    %v2362 = vadd.f32 %v2328, %v2344
    %v2363 = vadd.f32 %v2329, %v2344
    %v2364 = vadd.f32 %v2330, %v2344
    %v2365 = vadd.f32 %v2331, %v2344
    %v2366 = vadd.f32 %v2332, %v2344
    %v2367 = vadd.f32 %v2333, %v2344
    %v2368 = vadd.f32 %v2334, %v2344
    %v2369 = vadd.f32 %v2335, %v2344
    %v2370 = vadd.f32 %v2336, %v2344
    %v2371 = vadd.f32 %v2337, %v2344
    %v2372 = vadd.f32 %v2338, %v2344
    %v2373 = vadd.f32 %v2339, %v2344
    %v2374 = vadd.f32 %v2340, %v2344
    %v2375 = vadd.f32 %v2341, %v2344
    %v2376 = vadd.f32 %v2342, %v2344
    %s2377 = sld [smem:[#allocation7 + $0x6]]
    %v2378 = vtanh.pop %v2345
    %v2379 = vtanh.pop %v2346
    %v2380 = vtanh.pop %v2347
    %v2381 = vtanh.pop %v2348
    %v2382 = vtanh.pop %v2349
    %v2383 = vtanh.pop %v2350
    %v2384 = vtanh.pop %v2351
    %v2385 = vtanh.pop %v2352
    %v2386 = vtanh.pop %v2353
    %v2387 = vtanh.pop %v2354
    %v2388 = vtanh.pop %v2355
    %v2389 = vtanh.pop %v2356
    %v2390 = vtanh.pop %v2357
    %v2391 = vtanh.pop %v2358
    %v2392 = vtanh.pop %v2359
    %v2393 = vtanh.pop %v2360
    %v2394 = vtanh.pop %v2361
    %v2395 = vtanh.pop %v2362
    %v2396 = vtanh.pop %v2363
    %v2397 = vtanh.pop %v2364
    %v2398 = vtanh.pop %v2365
    %v2399 = vtanh.pop %v2366
    %v2400 = vtanh.pop %v2367
    %v2401 = vtanh.pop %v2368
    %v2402 = vtanh.pop %v2369
    %v2403 = vtanh.pop %v2370
    %v2404 = vtanh.pop %v2371
    %v2405 = vtanh.pop %v2372
    %v2406 = vtanh.pop %v2373
    %v2407 = vtanh.pop %v2374
    %v2408 = vtanh.pop %v2375
    %v2409 = vtanh.pop %v2376
    %v2410 = vadd.f32 %v2378, %v2380
    %v2411 = vadd.f32 %v2410, %v2382
    %v2412 = vadd.f32 %v2411, %v2384
    %v2413 = vadd.f32 %v2412, %v2386
    %v2414 = vadd.f32 %v2413, %v2388
    %v2415 = vadd.f32 %v2414, %v2390
    %v2416 = vadd.f32 %v2415, %v2392
    %v2417 = vadd.f32 %v2416, %v2394
    %v2418 = vadd.f32 %v2417, %v2396
    %v2419 = vadd.f32 %v2418, %v2398
    %v2420 = vadd.f32 %v2419, %v2400
    %v2421 = vadd.f32 %v2420, %v2402
    %v2422 = vadd.f32 %v2421, %v2404
    %v2423 = vadd.f32 %v2422, %v2406
    %v2424 = vadd.f32 %v2423, %v2408
    %v2425 = vadd.f32 %v2379, %v2381
    %v2426 = vadd.f32 %v2425, %v2383
    %v2427 = vadd.f32 %v2426, %v2385
    %v2428 = vadd.f32 %v2427, %v2387
    %v2429 = vadd.f32 %v2428, %v2389
    %v2430 = vadd.f32 %v2429, %v2391
    %v2431 = vadd.f32 %v2430, %v2393
    %v2432 = vadd.f32 %v2431, %v2395
    %v2433 = vadd.f32 %v2432, %v2397
    %v2434 = vadd.f32 %v2433, %v2399
    %v2435 = vadd.f32 %v2434, %v2401
    %v2436 = vadd.f32 %v2435, %v2403
    %v2437 = vadd.f32 %v2436, %v2405
    %v2438 = vadd.f32 %v2437, %v2407
    %v2439 = vadd.f32 %v2438, %v2409
    %v2440 = vstv %s2377
    %v2441 = vmul.f32 %v2440, %v2424
    %v2442 = vmul.f32 %v2440, %v2439
    %v2443 = vadd.f32 %v2175, %v2441
    %v2444 = vadd.f32 %v2176, %v2442
    %s2445 = sld [smem:[#allocation3 + $0x15]]
    %v2446 = vstv %s2445
    %v2447 = vmul.f32 %v2446, %v475
    %v2448 = vmul.f32 %v2446, %v476
    %v2449 = vmul.f32 %v2446, %v477
    %v2450 = vmul.f32 %v2446, %v478
    %v2451 = vmul.f32 %v2446, %v479
    %v2452 = vmul.f32 %v2446, %v480
    %v2453 = vmul.f32 %v2446, %v481
    %v2454 = vmul.f32 %v2446, %v482
    %v2455 = vmul.f32 %v2446, %v483
    %v2456 = vmul.f32 %v2446, %v484
    %v2457 = vmul.f32 %v2446, %v485
    %v2458 = vmul.f32 %v2446, %v486
    %v2459 = vmul.f32 %v2446, %v487
    %v2460 = vmul.f32 %v2446, %v488
    %v2461 = vmul.f32 %v2446, %v489
    %v2462 = vmul.f32 %v2446, %v490
    %v2463 = vmul.f32 %v2446, %v491
    %v2464 = vmul.f32 %v2446, %v492
    %v2465 = vmul.f32 %v2446, %v493
    %v2466 = vmul.f32 %v2446, %v494
    %v2467 = vmul.f32 %v2446, %v495
    %v2468 = vmul.f32 %v2446, %v496
    %v2469 = vmul.f32 %v2446, %v497
    %v2470 = vmul.f32 %v2446, %v498
    %v2471 = vmul.f32 %v2446, %v499
    %v2472 = vmul.f32 %v2446, %v500
    %v2473 = vmul.f32 %v2446, %v501
    %v2474 = vmul.f32 %v2446, %v502
    %v2475 = vmul.f32 %v2446, %v503
    %v2476 = vmul.f32 %v2446, %v504
    %v2477 = vmul.f32 %v2446, %v505
    %v2478 = vmul.f32 %v2446, %v506
    %s2479 = sld [smem:[#allocation3 + $0x16]]
    %v2480 = vstv %s2479
    %v2481 = vmul.f32 %v2480, %v507
    %v2482 = vmul.f32 %v2480, %v508
    %v2483 = vmul.f32 %v2480, %v509
    %v2484 = vmul.f32 %v2480, %v510
    %v2485 = vmul.f32 %v2480, %v511
    %v2486 = vmul.f32 %v2480, %v512
    %v2487 = vmul.f32 %v2480, %v513
    %v2488 = vmul.f32 %v2480, %v514
    %v2489 = vmul.f32 %v2480, %v515
    %v2490 = vmul.f32 %v2480, %v516
    %v2491 = vmul.f32 %v2480, %v517
    %v2492 = vmul.f32 %v2480, %v518
    %v2493 = vmul.f32 %v2480, %v519
    %v2494 = vmul.f32 %v2480, %v520
    %v2495 = vmul.f32 %v2480, %v521
    %v2496 = vmul.f32 %v2480, %v522
    %v2497 = vmul.f32 %v2480, %v523
    %v2498 = vmul.f32 %v2480, %v524
    %v2499 = vmul.f32 %v2480, %v525
    %v2500 = vmul.f32 %v2480, %v526
    %v2501 = vmul.f32 %v2480, %v527
    %v2502 = vmul.f32 %v2480, %v528
    %v2503 = vmul.f32 %v2480, %v529
    %v2504 = vmul.f32 %v2480, %v530
    %v2505 = vmul.f32 %v2480, %v531
    %v2506 = vmul.f32 %v2480, %v532
    %v2507 = vmul.f32 %v2480, %v533
    %v2508 = vmul.f32 %v2480, %v534
    %v2509 = vmul.f32 %v2480, %v535
    %v2510 = vmul.f32 %v2480, %v536
    %v2511 = vmul.f32 %v2480, %v537
    %v2512 = vmul.f32 %v2480, %v538
    %v2513 = vadd.f32 %v2447, %v2481
    %v2514 = vadd.f32 %v2448, %v2482
    %v2515 = vadd.f32 %v2449, %v2483
    %v2516 = vadd.f32 %v2450, %v2484
    %v2517 = vadd.f32 %v2451, %v2485
    %v2518 = vadd.f32 %v2452, %v2486
    %v2519 = vadd.f32 %v2453, %v2487
    %v2520 = vadd.f32 %v2454, %v2488
    %v2521 = vadd.f32 %v2455, %v2489
    %v2522 = vadd.f32 %v2456, %v2490
    %v2523 = vadd.f32 %v2457, %v2491
    %v2524 = vadd.f32 %v2458, %v2492
    %v2525 = vadd.f32 %v2459, %v2493
    %v2526 = vadd.f32 %v2460, %v2494
    %v2527 = vadd.f32 %v2461, %v2495
    %v2528 = vadd.f32 %v2462, %v2496
    %v2529 = vadd.f32 %v2463, %v2497
    %v2530 = vadd.f32 %v2464, %v2498
    %v2531 = vadd.f32 %v2465, %v2499
    %v2532 = vadd.f32 %v2466, %v2500
    %v2533 = vadd.f32 %v2467, %v2501
    %v2534 = vadd.f32 %v2468, %v2502
    %v2535 = vadd.f32 %v2469, %v2503
    %v2536 = vadd.f32 %v2470, %v2504
    %v2537 = vadd.f32 %v2471, %v2505
    %v2538 = vadd.f32 %v2472, %v2506
    %v2539 = vadd.f32 %v2473, %v2507
    %v2540 = vadd.f32 %v2474, %v2508
    %v2541 = vadd.f32 %v2475, %v2509
    %v2542 = vadd.f32 %v2476, %v2510
    %v2543 = vadd.f32 %v2477, %v2511
    %v2544 = vadd.f32 %v2478, %v2512
    %s2545 = sld [smem:[#allocation3 + $0x17]]
    %v2546 = vstv %s2545
    %v2547 = vmul.f32 %v2546, %v539
    %v2548 = vmul.f32 %v2546, %v540
    %v2549 = vmul.f32 %v2546, %v541
    %v2550 = vmul.f32 %v2546, %v542
    %v2551 = vmul.f32 %v2546, %v543
    %v2552 = vmul.f32 %v2546, %v544
    %v2553 = vmul.f32 %v2546, %v545
    %v2554 = vmul.f32 %v2546, %v546
    %v2555 = vmul.f32 %v2546, %v547
    %v2556 = vmul.f32 %v2546, %v548
    %v2557 = vmul.f32 %v2546, %v549
    %v2558 = vmul.f32 %v2546, %v550
    %v2559 = vmul.f32 %v2546, %v551
    %v2560 = vmul.f32 %v2546, %v552
    %v2561 = vmul.f32 %v2546, %v553
    %v2562 = vmul.f32 %v2546, %v554
    %v2563 = vmul.f32 %v2546, %v555
    %v2564 = vmul.f32 %v2546, %v556
    %v2565 = vmul.f32 %v2546, %v557
    %v2566 = vmul.f32 %v2546, %v558
    %v2567 = vmul.f32 %v2546, %v559
    %v2568 = vmul.f32 %v2546, %v560
    %v2569 = vmul.f32 %v2546, %v561
    %v2570 = vmul.f32 %v2546, %v562
    %v2571 = vmul.f32 %v2546, %v563
    %v2572 = vmul.f32 %v2546, %v564
    %v2573 = vmul.f32 %v2546, %v565
    %v2574 = vmul.f32 %v2546, %v566
    %v2575 = vmul.f32 %v2546, %v567
    %v2576 = vmul.f32 %v2546, %v568
    %v2577 = vmul.f32 %v2546, %v569
    %v2578 = vmul.f32 %v2546, %v570
    %v2579 = vadd.f32 %v2513, %v2547
    %v2580 = vadd.f32 %v2514, %v2548
    %v2581 = vadd.f32 %v2515, %v2549
    %v2582 = vadd.f32 %v2516, %v2550
    %v2583 = vadd.f32 %v2517, %v2551
    %v2584 = vadd.f32 %v2518, %v2552
    %v2585 = vadd.f32 %v2519, %v2553
    %v2586 = vadd.f32 %v2520, %v2554
    %v2587 = vadd.f32 %v2521, %v2555
    %v2588 = vadd.f32 %v2522, %v2556
    %v2589 = vadd.f32 %v2523, %v2557
    %v2590 = vadd.f32 %v2524, %v2558
    %v2591 = vadd.f32 %v2525, %v2559
    %v2592 = vadd.f32 %v2526, %v2560
    %v2593 = vadd.f32 %v2527, %v2561
    %v2594 = vadd.f32 %v2528, %v2562
    %v2595 = vadd.f32 %v2529, %v2563
    %v2596 = vadd.f32 %v2530, %v2564
    %v2597 = vadd.f32 %v2531, %v2565
    %v2598 = vadd.f32 %v2532, %v2566
    %v2599 = vadd.f32 %v2533, %v2567
    %v2600 = vadd.f32 %v2534, %v2568
    %v2601 = vadd.f32 %v2535, %v2569
    %v2602 = vadd.f32 %v2536, %v2570
    %v2603 = vadd.f32 %v2537, %v2571
    %v2604 = vadd.f32 %v2538, %v2572
    %v2605 = vadd.f32 %v2539, %v2573
    %v2606 = vadd.f32 %v2540, %v2574
    %v2607 = vadd.f32 %v2541, %v2575
    %v2608 = vadd.f32 %v2542, %v2576
    %v2609 = vadd.f32 %v2543, %v2577
    %v2610 = vadd.f32 %v2544, %v2578
    %s2611 = sld [smem:[#allocation5 + $0x7]]
    %v2612 = vstv %s2611
    %v2613 = vadd.f32 %v2579, %v2612
    %v2614 = vadd.f32 %v2580, %v2612
    %v2615 = vadd.f32 %v2581, %v2612
    %v2616 = vadd.f32 %v2582, %v2612
    %v2617 = vadd.f32 %v2583, %v2612
    %v2618 = vadd.f32 %v2584, %v2612
    %v2619 = vadd.f32 %v2585, %v2612
    %v2620 = vadd.f32 %v2586, %v2612
    %v2621 = vadd.f32 %v2587, %v2612
    %v2622 = vadd.f32 %v2588, %v2612
    %v2623 = vadd.f32 %v2589, %v2612
    %v2624 = vadd.f32 %v2590, %v2612
    %v2625 = vadd.f32 %v2591, %v2612
    %v2626 = vadd.f32 %v2592, %v2612
    %v2627 = vadd.f32 %v2593, %v2612
    %v2628 = vadd.f32 %v2594, %v2612
    %v2629 = vadd.f32 %v2595, %v2612
    %v2630 = vadd.f32 %v2596, %v2612
    %v2631 = vadd.f32 %v2597, %v2612
    %v2632 = vadd.f32 %v2598, %v2612
    %v2633 = vadd.f32 %v2599, %v2612
    %v2634 = vadd.f32 %v2600, %v2612
    %v2635 = vadd.f32 %v2601, %v2612
    %v2636 = vadd.f32 %v2602, %v2612
    %v2637 = vadd.f32 %v2603, %v2612
    %v2638 = vadd.f32 %v2604, %v2612
    %v2639 = vadd.f32 %v2605, %v2612
    %v2640 = vadd.f32 %v2606, %v2612
    %v2641 = vadd.f32 %v2607, %v2612
    %v2642 = vadd.f32 %v2608, %v2612
    %v2643 = vadd.f32 %v2609, %v2612
    %v2644 = vadd.f32 %v2610, %v2612
    %s2645 = sld [smem:[#allocation7 + $0x7]]
    %v2646 = vtanh.pop %v2613
    %v2647 = vtanh.pop %v2614
    %v2648 = vtanh.pop %v2615
    %v2649 = vtanh.pop %v2616
    %v2650 = vtanh.pop %v2617
    %v2651 = vtanh.pop %v2618
    %v2652 = vtanh.pop %v2619
    %v2653 = vtanh.pop %v2620
    %v2654 = vtanh.pop %v2621
    %v2655 = vtanh.pop %v2622
    %v2656 = vtanh.pop %v2623
    %v2657 = vtanh.pop %v2624
    %v2658 = vtanh.pop %v2625
    %v2659 = vtanh.pop %v2626
    %v2660 = vtanh.pop %v2627
    %v2661 = vtanh.pop %v2628
    %v2662 = vtanh.pop %v2629
    %v2663 = vtanh.pop %v2630
    %v2664 = vtanh.pop %v2631
    %v2665 = vtanh.pop %v2632
    %v2666 = vtanh.pop %v2633
    %v2667 = vtanh.pop %v2634
    %v2668 = vtanh.pop %v2635
    %v2669 = vtanh.pop %v2636
    %v2670 = vtanh.pop %v2637
    %v2671 = vtanh.pop %v2638
    %v2672 = vtanh.pop %v2639
    %v2673 = vtanh.pop %v2640
    %v2674 = vtanh.pop %v2641
    %v2675 = vtanh.pop %v2642
    %v2676 = vtanh.pop %v2643
    %v2677 = vtanh.pop %v2644
    %v2678 = vadd.f32 %v2646, %v2648
    %v2679 = vadd.f32 %v2678, %v2650
    %v2680 = vadd.f32 %v2679, %v2652
    %v2681 = vadd.f32 %v2680, %v2654
    %v2682 = vadd.f32 %v2681, %v2656
    %v2683 = vadd.f32 %v2682, %v2658
    %v2684 = vadd.f32 %v2683, %v2660
    %v2685 = vadd.f32 %v2684, %v2662
    %v2686 = vadd.f32 %v2685, %v2664
    %v2687 = vadd.f32 %v2686, %v2666
    %v2688 = vadd.f32 %v2687, %v2668
    %v2689 = vadd.f32 %v2688, %v2670
    %v2690 = vadd.f32 %v2689, %v2672
    %v2691 = vadd.f32 %v2690, %v2674
    %v2692 = vadd.f32 %v2691, %v2676
    %v2693 = vadd.f32 %v2647, %v2649
    %v2694 = vadd.f32 %v2693, %v2651
    %v2695 = vadd.f32 %v2694, %v2653
    %v2696 = vadd.f32 %v2695, %v2655
    %v2697 = vadd.f32 %v2696, %v2657
    %v2698 = vadd.f32 %v2697, %v2659
    %v2699 = vadd.f32 %v2698, %v2661
    %v2700 = vadd.f32 %v2699, %v2663
    %v2701 = vadd.f32 %v2700, %v2665
    %v2702 = vadd.f32 %v2701, %v2667
    %v2703 = vadd.f32 %v2702, %v2669
    %v2704 = vadd.f32 %v2703, %v2671
    %v2705 = vadd.f32 %v2704, %v2673
    %v2706 = vadd.f32 %v2705, %v2675
    %v2707 = vadd.f32 %v2706, %v2677
    %v2708 = vstv %s2645
    %v2709 = vmul.f32 %v2708, %v2692
    %v2710 = vmul.f32 %v2708, %v2707
    %v2711 = vadd.f32 %v2443, %v2709
    %v2712 = vadd.f32 %v2444, %v2710
    %s2713 = sld [smem:[#allocation3 + $0x18]]
    %v2714 = vstv %s2713
    %v2715 = vmul.f32 %v2714, %v475
    %v2716 = vmul.f32 %v2714, %v476
    %v2717 = vmul.f32 %v2714, %v477
    %v2718 = vmul.f32 %v2714, %v478
    %v2719 = vmul.f32 %v2714, %v479
    %v2720 = vmul.f32 %v2714, %v480
    %v2721 = vmul.f32 %v2714, %v481
    %v2722 = vmul.f32 %v2714, %v482
    %v2723 = vmul.f32 %v2714, %v483
    %v2724 = vmul.f32 %v2714, %v484
    %v2725 = vmul.f32 %v2714, %v485
    %v2726 = vmul.f32 %v2714, %v486
    %v2727 = vmul.f32 %v2714, %v487
    %v2728 = vmul.f32 %v2714, %v488
    %v2729 = vmul.f32 %v2714, %v489
    %v2730 = vmul.f32 %v2714, %v490
    %v2731 = vmul.f32 %v2714, %v491
    %v2732 = vmul.f32 %v2714, %v492
    %v2733 = vmul.f32 %v2714, %v493
    %v2734 = vmul.f32 %v2714, %v494
    %v2735 = vmul.f32 %v2714, %v495
    %v2736 = vmul.f32 %v2714, %v496
    %v2737 = vmul.f32 %v2714, %v497
    %v2738 = vmul.f32 %v2714, %v498
    %v2739 = vmul.f32 %v2714, %v499
    %v2740 = vmul.f32 %v2714, %v500
    %v2741 = vmul.f32 %v2714, %v501
    %v2742 = vmul.f32 %v2714, %v502
    %v2743 = vmul.f32 %v2714, %v503
    %v2744 = vmul.f32 %v2714, %v504
    %v2745 = vmul.f32 %v2714, %v505
    %v2746 = vmul.f32 %v2714, %v506
    %s2747 = sld [smem:[#allocation3 + $0x19]]
    %v2748 = vstv %s2747
    %v2749 = vmul.f32 %v2748, %v507
    %v2750 = vmul.f32 %v2748, %v508
    %v2751 = vmul.f32 %v2748, %v509
    %v2752 = vmul.f32 %v2748, %v510
    %v2753 = vmul.f32 %v2748, %v511
    %v2754 = vmul.f32 %v2748, %v512
    %v2755 = vmul.f32 %v2748, %v513
    %v2756 = vmul.f32 %v2748, %v514
    %v2757 = vmul.f32 %v2748, %v515
    %v2758 = vmul.f32 %v2748, %v516
    %v2759 = vmul.f32 %v2748, %v517
    %v2760 = vmul.f32 %v2748, %v518
    %v2761 = vmul.f32 %v2748, %v519
    %v2762 = vmul.f32 %v2748, %v520
    %v2763 = vmul.f32 %v2748, %v521
    %v2764 = vmul.f32 %v2748, %v522
    %v2765 = vmul.f32 %v2748, %v523
    %v2766 = vmul.f32 %v2748, %v524
    %v2767 = vmul.f32 %v2748, %v525
    %v2768 = vmul.f32 %v2748, %v526
    %v2769 = vmul.f32 %v2748, %v527
    %v2770 = vmul.f32 %v2748, %v528
    %v2771 = vmul.f32 %v2748, %v529
    %v2772 = vmul.f32 %v2748, %v530
    %v2773 = vmul.f32 %v2748, %v531
    %v2774 = vmul.f32 %v2748, %v532
    %v2775 = vmul.f32 %v2748, %v533
    %v2776 = vmul.f32 %v2748, %v534
    %v2777 = vmul.f32 %v2748, %v535
    %v2778 = vmul.f32 %v2748, %v536
    %v2779 = vmul.f32 %v2748, %v537
    %v2780 = vmul.f32 %v2748, %v538
    %v2781 = vadd.f32 %v2715, %v2749
    %v2782 = vadd.f32 %v2716, %v2750
    %v2783 = vadd.f32 %v2717, %v2751
    %v2784 = vadd.f32 %v2718, %v2752
    %v2785 = vadd.f32 %v2719, %v2753
    %v2786 = vadd.f32 %v2720, %v2754
    %v2787 = vadd.f32 %v2721, %v2755
    %v2788 = vadd.f32 %v2722, %v2756
    %v2789 = vadd.f32 %v2723, %v2757
    %v2790 = vadd.f32 %v2724, %v2758
    %v2791 = vadd.f32 %v2725, %v2759
    %v2792 = vadd.f32 %v2726, %v2760
    %v2793 = vadd.f32 %v2727, %v2761
    %v2794 = vadd.f32 %v2728, %v2762
    %v2795 = vadd.f32 %v2729, %v2763
    %v2796 = vadd.f32 %v2730, %v2764
    %v2797 = vadd.f32 %v2731, %v2765
    %v2798 = vadd.f32 %v2732, %v2766
    %v2799 = vadd.f32 %v2733, %v2767
    %v2800 = vadd.f32 %v2734, %v2768
    %v2801 = vadd.f32 %v2735, %v2769
    %v2802 = vadd.f32 %v2736, %v2770
    %v2803 = vadd.f32 %v2737, %v2771
    %v2804 = vadd.f32 %v2738, %v2772
    %v2805 = vadd.f32 %v2739, %v2773
    %v2806 = vadd.f32 %v2740, %v2774
    %v2807 = vadd.f32 %v2741, %v2775
    %v2808 = vadd.f32 %v2742, %v2776
    %v2809 = vadd.f32 %v2743, %v2777
    %v2810 = vadd.f32 %v2744, %v2778
    %v2811 = vadd.f32 %v2745, %v2779
    %v2812 = vadd.f32 %v2746, %v2780
    %s2813 = sld [smem:[#allocation3 + $0x1a]]
    %v2814 = vstv %s2813
    %v2815 = vmul.f32 %v2814, %v539
    %v2816 = vmul.f32 %v2814, %v540
    %v2817 = vmul.f32 %v2814, %v541
    %v2818 = vmul.f32 %v2814, %v542
    %v2819 = vmul.f32 %v2814, %v543
    %v2820 = vmul.f32 %v2814, %v544
    %v2821 = vmul.f32 %v2814, %v545
    %v2822 = vmul.f32 %v2814, %v546
    %v2823 = vmul.f32 %v2814, %v547
    %v2824 = vmul.f32 %v2814, %v548
    %v2825 = vmul.f32 %v2814, %v549
    %v2826 = vmul.f32 %v2814, %v550
    %v2827 = vmul.f32 %v2814, %v551
    %v2828 = vmul.f32 %v2814, %v552
    %v2829 = vmul.f32 %v2814, %v553
    %v2830 = vmul.f32 %v2814, %v554
    %v2831 = vmul.f32 %v2814, %v555
    %v2832 = vmul.f32 %v2814, %v556
    %v2833 = vmul.f32 %v2814, %v557
    %v2834 = vmul.f32 %v2814, %v558
    %v2835 = vmul.f32 %v2814, %v559
    %v2836 = vmul.f32 %v2814, %v560
    %v2837 = vmul.f32 %v2814, %v561
    %v2838 = vmul.f32 %v2814, %v562
    %v2839 = vmul.f32 %v2814, %v563
    %v2840 = vmul.f32 %v2814, %v564
    %v2841 = vmul.f32 %v2814, %v565
    %v2842 = vmul.f32 %v2814, %v566
    %v2843 = vmul.f32 %v2814, %v567
    %v2844 = vmul.f32 %v2814, %v568
    %v2845 = vmul.f32 %v2814, %v569
    %v2846 = vmul.f32 %v2814, %v570
    %v2847 = vadd.f32 %v2781, %v2815
    %v2848 = vadd.f32 %v2782, %v2816
    %v2849 = vadd.f32 %v2783, %v2817
    %v2850 = vadd.f32 %v2784, %v2818
    %v2851 = vadd.f32 %v2785, %v2819
    %v2852 = vadd.f32 %v2786, %v2820
    %v2853 = vadd.f32 %v2787, %v2821
    %v2854 = vadd.f32 %v2788, %v2822
    %v2855 = vadd.f32 %v2789, %v2823
    %v2856 = vadd.f32 %v2790, %v2824
    %v2857 = vadd.f32 %v2791, %v2825
    %v2858 = vadd.f32 %v2792, %v2826
    %v2859 = vadd.f32 %v2793, %v2827
    %v2860 = vadd.f32 %v2794, %v2828
    %v2861 = vadd.f32 %v2795, %v2829
    %v2862 = vadd.f32 %v2796, %v2830
    %v2863 = vadd.f32 %v2797, %v2831
    %v2864 = vadd.f32 %v2798, %v2832
    %v2865 = vadd.f32 %v2799, %v2833
    %v2866 = vadd.f32 %v2800, %v2834
    %v2867 = vadd.f32 %v2801, %v2835
    %v2868 = vadd.f32 %v2802, %v2836
    %v2869 = vadd.f32 %v2803, %v2837
    %v2870 = vadd.f32 %v2804, %v2838
    %v2871 = vadd.f32 %v2805, %v2839
    %v2872 = vadd.f32 %v2806, %v2840
    %v2873 = vadd.f32 %v2807, %v2841
    %v2874 = vadd.f32 %v2808, %v2842
    %v2875 = vadd.f32 %v2809, %v2843
    %v2876 = vadd.f32 %v2810, %v2844
    %v2877 = vadd.f32 %v2811, %v2845
    %v2878 = vadd.f32 %v2812, %v2846
    %s2879 = sld [smem:[#allocation5 + $0x8]]
    %v2880 = vstv %s2879
    %v2881 = vadd.f32 %v2847, %v2880
    %v2882 = vadd.f32 %v2848, %v2880
    %v2883 = vadd.f32 %v2849, %v2880
    %v2884 = vadd.f32 %v2850, %v2880
    %v2885 = vadd.f32 %v2851, %v2880
    %v2886 = vadd.f32 %v2852, %v2880
    %v2887 = vadd.f32 %v2853, %v2880
    %v2888 = vadd.f32 %v2854, %v2880
    %v2889 = vadd.f32 %v2855, %v2880
    %v2890 = vadd.f32 %v2856, %v2880
    %v2891 = vadd.f32 %v2857, %v2880
    %v2892 = vadd.f32 %v2858, %v2880
    %v2893 = vadd.f32 %v2859, %v2880
    %v2894 = vadd.f32 %v2860, %v2880
    %v2895 = vadd.f32 %v2861, %v2880
    %v2896 = vadd.f32 %v2862, %v2880
    %v2897 = vadd.f32 %v2863, %v2880
    %v2898 = vadd.f32 %v2864, %v2880
    %v2899 = vadd.f32 %v2865, %v2880
    %v2900 = vadd.f32 %v2866, %v2880
    %v2901 = vadd.f32 %v2867, %v2880
    %v2902 = vadd.f32 %v2868, %v2880
    %v2903 = vadd.f32 %v2869, %v2880
    %v2904 = vadd.f32 %v2870, %v2880
    %v2905 = vadd.f32 %v2871, %v2880
    %v2906 = vadd.f32 %v2872, %v2880
    %v2907 = vadd.f32 %v2873, %v2880
    %v2908 = vadd.f32 %v2874, %v2880
    %v2909 = vadd.f32 %v2875, %v2880
    %v2910 = vadd.f32 %v2876, %v2880
    %v2911 = vadd.f32 %v2877, %v2880
    %v2912 = vadd.f32 %v2878, %v2880
    %s2913 = sld [smem:[#allocation7 + $0x8]]
    %v2914 = vtanh.pop %v2881
    %v2915 = vtanh.pop %v2882
    %v2916 = vtanh.pop %v2883
    %v2917 = vtanh.pop %v2884
    %v2918 = vtanh.pop %v2885
    %v2919 = vtanh.pop %v2886
    %v2920 = vtanh.pop %v2887
    %v2921 = vtanh.pop %v2888
    %v2922 = vtanh.pop %v2889
    %v2923 = vtanh.pop %v2890
    %v2924 = vtanh.pop %v2891
    %v2925 = vtanh.pop %v2892
    %v2926 = vtanh.pop %v2893
    %v2927 = vtanh.pop %v2894
    %v2928 = vtanh.pop %v2895
    %v2929 = vtanh.pop %v2896
    %v2930 = vtanh.pop %v2897
    %v2931 = vtanh.pop %v2898
    %v2932 = vtanh.pop %v2899
    %v2933 = vtanh.pop %v2900
    %v2934 = vtanh.pop %v2901
    %v2935 = vtanh.pop %v2902
    %v2936 = vtanh.pop %v2903
    %v2937 = vtanh.pop %v2904
    %v2938 = vtanh.pop %v2905
    %v2939 = vtanh.pop %v2906
    %v2940 = vtanh.pop %v2907
    %v2941 = vtanh.pop %v2908
    %v2942 = vtanh.pop %v2909
    %v2943 = vtanh.pop %v2910
    %v2944 = vtanh.pop %v2911
    %v2945 = vtanh.pop %v2912
    %v2946 = vadd.f32 %v2914, %v2916
    %v2947 = vadd.f32 %v2946, %v2918
    %v2948 = vadd.f32 %v2947, %v2920
    %v2949 = vadd.f32 %v2948, %v2922
    %v2950 = vadd.f32 %v2949, %v2924
    %v2951 = vadd.f32 %v2950, %v2926
    %v2952 = vadd.f32 %v2951, %v2928
    %v2953 = vadd.f32 %v2952, %v2930
    %v2954 = vadd.f32 %v2953, %v2932
    %v2955 = vadd.f32 %v2954, %v2934
    %v2956 = vadd.f32 %v2955, %v2936
    %v2957 = vadd.f32 %v2956, %v2938
    %v2958 = vadd.f32 %v2957, %v2940
    %v2959 = vadd.f32 %v2958, %v2942
    %v2960 = vadd.f32 %v2959, %v2944
    %v2961 = vadd.f32 %v2915, %v2917
    %v2962 = vadd.f32 %v2961, %v2919
    %v2963 = vadd.f32 %v2962, %v2921
    %v2964 = vadd.f32 %v2963, %v2923
    %v2965 = vadd.f32 %v2964, %v2925
    %v2966 = vadd.f32 %v2965, %v2927
    %v2967 = vadd.f32 %v2966, %v2929
    %v2968 = vadd.f32 %v2967, %v2931
    %v2969 = vadd.f32 %v2968, %v2933
    %v2970 = vadd.f32 %v2969, %v2935
    %v2971 = vadd.f32 %v2970, %v2937
    %v2972 = vadd.f32 %v2971, %v2939
    %v2973 = vadd.f32 %v2972, %v2941
    %v2974 = vadd.f32 %v2973, %v2943
    %v2975 = vadd.f32 %v2974, %v2945
    %v2976 = vstv %s2913
    %v2977 = vmul.f32 %v2976, %v2960
    %v2978 = vmul.f32 %v2976, %v2975
    %v2979 = vadd.f32 %v2711, %v2977
    %v2980 = vadd.f32 %v2712, %v2978
    %s2981 = sld [smem:[#allocation3 + $0x1b]]
    %v2982 = vstv %s2981
    %v2983 = vmul.f32 %v2982, %v475
    %v2984 = vmul.f32 %v2982, %v476
    %v2985 = vmul.f32 %v2982, %v477
    %v2986 = vmul.f32 %v2982, %v478
    %v2987 = vmul.f32 %v2982, %v479
    %v2988 = vmul.f32 %v2982, %v480
    %v2989 = vmul.f32 %v2982, %v481
    %v2990 = vmul.f32 %v2982, %v482
    %v2991 = vmul.f32 %v2982, %v483
    %v2992 = vmul.f32 %v2982, %v484
    %v2993 = vmul.f32 %v2982, %v485
    %v2994 = vmul.f32 %v2982, %v486
    %v2995 = vmul.f32 %v2982, %v487
    %v2996 = vmul.f32 %v2982, %v488
    %v2997 = vmul.f32 %v2982, %v489
    %v2998 = vmul.f32 %v2982, %v490
    %v2999 = vmul.f32 %v2982, %v491
    %v3000 = vmul.f32 %v2982, %v492
    %v3001 = vmul.f32 %v2982, %v493
    %v3002 = vmul.f32 %v2982, %v494
    %v3003 = vmul.f32 %v2982, %v495
    %v3004 = vmul.f32 %v2982, %v496
    %v3005 = vmul.f32 %v2982, %v497
    %v3006 = vmul.f32 %v2982, %v498
    %v3007 = vmul.f32 %v2982, %v499
    %v3008 = vmul.f32 %v2982, %v500
    %v3009 = vmul.f32 %v2982, %v501
    %v3010 = vmul.f32 %v2982, %v502
    %v3011 = vmul.f32 %v2982, %v503
    %v3012 = vmul.f32 %v2982, %v504
    %v3013 = vmul.f32 %v2982, %v505
    %v3014 = vmul.f32 %v2982, %v506
    %s3015 = sld [smem:[#allocation3 + $0x1c]]
    %v3016 = vstv %s3015
    %v3017 = vmul.f32 %v3016, %v507
    %v3018 = vmul.f32 %v3016, %v508
    %v3019 = vmul.f32 %v3016, %v509
    %v3020 = vmul.f32 %v3016, %v510
    %v3021 = vmul.f32 %v3016, %v511
    %v3022 = vmul.f32 %v3016, %v512
    %v3023 = vmul.f32 %v3016, %v513
    %v3024 = vmul.f32 %v3016, %v514
    %v3025 = vmul.f32 %v3016, %v515
    %v3026 = vmul.f32 %v3016, %v516
    %v3027 = vmul.f32 %v3016, %v517
    %v3028 = vmul.f32 %v3016, %v518
    %v3029 = vmul.f32 %v3016, %v519
    %v3030 = vmul.f32 %v3016, %v520
    %v3031 = vmul.f32 %v3016, %v521
    %v3032 = vmul.f32 %v3016, %v522
    %v3033 = vmul.f32 %v3016, %v523
    %v3034 = vmul.f32 %v3016, %v524
    %v3035 = vmul.f32 %v3016, %v525
    %v3036 = vmul.f32 %v3016, %v526
    %v3037 = vmul.f32 %v3016, %v527
    %v3038 = vmul.f32 %v3016, %v528
    %v3039 = vmul.f32 %v3016, %v529
    %v3040 = vmul.f32 %v3016, %v530
    %v3041 = vmul.f32 %v3016, %v531
    %v3042 = vmul.f32 %v3016, %v532
    %v3043 = vmul.f32 %v3016, %v533
    %v3044 = vmul.f32 %v3016, %v534
    %v3045 = vmul.f32 %v3016, %v535
    %v3046 = vmul.f32 %v3016, %v536
    %v3047 = vmul.f32 %v3016, %v537
    %v3048 = vmul.f32 %v3016, %v538
    %v3049 = vadd.f32 %v2983, %v3017
    %v3050 = vadd.f32 %v2984, %v3018
    %v3051 = vadd.f32 %v2985, %v3019
    %v3052 = vadd.f32 %v2986, %v3020
    %v3053 = vadd.f32 %v2987, %v3021
    %v3054 = vadd.f32 %v2988, %v3022
    %v3055 = vadd.f32 %v2989, %v3023
    %v3056 = vadd.f32 %v2990, %v3024
    %v3057 = vadd.f32 %v2991, %v3025
    %v3058 = vadd.f32 %v2992, %v3026
    %v3059 = vadd.f32 %v2993, %v3027
    %v3060 = vadd.f32 %v2994, %v3028
    %v3061 = vadd.f32 %v2995, %v3029
    %v3062 = vadd.f32 %v2996, %v3030
    %v3063 = vadd.f32 %v2997, %v3031
    %v3064 = vadd.f32 %v2998, %v3032
    %v3065 = vadd.f32 %v2999, %v3033
    %v3066 = vadd.f32 %v3000, %v3034
    %v3067 = vadd.f32 %v3001, %v3035
    %v3068 = vadd.f32 %v3002, %v3036
    %v3069 = vadd.f32 %v3003, %v3037
    %v3070 = vadd.f32 %v3004, %v3038
    %v3071 = vadd.f32 %v3005, %v3039
    %v3072 = vadd.f32 %v3006, %v3040
    %v3073 = vadd.f32 %v3007, %v3041
    %v3074 = vadd.f32 %v3008, %v3042
    %v3075 = vadd.f32 %v3009, %v3043
    %v3076 = vadd.f32 %v3010, %v3044
    %v3077 = vadd.f32 %v3011, %v3045
    %v3078 = vadd.f32 %v3012, %v3046
    %v3079 = vadd.f32 %v3013, %v3047
    %v3080 = vadd.f32 %v3014, %v3048
    %s3081 = sld [smem:[#allocation3 + $0x1d]]
    %v3082 = vstv %s3081
    %v3083 = vmul.f32 %v3082, %v539
    %v3084 = vmul.f32 %v3082, %v540
    %v3085 = vmul.f32 %v3082, %v541
    %v3086 = vmul.f32 %v3082, %v542
    %v3087 = vmul.f32 %v3082, %v543
    %v3088 = vmul.f32 %v3082, %v544
    %v3089 = vmul.f32 %v3082, %v545
    %v3090 = vmul.f32 %v3082, %v546
    %v3091 = vmul.f32 %v3082, %v547
    %v3092 = vmul.f32 %v3082, %v548
    %v3093 = vmul.f32 %v3082, %v549
    %v3094 = vmul.f32 %v3082, %v550
    %v3095 = vmul.f32 %v3082, %v551
    %v3096 = vmul.f32 %v3082, %v552
    %v3097 = vmul.f32 %v3082, %v553
    %v3098 = vmul.f32 %v3082, %v554
    %v3099 = vmul.f32 %v3082, %v555
    %v3100 = vmul.f32 %v3082, %v556
    %v3101 = vmul.f32 %v3082, %v557
    %v3102 = vmul.f32 %v3082, %v558
    %v3103 = vmul.f32 %v3082, %v559
    %v3104 = vmul.f32 %v3082, %v560
    %v3105 = vmul.f32 %v3082, %v561
    %v3106 = vmul.f32 %v3082, %v562
    %v3107 = vmul.f32 %v3082, %v563
    %v3108 = vmul.f32 %v3082, %v564
    %v3109 = vmul.f32 %v3082, %v565
    %v3110 = vmul.f32 %v3082, %v566
    %v3111 = vmul.f32 %v3082, %v567
    %v3112 = vmul.f32 %v3082, %v568
    %v3113 = vmul.f32 %v3082, %v569
    %v3114 = vmul.f32 %v3082, %v570
    %v3115 = vadd.f32 %v3049, %v3083
    %v3116 = vadd.f32 %v3050, %v3084
    %v3117 = vadd.f32 %v3051, %v3085
    %v3118 = vadd.f32 %v3052, %v3086
    %v3119 = vadd.f32 %v3053, %v3087
    %v3120 = vadd.f32 %v3054, %v3088
    %v3121 = vadd.f32 %v3055, %v3089
    %v3122 = vadd.f32 %v3056, %v3090
    %v3123 = vadd.f32 %v3057, %v3091
    %v3124 = vadd.f32 %v3058, %v3092
    %v3125 = vadd.f32 %v3059, %v3093
    %v3126 = vadd.f32 %v3060, %v3094
    %v3127 = vadd.f32 %v3061, %v3095
    %v3128 = vadd.f32 %v3062, %v3096
    %v3129 = vadd.f32 %v3063, %v3097
    %v3130 = vadd.f32 %v3064, %v3098
    %v3131 = vadd.f32 %v3065, %v3099
    %v3132 = vadd.f32 %v3066, %v3100
    %v3133 = vadd.f32 %v3067, %v3101
    %v3134 = vadd.f32 %v3068, %v3102
    %v3135 = vadd.f32 %v3069, %v3103
    %v3136 = vadd.f32 %v3070, %v3104
    %v3137 = vadd.f32 %v3071, %v3105
    %v3138 = vadd.f32 %v3072, %v3106
    %v3139 = vadd.f32 %v3073, %v3107
    %v3140 = vadd.f32 %v3074, %v3108
    %v3141 = vadd.f32 %v3075, %v3109
    %v3142 = vadd.f32 %v3076, %v3110
    %v3143 = vadd.f32 %v3077, %v3111
    %v3144 = vadd.f32 %v3078, %v3112
    %v3145 = vadd.f32 %v3079, %v3113
    %v3146 = vadd.f32 %v3080, %v3114
    %s3147 = sld [smem:[#allocation5 + $0x9]]
    %v3148 = vstv %s3147
    %v3149 = vadd.f32 %v3115, %v3148
    %v3150 = vadd.f32 %v3116, %v3148
    %v3151 = vadd.f32 %v3117, %v3148
    %v3152 = vadd.f32 %v3118, %v3148
    %v3153 = vadd.f32 %v3119, %v3148
    %v3154 = vadd.f32 %v3120, %v3148
    %v3155 = vadd.f32 %v3121, %v3148
    %v3156 = vadd.f32 %v3122, %v3148
    %v3157 = vadd.f32 %v3123, %v3148
    %v3158 = vadd.f32 %v3124, %v3148
    %v3159 = vadd.f32 %v3125, %v3148
    %v3160 = vadd.f32 %v3126, %v3148
    %v3161 = vadd.f32 %v3127, %v3148
    %v3162 = vadd.f32 %v3128, %v3148
    %v3163 = vadd.f32 %v3129, %v3148
    %v3164 = vadd.f32 %v3130, %v3148
    %v3165 = vadd.f32 %v3131, %v3148
    %v3166 = vadd.f32 %v3132, %v3148
    %v3167 = vadd.f32 %v3133, %v3148
    %v3168 = vadd.f32 %v3134, %v3148
    %v3169 = vadd.f32 %v3135, %v3148
    %v3170 = vadd.f32 %v3136, %v3148
    %v3171 = vadd.f32 %v3137, %v3148
    %v3172 = vadd.f32 %v3138, %v3148
    %v3173 = vadd.f32 %v3139, %v3148
    %v3174 = vadd.f32 %v3140, %v3148
    %v3175 = vadd.f32 %v3141, %v3148
    %v3176 = vadd.f32 %v3142, %v3148
    %v3177 = vadd.f32 %v3143, %v3148
    %v3178 = vadd.f32 %v3144, %v3148
    %v3179 = vadd.f32 %v3145, %v3148
    %v3180 = vadd.f32 %v3146, %v3148
    %s3181 = sld [smem:[#allocation7 + $0x9]]
    %v3182 = vtanh.pop %v3149
    %v3183 = vtanh.pop %v3150
    %v3184 = vtanh.pop %v3151
    %v3185 = vtanh.pop %v3152
    %v3186 = vtanh.pop %v3153
    %v3187 = vtanh.pop %v3154
    %v3188 = vtanh.pop %v3155
    %v3189 = vtanh.pop %v3156
    %v3190 = vtanh.pop %v3157
    %v3191 = vtanh.pop %v3158
    %v3192 = vtanh.pop %v3159
    %v3193 = vtanh.pop %v3160
    %v3194 = vtanh.pop %v3161
    %v3195 = vtanh.pop %v3162
    %v3196 = vtanh.pop %v3163
    %v3197 = vtanh.pop %v3164
    %v3198 = vtanh.pop %v3165
    %v3199 = vtanh.pop %v3166
    %v3200 = vtanh.pop %v3167
    %v3201 = vtanh.pop %v3168
    %v3202 = vtanh.pop %v3169
    %v3203 = vtanh.pop %v3170
    %v3204 = vtanh.pop %v3171
    %v3205 = vtanh.pop %v3172
    %v3206 = vtanh.pop %v3173
    %v3207 = vtanh.pop %v3174
    %v3208 = vtanh.pop %v3175
    %v3209 = vtanh.pop %v3176
    %v3210 = vtanh.pop %v3177
    %v3211 = vtanh.pop %v3178
    %v3212 = vtanh.pop %v3179
    %v3213 = vtanh.pop %v3180
    %v3214 = vadd.f32 %v3182, %v3184
    %v3215 = vadd.f32 %v3214, %v3186
    %v3216 = vadd.f32 %v3215, %v3188
    %v3217 = vadd.f32 %v3216, %v3190
    %v3218 = vadd.f32 %v3217, %v3192
    %v3219 = vadd.f32 %v3218, %v3194
    %v3220 = vadd.f32 %v3219, %v3196
    %v3221 = vadd.f32 %v3220, %v3198
    %v3222 = vadd.f32 %v3221, %v3200
    %v3223 = vadd.f32 %v3222, %v3202
    %v3224 = vadd.f32 %v3223, %v3204
    %v3225 = vadd.f32 %v3224, %v3206
    %v3226 = vadd.f32 %v3225, %v3208
    %v3227 = vadd.f32 %v3226, %v3210
    %v3228 = vadd.f32 %v3227, %v3212
    %v3229 = vadd.f32 %v3183, %v3185
    %v3230 = vadd.f32 %v3229, %v3187
    %v3231 = vadd.f32 %v3230, %v3189
    %v3232 = vadd.f32 %v3231, %v3191
    %v3233 = vadd.f32 %v3232, %v3193
    %v3234 = vadd.f32 %v3233, %v3195
    %v3235 = vadd.f32 %v3234, %v3197
    %v3236 = vadd.f32 %v3235, %v3199
    %v3237 = vadd.f32 %v3236, %v3201
    %v3238 = vadd.f32 %v3237, %v3203
    %v3239 = vadd.f32 %v3238, %v3205
    %v3240 = vadd.f32 %v3239, %v3207
    %v3241 = vadd.f32 %v3240, %v3209
    %v3242 = vadd.f32 %v3241, %v3211
    %v3243 = vadd.f32 %v3242, %v3213
    %v3244 = vstv %s3181
    %v3245 = vmul.f32 %v3244, %v3228
    %v3246 = vmul.f32 %v3244, %v3243
    %v3247 = vadd.f32 %v2979, %v3245
    %v3248 = vadd.f32 %v2980, %v3246
    %s3249 = sld [smem:[#allocation3 + $0x1e]]
    %v3250 = vstv %s3249
    %v3251 = vmul.f32 %v3250, %v475
    %v3252 = vmul.f32 %v3250, %v476
    %v3253 = vmul.f32 %v3250, %v477
    %v3254 = vmul.f32 %v3250, %v478
    %v3255 = vmul.f32 %v3250, %v479
    %v3256 = vmul.f32 %v3250, %v480
    %v3257 = vmul.f32 %v3250, %v481
    %v3258 = vmul.f32 %v3250, %v482
    %v3259 = vmul.f32 %v3250, %v483
    %v3260 = vmul.f32 %v3250, %v484
    %v3261 = vmul.f32 %v3250, %v485
    %v3262 = vmul.f32 %v3250, %v486
    %v3263 = vmul.f32 %v3250, %v487
    %v3264 = vmul.f32 %v3250, %v488
    %v3265 = vmul.f32 %v3250, %v489
    %v3266 = vmul.f32 %v3250, %v490
    %v3267 = vmul.f32 %v3250, %v491
    %v3268 = vmul.f32 %v3250, %v492
    %v3269 = vmul.f32 %v3250, %v493
    %v3270 = vmul.f32 %v3250, %v494
    %v3271 = vmul.f32 %v3250, %v495
    %v3272 = vmul.f32 %v3250, %v496
    %v3273 = vmul.f32 %v3250, %v497
    %v3274 = vmul.f32 %v3250, %v498
    %v3275 = vmul.f32 %v3250, %v499
    %v3276 = vmul.f32 %v3250, %v500
    %v3277 = vmul.f32 %v3250, %v501
    %v3278 = vmul.f32 %v3250, %v502
    %v3279 = vmul.f32 %v3250, %v503
    %v3280 = vmul.f32 %v3250, %v504
    %v3281 = vmul.f32 %v3250, %v505
    %v3282 = vmul.f32 %v3250, %v506
    %s3283 = sld [smem:[#allocation3 + $0x1f]]
    %v3284 = vstv %s3283
    %v3285 = vmul.f32 %v3284, %v507
    %v3286 = vmul.f32 %v3284, %v508
    %v3287 = vmul.f32 %v3284, %v509
    %v3288 = vmul.f32 %v3284, %v510
    %v3289 = vmul.f32 %v3284, %v511
    %v3290 = vmul.f32 %v3284, %v512
    %v3291 = vmul.f32 %v3284, %v513
    %v3292 = vmul.f32 %v3284, %v514
    %v3293 = vmul.f32 %v3284, %v515
    %v3294 = vmul.f32 %v3284, %v516
    %v3295 = vmul.f32 %v3284, %v517
    %v3296 = vmul.f32 %v3284, %v518
    %v3297 = vmul.f32 %v3284, %v519
    %v3298 = vmul.f32 %v3284, %v520
    %v3299 = vmul.f32 %v3284, %v521
    %v3300 = vmul.f32 %v3284, %v522
    %v3301 = vmul.f32 %v3284, %v523
    %v3302 = vmul.f32 %v3284, %v524
    %v3303 = vmul.f32 %v3284, %v525
    %v3304 = vmul.f32 %v3284, %v526
    %v3305 = vmul.f32 %v3284, %v527
    %v3306 = vmul.f32 %v3284, %v528
    %v3307 = vmul.f32 %v3284, %v529
    %v3308 = vmul.f32 %v3284, %v530
    %v3309 = vmul.f32 %v3284, %v531
    %v3310 = vmul.f32 %v3284, %v532
    %v3311 = vmul.f32 %v3284, %v533
    %v3312 = vmul.f32 %v3284, %v534
    %v3313 = vmul.f32 %v3284, %v535
    %v3314 = vmul.f32 %v3284, %v536
    %v3315 = vmul.f32 %v3284, %v537
    %v3316 = vmul.f32 %v3284, %v538
    %v3317 = vadd.f32 %v3251, %v3285
    %v3318 = vadd.f32 %v3252, %v3286
    %v3319 = vadd.f32 %v3253, %v3287
    %v3320 = vadd.f32 %v3254, %v3288
    %v3321 = vadd.f32 %v3255, %v3289
    %v3322 = vadd.f32 %v3256, %v3290
    %v3323 = vadd.f32 %v3257, %v3291
    %v3324 = vadd.f32 %v3258, %v3292
    %v3325 = vadd.f32 %v3259, %v3293
    %v3326 = vadd.f32 %v3260, %v3294
    %v3327 = vadd.f32 %v3261, %v3295
    %v3328 = vadd.f32 %v3262, %v3296
    %v3329 = vadd.f32 %v3263, %v3297
    %v3330 = vadd.f32 %v3264, %v3298
    %v3331 = vadd.f32 %v3265, %v3299
    %v3332 = vadd.f32 %v3266, %v3300
    %v3333 = vadd.f32 %v3267, %v3301
    %v3334 = vadd.f32 %v3268, %v3302
    %v3335 = vadd.f32 %v3269, %v3303
    %v3336 = vadd.f32 %v3270, %v3304
    %v3337 = vadd.f32 %v3271, %v3305
    %v3338 = vadd.f32 %v3272, %v3306
    %v3339 = vadd.f32 %v3273, %v3307
    %v3340 = vadd.f32 %v3274, %v3308
    %v3341 = vadd.f32 %v3275, %v3309
    %v3342 = vadd.f32 %v3276, %v3310
    %v3343 = vadd.f32 %v3277, %v3311
    %v3344 = vadd.f32 %v3278, %v3312
    %v3345 = vadd.f32 %v3279, %v3313
    %v3346 = vadd.f32 %v3280, %v3314
    %v3347 = vadd.f32 %v3281, %v3315
    %v3348 = vadd.f32 %v3282, %v3316
    %s3349 = sld [smem:[#allocation3 + $0x20]]
    %v3350 = vstv %s3349
    %v3351 = vmul.f32 %v3350, %v539
    %v3352 = vmul.f32 %v3350, %v540
    %v3353 = vmul.f32 %v3350, %v541
    %v3354 = vmul.f32 %v3350, %v542
    %v3355 = vmul.f32 %v3350, %v543
    %v3356 = vmul.f32 %v3350, %v544
    %v3357 = vmul.f32 %v3350, %v545
    %v3358 = vmul.f32 %v3350, %v546
    %v3359 = vmul.f32 %v3350, %v547
    %v3360 = vmul.f32 %v3350, %v548
    %v3361 = vmul.f32 %v3350, %v549
    %v3362 = vmul.f32 %v3350, %v550
    %v3363 = vmul.f32 %v3350, %v551
    %v3364 = vmul.f32 %v3350, %v552
    %v3365 = vmul.f32 %v3350, %v553
    %v3366 = vmul.f32 %v3350, %v554
    %v3367 = vmul.f32 %v3350, %v555
    %v3368 = vmul.f32 %v3350, %v556
    %v3369 = vmul.f32 %v3350, %v557
    %v3370 = vmul.f32 %v3350, %v558
    %v3371 = vmul.f32 %v3350, %v559
    %v3372 = vmul.f32 %v3350, %v560
    %v3373 = vmul.f32 %v3350, %v561
    %v3374 = vmul.f32 %v3350, %v562
    %v3375 = vmul.f32 %v3350, %v563
    %v3376 = vmul.f32 %v3350, %v564
    %v3377 = vmul.f32 %v3350, %v565
    %v3378 = vmul.f32 %v3350, %v566
    %v3379 = vmul.f32 %v3350, %v567
    %v3380 = vmul.f32 %v3350, %v568
    %v3381 = vmul.f32 %v3350, %v569
    %v3382 = vmul.f32 %v3350, %v570
    %v3383 = vadd.f32 %v3317, %v3351
    %v3384 = vadd.f32 %v3318, %v3352
    %v3385 = vadd.f32 %v3319, %v3353
    %v3386 = vadd.f32 %v3320, %v3354
    %v3387 = vadd.f32 %v3321, %v3355
    %v3388 = vadd.f32 %v3322, %v3356
    %v3389 = vadd.f32 %v3323, %v3357
    %v3390 = vadd.f32 %v3324, %v3358
    %v3391 = vadd.f32 %v3325, %v3359
    %v3392 = vadd.f32 %v3326, %v3360
    %v3393 = vadd.f32 %v3327, %v3361
    %v3394 = vadd.f32 %v3328, %v3362
    %v3395 = vadd.f32 %v3329, %v3363
    %v3396 = vadd.f32 %v3330, %v3364
    %v3397 = vadd.f32 %v3331, %v3365
    %v3398 = vadd.f32 %v3332, %v3366
    %v3399 = vadd.f32 %v3333, %v3367
    %v3400 = vadd.f32 %v3334, %v3368
    %v3401 = vadd.f32 %v3335, %v3369
    %v3402 = vadd.f32 %v3336, %v3370
    %v3403 = vadd.f32 %v3337, %v3371
    %v3404 = vadd.f32 %v3338, %v3372
    %v3405 = vadd.f32 %v3339, %v3373
    %v3406 = vadd.f32 %v3340, %v3374
    %v3407 = vadd.f32 %v3341, %v3375
    %v3408 = vadd.f32 %v3342, %v3376
    %v3409 = vadd.f32 %v3343, %v3377
    %v3410 = vadd.f32 %v3344, %v3378
    %v3411 = vadd.f32 %v3345, %v3379
    %v3412 = vadd.f32 %v3346, %v3380
    %v3413 = vadd.f32 %v3347, %v3381
    %v3414 = vadd.f32 %v3348, %v3382
    %s3415 = sld [smem:[#allocation5 + $0xa]]
    %v3416 = vstv %s3415
    %v3417 = vadd.f32 %v3383, %v3416
    %v3418 = vadd.f32 %v3384, %v3416
    %v3419 = vadd.f32 %v3385, %v3416
    %v3420 = vadd.f32 %v3386, %v3416
    %v3421 = vadd.f32 %v3387, %v3416
    %v3422 = vadd.f32 %v3388, %v3416
    %v3423 = vadd.f32 %v3389, %v3416
    %v3424 = vadd.f32 %v3390, %v3416
    %v3425 = vadd.f32 %v3391, %v3416
    %v3426 = vadd.f32 %v3392, %v3416
    %v3427 = vadd.f32 %v3393, %v3416
    %v3428 = vadd.f32 %v3394, %v3416
    %v3429 = vadd.f32 %v3395, %v3416
    %v3430 = vadd.f32 %v3396, %v3416
    %v3431 = vadd.f32 %v3397, %v3416
    %v3432 = vadd.f32 %v3398, %v3416
    %v3433 = vadd.f32 %v3399, %v3416
    %v3434 = vadd.f32 %v3400, %v3416
    %v3435 = vadd.f32 %v3401, %v3416
    %v3436 = vadd.f32 %v3402, %v3416
    %v3437 = vadd.f32 %v3403, %v3416
    %v3438 = vadd.f32 %v3404, %v3416
    %v3439 = vadd.f32 %v3405, %v3416
    %v3440 = vadd.f32 %v3406, %v3416
    %v3441 = vadd.f32 %v3407, %v3416
    %v3442 = vadd.f32 %v3408, %v3416
    %v3443 = vadd.f32 %v3409, %v3416
    %v3444 = vadd.f32 %v3410, %v3416
    %v3445 = vadd.f32 %v3411, %v3416
    %v3446 = vadd.f32 %v3412, %v3416
    %v3447 = vadd.f32 %v3413, %v3416
    %v3448 = vadd.f32 %v3414, %v3416
    %s3449 = sld [smem:[#allocation7 + $0xa]]
    %v3450 = vtanh.pop %v3417
    %v3451 = vtanh.pop %v3418
    %v3452 = vtanh.pop %v3419
    %v3453 = vtanh.pop %v3420
    %v3454 = vtanh.pop %v3421
    %v3455 = vtanh.pop %v3422
    %v3456 = vtanh.pop %v3423
    %v3457 = vtanh.pop %v3424
    %v3458 = vtanh.pop %v3425
    %v3459 = vtanh.pop %v3426
    %v3460 = vtanh.pop %v3427
    %v3461 = vtanh.pop %v3428
    %v3462 = vtanh.pop %v3429
    %v3463 = vtanh.pop %v3430
    %v3464 = vtanh.pop %v3431
    %v3465 = vtanh.pop %v3432
    %v3466 = vtanh.pop %v3433
    %v3467 = vtanh.pop %v3434
    %v3468 = vtanh.pop %v3435
    %v3469 = vtanh.pop %v3436
    %v3470 = vtanh.pop %v3437
    %v3471 = vtanh.pop %v3438
    %v3472 = vtanh.pop %v3439
    %v3473 = vtanh.pop %v3440
    %v3474 = vtanh.pop %v3441
    %v3475 = vtanh.pop %v3442
    %v3476 = vtanh.pop %v3443
    %v3477 = vtanh.pop %v3444
    %v3478 = vtanh.pop %v3445
    %v3479 = vtanh.pop %v3446
    %v3480 = vtanh.pop %v3447
    %v3481 = vtanh.pop %v3448
    %v3482 = vadd.f32 %v3450, %v3452
    %v3483 = vadd.f32 %v3482, %v3454
    %v3484 = vadd.f32 %v3483, %v3456
    %v3485 = vadd.f32 %v3484, %v3458
    %v3486 = vadd.f32 %v3485, %v3460
    %v3487 = vadd.f32 %v3486, %v3462
    %v3488 = vadd.f32 %v3487, %v3464
    %v3489 = vadd.f32 %v3488, %v3466
    %v3490 = vadd.f32 %v3489, %v3468
    %v3491 = vadd.f32 %v3490, %v3470
    %v3492 = vadd.f32 %v3491, %v3472
    %v3493 = vadd.f32 %v3492, %v3474
    %v3494 = vadd.f32 %v3493, %v3476
    %v3495 = vadd.f32 %v3494, %v3478
    %v3496 = vadd.f32 %v3495, %v3480
    %v3497 = vadd.f32 %v3451, %v3453
    %v3498 = vadd.f32 %v3497, %v3455
    %v3499 = vadd.f32 %v3498, %v3457
    %v3500 = vadd.f32 %v3499, %v3459
    %v3501 = vadd.f32 %v3500, %v3461
    %v3502 = vadd.f32 %v3501, %v3463
    %v3503 = vadd.f32 %v3502, %v3465
    %v3504 = vadd.f32 %v3503, %v3467
    %v3505 = vadd.f32 %v3504, %v3469
    %v3506 = vadd.f32 %v3505, %v3471
    %v3507 = vadd.f32 %v3506, %v3473
    %v3508 = vadd.f32 %v3507, %v3475
    %v3509 = vadd.f32 %v3508, %v3477
    %v3510 = vadd.f32 %v3509, %v3479
    %v3511 = vadd.f32 %v3510, %v3481
    %v3512 = vstv %s3449
    %v3513 = vmul.f32 %v3512, %v3496
    %v3514 = vmul.f32 %v3512, %v3511
    %v3515 = vadd.f32 %v3247, %v3513
    %v3516 = vadd.f32 %v3248, %v3514
    %s3517 = sld [smem:[#allocation3 + $0x21]]
    %v3518 = vstv %s3517
    %v3519 = vmul.f32 %v3518, %v475
    %v3520 = vmul.f32 %v3518, %v476
    %v3521 = vmul.f32 %v3518, %v477
    %v3522 = vmul.f32 %v3518, %v478
    %v3523 = vmul.f32 %v3518, %v479
    %v3524 = vmul.f32 %v3518, %v480
    %v3525 = vmul.f32 %v3518, %v481
    %v3526 = vmul.f32 %v3518, %v482
    %v3527 = vmul.f32 %v3518, %v483
    %v3528 = vmul.f32 %v3518, %v484
    %v3529 = vmul.f32 %v3518, %v485
    %v3530 = vmul.f32 %v3518, %v486
    %v3531 = vmul.f32 %v3518, %v487
    %v3532 = vmul.f32 %v3518, %v488
    %v3533 = vmul.f32 %v3518, %v489
    %v3534 = vmul.f32 %v3518, %v490
    %v3535 = vmul.f32 %v3518, %v491
    %v3536 = vmul.f32 %v3518, %v492
    %v3537 = vmul.f32 %v3518, %v493
    %v3538 = vmul.f32 %v3518, %v494
    %v3539 = vmul.f32 %v3518, %v495
    %v3540 = vmul.f32 %v3518, %v496
    %v3541 = vmul.f32 %v3518, %v497
    %v3542 = vmul.f32 %v3518, %v498
    %v3543 = vmul.f32 %v3518, %v499
    %v3544 = vmul.f32 %v3518, %v500
    %v3545 = vmul.f32 %v3518, %v501
    %v3546 = vmul.f32 %v3518, %v502
    %v3547 = vmul.f32 %v3518, %v503
    %v3548 = vmul.f32 %v3518, %v504
    %v3549 = vmul.f32 %v3518, %v505
    %v3550 = vmul.f32 %v3518, %v506
    %s3551 = sld [smem:[#allocation3 + $0x22]]
    %v3552 = vstv %s3551
    %v3553 = vmul.f32 %v3552, %v507
    %v3554 = vmul.f32 %v3552, %v508
    %v3555 = vmul.f32 %v3552, %v509
    %v3556 = vmul.f32 %v3552, %v510
    %v3557 = vmul.f32 %v3552, %v511
    %v3558 = vmul.f32 %v3552, %v512
    %v3559 = vmul.f32 %v3552, %v513
    %v3560 = vmul.f32 %v3552, %v514
    %v3561 = vmul.f32 %v3552, %v515
    %v3562 = vmul.f32 %v3552, %v516
    %v3563 = vmul.f32 %v3552, %v517
    %v3564 = vmul.f32 %v3552, %v518
    %v3565 = vmul.f32 %v3552, %v519
    %v3566 = vmul.f32 %v3552, %v520
    %v3567 = vmul.f32 %v3552, %v521
    %v3568 = vmul.f32 %v3552, %v522
    %v3569 = vmul.f32 %v3552, %v523
    %v3570 = vmul.f32 %v3552, %v524
    %v3571 = vmul.f32 %v3552, %v525
    %v3572 = vmul.f32 %v3552, %v526
    %v3573 = vmul.f32 %v3552, %v527
    %v3574 = vmul.f32 %v3552, %v528
    %v3575 = vmul.f32 %v3552, %v529
    %v3576 = vmul.f32 %v3552, %v530
    %v3577 = vmul.f32 %v3552, %v531
    %v3578 = vmul.f32 %v3552, %v532
    %v3579 = vmul.f32 %v3552, %v533
    %v3580 = vmul.f32 %v3552, %v534
    %v3581 = vmul.f32 %v3552, %v535
    %v3582 = vmul.f32 %v3552, %v536
    %v3583 = vmul.f32 %v3552, %v537
    %v3584 = vmul.f32 %v3552, %v538
    %v3585 = vadd.f32 %v3519, %v3553
    %v3586 = vadd.f32 %v3520, %v3554
    %v3587 = vadd.f32 %v3521, %v3555
    %v3588 = vadd.f32 %v3522, %v3556
    %v3589 = vadd.f32 %v3523, %v3557
    %v3590 = vadd.f32 %v3524, %v3558
    %v3591 = vadd.f32 %v3525, %v3559
    %v3592 = vadd.f32 %v3526, %v3560
    %v3593 = vadd.f32 %v3527, %v3561
    %v3594 = vadd.f32 %v3528, %v3562
    %v3595 = vadd.f32 %v3529, %v3563
    %v3596 = vadd.f32 %v3530, %v3564
    %v3597 = vadd.f32 %v3531, %v3565
    %v3598 = vadd.f32 %v3532, %v3566
    %v3599 = vadd.f32 %v3533, %v3567
    %v3600 = vadd.f32 %v3534, %v3568
    %v3601 = vadd.f32 %v3535, %v3569
    %v3602 = vadd.f32 %v3536, %v3570
    %v3603 = vadd.f32 %v3537, %v3571
    %v3604 = vadd.f32 %v3538, %v3572
    %v3605 = vadd.f32 %v3539, %v3573
    %v3606 = vadd.f32 %v3540, %v3574
    %v3607 = vadd.f32 %v3541, %v3575
    %v3608 = vadd.f32 %v3542, %v3576
    %v3609 = vadd.f32 %v3543, %v3577
    %v3610 = vadd.f32 %v3544, %v3578
    %v3611 = vadd.f32 %v3545, %v3579
    %v3612 = vadd.f32 %v3546, %v3580
    %v3613 = vadd.f32 %v3547, %v3581
    %v3614 = vadd.f32 %v3548, %v3582
    %v3615 = vadd.f32 %v3549, %v3583
    %v3616 = vadd.f32 %v3550, %v3584
    %s3617 = sld [smem:[#allocation3 + $0x23]]
    %v3618 = vstv %s3617
    %v3619 = vmul.f32 %v3618, %v539
    %v3620 = vmul.f32 %v3618, %v540
    %v3621 = vmul.f32 %v3618, %v541
    %v3622 = vmul.f32 %v3618, %v542
    %v3623 = vmul.f32 %v3618, %v543
    %v3624 = vmul.f32 %v3618, %v544
    %v3625 = vmul.f32 %v3618, %v545
    %v3626 = vmul.f32 %v3618, %v546
    %v3627 = vmul.f32 %v3618, %v547
    %v3628 = vmul.f32 %v3618, %v548
    %v3629 = vmul.f32 %v3618, %v549
    %v3630 = vmul.f32 %v3618, %v550
    %v3631 = vmul.f32 %v3618, %v551
    %v3632 = vmul.f32 %v3618, %v552
    %v3633 = vmul.f32 %v3618, %v553
    %v3634 = vmul.f32 %v3618, %v554
    %v3635 = vmul.f32 %v3618, %v555
    %v3636 = vmul.f32 %v3618, %v556
    %v3637 = vmul.f32 %v3618, %v557
    %v3638 = vmul.f32 %v3618, %v558
    %v3639 = vmul.f32 %v3618, %v559
    %v3640 = vmul.f32 %v3618, %v560
    %v3641 = vmul.f32 %v3618, %v561
    %v3642 = vmul.f32 %v3618, %v562
    %v3643 = vmul.f32 %v3618, %v563
    %v3644 = vmul.f32 %v3618, %v564
    %v3645 = vmul.f32 %v3618, %v565
    %v3646 = vmul.f32 %v3618, %v566
    %v3647 = vmul.f32 %v3618, %v567
    %v3648 = vmul.f32 %v3618, %v568
    %v3649 = vmul.f32 %v3618, %v569
    %v3650 = vmul.f32 %v3618, %v570
    %v3651 = vadd.f32 %v3585, %v3619
    %v3652 = vadd.f32 %v3586, %v3620
    %v3653 = vadd.f32 %v3587, %v3621
    %v3654 = vadd.f32 %v3588, %v3622
    %v3655 = vadd.f32 %v3589, %v3623
    %v3656 = vadd.f32 %v3590, %v3624
    %v3657 = vadd.f32 %v3591, %v3625
    %v3658 = vadd.f32 %v3592, %v3626
    %v3659 = vadd.f32 %v3593, %v3627
    %v3660 = vadd.f32 %v3594, %v3628
    %v3661 = vadd.f32 %v3595, %v3629
    %v3662 = vadd.f32 %v3596, %v3630
    %v3663 = vadd.f32 %v3597, %v3631
    %v3664 = vadd.f32 %v3598, %v3632
    %v3665 = vadd.f32 %v3599, %v3633
    %v3666 = vadd.f32 %v3600, %v3634
    %v3667 = vadd.f32 %v3601, %v3635
    %v3668 = vadd.f32 %v3602, %v3636
    %v3669 = vadd.f32 %v3603, %v3637
    %v3670 = vadd.f32 %v3604, %v3638
    %v3671 = vadd.f32 %v3605, %v3639
    %v3672 = vadd.f32 %v3606, %v3640
    %v3673 = vadd.f32 %v3607, %v3641
    %v3674 = vadd.f32 %v3608, %v3642
    %v3675 = vadd.f32 %v3609, %v3643
    %v3676 = vadd.f32 %v3610, %v3644
    %v3677 = vadd.f32 %v3611, %v3645
    %v3678 = vadd.f32 %v3612, %v3646
    %v3679 = vadd.f32 %v3613, %v3647
    %v3680 = vadd.f32 %v3614, %v3648
    %v3681 = vadd.f32 %v3615, %v3649
    %v3682 = vadd.f32 %v3616, %v3650
    %s3683 = sld [smem:[#allocation5 + $0xb]]
    %v3684 = vstv %s3683
    %v3685 = vadd.f32 %v3651, %v3684
    %v3686 = vadd.f32 %v3652, %v3684
    %v3687 = vadd.f32 %v3653, %v3684
    %v3688 = vadd.f32 %v3654, %v3684
    %v3689 = vadd.f32 %v3655, %v3684
    %v3690 = vadd.f32 %v3656, %v3684
    %v3691 = vadd.f32 %v3657, %v3684
    %v3692 = vadd.f32 %v3658, %v3684
    %v3693 = vadd.f32 %v3659, %v3684
    %v3694 = vadd.f32 %v3660, %v3684
    %v3695 = vadd.f32 %v3661, %v3684
    %v3696 = vadd.f32 %v3662, %v3684
    %v3697 = vadd.f32 %v3663, %v3684
    %v3698 = vadd.f32 %v3664, %v3684
    %v3699 = vadd.f32 %v3665, %v3684
    %v3700 = vadd.f32 %v3666, %v3684
    %v3701 = vadd.f32 %v3667, %v3684
    %v3702 = vadd.f32 %v3668, %v3684
    %v3703 = vadd.f32 %v3669, %v3684
    %v3704 = vadd.f32 %v3670, %v3684
    %v3705 = vadd.f32 %v3671, %v3684
    %v3706 = vadd.f32 %v3672, %v3684
    %v3707 = vadd.f32 %v3673, %v3684
    %v3708 = vadd.f32 %v3674, %v3684
    %v3709 = vadd.f32 %v3675, %v3684
    %v3710 = vadd.f32 %v3676, %v3684
    %v3711 = vadd.f32 %v3677, %v3684
    %v3712 = vadd.f32 %v3678, %v3684
    %v3713 = vadd.f32 %v3679, %v3684
    %v3714 = vadd.f32 %v3680, %v3684
    %v3715 = vadd.f32 %v3681, %v3684
    %v3716 = vadd.f32 %v3682, %v3684
    %s3717 = sld [smem:[#allocation7 + $0xb]]
    %v3718 = vtanh.pop %v3685
    %v3719 = vtanh.pop %v3686
    %v3720 = vtanh.pop %v3687
    %v3721 = vtanh.pop %v3688
    %v3722 = vtanh.pop %v3689
    %v3723 = vtanh.pop %v3690
    %v3724 = vtanh.pop %v3691
    %v3725 = vtanh.pop %v3692
    %v3726 = vtanh.pop %v3693
    %v3727 = vtanh.pop %v3694
    %v3728 = vtanh.pop %v3695
    %v3729 = vtanh.pop %v3696
    %v3730 = vtanh.pop %v3697
    %v3731 = vtanh.pop %v3698
    %v3732 = vtanh.pop %v3699
    %v3733 = vtanh.pop %v3700
    %v3734 = vtanh.pop %v3701
    %v3735 = vtanh.pop %v3702
    %v3736 = vtanh.pop %v3703
    %v3737 = vtanh.pop %v3704
    %v3738 = vtanh.pop %v3705
    %v3739 = vtanh.pop %v3706
    %v3740 = vtanh.pop %v3707
    %v3741 = vtanh.pop %v3708
    %v3742 = vtanh.pop %v3709
    %v3743 = vtanh.pop %v3710
    %v3744 = vtanh.pop %v3711
    %v3745 = vtanh.pop %v3712
    %v3746 = vtanh.pop %v3713
    %v3747 = vtanh.pop %v3714
    %v3748 = vtanh.pop %v3715
    %v3749 = vtanh.pop %v3716
    %v3750 = vadd.f32 %v3718, %v3720
    %v3751 = vadd.f32 %v3750, %v3722
    %v3752 = vadd.f32 %v3751, %v3724
    %v3753 = vadd.f32 %v3752, %v3726
    %v3754 = vadd.f32 %v3753, %v3728
    %v3755 = vadd.f32 %v3754, %v3730
    %v3756 = vadd.f32 %v3755, %v3732
    %v3757 = vadd.f32 %v3756, %v3734
    %v3758 = vadd.f32 %v3757, %v3736
    %v3759 = vadd.f32 %v3758, %v3738
    %v3760 = vadd.f32 %v3759, %v3740
    %v3761 = vadd.f32 %v3760, %v3742
    %v3762 = vadd.f32 %v3761, %v3744
    %v3763 = vadd.f32 %v3762, %v3746
    %v3764 = vadd.f32 %v3763, %v3748
    %v3765 = vadd.f32 %v3719, %v3721
    %v3766 = vadd.f32 %v3765, %v3723
    %v3767 = vadd.f32 %v3766, %v3725
    %v3768 = vadd.f32 %v3767, %v3727
    %v3769 = vadd.f32 %v3768, %v3729
    %v3770 = vadd.f32 %v3769, %v3731
    %v3771 = vadd.f32 %v3770, %v3733
    %v3772 = vadd.f32 %v3771, %v3735
    %v3773 = vadd.f32 %v3772, %v3737
    %v3774 = vadd.f32 %v3773, %v3739
    %v3775 = vadd.f32 %v3774, %v3741
    %v3776 = vadd.f32 %v3775, %v3743
    %v3777 = vadd.f32 %v3776, %v3745
    %v3778 = vadd.f32 %v3777, %v3747
    %v3779 = vadd.f32 %v3778, %v3749
    %v3780 = vstv %s3717
    %v3781 = vmul.f32 %v3780, %v3764
    %v3782 = vmul.f32 %v3780, %v3779
    %v3783 = vadd.f32 %v3515, %v3781
    %v3784 = vadd.f32 %v3516, %v3782
    %s3785 = sld [smem:[#allocation3 + $0x24]]
    %v3786 = vstv %s3785
    %v3787 = vmul.f32 %v3786, %v475
    %v3788 = vmul.f32 %v3786, %v476
    %v3789 = vmul.f32 %v3786, %v477
    %v3790 = vmul.f32 %v3786, %v478
    %v3791 = vmul.f32 %v3786, %v479
    %v3792 = vmul.f32 %v3786, %v480
    %v3793 = vmul.f32 %v3786, %v481
    %v3794 = vmul.f32 %v3786, %v482
    %v3795 = vmul.f32 %v3786, %v483
    %v3796 = vmul.f32 %v3786, %v484
    %v3797 = vmul.f32 %v3786, %v485
    %v3798 = vmul.f32 %v3786, %v486
    %v3799 = vmul.f32 %v3786, %v487
    %v3800 = vmul.f32 %v3786, %v488
    %v3801 = vmul.f32 %v3786, %v489
    %v3802 = vmul.f32 %v3786, %v490
    %v3803 = vmul.f32 %v3786, %v491
    %v3804 = vmul.f32 %v3786, %v492
    %v3805 = vmul.f32 %v3786, %v493
    %v3806 = vmul.f32 %v3786, %v494
    %v3807 = vmul.f32 %v3786, %v495
    %v3808 = vmul.f32 %v3786, %v496
    %v3809 = vmul.f32 %v3786, %v497
    %v3810 = vmul.f32 %v3786, %v498
    %v3811 = vmul.f32 %v3786, %v499
    %v3812 = vmul.f32 %v3786, %v500
    %v3813 = vmul.f32 %v3786, %v501
    %v3814 = vmul.f32 %v3786, %v502
    %v3815 = vmul.f32 %v3786, %v503
    %v3816 = vmul.f32 %v3786, %v504
    %v3817 = vmul.f32 %v3786, %v505
    %v3818 = vmul.f32 %v3786, %v506
    %s3819 = sld [smem:[#allocation3 + $0x25]]
    %v3820 = vstv %s3819
    %v3821 = vmul.f32 %v3820, %v507
    %v3822 = vmul.f32 %v3820, %v508
    %v3823 = vmul.f32 %v3820, %v509
    %v3824 = vmul.f32 %v3820, %v510
    %v3825 = vmul.f32 %v3820, %v511
    %v3826 = vmul.f32 %v3820, %v512
    %v3827 = vmul.f32 %v3820, %v513
    %v3828 = vmul.f32 %v3820, %v514
    %v3829 = vmul.f32 %v3820, %v515
    %v3830 = vmul.f32 %v3820, %v516
    %v3831 = vmul.f32 %v3820, %v517
    %v3832 = vmul.f32 %v3820, %v518
    %v3833 = vmul.f32 %v3820, %v519
    %v3834 = vmul.f32 %v3820, %v520
    %v3835 = vmul.f32 %v3820, %v521
    %v3836 = vmul.f32 %v3820, %v522
    %v3837 = vmul.f32 %v3820, %v523
    %v3838 = vmul.f32 %v3820, %v524
    %v3839 = vmul.f32 %v3820, %v525
    %v3840 = vmul.f32 %v3820, %v526
    %v3841 = vmul.f32 %v3820, %v527
    %v3842 = vmul.f32 %v3820, %v528
    %v3843 = vmul.f32 %v3820, %v529
    %v3844 = vmul.f32 %v3820, %v530
    %v3845 = vmul.f32 %v3820, %v531
    %v3846 = vmul.f32 %v3820, %v532
    %v3847 = vmul.f32 %v3820, %v533
    %v3848 = vmul.f32 %v3820, %v534
    %v3849 = vmul.f32 %v3820, %v535
    %v3850 = vmul.f32 %v3820, %v536
    %v3851 = vmul.f32 %v3820, %v537
    %v3852 = vmul.f32 %v3820, %v538
    %v3853 = vadd.f32 %v3787, %v3821
    %v3854 = vadd.f32 %v3788, %v3822
    %v3855 = vadd.f32 %v3789, %v3823
    %v3856 = vadd.f32 %v3790, %v3824
    %v3857 = vadd.f32 %v3791, %v3825
    %v3858 = vadd.f32 %v3792, %v3826
    %v3859 = vadd.f32 %v3793, %v3827
    %v3860 = vadd.f32 %v3794, %v3828
    %v3861 = vadd.f32 %v3795, %v3829
    %v3862 = vadd.f32 %v3796, %v3830
    %v3863 = vadd.f32 %v3797, %v3831
    %v3864 = vadd.f32 %v3798, %v3832
    %v3865 = vadd.f32 %v3799, %v3833
    %v3866 = vadd.f32 %v3800, %v3834
    %v3867 = vadd.f32 %v3801, %v3835
    %v3868 = vadd.f32 %v3802, %v3836
    %v3869 = vadd.f32 %v3803, %v3837
    %v3870 = vadd.f32 %v3804, %v3838
    %v3871 = vadd.f32 %v3805, %v3839
    %v3872 = vadd.f32 %v3806, %v3840
    %v3873 = vadd.f32 %v3807, %v3841
    %v3874 = vadd.f32 %v3808, %v3842
    %v3875 = vadd.f32 %v3809, %v3843
    %v3876 = vadd.f32 %v3810, %v3844
    %v3877 = vadd.f32 %v3811, %v3845
    %v3878 = vadd.f32 %v3812, %v3846
    %v3879 = vadd.f32 %v3813, %v3847
    %v3880 = vadd.f32 %v3814, %v3848
    %v3881 = vadd.f32 %v3815, %v3849
    %v3882 = vadd.f32 %v3816, %v3850
    %v3883 = vadd.f32 %v3817, %v3851
    %v3884 = vadd.f32 %v3818, %v3852
    %s3885 = sld [smem:[#allocation3 + $0x26]]
    %v3886 = vstv %s3885
    %v3887 = vmul.f32 %v3886, %v539
    %v3888 = vmul.f32 %v3886, %v540
    %v3889 = vmul.f32 %v3886, %v541
    %v3890 = vmul.f32 %v3886, %v542
    %v3891 = vmul.f32 %v3886, %v543
    %v3892 = vmul.f32 %v3886, %v544
    %v3893 = vmul.f32 %v3886, %v545
    %v3894 = vmul.f32 %v3886, %v546
    %v3895 = vmul.f32 %v3886, %v547
    %v3896 = vmul.f32 %v3886, %v548
    %v3897 = vmul.f32 %v3886, %v549
    %v3898 = vmul.f32 %v3886, %v550
    %v3899 = vmul.f32 %v3886, %v551
    %v3900 = vmul.f32 %v3886, %v552
    %v3901 = vmul.f32 %v3886, %v553
    %v3902 = vmul.f32 %v3886, %v554
    %v3903 = vmul.f32 %v3886, %v555
    %v3904 = vmul.f32 %v3886, %v556
    %v3905 = vmul.f32 %v3886, %v557
    %v3906 = vmul.f32 %v3886, %v558
    %v3907 = vmul.f32 %v3886, %v559
    %v3908 = vmul.f32 %v3886, %v560
    %v3909 = vmul.f32 %v3886, %v561
    %v3910 = vmul.f32 %v3886, %v562
    %v3911 = vmul.f32 %v3886, %v563
    %v3912 = vmul.f32 %v3886, %v564
    %v3913 = vmul.f32 %v3886, %v565
    %v3914 = vmul.f32 %v3886, %v566
    %v3915 = vmul.f32 %v3886, %v567
    %v3916 = vmul.f32 %v3886, %v568
    %v3917 = vmul.f32 %v3886, %v569
    %v3918 = vmul.f32 %v3886, %v570
    %v3919 = vadd.f32 %v3853, %v3887
    %v3920 = vadd.f32 %v3854, %v3888
    %v3921 = vadd.f32 %v3855, %v3889
    %v3922 = vadd.f32 %v3856, %v3890
    %v3923 = vadd.f32 %v3857, %v3891
    %v3924 = vadd.f32 %v3858, %v3892
    %v3925 = vadd.f32 %v3859, %v3893
    %v3926 = vadd.f32 %v3860, %v3894
    %v3927 = vadd.f32 %v3861, %v3895
    %v3928 = vadd.f32 %v3862, %v3896
    %v3929 = vadd.f32 %v3863, %v3897
    %v3930 = vadd.f32 %v3864, %v3898
    %v3931 = vadd.f32 %v3865, %v3899
    %v3932 = vadd.f32 %v3866, %v3900
    %v3933 = vadd.f32 %v3867, %v3901
    %v3934 = vadd.f32 %v3868, %v3902
    %v3935 = vadd.f32 %v3869, %v3903
    %v3936 = vadd.f32 %v3870, %v3904
    %v3937 = vadd.f32 %v3871, %v3905
    %v3938 = vadd.f32 %v3872, %v3906
    %v3939 = vadd.f32 %v3873, %v3907
    %v3940 = vadd.f32 %v3874, %v3908
    %v3941 = vadd.f32 %v3875, %v3909
    %v3942 = vadd.f32 %v3876, %v3910
    %v3943 = vadd.f32 %v3877, %v3911
    %v3944 = vadd.f32 %v3878, %v3912
    %v3945 = vadd.f32 %v3879, %v3913
    %v3946 = vadd.f32 %v3880, %v3914
    %v3947 = vadd.f32 %v3881, %v3915
    %v3948 = vadd.f32 %v3882, %v3916
    %v3949 = vadd.f32 %v3883, %v3917
    %v3950 = vadd.f32 %v3884, %v3918
    %s3951 = sld [smem:[#allocation5 + $0xc]]
    %v3952 = vstv %s3951
    %v3953 = vadd.f32 %v3919, %v3952
    %v3954 = vadd.f32 %v3920, %v3952
    %v3955 = vadd.f32 %v3921, %v3952
    %v3956 = vadd.f32 %v3922, %v3952
    %v3957 = vadd.f32 %v3923, %v3952
    %v3958 = vadd.f32 %v3924, %v3952
    %v3959 = vadd.f32 %v3925, %v3952
    %v3960 = vadd.f32 %v3926, %v3952
    %v3961 = vadd.f32 %v3927, %v3952
    %v3962 = vadd.f32 %v3928, %v3952
    %v3963 = vadd.f32 %v3929, %v3952
    %v3964 = vadd.f32 %v3930, %v3952
    %v3965 = vadd.f32 %v3931, %v3952
    %v3966 = vadd.f32 %v3932, %v3952
    %v3967 = vadd.f32 %v3933, %v3952
    %v3968 = vadd.f32 %v3934, %v3952
    %v3969 = vadd.f32 %v3935, %v3952
    %v3970 = vadd.f32 %v3936, %v3952
    %v3971 = vadd.f32 %v3937, %v3952
    %v3972 = vadd.f32 %v3938, %v3952
    %v3973 = vadd.f32 %v3939, %v3952
    %v3974 = vadd.f32 %v3940, %v3952
    %v3975 = vadd.f32 %v3941, %v3952
    %v3976 = vadd.f32 %v3942, %v3952
    %v3977 = vadd.f32 %v3943, %v3952
    %v3978 = vadd.f32 %v3944, %v3952
    %v3979 = vadd.f32 %v3945, %v3952
    %v3980 = vadd.f32 %v3946, %v3952
    %v3981 = vadd.f32 %v3947, %v3952
    %v3982 = vadd.f32 %v3948, %v3952
    %v3983 = vadd.f32 %v3949, %v3952
    %v3984 = vadd.f32 %v3950, %v3952
    %s3985 = sld [smem:[#allocation7 + $0xc]]
    %v3986 = vtanh.pop %v3953
    %v3987 = vtanh.pop %v3954
    %v3988 = vtanh.pop %v3955
    %v3989 = vtanh.pop %v3956
    %v3990 = vtanh.pop %v3957
    %v3991 = vtanh.pop %v3958
    %v3992 = vtanh.pop %v3959
    %v3993 = vtanh.pop %v3960
    %v3994 = vtanh.pop %v3961
    %v3995 = vtanh.pop %v3962
    %v3996 = vtanh.pop %v3963
    %v3997 = vtanh.pop %v3964
    %v3998 = vtanh.pop %v3965
    %v3999 = vtanh.pop %v3966
    %v4000 = vtanh.pop %v3967
    %v4001 = vtanh.pop %v3968
    %v4002 = vtanh.pop %v3969
    %v4003 = vtanh.pop %v3970
    %v4004 = vtanh.pop %v3971
    %v4005 = vtanh.pop %v3972
    %v4006 = vtanh.pop %v3973
    %v4007 = vtanh.pop %v3974
    %v4008 = vtanh.pop %v3975
    %v4009 = vtanh.pop %v3976
    %v4010 = vtanh.pop %v3977
    %v4011 = vtanh.pop %v3978
    %v4012 = vtanh.pop %v3979
    %v4013 = vtanh.pop %v3980
    %v4014 = vtanh.pop %v3981
    %v4015 = vtanh.pop %v3982
    %v4016 = vtanh.pop %v3983
    %v4017 = vtanh.pop %v3984
    %v4018 = vadd.f32 %v3986, %v3988
    %v4019 = vadd.f32 %v4018, %v3990
    %v4020 = vadd.f32 %v4019, %v3992
    %v4021 = vadd.f32 %v4020, %v3994
    %v4022 = vadd.f32 %v4021, %v3996
    %v4023 = vadd.f32 %v4022, %v3998
    %v4024 = vadd.f32 %v4023, %v4000
    %v4025 = vadd.f32 %v4024, %v4002
    %v4026 = vadd.f32 %v4025, %v4004
    %v4027 = vadd.f32 %v4026, %v4006
    %v4028 = vadd.f32 %v4027, %v4008
    %v4029 = vadd.f32 %v4028, %v4010
    %v4030 = vadd.f32 %v4029, %v4012
    %v4031 = vadd.f32 %v4030, %v4014
    %v4032 = vadd.f32 %v4031, %v4016
    %v4033 = vadd.f32 %v3987, %v3989
    %v4034 = vadd.f32 %v4033, %v3991
    %v4035 = vadd.f32 %v4034, %v3993
    %v4036 = vadd.f32 %v4035, %v3995
    %v4037 = vadd.f32 %v4036, %v3997
    %v4038 = vadd.f32 %v4037, %v3999
    %v4039 = vadd.f32 %v4038, %v4001
    %v4040 = vadd.f32 %v4039, %v4003
    %v4041 = vadd.f32 %v4040, %v4005
    %v4042 = vadd.f32 %v4041, %v4007
    %v4043 = vadd.f32 %v4042, %v4009
    %v4044 = vadd.f32 %v4043, %v4011
    %v4045 = vadd.f32 %v4044, %v4013
    %v4046 = vadd.f32 %v4045, %v4015
    %v4047 = vadd.f32 %v4046, %v4017
    %v4048 = vstv %s3985
    %v4049 = vmul.f32 %v4048, %v4032
    %v4050 = vmul.f32 %v4048, %v4047
    %v4051 = vadd.f32 %v3783, %v4049
    %v4052 = vadd.f32 %v3784, %v4050
    %s4053 = sld [smem:[#allocation3 + $0x27]]
    %v4054 = vstv %s4053
    %v4055 = vmul.f32 %v4054, %v475
    %v4056 = vmul.f32 %v4054, %v476
    %v4057 = vmul.f32 %v4054, %v477
    %v4058 = vmul.f32 %v4054, %v478
    %v4059 = vmul.f32 %v4054, %v479
    %v4060 = vmul.f32 %v4054, %v480
    %v4061 = vmul.f32 %v4054, %v481
    %v4062 = vmul.f32 %v4054, %v482
    %v4063 = vmul.f32 %v4054, %v483
    %v4064 = vmul.f32 %v4054, %v484
    %v4065 = vmul.f32 %v4054, %v485
    %v4066 = vmul.f32 %v4054, %v486
    %v4067 = vmul.f32 %v4054, %v487
    %v4068 = vmul.f32 %v4054, %v488
    %v4069 = vmul.f32 %v4054, %v489
    %v4070 = vmul.f32 %v4054, %v490
    %v4071 = vmul.f32 %v4054, %v491
    %v4072 = vmul.f32 %v4054, %v492
    %v4073 = vmul.f32 %v4054, %v493
    %v4074 = vmul.f32 %v4054, %v494
    %v4075 = vmul.f32 %v4054, %v495
    %v4076 = vmul.f32 %v4054, %v496
    %v4077 = vmul.f32 %v4054, %v497
    %v4078 = vmul.f32 %v4054, %v498
    %v4079 = vmul.f32 %v4054, %v499
    %v4080 = vmul.f32 %v4054, %v500
    %v4081 = vmul.f32 %v4054, %v501
    %v4082 = vmul.f32 %v4054, %v502
    %v4083 = vmul.f32 %v4054, %v503
    %v4084 = vmul.f32 %v4054, %v504
    %v4085 = vmul.f32 %v4054, %v505
    %v4086 = vmul.f32 %v4054, %v506
    %s4087 = sld [smem:[#allocation3 + $0x28]]
    %v4088 = vstv %s4087
    %v4089 = vmul.f32 %v4088, %v507
    %v4090 = vmul.f32 %v4088, %v508
    %v4091 = vmul.f32 %v4088, %v509
    %v4092 = vmul.f32 %v4088, %v510
    %v4093 = vmul.f32 %v4088, %v511
    %v4094 = vmul.f32 %v4088, %v512
    %v4095 = vmul.f32 %v4088, %v513
    %v4096 = vmul.f32 %v4088, %v514
    %v4097 = vmul.f32 %v4088, %v515
    %v4098 = vmul.f32 %v4088, %v516
    %v4099 = vmul.f32 %v4088, %v517
    %v4100 = vmul.f32 %v4088, %v518
    %v4101 = vmul.f32 %v4088, %v519
    %v4102 = vmul.f32 %v4088, %v520
    %v4103 = vmul.f32 %v4088, %v521
    %v4104 = vmul.f32 %v4088, %v522
    %v4105 = vmul.f32 %v4088, %v523
    %v4106 = vmul.f32 %v4088, %v524
    %v4107 = vmul.f32 %v4088, %v525
    %v4108 = vmul.f32 %v4088, %v526
    %v4109 = vmul.f32 %v4088, %v527
    %v4110 = vmul.f32 %v4088, %v528
    %v4111 = vmul.f32 %v4088, %v529
    %v4112 = vmul.f32 %v4088, %v530
    %v4113 = vmul.f32 %v4088, %v531
    %v4114 = vmul.f32 %v4088, %v532
    %v4115 = vmul.f32 %v4088, %v533
    %v4116 = vmul.f32 %v4088, %v534
    %v4117 = vmul.f32 %v4088, %v535
    %v4118 = vmul.f32 %v4088, %v536
    %v4119 = vmul.f32 %v4088, %v537
    %v4120 = vmul.f32 %v4088, %v538
    %v4121 = vadd.f32 %v4055, %v4089
    %v4122 = vadd.f32 %v4056, %v4090
    %v4123 = vadd.f32 %v4057, %v4091
    %v4124 = vadd.f32 %v4058, %v4092
    %v4125 = vadd.f32 %v4059, %v4093
    %v4126 = vadd.f32 %v4060, %v4094
    %v4127 = vadd.f32 %v4061, %v4095
    %v4128 = vadd.f32 %v4062, %v4096
    %v4129 = vadd.f32 %v4063, %v4097
    %v4130 = vadd.f32 %v4064, %v4098
    %v4131 = vadd.f32 %v4065, %v4099
    %v4132 = vadd.f32 %v4066, %v4100
    %v4133 = vadd.f32 %v4067, %v4101
    %v4134 = vadd.f32 %v4068, %v4102
    %v4135 = vadd.f32 %v4069, %v4103
    %v4136 = vadd.f32 %v4070, %v4104
    %v4137 = vadd.f32 %v4071, %v4105
    %v4138 = vadd.f32 %v4072, %v4106
    %v4139 = vadd.f32 %v4073, %v4107
    %v4140 = vadd.f32 %v4074, %v4108
    %v4141 = vadd.f32 %v4075, %v4109
    %v4142 = vadd.f32 %v4076, %v4110
    %v4143 = vadd.f32 %v4077, %v4111
    %v4144 = vadd.f32 %v4078, %v4112
    %v4145 = vadd.f32 %v4079, %v4113
    %v4146 = vadd.f32 %v4080, %v4114
    %v4147 = vadd.f32 %v4081, %v4115
    %v4148 = vadd.f32 %v4082, %v4116
    %v4149 = vadd.f32 %v4083, %v4117
    %v4150 = vadd.f32 %v4084, %v4118
    %v4151 = vadd.f32 %v4085, %v4119
    %v4152 = vadd.f32 %v4086, %v4120
    %s4153 = sld [smem:[#allocation3 + $0x29]]
    %v4154 = vstv %s4153
    %v4155 = vmul.f32 %v4154, %v539
    %v4156 = vmul.f32 %v4154, %v540
    %v4157 = vmul.f32 %v4154, %v541
    %v4158 = vmul.f32 %v4154, %v542
    %v4159 = vmul.f32 %v4154, %v543
    %v4160 = vmul.f32 %v4154, %v544
    %v4161 = vmul.f32 %v4154, %v545
    %v4162 = vmul.f32 %v4154, %v546
    %v4163 = vmul.f32 %v4154, %v547
    %v4164 = vmul.f32 %v4154, %v548
    %v4165 = vmul.f32 %v4154, %v549
    %v4166 = vmul.f32 %v4154, %v550
    %v4167 = vmul.f32 %v4154, %v551
    %v4168 = vmul.f32 %v4154, %v552
    %v4169 = vmul.f32 %v4154, %v553
    %v4170 = vmul.f32 %v4154, %v554
    %v4171 = vmul.f32 %v4154, %v555
    %v4172 = vmul.f32 %v4154, %v556
    %v4173 = vmul.f32 %v4154, %v557
    %v4174 = vmul.f32 %v4154, %v558
    %v4175 = vmul.f32 %v4154, %v559
    %v4176 = vmul.f32 %v4154, %v560
    %v4177 = vmul.f32 %v4154, %v561
    %v4178 = vmul.f32 %v4154, %v562
    %v4179 = vmul.f32 %v4154, %v563
    %v4180 = vmul.f32 %v4154, %v564
    %v4181 = vmul.f32 %v4154, %v565
    %v4182 = vmul.f32 %v4154, %v566
    %v4183 = vmul.f32 %v4154, %v567
    %v4184 = vmul.f32 %v4154, %v568
    %v4185 = vmul.f32 %v4154, %v569
    %v4186 = vmul.f32 %v4154, %v570
    %v4187 = vadd.f32 %v4121, %v4155
    %v4188 = vadd.f32 %v4122, %v4156
    %v4189 = vadd.f32 %v4123, %v4157
    %v4190 = vadd.f32 %v4124, %v4158
    %v4191 = vadd.f32 %v4125, %v4159
    %v4192 = vadd.f32 %v4126, %v4160
    %v4193 = vadd.f32 %v4127, %v4161
    %v4194 = vadd.f32 %v4128, %v4162
    %v4195 = vadd.f32 %v4129, %v4163
    %v4196 = vadd.f32 %v4130, %v4164
    %v4197 = vadd.f32 %v4131, %v4165
    %v4198 = vadd.f32 %v4132, %v4166
    %v4199 = vadd.f32 %v4133, %v4167
    %v4200 = vadd.f32 %v4134, %v4168
    %v4201 = vadd.f32 %v4135, %v4169
    %v4202 = vadd.f32 %v4136, %v4170
    %v4203 = vadd.f32 %v4137, %v4171
    %v4204 = vadd.f32 %v4138, %v4172
    %v4205 = vadd.f32 %v4139, %v4173
    %v4206 = vadd.f32 %v4140, %v4174
    %v4207 = vadd.f32 %v4141, %v4175
    %v4208 = vadd.f32 %v4142, %v4176
    %v4209 = vadd.f32 %v4143, %v4177
    %v4210 = vadd.f32 %v4144, %v4178
    %v4211 = vadd.f32 %v4145, %v4179
    %v4212 = vadd.f32 %v4146, %v4180
    %v4213 = vadd.f32 %v4147, %v4181
    %v4214 = vadd.f32 %v4148, %v4182
    %v4215 = vadd.f32 %v4149, %v4183
    %v4216 = vadd.f32 %v4150, %v4184
    %v4217 = vadd.f32 %v4151, %v4185
    %v4218 = vadd.f32 %v4152, %v4186
    %s4219 = sld [smem:[#allocation5 + $0xd]]
    %v4220 = vstv %s4219
    %v4221 = vadd.f32 %v4187, %v4220
    %v4222 = vadd.f32 %v4188, %v4220
    %v4223 = vadd.f32 %v4189, %v4220
    %v4224 = vadd.f32 %v4190, %v4220
    %v4225 = vadd.f32 %v4191, %v4220
    %v4226 = vadd.f32 %v4192, %v4220
    %v4227 = vadd.f32 %v4193, %v4220
    %v4228 = vadd.f32 %v4194, %v4220
    %v4229 = vadd.f32 %v4195, %v4220
    %v4230 = vadd.f32 %v4196, %v4220
    %v4231 = vadd.f32 %v4197, %v4220
    %v4232 = vadd.f32 %v4198, %v4220
    %v4233 = vadd.f32 %v4199, %v4220
    %v4234 = vadd.f32 %v4200, %v4220
    %v4235 = vadd.f32 %v4201, %v4220
    %v4236 = vadd.f32 %v4202, %v4220
    %v4237 = vadd.f32 %v4203, %v4220
    %v4238 = vadd.f32 %v4204, %v4220
    %v4239 = vadd.f32 %v4205, %v4220
    %v4240 = vadd.f32 %v4206, %v4220
    %v4241 = vadd.f32 %v4207, %v4220
    %v4242 = vadd.f32 %v4208, %v4220
    %v4243 = vadd.f32 %v4209, %v4220
    %v4244 = vadd.f32 %v4210, %v4220
    %v4245 = vadd.f32 %v4211, %v4220
    %v4246 = vadd.f32 %v4212, %v4220
    %v4247 = vadd.f32 %v4213, %v4220
    %v4248 = vadd.f32 %v4214, %v4220
    %v4249 = vadd.f32 %v4215, %v4220
    %v4250 = vadd.f32 %v4216, %v4220
    %v4251 = vadd.f32 %v4217, %v4220
    %v4252 = vadd.f32 %v4218, %v4220
    %s4253 = sld [smem:[#allocation7 + $0xd]]
    %v4254 = vtanh.pop %v4221
    %v4255 = vtanh.pop %v4222
    %v4256 = vtanh.pop %v4223
    %v4257 = vtanh.pop %v4224
    %v4258 = vtanh.pop %v4225
    %v4259 = vtanh.pop %v4226
    %v4260 = vtanh.pop %v4227
    %v4261 = vtanh.pop %v4228
    %v4262 = vtanh.pop %v4229
    %v4263 = vtanh.pop %v4230
    %v4264 = vtanh.pop %v4231
    %v4265 = vtanh.pop %v4232
    %v4266 = vtanh.pop %v4233
    %v4267 = vtanh.pop %v4234
    %v4268 = vtanh.pop %v4235
    %v4269 = vtanh.pop %v4236
    %v4270 = vtanh.pop %v4237
    %v4271 = vtanh.pop %v4238
    %v4272 = vtanh.pop %v4239
    %v4273 = vtanh.pop %v4240
    %v4274 = vtanh.pop %v4241
    %v4275 = vtanh.pop %v4242
    %v4276 = vtanh.pop %v4243
    %v4277 = vtanh.pop %v4244
    %v4278 = vtanh.pop %v4245
    %v4279 = vtanh.pop %v4246
    %v4280 = vtanh.pop %v4247
    %v4281 = vtanh.pop %v4248
    %v4282 = vtanh.pop %v4249
    %v4283 = vtanh.pop %v4250
    %v4284 = vtanh.pop %v4251
    %v4285 = vtanh.pop %v4252
    %v4286 = vadd.f32 %v4254, %v4256
    %v4287 = vadd.f32 %v4286, %v4258
    %v4288 = vadd.f32 %v4287, %v4260
    %v4289 = vadd.f32 %v4288, %v4262
    %v4290 = vadd.f32 %v4289, %v4264
    %v4291 = vadd.f32 %v4290, %v4266
    %v4292 = vadd.f32 %v4291, %v4268
    %v4293 = vadd.f32 %v4292, %v4270
    %v4294 = vadd.f32 %v4293, %v4272
    %v4295 = vadd.f32 %v4294, %v4274
    %v4296 = vadd.f32 %v4295, %v4276
    %v4297 = vadd.f32 %v4296, %v4278
    %v4298 = vadd.f32 %v4297, %v4280
    %v4299 = vadd.f32 %v4298, %v4282
    %v4300 = vadd.f32 %v4299, %v4284
    %v4301 = vadd.f32 %v4255, %v4257
    %v4302 = vadd.f32 %v4301, %v4259
    %v4303 = vadd.f32 %v4302, %v4261
    %v4304 = vadd.f32 %v4303, %v4263
    %v4305 = vadd.f32 %v4304, %v4265
    %v4306 = vadd.f32 %v4305, %v4267
    %v4307 = vadd.f32 %v4306, %v4269
    %v4308 = vadd.f32 %v4307, %v4271
    %v4309 = vadd.f32 %v4308, %v4273
    %v4310 = vadd.f32 %v4309, %v4275
    %v4311 = vadd.f32 %v4310, %v4277
    %v4312 = vadd.f32 %v4311, %v4279
    %v4313 = vadd.f32 %v4312, %v4281
    %v4314 = vadd.f32 %v4313, %v4283
    %v4315 = vadd.f32 %v4314, %v4285
    %v4316 = vstv %s4253
    %v4317 = vmul.f32 %v4316, %v4300
    %v4318 = vmul.f32 %v4316, %v4315
    %v4319 = vadd.f32 %v4051, %v4317
    %v4320 = vadd.f32 %v4052, %v4318
    %s4321 = sld [smem:[#allocation3 + $0x2a]]
    %v4322 = vstv %s4321
    %v4323 = vmul.f32 %v4322, %v475
    %v4324 = vmul.f32 %v4322, %v476
    %v4325 = vmul.f32 %v4322, %v477
    %v4326 = vmul.f32 %v4322, %v478
    %v4327 = vmul.f32 %v4322, %v479
    %v4328 = vmul.f32 %v4322, %v480
    %v4329 = vmul.f32 %v4322, %v481
    %v4330 = vmul.f32 %v4322, %v482
    %v4331 = vmul.f32 %v4322, %v483
    %v4332 = vmul.f32 %v4322, %v484
    %v4333 = vmul.f32 %v4322, %v485
    %v4334 = vmul.f32 %v4322, %v486
    %v4335 = vmul.f32 %v4322, %v487
    %v4336 = vmul.f32 %v4322, %v488
    %v4337 = vmul.f32 %v4322, %v489
    %v4338 = vmul.f32 %v4322, %v490
    %v4339 = vmul.f32 %v4322, %v491
    %v4340 = vmul.f32 %v4322, %v492
    %v4341 = vmul.f32 %v4322, %v493
    %v4342 = vmul.f32 %v4322, %v494
    %v4343 = vmul.f32 %v4322, %v495
    %v4344 = vmul.f32 %v4322, %v496
    %v4345 = vmul.f32 %v4322, %v497
    %v4346 = vmul.f32 %v4322, %v498
    %v4347 = vmul.f32 %v4322, %v499
    %v4348 = vmul.f32 %v4322, %v500
    %v4349 = vmul.f32 %v4322, %v501
    %v4350 = vmul.f32 %v4322, %v502
    %v4351 = vmul.f32 %v4322, %v503
    %v4352 = vmul.f32 %v4322, %v504
    %v4353 = vmul.f32 %v4322, %v505
    %v4354 = vmul.f32 %v4322, %v506
    %s4355 = sld [smem:[#allocation3 + $0x2b]]
    %v4356 = vstv %s4355
    %v4357 = vmul.f32 %v4356, %v507
    %v4358 = vmul.f32 %v4356, %v508
    %v4359 = vmul.f32 %v4356, %v509
    %v4360 = vmul.f32 %v4356, %v510
    %v4361 = vmul.f32 %v4356, %v511
    %v4362 = vmul.f32 %v4356, %v512
    %v4363 = vmul.f32 %v4356, %v513
    %v4364 = vmul.f32 %v4356, %v514
    %v4365 = vmul.f32 %v4356, %v515
    %v4366 = vmul.f32 %v4356, %v516
    %v4367 = vmul.f32 %v4356, %v517
    %v4368 = vmul.f32 %v4356, %v518
    %v4369 = vmul.f32 %v4356, %v519
    %v4370 = vmul.f32 %v4356, %v520
    %v4371 = vmul.f32 %v4356, %v521
    %v4372 = vmul.f32 %v4356, %v522
    %v4373 = vmul.f32 %v4356, %v523
    %v4374 = vmul.f32 %v4356, %v524
    %v4375 = vmul.f32 %v4356, %v525
    %v4376 = vmul.f32 %v4356, %v526
    %v4377 = vmul.f32 %v4356, %v527
    %v4378 = vmul.f32 %v4356, %v528
    %v4379 = vmul.f32 %v4356, %v529
    %v4380 = vmul.f32 %v4356, %v530
    %v4381 = vmul.f32 %v4356, %v531
    %v4382 = vmul.f32 %v4356, %v532
    %v4383 = vmul.f32 %v4356, %v533
    %v4384 = vmul.f32 %v4356, %v534
    %v4385 = vmul.f32 %v4356, %v535
    %v4386 = vmul.f32 %v4356, %v536
    %v4387 = vmul.f32 %v4356, %v537
    %v4388 = vmul.f32 %v4356, %v538
    %v4389 = vadd.f32 %v4323, %v4357
    %v4390 = vadd.f32 %v4324, %v4358
    %v4391 = vadd.f32 %v4325, %v4359
    %v4392 = vadd.f32 %v4326, %v4360
    %v4393 = vadd.f32 %v4327, %v4361
    %v4394 = vadd.f32 %v4328, %v4362
    %v4395 = vadd.f32 %v4329, %v4363
    %v4396 = vadd.f32 %v4330, %v4364
    %v4397 = vadd.f32 %v4331, %v4365
    %v4398 = vadd.f32 %v4332, %v4366
    %v4399 = vadd.f32 %v4333, %v4367
    %v4400 = vadd.f32 %v4334, %v4368
    %v4401 = vadd.f32 %v4335, %v4369
    %v4402 = vadd.f32 %v4336, %v4370
    %v4403 = vadd.f32 %v4337, %v4371
    %v4404 = vadd.f32 %v4338, %v4372
    %v4405 = vadd.f32 %v4339, %v4373
    %v4406 = vadd.f32 %v4340, %v4374
    %v4407 = vadd.f32 %v4341, %v4375
    %v4408 = vadd.f32 %v4342, %v4376
    %v4409 = vadd.f32 %v4343, %v4377
    %v4410 = vadd.f32 %v4344, %v4378
    %v4411 = vadd.f32 %v4345, %v4379
    %v4412 = vadd.f32 %v4346, %v4380
    %v4413 = vadd.f32 %v4347, %v4381
    %v4414 = vadd.f32 %v4348, %v4382
    %v4415 = vadd.f32 %v4349, %v4383
    %v4416 = vadd.f32 %v4350, %v4384
    %v4417 = vadd.f32 %v4351, %v4385
    %v4418 = vadd.f32 %v4352, %v4386
    %v4419 = vadd.f32 %v4353, %v4387
    %v4420 = vadd.f32 %v4354, %v4388
    %s4421 = sld [smem:[#allocation3 + $0x2c]]
    %v4422 = vstv %s4421
    %v4423 = vmul.f32 %v4422, %v539
    %v4424 = vmul.f32 %v4422, %v540
    %v4425 = vmul.f32 %v4422, %v541
    %v4426 = vmul.f32 %v4422, %v542
    %v4427 = vmul.f32 %v4422, %v543
    %v4428 = vmul.f32 %v4422, %v544
    %v4429 = vmul.f32 %v4422, %v545
    %v4430 = vmul.f32 %v4422, %v546
    %v4431 = vmul.f32 %v4422, %v547
    %v4432 = vmul.f32 %v4422, %v548
    %v4433 = vmul.f32 %v4422, %v549
    %v4434 = vmul.f32 %v4422, %v550
    %v4435 = vmul.f32 %v4422, %v551
    %v4436 = vmul.f32 %v4422, %v552
    %v4437 = vmul.f32 %v4422, %v553
    %v4438 = vmul.f32 %v4422, %v554
    %v4439 = vmul.f32 %v4422, %v555
    %v4440 = vmul.f32 %v4422, %v556
    %v4441 = vmul.f32 %v4422, %v557
    %v4442 = vmul.f32 %v4422, %v558
    %v4443 = vmul.f32 %v4422, %v559
    %v4444 = vmul.f32 %v4422, %v560
    %v4445 = vmul.f32 %v4422, %v561
    %v4446 = vmul.f32 %v4422, %v562
    %v4447 = vmul.f32 %v4422, %v563
    %v4448 = vmul.f32 %v4422, %v564
    %v4449 = vmul.f32 %v4422, %v565
    %v4450 = vmul.f32 %v4422, %v566
    %v4451 = vmul.f32 %v4422, %v567
    %v4452 = vmul.f32 %v4422, %v568
    %v4453 = vmul.f32 %v4422, %v569
    %v4454 = vmul.f32 %v4422, %v570
    %v4455 = vadd.f32 %v4389, %v4423
    %v4456 = vadd.f32 %v4390, %v4424
    %v4457 = vadd.f32 %v4391, %v4425
    %v4458 = vadd.f32 %v4392, %v4426
    %v4459 = vadd.f32 %v4393, %v4427
    %v4460 = vadd.f32 %v4394, %v4428
    %v4461 = vadd.f32 %v4395, %v4429
    %v4462 = vadd.f32 %v4396, %v4430
    %v4463 = vadd.f32 %v4397, %v4431
    %v4464 = vadd.f32 %v4398, %v4432
    %v4465 = vadd.f32 %v4399, %v4433
    %v4466 = vadd.f32 %v4400, %v4434
    %v4467 = vadd.f32 %v4401, %v4435
    %v4468 = vadd.f32 %v4402, %v4436
    %v4469 = vadd.f32 %v4403, %v4437
    %v4470 = vadd.f32 %v4404, %v4438
    %v4471 = vadd.f32 %v4405, %v4439
    %v4472 = vadd.f32 %v4406, %v4440
    %v4473 = vadd.f32 %v4407, %v4441
    %v4474 = vadd.f32 %v4408, %v4442
    %v4475 = vadd.f32 %v4409, %v4443
    %v4476 = vadd.f32 %v4410, %v4444
    %v4477 = vadd.f32 %v4411, %v4445
    %v4478 = vadd.f32 %v4412, %v4446
    %v4479 = vadd.f32 %v4413, %v4447
    %v4480 = vadd.f32 %v4414, %v4448
    %v4481 = vadd.f32 %v4415, %v4449
    %v4482 = vadd.f32 %v4416, %v4450
    %v4483 = vadd.f32 %v4417, %v4451
    %v4484 = vadd.f32 %v4418, %v4452
    %v4485 = vadd.f32 %v4419, %v4453
    %v4486 = vadd.f32 %v4420, %v4454
    %s4487 = sld [smem:[#allocation5 + $0xe]]
    %v4488 = vstv %s4487
    %v4489 = vadd.f32 %v4455, %v4488
    %v4490 = vadd.f32 %v4456, %v4488
    %v4491 = vadd.f32 %v4457, %v4488
    %v4492 = vadd.f32 %v4458, %v4488
    %v4493 = vadd.f32 %v4459, %v4488
    %v4494 = vadd.f32 %v4460, %v4488
    %v4495 = vadd.f32 %v4461, %v4488
    %v4496 = vadd.f32 %v4462, %v4488
    %v4497 = vadd.f32 %v4463, %v4488
    %v4498 = vadd.f32 %v4464, %v4488
    %v4499 = vadd.f32 %v4465, %v4488
    %v4500 = vadd.f32 %v4466, %v4488
    %v4501 = vadd.f32 %v4467, %v4488
    %v4502 = vadd.f32 %v4468, %v4488
    %v4503 = vadd.f32 %v4469, %v4488
    %v4504 = vadd.f32 %v4470, %v4488
    %v4505 = vadd.f32 %v4471, %v4488
    %v4506 = vadd.f32 %v4472, %v4488
    %v4507 = vadd.f32 %v4473, %v4488
    %v4508 = vadd.f32 %v4474, %v4488
    %v4509 = vadd.f32 %v4475, %v4488
    %v4510 = vadd.f32 %v4476, %v4488
    %v4511 = vadd.f32 %v4477, %v4488
    %v4512 = vadd.f32 %v4478, %v4488
    %v4513 = vadd.f32 %v4479, %v4488
    %v4514 = vadd.f32 %v4480, %v4488
    %v4515 = vadd.f32 %v4481, %v4488
    %v4516 = vadd.f32 %v4482, %v4488
    %v4517 = vadd.f32 %v4483, %v4488
    %v4518 = vadd.f32 %v4484, %v4488
    %v4519 = vadd.f32 %v4485, %v4488
    %v4520 = vadd.f32 %v4486, %v4488
    %s4521 = sld [smem:[#allocation7 + $0xe]]
    %v4522 = vtanh.pop %v4489
    %v4523 = vtanh.pop %v4490
    %v4524 = vtanh.pop %v4491
    %v4525 = vtanh.pop %v4492
    %v4526 = vtanh.pop %v4493
    %v4527 = vtanh.pop %v4494
    %v4528 = vtanh.pop %v4495
    %v4529 = vtanh.pop %v4496
    %v4530 = vtanh.pop %v4497
    %v4531 = vtanh.pop %v4498
    %v4532 = vtanh.pop %v4499
    %v4533 = vtanh.pop %v4500
    %v4534 = vtanh.pop %v4501
    %v4535 = vtanh.pop %v4502
    %v4536 = vtanh.pop %v4503
    %v4537 = vtanh.pop %v4504
    %v4538 = vtanh.pop %v4505
    %v4539 = vtanh.pop %v4506
    %v4540 = vtanh.pop %v4507
    %v4541 = vtanh.pop %v4508
    %v4542 = vtanh.pop %v4509
    %v4543 = vtanh.pop %v4510
    %v4544 = vtanh.pop %v4511
    %v4545 = vtanh.pop %v4512
    %v4546 = vtanh.pop %v4513
    %v4547 = vtanh.pop %v4514
    %v4548 = vtanh.pop %v4515
    %v4549 = vtanh.pop %v4516
    %v4550 = vtanh.pop %v4517
    %v4551 = vtanh.pop %v4518
    %v4552 = vtanh.pop %v4519
    %v4553 = vtanh.pop %v4520
    %v4554 = vadd.f32 %v4522, %v4524
    %v4555 = vadd.f32 %v4554, %v4526
    %v4556 = vadd.f32 %v4555, %v4528
    %v4557 = vadd.f32 %v4556, %v4530
    %v4558 = vadd.f32 %v4557, %v4532
    %v4559 = vadd.f32 %v4558, %v4534
    %v4560 = vadd.f32 %v4559, %v4536
    %v4561 = vadd.f32 %v4560, %v4538
    %v4562 = vadd.f32 %v4561, %v4540
    %v4563 = vadd.f32 %v4562, %v4542
    %v4564 = vadd.f32 %v4563, %v4544
    %v4565 = vadd.f32 %v4564, %v4546
    %v4566 = vadd.f32 %v4565, %v4548
    %v4567 = vadd.f32 %v4566, %v4550
    %v4568 = vadd.f32 %v4567, %v4552
    %v4569 = vadd.f32 %v4523, %v4525
    %v4570 = vadd.f32 %v4569, %v4527
    %v4571 = vadd.f32 %v4570, %v4529
    %v4572 = vadd.f32 %v4571, %v4531
    %v4573 = vadd.f32 %v4572, %v4533
    %v4574 = vadd.f32 %v4573, %v4535
    %v4575 = vadd.f32 %v4574, %v4537
    %v4576 = vadd.f32 %v4575, %v4539
    %v4577 = vadd.f32 %v4576, %v4541
    %v4578 = vadd.f32 %v4577, %v4543
    %v4579 = vadd.f32 %v4578, %v4545
    %v4580 = vadd.f32 %v4579, %v4547
    %v4581 = vadd.f32 %v4580, %v4549
    %v4582 = vadd.f32 %v4581, %v4551
    %v4583 = vadd.f32 %v4582, %v4553
    %v4584 = vstv %s4521
    %v4585 = vmul.f32 %v4584, %v4568
    %v4586 = vmul.f32 %v4584, %v4583
    %v4587 = vadd.f32 %v4319, %v4585
    %v4588 = vadd.f32 %v4320, %v4586
    %s4589 = sld [smem:[#allocation3 + $0x2d]]
    %v4590 = vstv %s4589
    %v4591 = vmul.f32 %v4590, %v475
    %v4592 = vmul.f32 %v4590, %v476
    %v4593 = vmul.f32 %v4590, %v477
    %v4594 = vmul.f32 %v4590, %v478
    %v4595 = vmul.f32 %v4590, %v479
    %v4596 = vmul.f32 %v4590, %v480
    %v4597 = vmul.f32 %v4590, %v481
    %v4598 = vmul.f32 %v4590, %v482
    %v4599 = vmul.f32 %v4590, %v483
    %v4600 = vmul.f32 %v4590, %v484
    %v4601 = vmul.f32 %v4590, %v485
    %v4602 = vmul.f32 %v4590, %v486
    %v4603 = vmul.f32 %v4590, %v487
    %v4604 = vmul.f32 %v4590, %v488
    %v4605 = vmul.f32 %v4590, %v489
    %v4606 = vmul.f32 %v4590, %v490
    %v4607 = vmul.f32 %v4590, %v491
    %v4608 = vmul.f32 %v4590, %v492
    %v4609 = vmul.f32 %v4590, %v493
    %v4610 = vmul.f32 %v4590, %v494
    %v4611 = vmul.f32 %v4590, %v495
    %v4612 = vmul.f32 %v4590, %v496
    %v4613 = vmul.f32 %v4590, %v497
    %v4614 = vmul.f32 %v4590, %v498
    %v4615 = vmul.f32 %v4590, %v499
    %v4616 = vmul.f32 %v4590, %v500
    %v4617 = vmul.f32 %v4590, %v501
    %v4618 = vmul.f32 %v4590, %v502
    %v4619 = vmul.f32 %v4590, %v503
    %v4620 = vmul.f32 %v4590, %v504
    %v4621 = vmul.f32 %v4590, %v505
    %v4622 = vmul.f32 %v4590, %v506
    %s4623 = sld [smem:[#allocation3 + $0x2e]]
    %v4624 = vstv %s4623
    %v4625 = vmul.f32 %v4624, %v507
    %v4626 = vmul.f32 %v4624, %v508
    %v4627 = vmul.f32 %v4624, %v509
    %v4628 = vmul.f32 %v4624, %v510
    %v4629 = vmul.f32 %v4624, %v511
    %v4630 = vmul.f32 %v4624, %v512
    %v4631 = vmul.f32 %v4624, %v513
    %v4632 = vmul.f32 %v4624, %v514
    %v4633 = vmul.f32 %v4624, %v515
    %v4634 = vmul.f32 %v4624, %v516
    %v4635 = vmul.f32 %v4624, %v517
    %v4636 = vmul.f32 %v4624, %v518
    %v4637 = vmul.f32 %v4624, %v519
    %v4638 = vmul.f32 %v4624, %v520
    %v4639 = vmul.f32 %v4624, %v521
    %v4640 = vmul.f32 %v4624, %v522
    %v4641 = vmul.f32 %v4624, %v523
    %v4642 = vmul.f32 %v4624, %v524
    %v4643 = vmul.f32 %v4624, %v525
    %v4644 = vmul.f32 %v4624, %v526
    %v4645 = vmul.f32 %v4624, %v527
    %v4646 = vmul.f32 %v4624, %v528
    %v4647 = vmul.f32 %v4624, %v529
    %v4648 = vmul.f32 %v4624, %v530
    %v4649 = vmul.f32 %v4624, %v531
    %v4650 = vmul.f32 %v4624, %v532
    %v4651 = vmul.f32 %v4624, %v533
    %v4652 = vmul.f32 %v4624, %v534
    %v4653 = vmul.f32 %v4624, %v535
    %v4654 = vmul.f32 %v4624, %v536
    %v4655 = vmul.f32 %v4624, %v537
    %v4656 = vmul.f32 %v4624, %v538
    %v4657 = vadd.f32 %v4591, %v4625
    %v4658 = vadd.f32 %v4592, %v4626
    %v4659 = vadd.f32 %v4593, %v4627
    %v4660 = vadd.f32 %v4594, %v4628
    %v4661 = vadd.f32 %v4595, %v4629
    %v4662 = vadd.f32 %v4596, %v4630
    %v4663 = vadd.f32 %v4597, %v4631
    %v4664 = vadd.f32 %v4598, %v4632
    %v4665 = vadd.f32 %v4599, %v4633
    %v4666 = vadd.f32 %v4600, %v4634
    %v4667 = vadd.f32 %v4601, %v4635
    %v4668 = vadd.f32 %v4602, %v4636
    %v4669 = vadd.f32 %v4603, %v4637
    %v4670 = vadd.f32 %v4604, %v4638
    %v4671 = vadd.f32 %v4605, %v4639
    %v4672 = vadd.f32 %v4606, %v4640
    %v4673 = vadd.f32 %v4607, %v4641
    %v4674 = vadd.f32 %v4608, %v4642
    %v4675 = vadd.f32 %v4609, %v4643
    %v4676 = vadd.f32 %v4610, %v4644
    %v4677 = vadd.f32 %v4611, %v4645
    %v4678 = vadd.f32 %v4612, %v4646
    %v4679 = vadd.f32 %v4613, %v4647
    %v4680 = vadd.f32 %v4614, %v4648
    %v4681 = vadd.f32 %v4615, %v4649
    %v4682 = vadd.f32 %v4616, %v4650
    %v4683 = vadd.f32 %v4617, %v4651
    %v4684 = vadd.f32 %v4618, %v4652
    %v4685 = vadd.f32 %v4619, %v4653
    %v4686 = vadd.f32 %v4620, %v4654
    %v4687 = vadd.f32 %v4621, %v4655
    %v4688 = vadd.f32 %v4622, %v4656
    %s4689 = sld [smem:[#allocation3 + $0x2f]]
    %v4690 = vstv %s4689
    %v4691 = vmul.f32 %v4690, %v539
    %v4692 = vmul.f32 %v4690, %v540
    %v4693 = vmul.f32 %v4690, %v541
    %v4694 = vmul.f32 %v4690, %v542
    %v4695 = vmul.f32 %v4690, %v543
    %v4696 = vmul.f32 %v4690, %v544
    %v4697 = vmul.f32 %v4690, %v545
    %v4698 = vmul.f32 %v4690, %v546
    %v4699 = vmul.f32 %v4690, %v547
    %v4700 = vmul.f32 %v4690, %v548
    %v4701 = vmul.f32 %v4690, %v549
    %v4702 = vmul.f32 %v4690, %v550
    %v4703 = vmul.f32 %v4690, %v551
    %v4704 = vmul.f32 %v4690, %v552
    %v4705 = vmul.f32 %v4690, %v553
    %v4706 = vmul.f32 %v4690, %v554
    %v4707 = vmul.f32 %v4690, %v555
    %v4708 = vmul.f32 %v4690, %v556
    %v4709 = vmul.f32 %v4690, %v557
    %v4710 = vmul.f32 %v4690, %v558
    %v4711 = vmul.f32 %v4690, %v559
    %v4712 = vmul.f32 %v4690, %v560
    %v4713 = vmul.f32 %v4690, %v561
    %v4714 = vmul.f32 %v4690, %v562
    %v4715 = vmul.f32 %v4690, %v563
    %v4716 = vmul.f32 %v4690, %v564
    %v4717 = vmul.f32 %v4690, %v565
    %v4718 = vmul.f32 %v4690, %v566
    %v4719 = vmul.f32 %v4690, %v567
    %v4720 = vmul.f32 %v4690, %v568
    %v4721 = vmul.f32 %v4690, %v569
    %v4722 = vmul.f32 %v4690, %v570
    %v4723 = vadd.f32 %v4657, %v4691
    %v4724 = vadd.f32 %v4658, %v4692
    %v4725 = vadd.f32 %v4659, %v4693
    %v4726 = vadd.f32 %v4660, %v4694
    %v4727 = vadd.f32 %v4661, %v4695
    %v4728 = vadd.f32 %v4662, %v4696
    %v4729 = vadd.f32 %v4663, %v4697
    %v4730 = vadd.f32 %v4664, %v4698
    %v4731 = vadd.f32 %v4665, %v4699
    %v4732 = vadd.f32 %v4666, %v4700
    %v4733 = vadd.f32 %v4667, %v4701
    %v4734 = vadd.f32 %v4668, %v4702
    %v4735 = vadd.f32 %v4669, %v4703
    %v4736 = vadd.f32 %v4670, %v4704
    %v4737 = vadd.f32 %v4671, %v4705
    %v4738 = vadd.f32 %v4672, %v4706
    %v4739 = vadd.f32 %v4673, %v4707
    %v4740 = vadd.f32 %v4674, %v4708
    %v4741 = vadd.f32 %v4675, %v4709
    %v4742 = vadd.f32 %v4676, %v4710
    %v4743 = vadd.f32 %v4677, %v4711
    %v4744 = vadd.f32 %v4678, %v4712
    %v4745 = vadd.f32 %v4679, %v4713
    %v4746 = vadd.f32 %v4680, %v4714
    %v4747 = vadd.f32 %v4681, %v4715
    %v4748 = vadd.f32 %v4682, %v4716
    %v4749 = vadd.f32 %v4683, %v4717
    %v4750 = vadd.f32 %v4684, %v4718
    %v4751 = vadd.f32 %v4685, %v4719
    %v4752 = vadd.f32 %v4686, %v4720
    %v4753 = vadd.f32 %v4687, %v4721
    %v4754 = vadd.f32 %v4688, %v4722
    %s4755 = sld [smem:[#allocation5 + $0xf]]
    %v4756 = vstv %s4755
    %v4757 = vadd.f32 %v4723, %v4756
    %v4758 = vadd.f32 %v4724, %v4756
    %v4759 = vadd.f32 %v4725, %v4756
    %v4760 = vadd.f32 %v4726, %v4756
    %v4761 = vadd.f32 %v4727, %v4756
    %v4762 = vadd.f32 %v4728, %v4756
    %v4763 = vadd.f32 %v4729, %v4756
    %v4764 = vadd.f32 %v4730, %v4756
    %v4765 = vadd.f32 %v4731, %v4756
    %v4766 = vadd.f32 %v4732, %v4756
    %v4767 = vadd.f32 %v4733, %v4756
    %v4768 = vadd.f32 %v4734, %v4756
    %v4769 = vadd.f32 %v4735, %v4756
    %v4770 = vadd.f32 %v4736, %v4756
    %v4771 = vadd.f32 %v4737, %v4756
    %v4772 = vadd.f32 %v4738, %v4756
    %v4773 = vadd.f32 %v4739, %v4756
    %v4774 = vadd.f32 %v4740, %v4756
    %v4775 = vadd.f32 %v4741, %v4756
    %v4776 = vadd.f32 %v4742, %v4756
    %v4777 = vadd.f32 %v4743, %v4756
    %v4778 = vadd.f32 %v4744, %v4756
    %v4779 = vadd.f32 %v4745, %v4756
    %v4780 = vadd.f32 %v4746, %v4756
    %v4781 = vadd.f32 %v4747, %v4756
    %v4782 = vadd.f32 %v4748, %v4756
    %v4783 = vadd.f32 %v4749, %v4756
    %v4784 = vadd.f32 %v4750, %v4756
    %v4785 = vadd.f32 %v4751, %v4756
    %v4786 = vadd.f32 %v4752, %v4756
    %v4787 = vadd.f32 %v4753, %v4756
    %v4788 = vadd.f32 %v4754, %v4756
    %s4789 = sld [smem:[#allocation7 + $0xf]]
    %v4790 = vtanh.pop %v4757
    %v4791 = vtanh.pop %v4758
    %v4792 = vtanh.pop %v4759
    %v4793 = vtanh.pop %v4760
    %v4794 = vtanh.pop %v4761
    %v4795 = vtanh.pop %v4762
    %v4796 = vtanh.pop %v4763
    %v4797 = vtanh.pop %v4764
    %v4798 = vtanh.pop %v4765
    %v4799 = vtanh.pop %v4766
    %v4800 = vtanh.pop %v4767
    %v4801 = vtanh.pop %v4768
    %v4802 = vtanh.pop %v4769
    %v4803 = vtanh.pop %v4770
    %v4804 = vtanh.pop %v4771
    %v4805 = vtanh.pop %v4772
    %v4806 = vtanh.pop %v4773
    %v4807 = vtanh.pop %v4774
    %v4808 = vtanh.pop %v4775
    %v4809 = vtanh.pop %v4776
    %v4810 = vtanh.pop %v4777
    %v4811 = vtanh.pop %v4778
    %v4812 = vtanh.pop %v4779
    %v4813 = vtanh.pop %v4780
    %v4814 = vtanh.pop %v4781
    %v4815 = vtanh.pop %v4782
    %v4816 = vtanh.pop %v4783
    %v4817 = vtanh.pop %v4784
    %v4818 = vtanh.pop %v4785
    %v4819 = vtanh.pop %v4786
    %v4820 = vtanh.pop %v4787
    %v4821 = vtanh.pop %v4788
    %v4822 = vadd.f32 %v4790, %v4792
    %v4823 = vadd.f32 %v4822, %v4794
    %v4824 = vadd.f32 %v4823, %v4796
    %v4825 = vadd.f32 %v4824, %v4798
    %v4826 = vadd.f32 %v4825, %v4800
    %v4827 = vadd.f32 %v4826, %v4802
    %v4828 = vadd.f32 %v4827, %v4804
    %v4829 = vadd.f32 %v4828, %v4806
    %v4830 = vadd.f32 %v4829, %v4808
    %v4831 = vadd.f32 %v4830, %v4810
    %v4832 = vadd.f32 %v4831, %v4812
    %v4833 = vadd.f32 %v4832, %v4814
    %v4834 = vadd.f32 %v4833, %v4816
    %v4835 = vadd.f32 %v4834, %v4818
    %v4836 = vadd.f32 %v4835, %v4820
    %v4837 = vadd.f32 %v4791, %v4793
    %v4838 = vadd.f32 %v4837, %v4795
    %v4839 = vadd.f32 %v4838, %v4797
    %v4840 = vadd.f32 %v4839, %v4799
    %v4841 = vadd.f32 %v4840, %v4801
    %v4842 = vadd.f32 %v4841, %v4803
    %v4843 = vadd.f32 %v4842, %v4805
    %v4844 = vadd.f32 %v4843, %v4807
    %v4845 = vadd.f32 %v4844, %v4809
    %v4846 = vadd.f32 %v4845, %v4811
    %v4847 = vadd.f32 %v4846, %v4813
    %v4848 = vadd.f32 %v4847, %v4815
    %v4849 = vadd.f32 %v4848, %v4817
    %v4850 = vadd.f32 %v4849, %v4819
    %v4851 = vadd.f32 %v4850, %v4821
    %v4852 = vstv %s4789
    %v4853 = vmul.f32 %v4852, %v4836
    %v4854 = vmul.f32 %v4852, %v4851
    %v4855 = vadd.f32 %v4587, %v4853
    %v4856 = vadd.f32 %v4588, %v4854
    %s4857 = sld [smem:[#allocation3 + $0x30]]
    %v4858 = vstv %s4857
    %v4859 = vmul.f32 %v4858, %v475
    %v4860 = vmul.f32 %v4858, %v476
    %v4861 = vmul.f32 %v4858, %v477
    %v4862 = vmul.f32 %v4858, %v478
    %v4863 = vmul.f32 %v4858, %v479
    %v4864 = vmul.f32 %v4858, %v480
    %v4865 = vmul.f32 %v4858, %v481
    %v4866 = vmul.f32 %v4858, %v482
    %v4867 = vmul.f32 %v4858, %v483
    %v4868 = vmul.f32 %v4858, %v484
    %v4869 = vmul.f32 %v4858, %v485
    %v4870 = vmul.f32 %v4858, %v486
    %v4871 = vmul.f32 %v4858, %v487
    %v4872 = vmul.f32 %v4858, %v488
    %v4873 = vmul.f32 %v4858, %v489
    %v4874 = vmul.f32 %v4858, %v490
    %v4875 = vmul.f32 %v4858, %v491
    %v4876 = vmul.f32 %v4858, %v492
    %v4877 = vmul.f32 %v4858, %v493
    %v4878 = vmul.f32 %v4858, %v494
    %v4879 = vmul.f32 %v4858, %v495
    %v4880 = vmul.f32 %v4858, %v496
    %v4881 = vmul.f32 %v4858, %v497
    %v4882 = vmul.f32 %v4858, %v498
    %v4883 = vmul.f32 %v4858, %v499
    %v4884 = vmul.f32 %v4858, %v500
    %v4885 = vmul.f32 %v4858, %v501
    %v4886 = vmul.f32 %v4858, %v502
    %v4887 = vmul.f32 %v4858, %v503
    %v4888 = vmul.f32 %v4858, %v504
    %v4889 = vmul.f32 %v4858, %v505
    %v4890 = vmul.f32 %v4858, %v506
    %s4891 = sld [smem:[#allocation3 + $0x31]]
    %v4892 = vstv %s4891
    %v4893 = vmul.f32 %v4892, %v507
    %v4894 = vmul.f32 %v4892, %v508
    %v4895 = vmul.f32 %v4892, %v509
    %v4896 = vmul.f32 %v4892, %v510
    %v4897 = vmul.f32 %v4892, %v511
    %v4898 = vmul.f32 %v4892, %v512
    %v4899 = vmul.f32 %v4892, %v513
    %v4900 = vmul.f32 %v4892, %v514
    %v4901 = vmul.f32 %v4892, %v515
    %v4902 = vmul.f32 %v4892, %v516
    %v4903 = vmul.f32 %v4892, %v517
    %v4904 = vmul.f32 %v4892, %v518
    %v4905 = vmul.f32 %v4892, %v519
    %v4906 = vmul.f32 %v4892, %v520
    %v4907 = vmul.f32 %v4892, %v521
    %v4908 = vmul.f32 %v4892, %v522
    %v4909 = vmul.f32 %v4892, %v523
    %v4910 = vmul.f32 %v4892, %v524
    %v4911 = vmul.f32 %v4892, %v525
    %v4912 = vmul.f32 %v4892, %v526
    %v4913 = vmul.f32 %v4892, %v527
    %v4914 = vmul.f32 %v4892, %v528
    %v4915 = vmul.f32 %v4892, %v529
    %v4916 = vmul.f32 %v4892, %v530
    %v4917 = vmul.f32 %v4892, %v531
    %v4918 = vmul.f32 %v4892, %v532
    %v4919 = vmul.f32 %v4892, %v533
    %v4920 = vmul.f32 %v4892, %v534
    %v4921 = vmul.f32 %v4892, %v535
    %v4922 = vmul.f32 %v4892, %v536
    %v4923 = vmul.f32 %v4892, %v537
    %v4924 = vmul.f32 %v4892, %v538
    %v4925 = vadd.f32 %v4859, %v4893
    %v4926 = vadd.f32 %v4860, %v4894
    %v4927 = vadd.f32 %v4861, %v4895
    %v4928 = vadd.f32 %v4862, %v4896
    %v4929 = vadd.f32 %v4863, %v4897
    %v4930 = vadd.f32 %v4864, %v4898
    %v4931 = vadd.f32 %v4865, %v4899
    %v4932 = vadd.f32 %v4866, %v4900
    %v4933 = vadd.f32 %v4867, %v4901
    %v4934 = vadd.f32 %v4868, %v4902
    %v4935 = vadd.f32 %v4869, %v4903
    %v4936 = vadd.f32 %v4870, %v4904
    %v4937 = vadd.f32 %v4871, %v4905
    %v4938 = vadd.f32 %v4872, %v4906
    %v4939 = vadd.f32 %v4873, %v4907
    %v4940 = vadd.f32 %v4874, %v4908
    %v4941 = vadd.f32 %v4875, %v4909
    %v4942 = vadd.f32 %v4876, %v4910
    %v4943 = vadd.f32 %v4877, %v4911
    %v4944 = vadd.f32 %v4878, %v4912
    %v4945 = vadd.f32 %v4879, %v4913
    %v4946 = vadd.f32 %v4880, %v4914
    %v4947 = vadd.f32 %v4881, %v4915
    %v4948 = vadd.f32 %v4882, %v4916
    %v4949 = vadd.f32 %v4883, %v4917
    %v4950 = vadd.f32 %v4884, %v4918
    %v4951 = vadd.f32 %v4885, %v4919
    %v4952 = vadd.f32 %v4886, %v4920
    %v4953 = vadd.f32 %v4887, %v4921
    %v4954 = vadd.f32 %v4888, %v4922
    %v4955 = vadd.f32 %v4889, %v4923
    %v4956 = vadd.f32 %v4890, %v4924
    %s4957 = sld [smem:[#allocation3 + $0x32]]
    %v4958 = vstv %s4957
    %v4959 = vmul.f32 %v4958, %v539
    %v4960 = vmul.f32 %v4958, %v540
    %v4961 = vmul.f32 %v4958, %v541
    %v4962 = vmul.f32 %v4958, %v542
    %v4963 = vmul.f32 %v4958, %v543
    %v4964 = vmul.f32 %v4958, %v544
    %v4965 = vmul.f32 %v4958, %v545
    %v4966 = vmul.f32 %v4958, %v546
    %v4967 = vmul.f32 %v4958, %v547
    %v4968 = vmul.f32 %v4958, %v548
    %v4969 = vmul.f32 %v4958, %v549
    %v4970 = vmul.f32 %v4958, %v550
    %v4971 = vmul.f32 %v4958, %v551
    %v4972 = vmul.f32 %v4958, %v552
    %v4973 = vmul.f32 %v4958, %v553
    %v4974 = vmul.f32 %v4958, %v554
    %v4975 = vmul.f32 %v4958, %v555
    %v4976 = vmul.f32 %v4958, %v556
    %v4977 = vmul.f32 %v4958, %v557
    %v4978 = vmul.f32 %v4958, %v558
    %v4979 = vmul.f32 %v4958, %v559
    %v4980 = vmul.f32 %v4958, %v560
    %v4981 = vmul.f32 %v4958, %v561
    %v4982 = vmul.f32 %v4958, %v562
    %v4983 = vmul.f32 %v4958, %v563
    %v4984 = vmul.f32 %v4958, %v564
    %v4985 = vmul.f32 %v4958, %v565
    %v4986 = vmul.f32 %v4958, %v566
    %v4987 = vmul.f32 %v4958, %v567
    %v4988 = vmul.f32 %v4958, %v568
    %v4989 = vmul.f32 %v4958, %v569
    %v4990 = vmul.f32 %v4958, %v570
    %v4991 = vadd.f32 %v4925, %v4959
    %v4992 = vadd.f32 %v4926, %v4960
    %v4993 = vadd.f32 %v4927, %v4961
    %v4994 = vadd.f32 %v4928, %v4962
    %v4995 = vadd.f32 %v4929, %v4963
    %v4996 = vadd.f32 %v4930, %v4964
    %v4997 = vadd.f32 %v4931, %v4965
    %v4998 = vadd.f32 %v4932, %v4966
    %v4999 = vadd.f32 %v4933, %v4967
    %v5000 = vadd.f32 %v4934, %v4968
    %v5001 = vadd.f32 %v4935, %v4969
    %v5002 = vadd.f32 %v4936, %v4970
    %v5003 = vadd.f32 %v4937, %v4971
    %v5004 = vadd.f32 %v4938, %v4972
    %v5005 = vadd.f32 %v4939, %v4973
    %v5006 = vadd.f32 %v4940, %v4974
    %v5007 = vadd.f32 %v4941, %v4975
    %v5008 = vadd.f32 %v4942, %v4976
    %v5009 = vadd.f32 %v4943, %v4977
    %v5010 = vadd.f32 %v4944, %v4978
    %v5011 = vadd.f32 %v4945, %v4979
    %v5012 = vadd.f32 %v4946, %v4980
    %v5013 = vadd.f32 %v4947, %v4981
    %v5014 = vadd.f32 %v4948, %v4982
    %v5015 = vadd.f32 %v4949, %v4983
    %v5016 = vadd.f32 %v4950, %v4984
    %v5017 = vadd.f32 %v4951, %v4985
    %v5018 = vadd.f32 %v4952, %v4986
    %v5019 = vadd.f32 %v4953, %v4987
    %v5020 = vadd.f32 %v4954, %v4988
    %v5021 = vadd.f32 %v4955, %v4989
    %v5022 = vadd.f32 %v4956, %v4990
    %s5023 = sld [smem:[#allocation5 + $0x10]]
    %v5024 = vstv %s5023
    %v5025 = vadd.f32 %v4991, %v5024
    %v5026 = vadd.f32 %v4992, %v5024
    %v5027 = vadd.f32 %v4993, %v5024
    %v5028 = vadd.f32 %v4994, %v5024
    %v5029 = vadd.f32 %v4995, %v5024
    %v5030 = vadd.f32 %v4996, %v5024
    %v5031 = vadd.f32 %v4997, %v5024
    %v5032 = vadd.f32 %v4998, %v5024
    %v5033 = vadd.f32 %v4999, %v5024
    %v5034 = vadd.f32 %v5000, %v5024
    %v5035 = vadd.f32 %v5001, %v5024
    %v5036 = vadd.f32 %v5002, %v5024
    %v5037 = vadd.f32 %v5003, %v5024
    %v5038 = vadd.f32 %v5004, %v5024
    %v5039 = vadd.f32 %v5005, %v5024
    %v5040 = vadd.f32 %v5006, %v5024
    %v5041 = vadd.f32 %v5007, %v5024
    %v5042 = vadd.f32 %v5008, %v5024
    %v5043 = vadd.f32 %v5009, %v5024
    %v5044 = vadd.f32 %v5010, %v5024
    %v5045 = vadd.f32 %v5011, %v5024
    %v5046 = vadd.f32 %v5012, %v5024
    %v5047 = vadd.f32 %v5013, %v5024
    %v5048 = vadd.f32 %v5014, %v5024
    %v5049 = vadd.f32 %v5015, %v5024
    %v5050 = vadd.f32 %v5016, %v5024
    %v5051 = vadd.f32 %v5017, %v5024
    %v5052 = vadd.f32 %v5018, %v5024
    %v5053 = vadd.f32 %v5019, %v5024
    %v5054 = vadd.f32 %v5020, %v5024
    %v5055 = vadd.f32 %v5021, %v5024
    %v5056 = vadd.f32 %v5022, %v5024
    %s5057 = sld [smem:[#allocation7 + $0x10]]
    %v5058 = vtanh.pop %v5025
    %v5059 = vtanh.pop %v5026
    %v5060 = vtanh.pop %v5027
    %v5061 = vtanh.pop %v5028
    %v5062 = vtanh.pop %v5029
    %v5063 = vtanh.pop %v5030
    %v5064 = vtanh.pop %v5031
    %v5065 = vtanh.pop %v5032
    %v5066 = vtanh.pop %v5033
    %v5067 = vtanh.pop %v5034
    %v5068 = vtanh.pop %v5035
    %v5069 = vtanh.pop %v5036
    %v5070 = vtanh.pop %v5037
    %v5071 = vtanh.pop %v5038
    %v5072 = vtanh.pop %v5039
    %v5073 = vtanh.pop %v5040
    %v5074 = vtanh.pop %v5041
    %v5075 = vtanh.pop %v5042
    %v5076 = vtanh.pop %v5043
    %v5077 = vtanh.pop %v5044
    %v5078 = vtanh.pop %v5045
    %v5079 = vtanh.pop %v5046
    %v5080 = vtanh.pop %v5047
    %v5081 = vtanh.pop %v5048
    %v5082 = vtanh.pop %v5049
    %v5083 = vtanh.pop %v5050
    %v5084 = vtanh.pop %v5051
    %v5085 = vtanh.pop %v5052
    %v5086 = vtanh.pop %v5053
    %v5087 = vtanh.pop %v5054
    %v5088 = vtanh.pop %v5055
    %v5089 = vtanh.pop %v5056
    %v5090 = vadd.f32 %v5058, %v5060
    %v5091 = vadd.f32 %v5090, %v5062
    %v5092 = vadd.f32 %v5091, %v5064
    %v5093 = vadd.f32 %v5092, %v5066
    %v5094 = vadd.f32 %v5093, %v5068
    %v5095 = vadd.f32 %v5094, %v5070
    %v5096 = vadd.f32 %v5095, %v5072
    %v5097 = vadd.f32 %v5096, %v5074
    %v5098 = vadd.f32 %v5097, %v5076
    %v5099 = vadd.f32 %v5098, %v5078
    %v5100 = vadd.f32 %v5099, %v5080
    %v5101 = vadd.f32 %v5100, %v5082
    %v5102 = vadd.f32 %v5101, %v5084
    %v5103 = vadd.f32 %v5102, %v5086
    %v5104 = vadd.f32 %v5103, %v5088
    %v5105 = vadd.f32 %v5059, %v5061
    %v5106 = vadd.f32 %v5105, %v5063
    %v5107 = vadd.f32 %v5106, %v5065
    %v5108 = vadd.f32 %v5107, %v5067
    %v5109 = vadd.f32 %v5108, %v5069
    %v5110 = vadd.f32 %v5109, %v5071
    %v5111 = vadd.f32 %v5110, %v5073
    %v5112 = vadd.f32 %v5111, %v5075
    %v5113 = vadd.f32 %v5112, %v5077
    %v5114 = vadd.f32 %v5113, %v5079
    %v5115 = vadd.f32 %v5114, %v5081
    %v5116 = vadd.f32 %v5115, %v5083
    %v5117 = vadd.f32 %v5116, %v5085
    %v5118 = vadd.f32 %v5117, %v5087
    %v5119 = vadd.f32 %v5118, %v5089
    %v5120 = vstv %s5057
    %v5121 = vmul.f32 %v5120, %v5104
    %v5122 = vmul.f32 %v5120, %v5119
    %v5123 = vadd.f32 %v4855, %v5121
    %v5124 = vadd.f32 %v4856, %v5122
    %s5125 = sld [smem:[#allocation3 + $0x33]]
    %v5126 = vstv %s5125
    %v5127 = vmul.f32 %v5126, %v475
    %v5128 = vmul.f32 %v5126, %v476
    %v5129 = vmul.f32 %v5126, %v477
    %v5130 = vmul.f32 %v5126, %v478
    %v5131 = vmul.f32 %v5126, %v479
    %v5132 = vmul.f32 %v5126, %v480
    %v5133 = vmul.f32 %v5126, %v481
    %v5134 = vmul.f32 %v5126, %v482
    %v5135 = vmul.f32 %v5126, %v483
    %v5136 = vmul.f32 %v5126, %v484
    %v5137 = vmul.f32 %v5126, %v485
    %v5138 = vmul.f32 %v5126, %v486
    %v5139 = vmul.f32 %v5126, %v487
    %v5140 = vmul.f32 %v5126, %v488
    %v5141 = vmul.f32 %v5126, %v489
    %v5142 = vmul.f32 %v5126, %v490
    %v5143 = vmul.f32 %v5126, %v491
    %v5144 = vmul.f32 %v5126, %v492
    %v5145 = vmul.f32 %v5126, %v493
    %v5146 = vmul.f32 %v5126, %v494
    %v5147 = vmul.f32 %v5126, %v495
    %v5148 = vmul.f32 %v5126, %v496
    %v5149 = vmul.f32 %v5126, %v497
    %v5150 = vmul.f32 %v5126, %v498
    %v5151 = vmul.f32 %v5126, %v499
    %v5152 = vmul.f32 %v5126, %v500
    %v5153 = vmul.f32 %v5126, %v501
    %v5154 = vmul.f32 %v5126, %v502
    %v5155 = vmul.f32 %v5126, %v503
    %v5156 = vmul.f32 %v5126, %v504
    %v5157 = vmul.f32 %v5126, %v505
    %v5158 = vmul.f32 %v5126, %v506
    %s5159 = sld [smem:[#allocation3 + $0x34]]
    %v5160 = vstv %s5159
    %v5161 = vmul.f32 %v5160, %v507
    %v5162 = vmul.f32 %v5160, %v508
    %v5163 = vmul.f32 %v5160, %v509
    %v5164 = vmul.f32 %v5160, %v510
    %v5165 = vmul.f32 %v5160, %v511
    %v5166 = vmul.f32 %v5160, %v512
    %v5167 = vmul.f32 %v5160, %v513
    %v5168 = vmul.f32 %v5160, %v514
    %v5169 = vmul.f32 %v5160, %v515
    %v5170 = vmul.f32 %v5160, %v516
    %v5171 = vmul.f32 %v5160, %v517
    %v5172 = vmul.f32 %v5160, %v518
    %v5173 = vmul.f32 %v5160, %v519
    %v5174 = vmul.f32 %v5160, %v520
    %v5175 = vmul.f32 %v5160, %v521
    %v5176 = vmul.f32 %v5160, %v522
    %v5177 = vmul.f32 %v5160, %v523
    %v5178 = vmul.f32 %v5160, %v524
    %v5179 = vmul.f32 %v5160, %v525
    %v5180 = vmul.f32 %v5160, %v526
    %v5181 = vmul.f32 %v5160, %v527
    %v5182 = vmul.f32 %v5160, %v528
    %v5183 = vmul.f32 %v5160, %v529
    %v5184 = vmul.f32 %v5160, %v530
    %v5185 = vmul.f32 %v5160, %v531
    %v5186 = vmul.f32 %v5160, %v532
    %v5187 = vmul.f32 %v5160, %v533
    %v5188 = vmul.f32 %v5160, %v534
    %v5189 = vmul.f32 %v5160, %v535
    %v5190 = vmul.f32 %v5160, %v536
    %v5191 = vmul.f32 %v5160, %v537
    %v5192 = vmul.f32 %v5160, %v538
    %v5193 = vadd.f32 %v5127, %v5161
    %v5194 = vadd.f32 %v5128, %v5162
    %v5195 = vadd.f32 %v5129, %v5163
    %v5196 = vadd.f32 %v5130, %v5164
    %v5197 = vadd.f32 %v5131, %v5165
    %v5198 = vadd.f32 %v5132, %v5166
    %v5199 = vadd.f32 %v5133, %v5167
    %v5200 = vadd.f32 %v5134, %v5168
    %v5201 = vadd.f32 %v5135, %v5169
    %v5202 = vadd.f32 %v5136, %v5170
    %v5203 = vadd.f32 %v5137, %v5171
    %v5204 = vadd.f32 %v5138, %v5172
    %v5205 = vadd.f32 %v5139, %v5173
    %v5206 = vadd.f32 %v5140, %v5174
    %v5207 = vadd.f32 %v5141, %v5175
    %v5208 = vadd.f32 %v5142, %v5176
    %v5209 = vadd.f32 %v5143, %v5177
    %v5210 = vadd.f32 %v5144, %v5178
    %v5211 = vadd.f32 %v5145, %v5179
    %v5212 = vadd.f32 %v5146, %v5180
    %v5213 = vadd.f32 %v5147, %v5181
    %v5214 = vadd.f32 %v5148, %v5182
    %v5215 = vadd.f32 %v5149, %v5183
    %v5216 = vadd.f32 %v5150, %v5184
    %v5217 = vadd.f32 %v5151, %v5185
    %v5218 = vadd.f32 %v5152, %v5186
    %v5219 = vadd.f32 %v5153, %v5187
    %v5220 = vadd.f32 %v5154, %v5188
    %v5221 = vadd.f32 %v5155, %v5189
    %v5222 = vadd.f32 %v5156, %v5190
    %v5223 = vadd.f32 %v5157, %v5191
    %v5224 = vadd.f32 %v5158, %v5192
    %s5225 = sld [smem:[#allocation3 + $0x35]]
    %v5226 = vstv %s5225
    %v5227 = vmul.f32 %v5226, %v539
    %v5228 = vmul.f32 %v5226, %v540
    %v5229 = vmul.f32 %v5226, %v541
    %v5230 = vmul.f32 %v5226, %v542
    %v5231 = vmul.f32 %v5226, %v543
    %v5232 = vmul.f32 %v5226, %v544
    %v5233 = vmul.f32 %v5226, %v545
    %v5234 = vmul.f32 %v5226, %v546
    %v5235 = vmul.f32 %v5226, %v547
    %v5236 = vmul.f32 %v5226, %v548
    %v5237 = vmul.f32 %v5226, %v549
    %v5238 = vmul.f32 %v5226, %v550
    %v5239 = vmul.f32 %v5226, %v551
    %v5240 = vmul.f32 %v5226, %v552
    %v5241 = vmul.f32 %v5226, %v553
    %v5242 = vmul.f32 %v5226, %v554
    %v5243 = vmul.f32 %v5226, %v555
    %v5244 = vmul.f32 %v5226, %v556
    %v5245 = vmul.f32 %v5226, %v557
    %v5246 = vmul.f32 %v5226, %v558
    %v5247 = vmul.f32 %v5226, %v559
    %v5248 = vmul.f32 %v5226, %v560
    %v5249 = vmul.f32 %v5226, %v561
    %v5250 = vmul.f32 %v5226, %v562
    %v5251 = vmul.f32 %v5226, %v563
    %v5252 = vmul.f32 %v5226, %v564
    %v5253 = vmul.f32 %v5226, %v565
    %v5254 = vmul.f32 %v5226, %v566
    %v5255 = vmul.f32 %v5226, %v567
    %v5256 = vmul.f32 %v5226, %v568
    %v5257 = vmul.f32 %v5226, %v569
    %v5258 = vmul.f32 %v5226, %v570
    %v5259 = vadd.f32 %v5193, %v5227
    %v5260 = vadd.f32 %v5194, %v5228
    %v5261 = vadd.f32 %v5195, %v5229
    %v5262 = vadd.f32 %v5196, %v5230
    %v5263 = vadd.f32 %v5197, %v5231
    %v5264 = vadd.f32 %v5198, %v5232
    %v5265 = vadd.f32 %v5199, %v5233
    %v5266 = vadd.f32 %v5200, %v5234
    %v5267 = vadd.f32 %v5201, %v5235
    %v5268 = vadd.f32 %v5202, %v5236
    %v5269 = vadd.f32 %v5203, %v5237
    %v5270 = vadd.f32 %v5204, %v5238
    %v5271 = vadd.f32 %v5205, %v5239
    %v5272 = vadd.f32 %v5206, %v5240
    %v5273 = vadd.f32 %v5207, %v5241
    %v5274 = vadd.f32 %v5208, %v5242
    %v5275 = vadd.f32 %v5209, %v5243
    %v5276 = vadd.f32 %v5210, %v5244
    %v5277 = vadd.f32 %v5211, %v5245
    %v5278 = vadd.f32 %v5212, %v5246
    %v5279 = vadd.f32 %v5213, %v5247
    %v5280 = vadd.f32 %v5214, %v5248
    %v5281 = vadd.f32 %v5215, %v5249
    %v5282 = vadd.f32 %v5216, %v5250
    %v5283 = vadd.f32 %v5217, %v5251
    %v5284 = vadd.f32 %v5218, %v5252
    %v5285 = vadd.f32 %v5219, %v5253
    %v5286 = vadd.f32 %v5220, %v5254
    %v5287 = vadd.f32 %v5221, %v5255
    %v5288 = vadd.f32 %v5222, %v5256
    %v5289 = vadd.f32 %v5223, %v5257
    %v5290 = vadd.f32 %v5224, %v5258
    %s5291 = sld [smem:[#allocation5 + $0x11]]
    %v5292 = vstv %s5291
    %v5293 = vadd.f32 %v5259, %v5292
    %v5294 = vadd.f32 %v5260, %v5292
    %v5295 = vadd.f32 %v5261, %v5292
    %v5296 = vadd.f32 %v5262, %v5292
    %v5297 = vadd.f32 %v5263, %v5292
    %v5298 = vadd.f32 %v5264, %v5292
    %v5299 = vadd.f32 %v5265, %v5292
    %v5300 = vadd.f32 %v5266, %v5292
    %v5301 = vadd.f32 %v5267, %v5292
    %v5302 = vadd.f32 %v5268, %v5292
    %v5303 = vadd.f32 %v5269, %v5292
    %v5304 = vadd.f32 %v5270, %v5292
    %v5305 = vadd.f32 %v5271, %v5292
    %v5306 = vadd.f32 %v5272, %v5292
    %v5307 = vadd.f32 %v5273, %v5292
    %v5308 = vadd.f32 %v5274, %v5292
    %v5309 = vadd.f32 %v5275, %v5292
    %v5310 = vadd.f32 %v5276, %v5292
    %v5311 = vadd.f32 %v5277, %v5292
    %v5312 = vadd.f32 %v5278, %v5292
    %v5313 = vadd.f32 %v5279, %v5292
    %v5314 = vadd.f32 %v5280, %v5292
    %v5315 = vadd.f32 %v5281, %v5292
    %v5316 = vadd.f32 %v5282, %v5292
    %v5317 = vadd.f32 %v5283, %v5292
    %v5318 = vadd.f32 %v5284, %v5292
    %v5319 = vadd.f32 %v5285, %v5292
    %v5320 = vadd.f32 %v5286, %v5292
    %v5321 = vadd.f32 %v5287, %v5292
    %v5322 = vadd.f32 %v5288, %v5292
    %v5323 = vadd.f32 %v5289, %v5292
    %v5324 = vadd.f32 %v5290, %v5292
    %s5325 = sld [smem:[#allocation7 + $0x11]]
    %v5326 = vtanh.pop %v5293
    %v5327 = vtanh.pop %v5294
    %v5328 = vtanh.pop %v5295
    %v5329 = vtanh.pop %v5296
    %v5330 = vtanh.pop %v5297
    %v5331 = vtanh.pop %v5298
    %v5332 = vtanh.pop %v5299
    %v5333 = vtanh.pop %v5300
    %v5334 = vtanh.pop %v5301
    %v5335 = vtanh.pop %v5302
    %v5336 = vtanh.pop %v5303
    %v5337 = vtanh.pop %v5304
    %v5338 = vtanh.pop %v5305
    %v5339 = vtanh.pop %v5306
    %v5340 = vtanh.pop %v5307
    %v5341 = vtanh.pop %v5308
    %v5342 = vtanh.pop %v5309
    %v5343 = vtanh.pop %v5310
    %v5344 = vtanh.pop %v5311
    %v5345 = vtanh.pop %v5312
    %v5346 = vtanh.pop %v5313
    %v5347 = vtanh.pop %v5314
    %v5348 = vtanh.pop %v5315
    %v5349 = vtanh.pop %v5316
    %v5350 = vtanh.pop %v5317
    %v5351 = vtanh.pop %v5318
    %v5352 = vtanh.pop %v5319
    %v5353 = vtanh.pop %v5320
    %v5354 = vtanh.pop %v5321
    %v5355 = vtanh.pop %v5322
    %v5356 = vtanh.pop %v5323
    %v5357 = vtanh.pop %v5324
    %v5358 = vadd.f32 %v5326, %v5328
    %v5359 = vadd.f32 %v5358, %v5330
    %v5360 = vadd.f32 %v5359, %v5332
    %v5361 = vadd.f32 %v5360, %v5334
    %v5362 = vadd.f32 %v5361, %v5336
    %v5363 = vadd.f32 %v5362, %v5338
    %v5364 = vadd.f32 %v5363, %v5340
    %v5365 = vadd.f32 %v5364, %v5342
    %v5366 = vadd.f32 %v5365, %v5344
    %v5367 = vadd.f32 %v5366, %v5346
    %v5368 = vadd.f32 %v5367, %v5348
    %v5369 = vadd.f32 %v5368, %v5350
    %v5370 = vadd.f32 %v5369, %v5352
    %v5371 = vadd.f32 %v5370, %v5354
    %v5372 = vadd.f32 %v5371, %v5356
    %v5373 = vadd.f32 %v5327, %v5329
    %v5374 = vadd.f32 %v5373, %v5331
    %v5375 = vadd.f32 %v5374, %v5333
    %v5376 = vadd.f32 %v5375, %v5335
    %v5377 = vadd.f32 %v5376, %v5337
    %v5378 = vadd.f32 %v5377, %v5339
    %v5379 = vadd.f32 %v5378, %v5341
    %v5380 = vadd.f32 %v5379, %v5343
    %v5381 = vadd.f32 %v5380, %v5345
    %v5382 = vadd.f32 %v5381, %v5347
    %v5383 = vadd.f32 %v5382, %v5349
    %v5384 = vadd.f32 %v5383, %v5351
    %v5385 = vadd.f32 %v5384, %v5353
    %v5386 = vadd.f32 %v5385, %v5355
    %v5387 = vadd.f32 %v5386, %v5357
    %v5388 = vstv %s5325
    %v5389 = vmul.f32 %v5388, %v5372
    %v5390 = vmul.f32 %v5388, %v5387
    %v5391 = vadd.f32 %v5123, %v5389
    %v5392 = vadd.f32 %v5124, %v5390
    %s5393 = sld [smem:[#allocation3 + $0x36]]
    %v5394 = vstv %s5393
    %v5395 = vmul.f32 %v5394, %v475
    %v5396 = vmul.f32 %v5394, %v476
    %v5397 = vmul.f32 %v5394, %v477
    %v5398 = vmul.f32 %v5394, %v478
    %v5399 = vmul.f32 %v5394, %v479
    %v5400 = vmul.f32 %v5394, %v480
    %v5401 = vmul.f32 %v5394, %v481
    %v5402 = vmul.f32 %v5394, %v482
    %v5403 = vmul.f32 %v5394, %v483
    %v5404 = vmul.f32 %v5394, %v484
    %v5405 = vmul.f32 %v5394, %v485
    %v5406 = vmul.f32 %v5394, %v486
    %v5407 = vmul.f32 %v5394, %v487
    %v5408 = vmul.f32 %v5394, %v488
    %v5409 = vmul.f32 %v5394, %v489
    %v5410 = vmul.f32 %v5394, %v490
    %v5411 = vmul.f32 %v5394, %v491
    %v5412 = vmul.f32 %v5394, %v492
    %v5413 = vmul.f32 %v5394, %v493
    %v5414 = vmul.f32 %v5394, %v494
    %v5415 = vmul.f32 %v5394, %v495
    %v5416 = vmul.f32 %v5394, %v496
    %v5417 = vmul.f32 %v5394, %v497
    %v5418 = vmul.f32 %v5394, %v498
    %v5419 = vmul.f32 %v5394, %v499
    %v5420 = vmul.f32 %v5394, %v500
    %v5421 = vmul.f32 %v5394, %v501
    %v5422 = vmul.f32 %v5394, %v502
    %v5423 = vmul.f32 %v5394, %v503
    %v5424 = vmul.f32 %v5394, %v504
    %v5425 = vmul.f32 %v5394, %v505
    %v5426 = vmul.f32 %v5394, %v506
    %s5427 = sld [smem:[#allocation3 + $0x37]]
    %v5428 = vstv %s5427
    %v5429 = vmul.f32 %v5428, %v507
    %v5430 = vmul.f32 %v5428, %v508
    %v5431 = vmul.f32 %v5428, %v509
    %v5432 = vmul.f32 %v5428, %v510
    %v5433 = vmul.f32 %v5428, %v511
    %v5434 = vmul.f32 %v5428, %v512
    %v5435 = vmul.f32 %v5428, %v513
    %v5436 = vmul.f32 %v5428, %v514
    %v5437 = vmul.f32 %v5428, %v515
    %v5438 = vmul.f32 %v5428, %v516
    %v5439 = vmul.f32 %v5428, %v517
    %v5440 = vmul.f32 %v5428, %v518
    %v5441 = vmul.f32 %v5428, %v519
    %v5442 = vmul.f32 %v5428, %v520
    %v5443 = vmul.f32 %v5428, %v521
    %v5444 = vmul.f32 %v5428, %v522
    %v5445 = vmul.f32 %v5428, %v523
    %v5446 = vmul.f32 %v5428, %v524
    %v5447 = vmul.f32 %v5428, %v525
    %v5448 = vmul.f32 %v5428, %v526
    %v5449 = vmul.f32 %v5428, %v527
    %v5450 = vmul.f32 %v5428, %v528
    %v5451 = vmul.f32 %v5428, %v529
    %v5452 = vmul.f32 %v5428, %v530
    %v5453 = vmul.f32 %v5428, %v531
    %v5454 = vmul.f32 %v5428, %v532
    %v5455 = vmul.f32 %v5428, %v533
    %v5456 = vmul.f32 %v5428, %v534
    %v5457 = vmul.f32 %v5428, %v535
    %v5458 = vmul.f32 %v5428, %v536
    %v5459 = vmul.f32 %v5428, %v537
    %v5460 = vmul.f32 %v5428, %v538
    %v5461 = vadd.f32 %v5395, %v5429
    %v5462 = vadd.f32 %v5396, %v5430
    %v5463 = vadd.f32 %v5397, %v5431
    %v5464 = vadd.f32 %v5398, %v5432
    %v5465 = vadd.f32 %v5399, %v5433
    %v5466 = vadd.f32 %v5400, %v5434
    %v5467 = vadd.f32 %v5401, %v5435
    %v5468 = vadd.f32 %v5402, %v5436
    %v5469 = vadd.f32 %v5403, %v5437
    %v5470 = vadd.f32 %v5404, %v5438
    %v5471 = vadd.f32 %v5405, %v5439
    %v5472 = vadd.f32 %v5406, %v5440
    %v5473 = vadd.f32 %v5407, %v5441
    %v5474 = vadd.f32 %v5408, %v5442
    %v5475 = vadd.f32 %v5409, %v5443
    %v5476 = vadd.f32 %v5410, %v5444
    %v5477 = vadd.f32 %v5411, %v5445
    %v5478 = vadd.f32 %v5412, %v5446
    %v5479 = vadd.f32 %v5413, %v5447
    %v5480 = vadd.f32 %v5414, %v5448
    %v5481 = vadd.f32 %v5415, %v5449
    %v5482 = vadd.f32 %v5416, %v5450
    %v5483 = vadd.f32 %v5417, %v5451
    %v5484 = vadd.f32 %v5418, %v5452
    %v5485 = vadd.f32 %v5419, %v5453
    %v5486 = vadd.f32 %v5420, %v5454
    %v5487 = vadd.f32 %v5421, %v5455
    %v5488 = vadd.f32 %v5422, %v5456
    %v5489 = vadd.f32 %v5423, %v5457
    %v5490 = vadd.f32 %v5424, %v5458
    %v5491 = vadd.f32 %v5425, %v5459
    %v5492 = vadd.f32 %v5426, %v5460
    %s5493 = sld [smem:[#allocation3 + $0x38]]
    %v5494 = vstv %s5493
    %v5495 = vmul.f32 %v5494, %v539
    %v5496 = vmul.f32 %v5494, %v540
    %v5497 = vmul.f32 %v5494, %v541
    %v5498 = vmul.f32 %v5494, %v542
    %v5499 = vmul.f32 %v5494, %v543
    %v5500 = vmul.f32 %v5494, %v544
    %v5501 = vmul.f32 %v5494, %v545
    %v5502 = vmul.f32 %v5494, %v546
    %v5503 = vmul.f32 %v5494, %v547
    %v5504 = vmul.f32 %v5494, %v548
    %v5505 = vmul.f32 %v5494, %v549
    %v5506 = vmul.f32 %v5494, %v550
    %v5507 = vmul.f32 %v5494, %v551
    %v5508 = vmul.f32 %v5494, %v552
    %v5509 = vmul.f32 %v5494, %v553
    %v5510 = vmul.f32 %v5494, %v554
    %v5511 = vmul.f32 %v5494, %v555
    %v5512 = vmul.f32 %v5494, %v556
    %v5513 = vmul.f32 %v5494, %v557
    %v5514 = vmul.f32 %v5494, %v558
    %v5515 = vmul.f32 %v5494, %v559
    %v5516 = vmul.f32 %v5494, %v560
    %v5517 = vmul.f32 %v5494, %v561
    %v5518 = vmul.f32 %v5494, %v562
    %v5519 = vmul.f32 %v5494, %v563
    %v5520 = vmul.f32 %v5494, %v564
    %v5521 = vmul.f32 %v5494, %v565
    %v5522 = vmul.f32 %v5494, %v566
    %v5523 = vmul.f32 %v5494, %v567
    %v5524 = vmul.f32 %v5494, %v568
    %v5525 = vmul.f32 %v5494, %v569
    %v5526 = vmul.f32 %v5494, %v570
    %v5527 = vadd.f32 %v5461, %v5495
    %v5528 = vadd.f32 %v5462, %v5496
    %v5529 = vadd.f32 %v5463, %v5497
    %v5530 = vadd.f32 %v5464, %v5498
    %v5531 = vadd.f32 %v5465, %v5499
    %v5532 = vadd.f32 %v5466, %v5500
    %v5533 = vadd.f32 %v5467, %v5501
    %v5534 = vadd.f32 %v5468, %v5502
    %v5535 = vadd.f32 %v5469, %v5503
    %v5536 = vadd.f32 %v5470, %v5504
    %v5537 = vadd.f32 %v5471, %v5505
    %v5538 = vadd.f32 %v5472, %v5506
    %v5539 = vadd.f32 %v5473, %v5507
    %v5540 = vadd.f32 %v5474, %v5508
    %v5541 = vadd.f32 %v5475, %v5509
    %v5542 = vadd.f32 %v5476, %v5510
    %v5543 = vadd.f32 %v5477, %v5511
    %v5544 = vadd.f32 %v5478, %v5512
    %v5545 = vadd.f32 %v5479, %v5513
    %v5546 = vadd.f32 %v5480, %v5514
    %v5547 = vadd.f32 %v5481, %v5515
    %v5548 = vadd.f32 %v5482, %v5516
    %v5549 = vadd.f32 %v5483, %v5517
    %v5550 = vadd.f32 %v5484, %v5518
    %v5551 = vadd.f32 %v5485, %v5519
    %v5552 = vadd.f32 %v5486, %v5520
    %v5553 = vadd.f32 %v5487, %v5521
    %v5554 = vadd.f32 %v5488, %v5522
    %v5555 = vadd.f32 %v5489, %v5523
    %v5556 = vadd.f32 %v5490, %v5524
    %v5557 = vadd.f32 %v5491, %v5525
    %v5558 = vadd.f32 %v5492, %v5526
    %s5559 = sld [smem:[#allocation5 + $0x12]]
    %v5560 = vstv %s5559
    %v5561 = vadd.f32 %v5527, %v5560
    %v5562 = vadd.f32 %v5528, %v5560
    %v5563 = vadd.f32 %v5529, %v5560
    %v5564 = vadd.f32 %v5530, %v5560
    %v5565 = vadd.f32 %v5531, %v5560
    %v5566 = vadd.f32 %v5532, %v5560
    %v5567 = vadd.f32 %v5533, %v5560
    %v5568 = vadd.f32 %v5534, %v5560
    %v5569 = vadd.f32 %v5535, %v5560
    %v5570 = vadd.f32 %v5536, %v5560
    %v5571 = vadd.f32 %v5537, %v5560
    %v5572 = vadd.f32 %v5538, %v5560
    %v5573 = vadd.f32 %v5539, %v5560
    %v5574 = vadd.f32 %v5540, %v5560
    %v5575 = vadd.f32 %v5541, %v5560
    %v5576 = vadd.f32 %v5542, %v5560
    %v5577 = vadd.f32 %v5543, %v5560
    %v5578 = vadd.f32 %v5544, %v5560
    %v5579 = vadd.f32 %v5545, %v5560
    %v5580 = vadd.f32 %v5546, %v5560
    %v5581 = vadd.f32 %v5547, %v5560
    %v5582 = vadd.f32 %v5548, %v5560
    %v5583 = vadd.f32 %v5549, %v5560
    %v5584 = vadd.f32 %v5550, %v5560
    %v5585 = vadd.f32 %v5551, %v5560
    %v5586 = vadd.f32 %v5552, %v5560
    %v5587 = vadd.f32 %v5553, %v5560
    %v5588 = vadd.f32 %v5554, %v5560
    %v5589 = vadd.f32 %v5555, %v5560
    %v5590 = vadd.f32 %v5556, %v5560
    %v5591 = vadd.f32 %v5557, %v5560
    %v5592 = vadd.f32 %v5558, %v5560
    %s5593 = sld [smem:[#allocation7 + $0x12]]
    %v5594 = vtanh.pop %v5561
    %v5595 = vtanh.pop %v5562
    %v5596 = vtanh.pop %v5563
    %v5597 = vtanh.pop %v5564
    %v5598 = vtanh.pop %v5565
    %v5599 = vtanh.pop %v5566
    %v5600 = vtanh.pop %v5567
    %v5601 = vtanh.pop %v5568
    %v5602 = vtanh.pop %v5569
    %v5603 = vtanh.pop %v5570
    %v5604 = vtanh.pop %v5571
    %v5605 = vtanh.pop %v5572
    %v5606 = vtanh.pop %v5573
    %v5607 = vtanh.pop %v5574
    %v5608 = vtanh.pop %v5575
    %v5609 = vtanh.pop %v5576
    %v5610 = vtanh.pop %v5577
    %v5611 = vtanh.pop %v5578
    %v5612 = vtanh.pop %v5579
    %v5613 = vtanh.pop %v5580
    %v5614 = vtanh.pop %v5581
    %v5615 = vtanh.pop %v5582
    %v5616 = vtanh.pop %v5583
    %v5617 = vtanh.pop %v5584
    %v5618 = vtanh.pop %v5585
    %v5619 = vtanh.pop %v5586
    %v5620 = vtanh.pop %v5587
    %v5621 = vtanh.pop %v5588
    %v5622 = vtanh.pop %v5589
    %v5623 = vtanh.pop %v5590
    %v5624 = vtanh.pop %v5591
    %v5625 = vtanh.pop %v5592
    %v5626 = vadd.f32 %v5594, %v5596
    %v5627 = vadd.f32 %v5626, %v5598
    %v5628 = vadd.f32 %v5627, %v5600
    %v5629 = vadd.f32 %v5628, %v5602
    %v5630 = vadd.f32 %v5629, %v5604
    %v5631 = vadd.f32 %v5630, %v5606
    %v5632 = vadd.f32 %v5631, %v5608
    %v5633 = vadd.f32 %v5632, %v5610
    %v5634 = vadd.f32 %v5633, %v5612
    %v5635 = vadd.f32 %v5634, %v5614
    %v5636 = vadd.f32 %v5635, %v5616
    %v5637 = vadd.f32 %v5636, %v5618
    %v5638 = vadd.f32 %v5637, %v5620
    %v5639 = vadd.f32 %v5638, %v5622
    %v5640 = vadd.f32 %v5639, %v5624
    %v5641 = vadd.f32 %v5595, %v5597
    %v5642 = vadd.f32 %v5641, %v5599
    %v5643 = vadd.f32 %v5642, %v5601
    %v5644 = vadd.f32 %v5643, %v5603
    %v5645 = vadd.f32 %v5644, %v5605
    %v5646 = vadd.f32 %v5645, %v5607
    %v5647 = vadd.f32 %v5646, %v5609
    %v5648 = vadd.f32 %v5647, %v5611
    %v5649 = vadd.f32 %v5648, %v5613
    %v5650 = vadd.f32 %v5649, %v5615
    %v5651 = vadd.f32 %v5650, %v5617
    %v5652 = vadd.f32 %v5651, %v5619
    %v5653 = vadd.f32 %v5652, %v5621
    %v5654 = vadd.f32 %v5653, %v5623
    %v5655 = vadd.f32 %v5654, %v5625
    %v5656 = vstv %s5593
    %v5657 = vmul.f32 %v5656, %v5640
    %v5658 = vmul.f32 %v5656, %v5655
    %v5659 = vadd.f32 %v5391, %v5657
    %v5660 = vadd.f32 %v5392, %v5658
    %s5661 = sld [smem:[#allocation3 + $0x39]]
    %v5662 = vstv %s5661
    %v5663 = vmul.f32 %v5662, %v475
    %v5664 = vmul.f32 %v5662, %v476
    %v5665 = vmul.f32 %v5662, %v477
    %v5666 = vmul.f32 %v5662, %v478
    %v5667 = vmul.f32 %v5662, %v479
    %v5668 = vmul.f32 %v5662, %v480
    %v5669 = vmul.f32 %v5662, %v481
    %v5670 = vmul.f32 %v5662, %v482
    %v5671 = vmul.f32 %v5662, %v483
    %v5672 = vmul.f32 %v5662, %v484
    %v5673 = vmul.f32 %v5662, %v485
    %v5674 = vmul.f32 %v5662, %v486
    %v5675 = vmul.f32 %v5662, %v487
    %v5676 = vmul.f32 %v5662, %v488
    %v5677 = vmul.f32 %v5662, %v489
    %v5678 = vmul.f32 %v5662, %v490
    %v5679 = vmul.f32 %v5662, %v491
    %v5680 = vmul.f32 %v5662, %v492
    %v5681 = vmul.f32 %v5662, %v493
    %v5682 = vmul.f32 %v5662, %v494
    %v5683 = vmul.f32 %v5662, %v495
    %v5684 = vmul.f32 %v5662, %v496
    %v5685 = vmul.f32 %v5662, %v497
    %v5686 = vmul.f32 %v5662, %v498
    %v5687 = vmul.f32 %v5662, %v499
    %v5688 = vmul.f32 %v5662, %v500
    %v5689 = vmul.f32 %v5662, %v501
    %v5690 = vmul.f32 %v5662, %v502
    %v5691 = vmul.f32 %v5662, %v503
    %v5692 = vmul.f32 %v5662, %v504
    %v5693 = vmul.f32 %v5662, %v505
    %v5694 = vmul.f32 %v5662, %v506
    %s5695 = sld [smem:[#allocation3 + $0x3a]]
    %v5696 = vstv %s5695
    %v5697 = vmul.f32 %v5696, %v507
    %v5698 = vmul.f32 %v5696, %v508
    %v5699 = vmul.f32 %v5696, %v509
    %v5700 = vmul.f32 %v5696, %v510
    %v5701 = vmul.f32 %v5696, %v511
    %v5702 = vmul.f32 %v5696, %v512
    %v5703 = vmul.f32 %v5696, %v513
    %v5704 = vmul.f32 %v5696, %v514
    %v5705 = vmul.f32 %v5696, %v515
    %v5706 = vmul.f32 %v5696, %v516
    %v5707 = vmul.f32 %v5696, %v517
    %v5708 = vmul.f32 %v5696, %v518
    %v5709 = vmul.f32 %v5696, %v519
    %v5710 = vmul.f32 %v5696, %v520
    %v5711 = vmul.f32 %v5696, %v521
    %v5712 = vmul.f32 %v5696, %v522
    %v5713 = vmul.f32 %v5696, %v523
    %v5714 = vmul.f32 %v5696, %v524
    %v5715 = vmul.f32 %v5696, %v525
    %v5716 = vmul.f32 %v5696, %v526
    %v5717 = vmul.f32 %v5696, %v527
    %v5718 = vmul.f32 %v5696, %v528
    %v5719 = vmul.f32 %v5696, %v529
    %v5720 = vmul.f32 %v5696, %v530
    %v5721 = vmul.f32 %v5696, %v531
    %v5722 = vmul.f32 %v5696, %v532
    %v5723 = vmul.f32 %v5696, %v533
    %v5724 = vmul.f32 %v5696, %v534
    %v5725 = vmul.f32 %v5696, %v535
    %v5726 = vmul.f32 %v5696, %v536
    %v5727 = vmul.f32 %v5696, %v537
    %v5728 = vmul.f32 %v5696, %v538
    %v5729 = vadd.f32 %v5663, %v5697
    %v5730 = vadd.f32 %v5664, %v5698
    %v5731 = vadd.f32 %v5665, %v5699
    %v5732 = vadd.f32 %v5666, %v5700
    %v5733 = vadd.f32 %v5667, %v5701
    %v5734 = vadd.f32 %v5668, %v5702
    %v5735 = vadd.f32 %v5669, %v5703
    %v5736 = vadd.f32 %v5670, %v5704
    %v5737 = vadd.f32 %v5671, %v5705
    %v5738 = vadd.f32 %v5672, %v5706
    %v5739 = vadd.f32 %v5673, %v5707
    %v5740 = vadd.f32 %v5674, %v5708
    %v5741 = vadd.f32 %v5675, %v5709
    %v5742 = vadd.f32 %v5676, %v5710
    %v5743 = vadd.f32 %v5677, %v5711
    %v5744 = vadd.f32 %v5678, %v5712
    %v5745 = vadd.f32 %v5679, %v5713
    %v5746 = vadd.f32 %v5680, %v5714
    %v5747 = vadd.f32 %v5681, %v5715
    %v5748 = vadd.f32 %v5682, %v5716
    %v5749 = vadd.f32 %v5683, %v5717
    %v5750 = vadd.f32 %v5684, %v5718
    %v5751 = vadd.f32 %v5685, %v5719
    %v5752 = vadd.f32 %v5686, %v5720
    %v5753 = vadd.f32 %v5687, %v5721
    %v5754 = vadd.f32 %v5688, %v5722
    %v5755 = vadd.f32 %v5689, %v5723
    %v5756 = vadd.f32 %v5690, %v5724
    %v5757 = vadd.f32 %v5691, %v5725
    %v5758 = vadd.f32 %v5692, %v5726
    %v5759 = vadd.f32 %v5693, %v5727
    %v5760 = vadd.f32 %v5694, %v5728
    %s5761 = sld [smem:[#allocation3 + $0x3b]]
    %v5762 = vstv %s5761
    %v5763 = vmul.f32 %v5762, %v539
    %v5764 = vmul.f32 %v5762, %v540
    %v5765 = vmul.f32 %v5762, %v541
    %v5766 = vmul.f32 %v5762, %v542
    %v5767 = vmul.f32 %v5762, %v543
    %v5768 = vmul.f32 %v5762, %v544
    %v5769 = vmul.f32 %v5762, %v545
    %v5770 = vmul.f32 %v5762, %v546
    %v5771 = vmul.f32 %v5762, %v547
    %v5772 = vmul.f32 %v5762, %v548
    %v5773 = vmul.f32 %v5762, %v549
    %v5774 = vmul.f32 %v5762, %v550
    %v5775 = vmul.f32 %v5762, %v551
    %v5776 = vmul.f32 %v5762, %v552
    %v5777 = vmul.f32 %v5762, %v553
    %v5778 = vmul.f32 %v5762, %v554
    %v5779 = vmul.f32 %v5762, %v555
    %v5780 = vmul.f32 %v5762, %v556
    %v5781 = vmul.f32 %v5762, %v557
    %v5782 = vmul.f32 %v5762, %v558
    %v5783 = vmul.f32 %v5762, %v559
    %v5784 = vmul.f32 %v5762, %v560
    %v5785 = vmul.f32 %v5762, %v561
    %v5786 = vmul.f32 %v5762, %v562
    %v5787 = vmul.f32 %v5762, %v563
    %v5788 = vmul.f32 %v5762, %v564
    %v5789 = vmul.f32 %v5762, %v565
    %v5790 = vmul.f32 %v5762, %v566
    %v5791 = vmul.f32 %v5762, %v567
    %v5792 = vmul.f32 %v5762, %v568
    %v5793 = vmul.f32 %v5762, %v569
    %v5794 = vmul.f32 %v5762, %v570
    %v5795 = vadd.f32 %v5729, %v5763
    %v5796 = vadd.f32 %v5730, %v5764
    %v5797 = vadd.f32 %v5731, %v5765
    %v5798 = vadd.f32 %v5732, %v5766
    %v5799 = vadd.f32 %v5733, %v5767
    %v5800 = vadd.f32 %v5734, %v5768
    %v5801 = vadd.f32 %v5735, %v5769
    %v5802 = vadd.f32 %v5736, %v5770
    %v5803 = vadd.f32 %v5737, %v5771
    %v5804 = vadd.f32 %v5738, %v5772
    %v5805 = vadd.f32 %v5739, %v5773
    %v5806 = vadd.f32 %v5740, %v5774
    %v5807 = vadd.f32 %v5741, %v5775
    %v5808 = vadd.f32 %v5742, %v5776
    %v5809 = vadd.f32 %v5743, %v5777
    %v5810 = vadd.f32 %v5744, %v5778
    %v5811 = vadd.f32 %v5745, %v5779
    %v5812 = vadd.f32 %v5746, %v5780
    %v5813 = vadd.f32 %v5747, %v5781
    %v5814 = vadd.f32 %v5748, %v5782
    %v5815 = vadd.f32 %v5749, %v5783
    %v5816 = vadd.f32 %v5750, %v5784
    %v5817 = vadd.f32 %v5751, %v5785
    %v5818 = vadd.f32 %v5752, %v5786
    %v5819 = vadd.f32 %v5753, %v5787
    %v5820 = vadd.f32 %v5754, %v5788
    %v5821 = vadd.f32 %v5755, %v5789
    %v5822 = vadd.f32 %v5756, %v5790
    %v5823 = vadd.f32 %v5757, %v5791
    %v5824 = vadd.f32 %v5758, %v5792
    %v5825 = vadd.f32 %v5759, %v5793
    %v5826 = vadd.f32 %v5760, %v5794
    %s5827 = sld [smem:[#allocation5 + $0x13]]
    %v5828 = vstv %s5827
    %v5829 = vadd.f32 %v5795, %v5828
    %v5830 = vadd.f32 %v5796, %v5828
    %v5831 = vadd.f32 %v5797, %v5828
    %v5832 = vadd.f32 %v5798, %v5828
    %v5833 = vadd.f32 %v5799, %v5828
    %v5834 = vadd.f32 %v5800, %v5828
    %v5835 = vadd.f32 %v5801, %v5828
    %v5836 = vadd.f32 %v5802, %v5828
    %v5837 = vadd.f32 %v5803, %v5828
    %v5838 = vadd.f32 %v5804, %v5828
    %v5839 = vadd.f32 %v5805, %v5828
    %v5840 = vadd.f32 %v5806, %v5828
    %v5841 = vadd.f32 %v5807, %v5828
    %v5842 = vadd.f32 %v5808, %v5828
    %v5843 = vadd.f32 %v5809, %v5828
    %v5844 = vadd.f32 %v5810, %v5828
    %v5845 = vadd.f32 %v5811, %v5828
    %v5846 = vadd.f32 %v5812, %v5828
    %v5847 = vadd.f32 %v5813, %v5828
    %v5848 = vadd.f32 %v5814, %v5828
    %v5849 = vadd.f32 %v5815, %v5828
    %v5850 = vadd.f32 %v5816, %v5828
    %v5851 = vadd.f32 %v5817, %v5828
    %v5852 = vadd.f32 %v5818, %v5828
    %v5853 = vadd.f32 %v5819, %v5828
    %v5854 = vadd.f32 %v5820, %v5828
    %v5855 = vadd.f32 %v5821, %v5828
    %v5856 = vadd.f32 %v5822, %v5828
    %v5857 = vadd.f32 %v5823, %v5828
    %v5858 = vadd.f32 %v5824, %v5828
    %v5859 = vadd.f32 %v5825, %v5828
    %v5860 = vadd.f32 %v5826, %v5828
    %s5861 = sld [smem:[#allocation7 + $0x13]]
    %v5862 = vtanh.pop %v5829
    %v5863 = vtanh.pop %v5830
    %v5864 = vtanh.pop %v5831
    %v5865 = vtanh.pop %v5832
    %v5866 = vtanh.pop %v5833
    %v5867 = vtanh.pop %v5834
    %v5868 = vtanh.pop %v5835
    %v5869 = vtanh.pop %v5836
    %v5870 = vtanh.pop %v5837
    %v5871 = vtanh.pop %v5838
    %v5872 = vtanh.pop %v5839
    %v5873 = vtanh.pop %v5840
    %v5874 = vtanh.pop %v5841
    %v5875 = vtanh.pop %v5842
    %v5876 = vtanh.pop %v5843
    %v5877 = vtanh.pop %v5844
    %v5878 = vtanh.pop %v5845
    %v5879 = vtanh.pop %v5846
    %v5880 = vtanh.pop %v5847
    %v5881 = vtanh.pop %v5848
    %v5882 = vtanh.pop %v5849
    %v5883 = vtanh.pop %v5850
    %v5884 = vtanh.pop %v5851
    %v5885 = vtanh.pop %v5852
    %v5886 = vtanh.pop %v5853
    %v5887 = vtanh.pop %v5854
    %v5888 = vtanh.pop %v5855
    %v5889 = vtanh.pop %v5856
    %v5890 = vtanh.pop %v5857
    %v5891 = vtanh.pop %v5858
    %v5892 = vtanh.pop %v5859
    %v5893 = vtanh.pop %v5860
    %v5894 = vadd.f32 %v5862, %v5864
    %v5895 = vadd.f32 %v5894, %v5866
    %v5896 = vadd.f32 %v5895, %v5868
    %v5897 = vadd.f32 %v5896, %v5870
    %v5898 = vadd.f32 %v5897, %v5872
    %v5899 = vadd.f32 %v5898, %v5874
    %v5900 = vadd.f32 %v5899, %v5876
    %v5901 = vadd.f32 %v5900, %v5878
    %v5902 = vadd.f32 %v5901, %v5880
    %v5903 = vadd.f32 %v5902, %v5882
    %v5904 = vadd.f32 %v5903, %v5884
    %v5905 = vadd.f32 %v5904, %v5886
    %v5906 = vadd.f32 %v5905, %v5888
    %v5907 = vadd.f32 %v5906, %v5890
    %v5908 = vadd.f32 %v5907, %v5892
    %v5909 = vadd.f32 %v5863, %v5865
    %v5910 = vadd.f32 %v5909, %v5867
    %v5911 = vadd.f32 %v5910, %v5869
    %v5912 = vadd.f32 %v5911, %v5871
    %v5913 = vadd.f32 %v5912, %v5873
    %v5914 = vadd.f32 %v5913, %v5875
    %v5915 = vadd.f32 %v5914, %v5877
    %v5916 = vadd.f32 %v5915, %v5879
    %v5917 = vadd.f32 %v5916, %v5881
    %v5918 = vadd.f32 %v5917, %v5883
    %v5919 = vadd.f32 %v5918, %v5885
    %v5920 = vadd.f32 %v5919, %v5887
    %v5921 = vadd.f32 %v5920, %v5889
    %v5922 = vadd.f32 %v5921, %v5891
    %v5923 = vadd.f32 %v5922, %v5893
    %v5924 = vstv %s5861
    %v5925 = vmul.f32 %v5924, %v5908
    %v5926 = vmul.f32 %v5924, %v5923
    %v5927 = vadd.f32 %v5659, %v5925
    %v5928 = vadd.f32 %v5660, %v5926
    %s5929 = sld [smem:[#allocation3 + $0x3c]]
    %v5930 = vstv %s5929
    %v5931 = vmul.f32 %v5930, %v475
    %v5932 = vmul.f32 %v5930, %v476
    %v5933 = vmul.f32 %v5930, %v477
    %v5934 = vmul.f32 %v5930, %v478
    %v5935 = vmul.f32 %v5930, %v479
    %v5936 = vmul.f32 %v5930, %v480
    %v5937 = vmul.f32 %v5930, %v481
    %v5938 = vmul.f32 %v5930, %v482
    %v5939 = vmul.f32 %v5930, %v483
    %v5940 = vmul.f32 %v5930, %v484
    %v5941 = vmul.f32 %v5930, %v485
    %v5942 = vmul.f32 %v5930, %v486
    %v5943 = vmul.f32 %v5930, %v487
    %v5944 = vmul.f32 %v5930, %v488
    %v5945 = vmul.f32 %v5930, %v489
    %v5946 = vmul.f32 %v5930, %v490
    %v5947 = vmul.f32 %v5930, %v491
    %v5948 = vmul.f32 %v5930, %v492
    %v5949 = vmul.f32 %v5930, %v493
    %v5950 = vmul.f32 %v5930, %v494
    %v5951 = vmul.f32 %v5930, %v495
    %v5952 = vmul.f32 %v5930, %v496
    %v5953 = vmul.f32 %v5930, %v497
    %v5954 = vmul.f32 %v5930, %v498
    %v5955 = vmul.f32 %v5930, %v499
    %v5956 = vmul.f32 %v5930, %v500
    %v5957 = vmul.f32 %v5930, %v501
    %v5958 = vmul.f32 %v5930, %v502
    %v5959 = vmul.f32 %v5930, %v503
    %v5960 = vmul.f32 %v5930, %v504
    %v5961 = vmul.f32 %v5930, %v505
    %v5962 = vmul.f32 %v5930, %v506
    %s5963 = sld [smem:[#allocation3 + $0x3d]]
    %v5964 = vstv %s5963
    %v5965 = vmul.f32 %v5964, %v507
    %v5966 = vmul.f32 %v5964, %v508
    %v5967 = vmul.f32 %v5964, %v509
    %v5968 = vmul.f32 %v5964, %v510
    %v5969 = vmul.f32 %v5964, %v511
    %v5970 = vmul.f32 %v5964, %v512
    %v5971 = vmul.f32 %v5964, %v513
    %v5972 = vmul.f32 %v5964, %v514
    %v5973 = vmul.f32 %v5964, %v515
    %v5974 = vmul.f32 %v5964, %v516
    %v5975 = vmul.f32 %v5964, %v517
    %v5976 = vmul.f32 %v5964, %v518
    %v5977 = vmul.f32 %v5964, %v519
    %v5978 = vmul.f32 %v5964, %v520
    %v5979 = vmul.f32 %v5964, %v521
    %v5980 = vmul.f32 %v5964, %v522
    %v5981 = vmul.f32 %v5964, %v523
    %v5982 = vmul.f32 %v5964, %v524
    %v5983 = vmul.f32 %v5964, %v525
    %v5984 = vmul.f32 %v5964, %v526
    %v5985 = vmul.f32 %v5964, %v527
    %v5986 = vmul.f32 %v5964, %v528
    %v5987 = vmul.f32 %v5964, %v529
    %v5988 = vmul.f32 %v5964, %v530
    %v5989 = vmul.f32 %v5964, %v531
    %v5990 = vmul.f32 %v5964, %v532
    %v5991 = vmul.f32 %v5964, %v533
    %v5992 = vmul.f32 %v5964, %v534
    %v5993 = vmul.f32 %v5964, %v535
    %v5994 = vmul.f32 %v5964, %v536
    %v5995 = vmul.f32 %v5964, %v537
    %v5996 = vmul.f32 %v5964, %v538
    %v5997 = vadd.f32 %v5931, %v5965
    %v5998 = vadd.f32 %v5932, %v5966
    %v5999 = vadd.f32 %v5933, %v5967
    %v6000 = vadd.f32 %v5934, %v5968
    %v6001 = vadd.f32 %v5935, %v5969
    %v6002 = vadd.f32 %v5936, %v5970
    %v6003 = vadd.f32 %v5937, %v5971
    %v6004 = vadd.f32 %v5938, %v5972
    %v6005 = vadd.f32 %v5939, %v5973
    %v6006 = vadd.f32 %v5940, %v5974
    %v6007 = vadd.f32 %v5941, %v5975
    %v6008 = vadd.f32 %v5942, %v5976
    %v6009 = vadd.f32 %v5943, %v5977
    %v6010 = vadd.f32 %v5944, %v5978
    %v6011 = vadd.f32 %v5945, %v5979
    %v6012 = vadd.f32 %v5946, %v5980
    %v6013 = vadd.f32 %v5947, %v5981
    %v6014 = vadd.f32 %v5948, %v5982
    %v6015 = vadd.f32 %v5949, %v5983
    %v6016 = vadd.f32 %v5950, %v5984
    %v6017 = vadd.f32 %v5951, %v5985
    %v6018 = vadd.f32 %v5952, %v5986
    %v6019 = vadd.f32 %v5953, %v5987
    %v6020 = vadd.f32 %v5954, %v5988
    %v6021 = vadd.f32 %v5955, %v5989
    %v6022 = vadd.f32 %v5956, %v5990
    %v6023 = vadd.f32 %v5957, %v5991
    %v6024 = vadd.f32 %v5958, %v5992
    %v6025 = vadd.f32 %v5959, %v5993
    %v6026 = vadd.f32 %v5960, %v5994
    %v6027 = vadd.f32 %v5961, %v5995
    %v6028 = vadd.f32 %v5962, %v5996
    %s6029 = sld [smem:[#allocation3 + $0x3e]]
    %v6030 = vstv %s6029
    %v6031 = vmul.f32 %v6030, %v539
    %v6032 = vmul.f32 %v6030, %v540
    %v6033 = vmul.f32 %v6030, %v541
    %v6034 = vmul.f32 %v6030, %v542
    %v6035 = vmul.f32 %v6030, %v543
    %v6036 = vmul.f32 %v6030, %v544
    %v6037 = vmul.f32 %v6030, %v545
    %v6038 = vmul.f32 %v6030, %v546
    %v6039 = vmul.f32 %v6030, %v547
    %v6040 = vmul.f32 %v6030, %v548
    %v6041 = vmul.f32 %v6030, %v549
    %v6042 = vmul.f32 %v6030, %v550
    %v6043 = vmul.f32 %v6030, %v551
    %v6044 = vmul.f32 %v6030, %v552
    %v6045 = vmul.f32 %v6030, %v553
    %v6046 = vmul.f32 %v6030, %v554
    %v6047 = vmul.f32 %v6030, %v555
    %v6048 = vmul.f32 %v6030, %v556
    %v6049 = vmul.f32 %v6030, %v557
    %v6050 = vmul.f32 %v6030, %v558
    %v6051 = vmul.f32 %v6030, %v559
    %v6052 = vmul.f32 %v6030, %v560
    %v6053 = vmul.f32 %v6030, %v561
    %v6054 = vmul.f32 %v6030, %v562
    %v6055 = vmul.f32 %v6030, %v563
    %v6056 = vmul.f32 %v6030, %v564
    %v6057 = vmul.f32 %v6030, %v565
    %v6058 = vmul.f32 %v6030, %v566
    %v6059 = vmul.f32 %v6030, %v567
    %v6060 = vmul.f32 %v6030, %v568
    %v6061 = vmul.f32 %v6030, %v569
    %v6062 = vmul.f32 %v6030, %v570
    %v6063 = vadd.f32 %v5997, %v6031
    %v6064 = vadd.f32 %v5998, %v6032
    %v6065 = vadd.f32 %v5999, %v6033
    %v6066 = vadd.f32 %v6000, %v6034
    %v6067 = vadd.f32 %v6001, %v6035
    %v6068 = vadd.f32 %v6002, %v6036
    %v6069 = vadd.f32 %v6003, %v6037
    %v6070 = vadd.f32 %v6004, %v6038
    %v6071 = vadd.f32 %v6005, %v6039
    %v6072 = vadd.f32 %v6006, %v6040
    %v6073 = vadd.f32 %v6007, %v6041
    %v6074 = vadd.f32 %v6008, %v6042
    %v6075 = vadd.f32 %v6009, %v6043
    %v6076 = vadd.f32 %v6010, %v6044
    %v6077 = vadd.f32 %v6011, %v6045
    %v6078 = vadd.f32 %v6012, %v6046
    %v6079 = vadd.f32 %v6013, %v6047
    %v6080 = vadd.f32 %v6014, %v6048
    %v6081 = vadd.f32 %v6015, %v6049
    %v6082 = vadd.f32 %v6016, %v6050
    %v6083 = vadd.f32 %v6017, %v6051
    %v6084 = vadd.f32 %v6018, %v6052
    %v6085 = vadd.f32 %v6019, %v6053
    %v6086 = vadd.f32 %v6020, %v6054
    %v6087 = vadd.f32 %v6021, %v6055
    %v6088 = vadd.f32 %v6022, %v6056
    %v6089 = vadd.f32 %v6023, %v6057
    %v6090 = vadd.f32 %v6024, %v6058
    %v6091 = vadd.f32 %v6025, %v6059
    %v6092 = vadd.f32 %v6026, %v6060
    %v6093 = vadd.f32 %v6027, %v6061
    %v6094 = vadd.f32 %v6028, %v6062
    %s6095 = sld [smem:[#allocation5 + $0x14]]
    %v6096 = vstv %s6095
    %v6097 = vadd.f32 %v6063, %v6096
    %v6098 = vadd.f32 %v6064, %v6096
    %v6099 = vadd.f32 %v6065, %v6096
    %v6100 = vadd.f32 %v6066, %v6096
    %v6101 = vadd.f32 %v6067, %v6096
    %v6102 = vadd.f32 %v6068, %v6096
    %v6103 = vadd.f32 %v6069, %v6096
    %v6104 = vadd.f32 %v6070, %v6096
    %v6105 = vadd.f32 %v6071, %v6096
    %v6106 = vadd.f32 %v6072, %v6096
    %v6107 = vadd.f32 %v6073, %v6096
    %v6108 = vadd.f32 %v6074, %v6096
    %v6109 = vadd.f32 %v6075, %v6096
    %v6110 = vadd.f32 %v6076, %v6096
    %v6111 = vadd.f32 %v6077, %v6096
    %v6112 = vadd.f32 %v6078, %v6096
    %v6113 = vadd.f32 %v6079, %v6096
    %v6114 = vadd.f32 %v6080, %v6096
    %v6115 = vadd.f32 %v6081, %v6096
    %v6116 = vadd.f32 %v6082, %v6096
    %v6117 = vadd.f32 %v6083, %v6096
    %v6118 = vadd.f32 %v6084, %v6096
    %v6119 = vadd.f32 %v6085, %v6096
    %v6120 = vadd.f32 %v6086, %v6096
    %v6121 = vadd.f32 %v6087, %v6096
    %v6122 = vadd.f32 %v6088, %v6096
    %v6123 = vadd.f32 %v6089, %v6096
    %v6124 = vadd.f32 %v6090, %v6096
    %v6125 = vadd.f32 %v6091, %v6096
    %v6126 = vadd.f32 %v6092, %v6096
    %v6127 = vadd.f32 %v6093, %v6096
    %v6128 = vadd.f32 %v6094, %v6096
    %s6129 = sld [smem:[#allocation7 + $0x14]]
    %v6130 = vtanh.pop %v6097
    %v6131 = vtanh.pop %v6098
    %v6132 = vtanh.pop %v6099
    %v6133 = vtanh.pop %v6100
    %v6134 = vtanh.pop %v6101
    %v6135 = vtanh.pop %v6102
    %v6136 = vtanh.pop %v6103
    %v6137 = vtanh.pop %v6104
    %v6138 = vtanh.pop %v6105
    %v6139 = vtanh.pop %v6106
    %v6140 = vtanh.pop %v6107
    %v6141 = vtanh.pop %v6108
    %v6142 = vtanh.pop %v6109
    %v6143 = vtanh.pop %v6110
    %v6144 = vtanh.pop %v6111
    %v6145 = vtanh.pop %v6112
    %v6146 = vtanh.pop %v6113
    %v6147 = vtanh.pop %v6114
    %v6148 = vtanh.pop %v6115
    %v6149 = vtanh.pop %v6116
    %v6150 = vtanh.pop %v6117
    %v6151 = vtanh.pop %v6118
    %v6152 = vtanh.pop %v6119
    %v6153 = vtanh.pop %v6120
    %v6154 = vtanh.pop %v6121
    %v6155 = vtanh.pop %v6122
    %v6156 = vtanh.pop %v6123
    %v6157 = vtanh.pop %v6124
    %v6158 = vtanh.pop %v6125
    %v6159 = vtanh.pop %v6126
    %v6160 = vtanh.pop %v6127
    %v6161 = vtanh.pop %v6128
    %v6162 = vadd.f32 %v6130, %v6132
    %v6163 = vadd.f32 %v6162, %v6134
    %v6164 = vadd.f32 %v6163, %v6136
    %v6165 = vadd.f32 %v6164, %v6138
    %v6166 = vadd.f32 %v6165, %v6140
    %v6167 = vadd.f32 %v6166, %v6142
    %v6168 = vadd.f32 %v6167, %v6144
    %v6169 = vadd.f32 %v6168, %v6146
    %v6170 = vadd.f32 %v6169, %v6148
    %v6171 = vadd.f32 %v6170, %v6150
    %v6172 = vadd.f32 %v6171, %v6152
    %v6173 = vadd.f32 %v6172, %v6154
    %v6174 = vadd.f32 %v6173, %v6156
    %v6175 = vadd.f32 %v6174, %v6158
    %v6176 = vadd.f32 %v6175, %v6160
    %v6177 = vadd.f32 %v6131, %v6133
    %v6178 = vadd.f32 %v6177, %v6135
    %v6179 = vadd.f32 %v6178, %v6137
    %v6180 = vadd.f32 %v6179, %v6139
    %v6181 = vadd.f32 %v6180, %v6141
    %v6182 = vadd.f32 %v6181, %v6143
    %v6183 = vadd.f32 %v6182, %v6145
    %v6184 = vadd.f32 %v6183, %v6147
    %v6185 = vadd.f32 %v6184, %v6149
    %v6186 = vadd.f32 %v6185, %v6151
    %v6187 = vadd.f32 %v6186, %v6153
    %v6188 = vadd.f32 %v6187, %v6155
    %v6189 = vadd.f32 %v6188, %v6157
    %v6190 = vadd.f32 %v6189, %v6159
    %v6191 = vadd.f32 %v6190, %v6161
    %v6192 = vstv %s6129
    %v6193 = vmul.f32 %v6192, %v6176
    %v6194 = vmul.f32 %v6192, %v6191
    %v6195 = vadd.f32 %v5927, %v6193
    %v6196 = vadd.f32 %v5928, %v6194
    %s6197 = sld [smem:[#allocation3 + $0x3f]]
    %v6198 = vstv %s6197
    %v6199 = vmul.f32 %v6198, %v475
    %v6200 = vmul.f32 %v6198, %v476
    %v6201 = vmul.f32 %v6198, %v477
    %v6202 = vmul.f32 %v6198, %v478
    %v6203 = vmul.f32 %v6198, %v479
    %v6204 = vmul.f32 %v6198, %v480
    %v6205 = vmul.f32 %v6198, %v481
    %v6206 = vmul.f32 %v6198, %v482
    %v6207 = vmul.f32 %v6198, %v483
    %v6208 = vmul.f32 %v6198, %v484
    %v6209 = vmul.f32 %v6198, %v485
    %v6210 = vmul.f32 %v6198, %v486
    %v6211 = vmul.f32 %v6198, %v487
    %v6212 = vmul.f32 %v6198, %v488
    %v6213 = vmul.f32 %v6198, %v489
    %v6214 = vmul.f32 %v6198, %v490
    %v6215 = vmul.f32 %v6198, %v491
    %v6216 = vmul.f32 %v6198, %v492
    %v6217 = vmul.f32 %v6198, %v493
    %v6218 = vmul.f32 %v6198, %v494
    %v6219 = vmul.f32 %v6198, %v495
    %v6220 = vmul.f32 %v6198, %v496
    %v6221 = vmul.f32 %v6198, %v497
    %v6222 = vmul.f32 %v6198, %v498
    %v6223 = vmul.f32 %v6198, %v499
    %v6224 = vmul.f32 %v6198, %v500
    %v6225 = vmul.f32 %v6198, %v501
    %v6226 = vmul.f32 %v6198, %v502
    %v6227 = vmul.f32 %v6198, %v503
    %v6228 = vmul.f32 %v6198, %v504
    %v6229 = vmul.f32 %v6198, %v505
    %v6230 = vmul.f32 %v6198, %v506
    %s6231 = sld [smem:[#allocation3 + $0x40]]
    %v6232 = vstv %s6231
    %v6233 = vmul.f32 %v6232, %v507
    %v6234 = vmul.f32 %v6232, %v508
    %v6235 = vmul.f32 %v6232, %v509
    %v6236 = vmul.f32 %v6232, %v510
    %v6237 = vmul.f32 %v6232, %v511
    %v6238 = vmul.f32 %v6232, %v512
    %v6239 = vmul.f32 %v6232, %v513
    %v6240 = vmul.f32 %v6232, %v514
    %v6241 = vmul.f32 %v6232, %v515
    %v6242 = vmul.f32 %v6232, %v516
    %v6243 = vmul.f32 %v6232, %v517
    %v6244 = vmul.f32 %v6232, %v518
    %v6245 = vmul.f32 %v6232, %v519
    %v6246 = vmul.f32 %v6232, %v520
    %v6247 = vmul.f32 %v6232, %v521
    %v6248 = vmul.f32 %v6232, %v522
    %v6249 = vmul.f32 %v6232, %v523
    %v6250 = vmul.f32 %v6232, %v524
    %v6251 = vmul.f32 %v6232, %v525
    %v6252 = vmul.f32 %v6232, %v526
    %v6253 = vmul.f32 %v6232, %v527
    %v6254 = vmul.f32 %v6232, %v528
    %v6255 = vmul.f32 %v6232, %v529
    %v6256 = vmul.f32 %v6232, %v530
    %v6257 = vmul.f32 %v6232, %v531
    %v6258 = vmul.f32 %v6232, %v532
    %v6259 = vmul.f32 %v6232, %v533
    %v6260 = vmul.f32 %v6232, %v534
    %v6261 = vmul.f32 %v6232, %v535
    %v6262 = vmul.f32 %v6232, %v536
    %v6263 = vmul.f32 %v6232, %v537
    %v6264 = vmul.f32 %v6232, %v538
    %v6265 = vadd.f32 %v6199, %v6233
    %v6266 = vadd.f32 %v6200, %v6234
    %v6267 = vadd.f32 %v6201, %v6235
    %v6268 = vadd.f32 %v6202, %v6236
    %v6269 = vadd.f32 %v6203, %v6237
    %v6270 = vadd.f32 %v6204, %v6238
    %v6271 = vadd.f32 %v6205, %v6239
    %v6272 = vadd.f32 %v6206, %v6240
    %v6273 = vadd.f32 %v6207, %v6241
    %v6274 = vadd.f32 %v6208, %v6242
    %v6275 = vadd.f32 %v6209, %v6243
    %v6276 = vadd.f32 %v6210, %v6244
    %v6277 = vadd.f32 %v6211, %v6245
    %v6278 = vadd.f32 %v6212, %v6246
    %v6279 = vadd.f32 %v6213, %v6247
    %v6280 = vadd.f32 %v6214, %v6248
    %v6281 = vadd.f32 %v6215, %v6249
    %v6282 = vadd.f32 %v6216, %v6250
    %v6283 = vadd.f32 %v6217, %v6251
    %v6284 = vadd.f32 %v6218, %v6252
    %v6285 = vadd.f32 %v6219, %v6253
    %v6286 = vadd.f32 %v6220, %v6254
    %v6287 = vadd.f32 %v6221, %v6255
    %v6288 = vadd.f32 %v6222, %v6256
    %v6289 = vadd.f32 %v6223, %v6257
    %v6290 = vadd.f32 %v6224, %v6258
    %v6291 = vadd.f32 %v6225, %v6259
    %v6292 = vadd.f32 %v6226, %v6260
    %v6293 = vadd.f32 %v6227, %v6261
    %v6294 = vadd.f32 %v6228, %v6262
    %v6295 = vadd.f32 %v6229, %v6263
    %v6296 = vadd.f32 %v6230, %v6264
    %s6297 = sld [smem:[#allocation3 + $0x41]]
    %v6298 = vstv %s6297
    %v6299 = vmul.f32 %v6298, %v539
    %v6300 = vmul.f32 %v6298, %v540
    %v6301 = vmul.f32 %v6298, %v541
    %v6302 = vmul.f32 %v6298, %v542
    %v6303 = vmul.f32 %v6298, %v543
    %v6304 = vmul.f32 %v6298, %v544
    %v6305 = vmul.f32 %v6298, %v545
    %v6306 = vmul.f32 %v6298, %v546
    %v6307 = vmul.f32 %v6298, %v547
    %v6308 = vmul.f32 %v6298, %v548
    %v6309 = vmul.f32 %v6298, %v549
    %v6310 = vmul.f32 %v6298, %v550
    %v6311 = vmul.f32 %v6298, %v551
    %v6312 = vmul.f32 %v6298, %v552
    %v6313 = vmul.f32 %v6298, %v553
    %v6314 = vmul.f32 %v6298, %v554
    %v6315 = vmul.f32 %v6298, %v555
    %v6316 = vmul.f32 %v6298, %v556
    %v6317 = vmul.f32 %v6298, %v557
    %v6318 = vmul.f32 %v6298, %v558
    %v6319 = vmul.f32 %v6298, %v559
    %v6320 = vmul.f32 %v6298, %v560
    %v6321 = vmul.f32 %v6298, %v561
    %v6322 = vmul.f32 %v6298, %v562
    %v6323 = vmul.f32 %v6298, %v563
    %v6324 = vmul.f32 %v6298, %v564
    %v6325 = vmul.f32 %v6298, %v565
    %v6326 = vmul.f32 %v6298, %v566
    %v6327 = vmul.f32 %v6298, %v567
    %v6328 = vmul.f32 %v6298, %v568
    %v6329 = vmul.f32 %v6298, %v569
    %v6330 = vmul.f32 %v6298, %v570
    %v6331 = vadd.f32 %v6265, %v6299
    %v6332 = vadd.f32 %v6266, %v6300
    %v6333 = vadd.f32 %v6267, %v6301
    %v6334 = vadd.f32 %v6268, %v6302
    %v6335 = vadd.f32 %v6269, %v6303
    %v6336 = vadd.f32 %v6270, %v6304
    %v6337 = vadd.f32 %v6271, %v6305
    %v6338 = vadd.f32 %v6272, %v6306
    %v6339 = vadd.f32 %v6273, %v6307
    %v6340 = vadd.f32 %v6274, %v6308
    %v6341 = vadd.f32 %v6275, %v6309
    %v6342 = vadd.f32 %v6276, %v6310
    %v6343 = vadd.f32 %v6277, %v6311
    %v6344 = vadd.f32 %v6278, %v6312
    %v6345 = vadd.f32 %v6279, %v6313
    %v6346 = vadd.f32 %v6280, %v6314
    %v6347 = vadd.f32 %v6281, %v6315
    %v6348 = vadd.f32 %v6282, %v6316
    %v6349 = vadd.f32 %v6283, %v6317
    %v6350 = vadd.f32 %v6284, %v6318
    %v6351 = vadd.f32 %v6285, %v6319
    %v6352 = vadd.f32 %v6286, %v6320
    %v6353 = vadd.f32 %v6287, %v6321
    %v6354 = vadd.f32 %v6288, %v6322
    %v6355 = vadd.f32 %v6289, %v6323
    %v6356 = vadd.f32 %v6290, %v6324
    %v6357 = vadd.f32 %v6291, %v6325
    %v6358 = vadd.f32 %v6292, %v6326
    %v6359 = vadd.f32 %v6293, %v6327
    %v6360 = vadd.f32 %v6294, %v6328
    %v6361 = vadd.f32 %v6295, %v6329
    %v6362 = vadd.f32 %v6296, %v6330
    %s6363 = sld [smem:[#allocation5 + $0x15]]
    %v6364 = vstv %s6363
    %v6365 = vadd.f32 %v6331, %v6364
    %v6366 = vadd.f32 %v6332, %v6364
    %v6367 = vadd.f32 %v6333, %v6364
    %v6368 = vadd.f32 %v6334, %v6364
    %v6369 = vadd.f32 %v6335, %v6364
    %v6370 = vadd.f32 %v6336, %v6364
    %v6371 = vadd.f32 %v6337, %v6364
    %v6372 = vadd.f32 %v6338, %v6364
    %v6373 = vadd.f32 %v6339, %v6364
    %v6374 = vadd.f32 %v6340, %v6364
    %v6375 = vadd.f32 %v6341, %v6364
    %v6376 = vadd.f32 %v6342, %v6364
    %v6377 = vadd.f32 %v6343, %v6364
    %v6378 = vadd.f32 %v6344, %v6364
    %v6379 = vadd.f32 %v6345, %v6364
    %v6380 = vadd.f32 %v6346, %v6364
    %v6381 = vadd.f32 %v6347, %v6364
    %v6382 = vadd.f32 %v6348, %v6364
    %v6383 = vadd.f32 %v6349, %v6364
    %v6384 = vadd.f32 %v6350, %v6364
    %v6385 = vadd.f32 %v6351, %v6364
    %v6386 = vadd.f32 %v6352, %v6364
    %v6387 = vadd.f32 %v6353, %v6364
    %v6388 = vadd.f32 %v6354, %v6364
    %v6389 = vadd.f32 %v6355, %v6364
    %v6390 = vadd.f32 %v6356, %v6364
    %v6391 = vadd.f32 %v6357, %v6364
    %v6392 = vadd.f32 %v6358, %v6364
    %v6393 = vadd.f32 %v6359, %v6364
    %v6394 = vadd.f32 %v6360, %v6364
    %v6395 = vadd.f32 %v6361, %v6364
    %v6396 = vadd.f32 %v6362, %v6364
    %s6397 = sld [smem:[#allocation7 + $0x15]]
    %v6398 = vtanh.pop %v6365
    %v6399 = vtanh.pop %v6366
    %v6400 = vtanh.pop %v6367
    %v6401 = vtanh.pop %v6368
    %v6402 = vtanh.pop %v6369
    %v6403 = vtanh.pop %v6370
    %v6404 = vtanh.pop %v6371
    %v6405 = vtanh.pop %v6372
    %v6406 = vtanh.pop %v6373
    %v6407 = vtanh.pop %v6374
    %v6408 = vtanh.pop %v6375
    %v6409 = vtanh.pop %v6376
    %v6410 = vtanh.pop %v6377
    %v6411 = vtanh.pop %v6378
    %v6412 = vtanh.pop %v6379
    %v6413 = vtanh.pop %v6380
    %v6414 = vtanh.pop %v6381
    %v6415 = vtanh.pop %v6382
    %v6416 = vtanh.pop %v6383
    %v6417 = vtanh.pop %v6384
    %v6418 = vtanh.pop %v6385
    %v6419 = vtanh.pop %v6386
    %v6420 = vtanh.pop %v6387
    %v6421 = vtanh.pop %v6388
    %v6422 = vtanh.pop %v6389
    %v6423 = vtanh.pop %v6390
    %v6424 = vtanh.pop %v6391
    %v6425 = vtanh.pop %v6392
    %v6426 = vtanh.pop %v6393
    %v6427 = vtanh.pop %v6394
    %v6428 = vtanh.pop %v6395
    %v6429 = vtanh.pop %v6396
    %v6430 = vadd.f32 %v6398, %v6400
    %v6431 = vadd.f32 %v6430, %v6402
    %v6432 = vadd.f32 %v6431, %v6404
    %v6433 = vadd.f32 %v6432, %v6406
    %v6434 = vadd.f32 %v6433, %v6408
    %v6435 = vadd.f32 %v6434, %v6410
    %v6436 = vadd.f32 %v6435, %v6412
    %v6437 = vadd.f32 %v6436, %v6414
    %v6438 = vadd.f32 %v6437, %v6416
    %v6439 = vadd.f32 %v6438, %v6418
    %v6440 = vadd.f32 %v6439, %v6420
    %v6441 = vadd.f32 %v6440, %v6422
    %v6442 = vadd.f32 %v6441, %v6424
    %v6443 = vadd.f32 %v6442, %v6426
    %v6444 = vadd.f32 %v6443, %v6428
    %v6445 = vadd.f32 %v6399, %v6401
    %v6446 = vadd.f32 %v6445, %v6403
    %v6447 = vadd.f32 %v6446, %v6405
    %v6448 = vadd.f32 %v6447, %v6407
    %v6449 = vadd.f32 %v6448, %v6409
    %v6450 = vadd.f32 %v6449, %v6411
    %v6451 = vadd.f32 %v6450, %v6413
    %v6452 = vadd.f32 %v6451, %v6415
    %v6453 = vadd.f32 %v6452, %v6417
    %v6454 = vadd.f32 %v6453, %v6419
    %v6455 = vadd.f32 %v6454, %v6421
    %v6456 = vadd.f32 %v6455, %v6423
    %v6457 = vadd.f32 %v6456, %v6425
    %v6458 = vadd.f32 %v6457, %v6427
    %v6459 = vadd.f32 %v6458, %v6429
    %v6460 = vstv %s6397
    %v6461 = vmul.f32 %v6460, %v6444
    %v6462 = vmul.f32 %v6460, %v6459
    %v6463 = vadd.f32 %v6195, %v6461
    %v6464 = vadd.f32 %v6196, %v6462
    %s6465 = sld [smem:[#allocation3 + $0x42]]
    %v6466 = vstv %s6465
    %v6467 = vmul.f32 %v6466, %v475
    %v6468 = vmul.f32 %v6466, %v476
    %v6469 = vmul.f32 %v6466, %v477
    %v6470 = vmul.f32 %v6466, %v478
    %v6471 = vmul.f32 %v6466, %v479
    %v6472 = vmul.f32 %v6466, %v480
    %v6473 = vmul.f32 %v6466, %v481
    %v6474 = vmul.f32 %v6466, %v482
    %v6475 = vmul.f32 %v6466, %v483
    %v6476 = vmul.f32 %v6466, %v484
    %v6477 = vmul.f32 %v6466, %v485
    %v6478 = vmul.f32 %v6466, %v486
    %v6479 = vmul.f32 %v6466, %v487
    %v6480 = vmul.f32 %v6466, %v488
    %v6481 = vmul.f32 %v6466, %v489
    %v6482 = vmul.f32 %v6466, %v490
    %v6483 = vmul.f32 %v6466, %v491
    %v6484 = vmul.f32 %v6466, %v492
    %v6485 = vmul.f32 %v6466, %v493
    %v6486 = vmul.f32 %v6466, %v494
    %v6487 = vmul.f32 %v6466, %v495
    %v6488 = vmul.f32 %v6466, %v496
    %v6489 = vmul.f32 %v6466, %v497
    %v6490 = vmul.f32 %v6466, %v498
    %v6491 = vmul.f32 %v6466, %v499
    %v6492 = vmul.f32 %v6466, %v500
    %v6493 = vmul.f32 %v6466, %v501
    %v6494 = vmul.f32 %v6466, %v502
    %v6495 = vmul.f32 %v6466, %v503
    %v6496 = vmul.f32 %v6466, %v504
    %v6497 = vmul.f32 %v6466, %v505
    %v6498 = vmul.f32 %v6466, %v506
    %s6499 = sld [smem:[#allocation3 + $0x43]]
    %v6500 = vstv %s6499
    %v6501 = vmul.f32 %v6500, %v507
    %v6502 = vmul.f32 %v6500, %v508
    %v6503 = vmul.f32 %v6500, %v509
    %v6504 = vmul.f32 %v6500, %v510
    %v6505 = vmul.f32 %v6500, %v511
    %v6506 = vmul.f32 %v6500, %v512
    %v6507 = vmul.f32 %v6500, %v513
    %v6508 = vmul.f32 %v6500, %v514
    %v6509 = vmul.f32 %v6500, %v515
    %v6510 = vmul.f32 %v6500, %v516
    %v6511 = vmul.f32 %v6500, %v517
    %v6512 = vmul.f32 %v6500, %v518
    %v6513 = vmul.f32 %v6500, %v519
    %v6514 = vmul.f32 %v6500, %v520
    %v6515 = vmul.f32 %v6500, %v521
    %v6516 = vmul.f32 %v6500, %v522
    %v6517 = vmul.f32 %v6500, %v523
    %v6518 = vmul.f32 %v6500, %v524
    %v6519 = vmul.f32 %v6500, %v525
    %v6520 = vmul.f32 %v6500, %v526
    %v6521 = vmul.f32 %v6500, %v527
    %v6522 = vmul.f32 %v6500, %v528
    %v6523 = vmul.f32 %v6500, %v529
    %v6524 = vmul.f32 %v6500, %v530
    %v6525 = vmul.f32 %v6500, %v531
    %v6526 = vmul.f32 %v6500, %v532
    %v6527 = vmul.f32 %v6500, %v533
    %v6528 = vmul.f32 %v6500, %v534
    %v6529 = vmul.f32 %v6500, %v535
    %v6530 = vmul.f32 %v6500, %v536
    %v6531 = vmul.f32 %v6500, %v537
    %v6532 = vmul.f32 %v6500, %v538
    %v6533 = vadd.f32 %v6467, %v6501
    %v6534 = vadd.f32 %v6468, %v6502
    %v6535 = vadd.f32 %v6469, %v6503
    %v6536 = vadd.f32 %v6470, %v6504
    %v6537 = vadd.f32 %v6471, %v6505
    %v6538 = vadd.f32 %v6472, %v6506
    %v6539 = vadd.f32 %v6473, %v6507
    %v6540 = vadd.f32 %v6474, %v6508
    %v6541 = vadd.f32 %v6475, %v6509
    %v6542 = vadd.f32 %v6476, %v6510
    %v6543 = vadd.f32 %v6477, %v6511
    %v6544 = vadd.f32 %v6478, %v6512
    %v6545 = vadd.f32 %v6479, %v6513
    %v6546 = vadd.f32 %v6480, %v6514
    %v6547 = vadd.f32 %v6481, %v6515
    %v6548 = vadd.f32 %v6482, %v6516
    %v6549 = vadd.f32 %v6483, %v6517
    %v6550 = vadd.f32 %v6484, %v6518
    %v6551 = vadd.f32 %v6485, %v6519
    %v6552 = vadd.f32 %v6486, %v6520
    %v6553 = vadd.f32 %v6487, %v6521
    %v6554 = vadd.f32 %v6488, %v6522
    %v6555 = vadd.f32 %v6489, %v6523
    %v6556 = vadd.f32 %v6490, %v6524
    %v6557 = vadd.f32 %v6491, %v6525
    %v6558 = vadd.f32 %v6492, %v6526
    %v6559 = vadd.f32 %v6493, %v6527
    %v6560 = vadd.f32 %v6494, %v6528
    %v6561 = vadd.f32 %v6495, %v6529
    %v6562 = vadd.f32 %v6496, %v6530
    %v6563 = vadd.f32 %v6497, %v6531
    %v6564 = vadd.f32 %v6498, %v6532
    %s6565 = sld [smem:[#allocation3 + $0x44]]
    %v6566 = vstv %s6565
    %v6567 = vmul.f32 %v6566, %v539
    %v6568 = vmul.f32 %v6566, %v540
    %v6569 = vmul.f32 %v6566, %v541
    %v6570 = vmul.f32 %v6566, %v542
    %v6571 = vmul.f32 %v6566, %v543
    %v6572 = vmul.f32 %v6566, %v544
    %v6573 = vmul.f32 %v6566, %v545
    %v6574 = vmul.f32 %v6566, %v546
    %v6575 = vmul.f32 %v6566, %v547
    %v6576 = vmul.f32 %v6566, %v548
    %v6577 = vmul.f32 %v6566, %v549
    %v6578 = vmul.f32 %v6566, %v550
    %v6579 = vmul.f32 %v6566, %v551
    %v6580 = vmul.f32 %v6566, %v552
    %v6581 = vmul.f32 %v6566, %v553
    %v6582 = vmul.f32 %v6566, %v554
    %v6583 = vmul.f32 %v6566, %v555
    %v6584 = vmul.f32 %v6566, %v556
    %v6585 = vmul.f32 %v6566, %v557
    %v6586 = vmul.f32 %v6566, %v558
    %v6587 = vmul.f32 %v6566, %v559
    %v6588 = vmul.f32 %v6566, %v560
    %v6589 = vmul.f32 %v6566, %v561
    %v6590 = vmul.f32 %v6566, %v562
    %v6591 = vmul.f32 %v6566, %v563
    %v6592 = vmul.f32 %v6566, %v564
    %v6593 = vmul.f32 %v6566, %v565
    %v6594 = vmul.f32 %v6566, %v566
    %v6595 = vmul.f32 %v6566, %v567
    %v6596 = vmul.f32 %v6566, %v568
    %v6597 = vmul.f32 %v6566, %v569
    %v6598 = vmul.f32 %v6566, %v570
    %v6599 = vadd.f32 %v6533, %v6567
    %v6600 = vadd.f32 %v6534, %v6568
    %v6601 = vadd.f32 %v6535, %v6569
    %v6602 = vadd.f32 %v6536, %v6570
    %v6603 = vadd.f32 %v6537, %v6571
    %v6604 = vadd.f32 %v6538, %v6572
    %v6605 = vadd.f32 %v6539, %v6573
    %v6606 = vadd.f32 %v6540, %v6574
    %v6607 = vadd.f32 %v6541, %v6575
    %v6608 = vadd.f32 %v6542, %v6576
    %v6609 = vadd.f32 %v6543, %v6577
    %v6610 = vadd.f32 %v6544, %v6578
    %v6611 = vadd.f32 %v6545, %v6579
    %v6612 = vadd.f32 %v6546, %v6580
    %v6613 = vadd.f32 %v6547, %v6581
    %v6614 = vadd.f32 %v6548, %v6582
    %v6615 = vadd.f32 %v6549, %v6583
    %v6616 = vadd.f32 %v6550, %v6584
    %v6617 = vadd.f32 %v6551, %v6585
    %v6618 = vadd.f32 %v6552, %v6586
    %v6619 = vadd.f32 %v6553, %v6587
    %v6620 = vadd.f32 %v6554, %v6588
    %v6621 = vadd.f32 %v6555, %v6589
    %v6622 = vadd.f32 %v6556, %v6590
    %v6623 = vadd.f32 %v6557, %v6591
    %v6624 = vadd.f32 %v6558, %v6592
    %v6625 = vadd.f32 %v6559, %v6593
    %v6626 = vadd.f32 %v6560, %v6594
    %v6627 = vadd.f32 %v6561, %v6595
    %v6628 = vadd.f32 %v6562, %v6596
    %v6629 = vadd.f32 %v6563, %v6597
    %v6630 = vadd.f32 %v6564, %v6598
    %s6631 = sld [smem:[#allocation5 + $0x16]]
    %v6632 = vstv %s6631
    %v6633 = vadd.f32 %v6599, %v6632
    %v6634 = vadd.f32 %v6600, %v6632
    %v6635 = vadd.f32 %v6601, %v6632
    %v6636 = vadd.f32 %v6602, %v6632
    %v6637 = vadd.f32 %v6603, %v6632
    %v6638 = vadd.f32 %v6604, %v6632
    %v6639 = vadd.f32 %v6605, %v6632
    %v6640 = vadd.f32 %v6606, %v6632
    %v6641 = vadd.f32 %v6607, %v6632
    %v6642 = vadd.f32 %v6608, %v6632
    %v6643 = vadd.f32 %v6609, %v6632
    %v6644 = vadd.f32 %v6610, %v6632
    %v6645 = vadd.f32 %v6611, %v6632
    %v6646 = vadd.f32 %v6612, %v6632
    %v6647 = vadd.f32 %v6613, %v6632
    %v6648 = vadd.f32 %v6614, %v6632
    %v6649 = vadd.f32 %v6615, %v6632
    %v6650 = vadd.f32 %v6616, %v6632
    %v6651 = vadd.f32 %v6617, %v6632
    %v6652 = vadd.f32 %v6618, %v6632
    %v6653 = vadd.f32 %v6619, %v6632
    %v6654 = vadd.f32 %v6620, %v6632
    %v6655 = vadd.f32 %v6621, %v6632
    %v6656 = vadd.f32 %v6622, %v6632
    %v6657 = vadd.f32 %v6623, %v6632
    %v6658 = vadd.f32 %v6624, %v6632
    %v6659 = vadd.f32 %v6625, %v6632
    %v6660 = vadd.f32 %v6626, %v6632
    %v6661 = vadd.f32 %v6627, %v6632
    %v6662 = vadd.f32 %v6628, %v6632
    %v6663 = vadd.f32 %v6629, %v6632
    %v6664 = vadd.f32 %v6630, %v6632
    %s6665 = sld [smem:[#allocation7 + $0x16]]
    %v6666 = vtanh.pop %v6633
    %v6667 = vtanh.pop %v6634
    %v6668 = vtanh.pop %v6635
    %v6669 = vtanh.pop %v6636
    %v6670 = vtanh.pop %v6637
    %v6671 = vtanh.pop %v6638
    %v6672 = vtanh.pop %v6639
    %v6673 = vtanh.pop %v6640
    %v6674 = vtanh.pop %v6641
    %v6675 = vtanh.pop %v6642
    %v6676 = vtanh.pop %v6643
    %v6677 = vtanh.pop %v6644
    %v6678 = vtanh.pop %v6645
    %v6679 = vtanh.pop %v6646
    %v6680 = vtanh.pop %v6647
    %v6681 = vtanh.pop %v6648
    %v6682 = vtanh.pop %v6649
    %v6683 = vtanh.pop %v6650
    %v6684 = vtanh.pop %v6651
    %v6685 = vtanh.pop %v6652
    %v6686 = vtanh.pop %v6653
    %v6687 = vtanh.pop %v6654
    %v6688 = vtanh.pop %v6655
    %v6689 = vtanh.pop %v6656
    %v6690 = vtanh.pop %v6657
    %v6691 = vtanh.pop %v6658
    %v6692 = vtanh.pop %v6659
    %v6693 = vtanh.pop %v6660
    %v6694 = vtanh.pop %v6661
    %v6695 = vtanh.pop %v6662
    %v6696 = vtanh.pop %v6663
    %v6697 = vtanh.pop %v6664
    %v6698 = vadd.f32 %v6666, %v6668
    %v6699 = vadd.f32 %v6698, %v6670
    %v6700 = vadd.f32 %v6699, %v6672
    %v6701 = vadd.f32 %v6700, %v6674
    %v6702 = vadd.f32 %v6701, %v6676
    %v6703 = vadd.f32 %v6702, %v6678
    %v6704 = vadd.f32 %v6703, %v6680
    %v6705 = vadd.f32 %v6704, %v6682
    %v6706 = vadd.f32 %v6705, %v6684
    %v6707 = vadd.f32 %v6706, %v6686
    %v6708 = vadd.f32 %v6707, %v6688
    %v6709 = vadd.f32 %v6708, %v6690
    %v6710 = vadd.f32 %v6709, %v6692
    %v6711 = vadd.f32 %v6710, %v6694
    %v6712 = vadd.f32 %v6711, %v6696
    %v6713 = vadd.f32 %v6667, %v6669
    %v6714 = vadd.f32 %v6713, %v6671
    %v6715 = vadd.f32 %v6714, %v6673
    %v6716 = vadd.f32 %v6715, %v6675
    %v6717 = vadd.f32 %v6716, %v6677
    %v6718 = vadd.f32 %v6717, %v6679
    %v6719 = vadd.f32 %v6718, %v6681
    %v6720 = vadd.f32 %v6719, %v6683
    %v6721 = vadd.f32 %v6720, %v6685
    %v6722 = vadd.f32 %v6721, %v6687
    %v6723 = vadd.f32 %v6722, %v6689
    %v6724 = vadd.f32 %v6723, %v6691
    %v6725 = vadd.f32 %v6724, %v6693
    %v6726 = vadd.f32 %v6725, %v6695
    %v6727 = vadd.f32 %v6726, %v6697
    %v6728 = vstv %s6665
    %v6729 = vmul.f32 %v6728, %v6712
    %v6730 = vmul.f32 %v6728, %v6727
    %v6731 = vadd.f32 %v6463, %v6729
    %v6732 = vadd.f32 %v6464, %v6730
    %s6733 = sld [smem:[#allocation3 + $0x45]]
    %v6734 = vstv %s6733
    %v6735 = vmul.f32 %v6734, %v475
    %v6736 = vmul.f32 %v6734, %v476
    %v6737 = vmul.f32 %v6734, %v477
    %v6738 = vmul.f32 %v6734, %v478
    %v6739 = vmul.f32 %v6734, %v479
    %v6740 = vmul.f32 %v6734, %v480
    %v6741 = vmul.f32 %v6734, %v481
    %v6742 = vmul.f32 %v6734, %v482
    %v6743 = vmul.f32 %v6734, %v483
    %v6744 = vmul.f32 %v6734, %v484
    %v6745 = vmul.f32 %v6734, %v485
    %v6746 = vmul.f32 %v6734, %v486
    %v6747 = vmul.f32 %v6734, %v487
    %v6748 = vmul.f32 %v6734, %v488
    %v6749 = vmul.f32 %v6734, %v489
    %v6750 = vmul.f32 %v6734, %v490
    %v6751 = vmul.f32 %v6734, %v491
    %v6752 = vmul.f32 %v6734, %v492
    %v6753 = vmul.f32 %v6734, %v493
    %v6754 = vmul.f32 %v6734, %v494
    %v6755 = vmul.f32 %v6734, %v495
    %v6756 = vmul.f32 %v6734, %v496
    %v6757 = vmul.f32 %v6734, %v497
    %v6758 = vmul.f32 %v6734, %v498
    %v6759 = vmul.f32 %v6734, %v499
    %v6760 = vmul.f32 %v6734, %v500
    %v6761 = vmul.f32 %v6734, %v501
    %v6762 = vmul.f32 %v6734, %v502
    %v6763 = vmul.f32 %v6734, %v503
    %v6764 = vmul.f32 %v6734, %v504
    %v6765 = vmul.f32 %v6734, %v505
    %v6766 = vmul.f32 %v6734, %v506
    %s6767 = sld [smem:[#allocation3 + $0x46]]
    %v6768 = vstv %s6767
    %v6769 = vmul.f32 %v6768, %v507
    %v6770 = vmul.f32 %v6768, %v508
    %v6771 = vmul.f32 %v6768, %v509
    %v6772 = vmul.f32 %v6768, %v510
    %v6773 = vmul.f32 %v6768, %v511
    %v6774 = vmul.f32 %v6768, %v512
    %v6775 = vmul.f32 %v6768, %v513
    %v6776 = vmul.f32 %v6768, %v514
    %v6777 = vmul.f32 %v6768, %v515
    %v6778 = vmul.f32 %v6768, %v516
    %v6779 = vmul.f32 %v6768, %v517
    %v6780 = vmul.f32 %v6768, %v518
    %v6781 = vmul.f32 %v6768, %v519
    %v6782 = vmul.f32 %v6768, %v520
    %v6783 = vmul.f32 %v6768, %v521
    %v6784 = vmul.f32 %v6768, %v522
    %v6785 = vmul.f32 %v6768, %v523
    %v6786 = vmul.f32 %v6768, %v524
    %v6787 = vmul.f32 %v6768, %v525
    %v6788 = vmul.f32 %v6768, %v526
    %v6789 = vmul.f32 %v6768, %v527
    %v6790 = vmul.f32 %v6768, %v528
    %v6791 = vmul.f32 %v6768, %v529
    %v6792 = vmul.f32 %v6768, %v530
    %v6793 = vmul.f32 %v6768, %v531
    %v6794 = vmul.f32 %v6768, %v532
    %v6795 = vmul.f32 %v6768, %v533
    %v6796 = vmul.f32 %v6768, %v534
    %v6797 = vmul.f32 %v6768, %v535
    %v6798 = vmul.f32 %v6768, %v536
    %v6799 = vmul.f32 %v6768, %v537
    %v6800 = vmul.f32 %v6768, %v538
    %v6801 = vadd.f32 %v6735, %v6769
    %v6802 = vadd.f32 %v6736, %v6770
    %v6803 = vadd.f32 %v6737, %v6771
    %v6804 = vadd.f32 %v6738, %v6772
    %v6805 = vadd.f32 %v6739, %v6773
    %v6806 = vadd.f32 %v6740, %v6774
    %v6807 = vadd.f32 %v6741, %v6775
    %v6808 = vadd.f32 %v6742, %v6776
    %v6809 = vadd.f32 %v6743, %v6777
    %v6810 = vadd.f32 %v6744, %v6778
    %v6811 = vadd.f32 %v6745, %v6779
    %v6812 = vadd.f32 %v6746, %v6780
    %v6813 = vadd.f32 %v6747, %v6781
    %v6814 = vadd.f32 %v6748, %v6782
    %v6815 = vadd.f32 %v6749, %v6783
    %v6816 = vadd.f32 %v6750, %v6784
    %v6817 = vadd.f32 %v6751, %v6785
    %v6818 = vadd.f32 %v6752, %v6786
    %v6819 = vadd.f32 %v6753, %v6787
    %v6820 = vadd.f32 %v6754, %v6788
    %v6821 = vadd.f32 %v6755, %v6789
    %v6822 = vadd.f32 %v6756, %v6790
    %v6823 = vadd.f32 %v6757, %v6791
    %v6824 = vadd.f32 %v6758, %v6792
    %v6825 = vadd.f32 %v6759, %v6793
    %v6826 = vadd.f32 %v6760, %v6794
    %v6827 = vadd.f32 %v6761, %v6795
    %v6828 = vadd.f32 %v6762, %v6796
    %v6829 = vadd.f32 %v6763, %v6797
    %v6830 = vadd.f32 %v6764, %v6798
    %v6831 = vadd.f32 %v6765, %v6799
    %v6832 = vadd.f32 %v6766, %v6800
    %s6833 = sld [smem:[#allocation3 + $0x47]]
    %v6834 = vstv %s6833
    %v6835 = vmul.f32 %v6834, %v539
    %v6836 = vmul.f32 %v6834, %v540
    %v6837 = vmul.f32 %v6834, %v541
    %v6838 = vmul.f32 %v6834, %v542
    %v6839 = vmul.f32 %v6834, %v543
    %v6840 = vmul.f32 %v6834, %v544
    %v6841 = vmul.f32 %v6834, %v545
    %v6842 = vmul.f32 %v6834, %v546
    %v6843 = vmul.f32 %v6834, %v547
    %v6844 = vmul.f32 %v6834, %v548
    %v6845 = vmul.f32 %v6834, %v549
    %v6846 = vmul.f32 %v6834, %v550
    %v6847 = vmul.f32 %v6834, %v551
    %v6848 = vmul.f32 %v6834, %v552
    %v6849 = vmul.f32 %v6834, %v553
    %v6850 = vmul.f32 %v6834, %v554
    %v6851 = vmul.f32 %v6834, %v555
    %v6852 = vmul.f32 %v6834, %v556
    %v6853 = vmul.f32 %v6834, %v557
    %v6854 = vmul.f32 %v6834, %v558
    %v6855 = vmul.f32 %v6834, %v559
    %v6856 = vmul.f32 %v6834, %v560
    %v6857 = vmul.f32 %v6834, %v561
    %v6858 = vmul.f32 %v6834, %v562
    %v6859 = vmul.f32 %v6834, %v563
    %v6860 = vmul.f32 %v6834, %v564
    %v6861 = vmul.f32 %v6834, %v565
    %v6862 = vmul.f32 %v6834, %v566
    %v6863 = vmul.f32 %v6834, %v567
    %v6864 = vmul.f32 %v6834, %v568
    %v6865 = vmul.f32 %v6834, %v569
    %v6866 = vmul.f32 %v6834, %v570
    %v6867 = vadd.f32 %v6801, %v6835
    %v6868 = vadd.f32 %v6802, %v6836
    %v6869 = vadd.f32 %v6803, %v6837
    %v6870 = vadd.f32 %v6804, %v6838
    %v6871 = vadd.f32 %v6805, %v6839
    %v6872 = vadd.f32 %v6806, %v6840
    %v6873 = vadd.f32 %v6807, %v6841
    %v6874 = vadd.f32 %v6808, %v6842
    %v6875 = vadd.f32 %v6809, %v6843
    %v6876 = vadd.f32 %v6810, %v6844
    %v6877 = vadd.f32 %v6811, %v6845
    %v6878 = vadd.f32 %v6812, %v6846
    %v6879 = vadd.f32 %v6813, %v6847
    %v6880 = vadd.f32 %v6814, %v6848
    %v6881 = vadd.f32 %v6815, %v6849
    %v6882 = vadd.f32 %v6816, %v6850
    %v6883 = vadd.f32 %v6817, %v6851
    %v6884 = vadd.f32 %v6818, %v6852
    %v6885 = vadd.f32 %v6819, %v6853
    %v6886 = vadd.f32 %v6820, %v6854
    %v6887 = vadd.f32 %v6821, %v6855
    %v6888 = vadd.f32 %v6822, %v6856
    %v6889 = vadd.f32 %v6823, %v6857
    %v6890 = vadd.f32 %v6824, %v6858
    %v6891 = vadd.f32 %v6825, %v6859
    %v6892 = vadd.f32 %v6826, %v6860
    %v6893 = vadd.f32 %v6827, %v6861
    %v6894 = vadd.f32 %v6828, %v6862
    %v6895 = vadd.f32 %v6829, %v6863
    %v6896 = vadd.f32 %v6830, %v6864
    %v6897 = vadd.f32 %v6831, %v6865
    %v6898 = vadd.f32 %v6832, %v6866
    %s6899 = sld [smem:[#allocation5 + $0x17]]
    %v6900 = vstv %s6899
    %v6901 = vadd.f32 %v6867, %v6900
    %v6902 = vadd.f32 %v6868, %v6900
    %v6903 = vadd.f32 %v6869, %v6900
    %v6904 = vadd.f32 %v6870, %v6900
    %v6905 = vadd.f32 %v6871, %v6900
    %v6906 = vadd.f32 %v6872, %v6900
    %v6907 = vadd.f32 %v6873, %v6900
    %v6908 = vadd.f32 %v6874, %v6900
    %v6909 = vadd.f32 %v6875, %v6900
    %v6910 = vadd.f32 %v6876, %v6900
    %v6911 = vadd.f32 %v6877, %v6900
    %v6912 = vadd.f32 %v6878, %v6900
    %v6913 = vadd.f32 %v6879, %v6900
    %v6914 = vadd.f32 %v6880, %v6900
    %v6915 = vadd.f32 %v6881, %v6900
    %v6916 = vadd.f32 %v6882, %v6900
    %v6917 = vadd.f32 %v6883, %v6900
    %v6918 = vadd.f32 %v6884, %v6900
    %v6919 = vadd.f32 %v6885, %v6900
    %v6920 = vadd.f32 %v6886, %v6900
    %v6921 = vadd.f32 %v6887, %v6900
    %v6922 = vadd.f32 %v6888, %v6900
    %v6923 = vadd.f32 %v6889, %v6900
    %v6924 = vadd.f32 %v6890, %v6900
    %v6925 = vadd.f32 %v6891, %v6900
    %v6926 = vadd.f32 %v6892, %v6900
    %v6927 = vadd.f32 %v6893, %v6900
    %v6928 = vadd.f32 %v6894, %v6900
    %v6929 = vadd.f32 %v6895, %v6900
    %v6930 = vadd.f32 %v6896, %v6900
    %v6931 = vadd.f32 %v6897, %v6900
    %v6932 = vadd.f32 %v6898, %v6900
    %s6933 = sld [smem:[#allocation7 + $0x17]]
    %v6934 = vtanh.pop %v6901
    %v6935 = vtanh.pop %v6902
    %v6936 = vtanh.pop %v6903
    %v6937 = vtanh.pop %v6904
    %v6938 = vtanh.pop %v6905
    %v6939 = vtanh.pop %v6906
    %v6940 = vtanh.pop %v6907
    %v6941 = vtanh.pop %v6908
    %v6942 = vtanh.pop %v6909
    %v6943 = vtanh.pop %v6910
    %v6944 = vtanh.pop %v6911
    %v6945 = vtanh.pop %v6912
    %v6946 = vtanh.pop %v6913
    %v6947 = vtanh.pop %v6914
    %v6948 = vtanh.pop %v6915
    %v6949 = vtanh.pop %v6916
    %v6950 = vtanh.pop %v6917
    %v6951 = vtanh.pop %v6918
    %v6952 = vtanh.pop %v6919
    %v6953 = vtanh.pop %v6920
    %v6954 = vtanh.pop %v6921
    %v6955 = vtanh.pop %v6922
    %v6956 = vtanh.pop %v6923
    %v6957 = vtanh.pop %v6924
    %v6958 = vtanh.pop %v6925
    %v6959 = vtanh.pop %v6926
    %v6960 = vtanh.pop %v6927
    %v6961 = vtanh.pop %v6928
    %v6962 = vtanh.pop %v6929
    %v6963 = vtanh.pop %v6930
    %v6964 = vtanh.pop %v6931
    %v6965 = vtanh.pop %v6932
    %v6966 = vadd.f32 %v6934, %v6936
    %v6967 = vadd.f32 %v6966, %v6938
    %v6968 = vadd.f32 %v6967, %v6940
    %v6969 = vadd.f32 %v6968, %v6942
    %v6970 = vadd.f32 %v6969, %v6944
    %v6971 = vadd.f32 %v6970, %v6946
    %v6972 = vadd.f32 %v6971, %v6948
    %v6973 = vadd.f32 %v6972, %v6950
    %v6974 = vadd.f32 %v6973, %v6952
    %v6975 = vadd.f32 %v6974, %v6954
    %v6976 = vadd.f32 %v6975, %v6956
    %v6977 = vadd.f32 %v6976, %v6958
    %v6978 = vadd.f32 %v6977, %v6960
    %v6979 = vadd.f32 %v6978, %v6962
    %v6980 = vadd.f32 %v6979, %v6964
    %v6981 = vadd.f32 %v6935, %v6937
    %v6982 = vadd.f32 %v6981, %v6939
    %v6983 = vadd.f32 %v6982, %v6941
    %v6984 = vadd.f32 %v6983, %v6943
    %v6985 = vadd.f32 %v6984, %v6945
    %v6986 = vadd.f32 %v6985, %v6947
    %v6987 = vadd.f32 %v6986, %v6949
    %v6988 = vadd.f32 %v6987, %v6951
    %v6989 = vadd.f32 %v6988, %v6953
    %v6990 = vadd.f32 %v6989, %v6955
    %v6991 = vadd.f32 %v6990, %v6957
    %v6992 = vadd.f32 %v6991, %v6959
    %v6993 = vadd.f32 %v6992, %v6961
    %v6994 = vadd.f32 %v6993, %v6963
    %v6995 = vadd.f32 %v6994, %v6965
    %v6996 = vstv %s6933
    %v6997 = vmul.f32 %v6996, %v6980
    %v6998 = vmul.f32 %v6996, %v6995
    %v6999 = vadd.f32 %v6731, %v6997
    %v7000 = vadd.f32 %v6732, %v6998
    %s7001 = sld [smem:[#allocation3 + $0x48]]
    %v7002 = vstv %s7001
    %v7003 = vmul.f32 %v7002, %v475
    %v7004 = vmul.f32 %v7002, %v476
    %v7005 = vmul.f32 %v7002, %v477
    %v7006 = vmul.f32 %v7002, %v478
    %v7007 = vmul.f32 %v7002, %v479
    %v7008 = vmul.f32 %v7002, %v480
    %v7009 = vmul.f32 %v7002, %v481
    %v7010 = vmul.f32 %v7002, %v482
    %v7011 = vmul.f32 %v7002, %v483
    %v7012 = vmul.f32 %v7002, %v484
    %v7013 = vmul.f32 %v7002, %v485
    %v7014 = vmul.f32 %v7002, %v486
    %v7015 = vmul.f32 %v7002, %v487
    %v7016 = vmul.f32 %v7002, %v488
    %v7017 = vmul.f32 %v7002, %v489
    %v7018 = vmul.f32 %v7002, %v490
    %v7019 = vmul.f32 %v7002, %v491
    %v7020 = vmul.f32 %v7002, %v492
    %v7021 = vmul.f32 %v7002, %v493
    %v7022 = vmul.f32 %v7002, %v494
    %v7023 = vmul.f32 %v7002, %v495
    %v7024 = vmul.f32 %v7002, %v496
    %v7025 = vmul.f32 %v7002, %v497
    %v7026 = vmul.f32 %v7002, %v498
    %v7027 = vmul.f32 %v7002, %v499
    %v7028 = vmul.f32 %v7002, %v500
    %v7029 = vmul.f32 %v7002, %v501
    %v7030 = vmul.f32 %v7002, %v502
    %v7031 = vmul.f32 %v7002, %v503
    %v7032 = vmul.f32 %v7002, %v504
    %v7033 = vmul.f32 %v7002, %v505
    %v7034 = vmul.f32 %v7002, %v506
    %s7035 = sld [smem:[#allocation3 + $0x49]]
    %v7036 = vstv %s7035
    %v7037 = vmul.f32 %v7036, %v507
    %v7038 = vmul.f32 %v7036, %v508
    %v7039 = vmul.f32 %v7036, %v509
    %v7040 = vmul.f32 %v7036, %v510
    %v7041 = vmul.f32 %v7036, %v511
    %v7042 = vmul.f32 %v7036, %v512
    %v7043 = vmul.f32 %v7036, %v513
    %v7044 = vmul.f32 %v7036, %v514
    %v7045 = vmul.f32 %v7036, %v515
    %v7046 = vmul.f32 %v7036, %v516
    %v7047 = vmul.f32 %v7036, %v517
    %v7048 = vmul.f32 %v7036, %v518
    %v7049 = vmul.f32 %v7036, %v519
    %v7050 = vmul.f32 %v7036, %v520
    %v7051 = vmul.f32 %v7036, %v521
    %v7052 = vmul.f32 %v7036, %v522
    %v7053 = vmul.f32 %v7036, %v523
    %v7054 = vmul.f32 %v7036, %v524
    %v7055 = vmul.f32 %v7036, %v525
    %v7056 = vmul.f32 %v7036, %v526
    %v7057 = vmul.f32 %v7036, %v527
    %v7058 = vmul.f32 %v7036, %v528
    %v7059 = vmul.f32 %v7036, %v529
    %v7060 = vmul.f32 %v7036, %v530
    %v7061 = vmul.f32 %v7036, %v531
    %v7062 = vmul.f32 %v7036, %v532
    %v7063 = vmul.f32 %v7036, %v533
    %v7064 = vmul.f32 %v7036, %v534
    %v7065 = vmul.f32 %v7036, %v535
    %v7066 = vmul.f32 %v7036, %v536
    %v7067 = vmul.f32 %v7036, %v537
    %v7068 = vmul.f32 %v7036, %v538
    %v7069 = vadd.f32 %v7003, %v7037
    %v7070 = vadd.f32 %v7004, %v7038
    %v7071 = vadd.f32 %v7005, %v7039
    %v7072 = vadd.f32 %v7006, %v7040
    %v7073 = vadd.f32 %v7007, %v7041
    %v7074 = vadd.f32 %v7008, %v7042
    %v7075 = vadd.f32 %v7009, %v7043
    %v7076 = vadd.f32 %v7010, %v7044
    %v7077 = vadd.f32 %v7011, %v7045
    %v7078 = vadd.f32 %v7012, %v7046
    %v7079 = vadd.f32 %v7013, %v7047
    %v7080 = vadd.f32 %v7014, %v7048
    %v7081 = vadd.f32 %v7015, %v7049
    %v7082 = vadd.f32 %v7016, %v7050
    %v7083 = vadd.f32 %v7017, %v7051
    %v7084 = vadd.f32 %v7018, %v7052
    %v7085 = vadd.f32 %v7019, %v7053
    %v7086 = vadd.f32 %v7020, %v7054
    %v7087 = vadd.f32 %v7021, %v7055
    %v7088 = vadd.f32 %v7022, %v7056
    %v7089 = vadd.f32 %v7023, %v7057
    %v7090 = vadd.f32 %v7024, %v7058
    %v7091 = vadd.f32 %v7025, %v7059
    %v7092 = vadd.f32 %v7026, %v7060
    %v7093 = vadd.f32 %v7027, %v7061
    %v7094 = vadd.f32 %v7028, %v7062
    %v7095 = vadd.f32 %v7029, %v7063
    %v7096 = vadd.f32 %v7030, %v7064
    %v7097 = vadd.f32 %v7031, %v7065
    %v7098 = vadd.f32 %v7032, %v7066
    %v7099 = vadd.f32 %v7033, %v7067
    %v7100 = vadd.f32 %v7034, %v7068
    %s7101 = sld [smem:[#allocation3 + $0x4a]]
    %v7102 = vstv %s7101
    %v7103 = vmul.f32 %v7102, %v539
    %v7104 = vmul.f32 %v7102, %v540
    %v7105 = vmul.f32 %v7102, %v541
    %v7106 = vmul.f32 %v7102, %v542
    %v7107 = vmul.f32 %v7102, %v543
    %v7108 = vmul.f32 %v7102, %v544
    %v7109 = vmul.f32 %v7102, %v545
    %v7110 = vmul.f32 %v7102, %v546
    %v7111 = vmul.f32 %v7102, %v547
    %v7112 = vmul.f32 %v7102, %v548
    %v7113 = vmul.f32 %v7102, %v549
    %v7114 = vmul.f32 %v7102, %v550
    %v7115 = vmul.f32 %v7102, %v551
    %v7116 = vmul.f32 %v7102, %v552
    %v7117 = vmul.f32 %v7102, %v553
    %v7118 = vmul.f32 %v7102, %v554
    %v7119 = vmul.f32 %v7102, %v555
    %v7120 = vmul.f32 %v7102, %v556
    %v7121 = vmul.f32 %v7102, %v557
    %v7122 = vmul.f32 %v7102, %v558
    %v7123 = vmul.f32 %v7102, %v559
    %v7124 = vmul.f32 %v7102, %v560
    %v7125 = vmul.f32 %v7102, %v561
    %v7126 = vmul.f32 %v7102, %v562
    %v7127 = vmul.f32 %v7102, %v563
    %v7128 = vmul.f32 %v7102, %v564
    %v7129 = vmul.f32 %v7102, %v565
    %v7130 = vmul.f32 %v7102, %v566
    %v7131 = vmul.f32 %v7102, %v567
    %v7132 = vmul.f32 %v7102, %v568
    %v7133 = vmul.f32 %v7102, %v569
    %v7134 = vmul.f32 %v7102, %v570
    %v7135 = vadd.f32 %v7069, %v7103
    %v7136 = vadd.f32 %v7070, %v7104
    %v7137 = vadd.f32 %v7071, %v7105
    %v7138 = vadd.f32 %v7072, %v7106
    %v7139 = vadd.f32 %v7073, %v7107
    %v7140 = vadd.f32 %v7074, %v7108
    %v7141 = vadd.f32 %v7075, %v7109
    %v7142 = vadd.f32 %v7076, %v7110
    %v7143 = vadd.f32 %v7077, %v7111
    %v7144 = vadd.f32 %v7078, %v7112
    %v7145 = vadd.f32 %v7079, %v7113
    %v7146 = vadd.f32 %v7080, %v7114
    %v7147 = vadd.f32 %v7081, %v7115
    %v7148 = vadd.f32 %v7082, %v7116
    %v7149 = vadd.f32 %v7083, %v7117
    %v7150 = vadd.f32 %v7084, %v7118
    %v7151 = vadd.f32 %v7085, %v7119
    %v7152 = vadd.f32 %v7086, %v7120
    %v7153 = vadd.f32 %v7087, %v7121
    %v7154 = vadd.f32 %v7088, %v7122
    %v7155 = vadd.f32 %v7089, %v7123
    %v7156 = vadd.f32 %v7090, %v7124
    %v7157 = vadd.f32 %v7091, %v7125
    %v7158 = vadd.f32 %v7092, %v7126
    %v7159 = vadd.f32 %v7093, %v7127
    %v7160 = vadd.f32 %v7094, %v7128
    %v7161 = vadd.f32 %v7095, %v7129
    %v7162 = vadd.f32 %v7096, %v7130
    %v7163 = vadd.f32 %v7097, %v7131
    %v7164 = vadd.f32 %v7098, %v7132
    %v7165 = vadd.f32 %v7099, %v7133
    %v7166 = vadd.f32 %v7100, %v7134
    %s7167 = sld [smem:[#allocation5 + $0x18]]
    %v7168 = vstv %s7167
    %v7169 = vadd.f32 %v7135, %v7168
    %v7170 = vadd.f32 %v7136, %v7168
    %v7171 = vadd.f32 %v7137, %v7168
    %v7172 = vadd.f32 %v7138, %v7168
    %v7173 = vadd.f32 %v7139, %v7168
    %v7174 = vadd.f32 %v7140, %v7168
    %v7175 = vadd.f32 %v7141, %v7168
    %v7176 = vadd.f32 %v7142, %v7168
    %v7177 = vadd.f32 %v7143, %v7168
    %v7178 = vadd.f32 %v7144, %v7168
    %v7179 = vadd.f32 %v7145, %v7168
    %v7180 = vadd.f32 %v7146, %v7168
    %v7181 = vadd.f32 %v7147, %v7168
    %v7182 = vadd.f32 %v7148, %v7168
    %v7183 = vadd.f32 %v7149, %v7168
    %v7184 = vadd.f32 %v7150, %v7168
    %v7185 = vadd.f32 %v7151, %v7168
    %v7186 = vadd.f32 %v7152, %v7168
    %v7187 = vadd.f32 %v7153, %v7168
    %v7188 = vadd.f32 %v7154, %v7168
    %v7189 = vadd.f32 %v7155, %v7168
    %v7190 = vadd.f32 %v7156, %v7168
    %v7191 = vadd.f32 %v7157, %v7168
    %v7192 = vadd.f32 %v7158, %v7168
    %v7193 = vadd.f32 %v7159, %v7168
    %v7194 = vadd.f32 %v7160, %v7168
    %v7195 = vadd.f32 %v7161, %v7168
    %v7196 = vadd.f32 %v7162, %v7168
    %v7197 = vadd.f32 %v7163, %v7168
    %v7198 = vadd.f32 %v7164, %v7168
    %v7199 = vadd.f32 %v7165, %v7168
    %v7200 = vadd.f32 %v7166, %v7168
    %s7201 = sld [smem:[#allocation7 + $0x18]]
    %v7202 = vtanh.pop %v7169
    %v7203 = vtanh.pop %v7170
    %v7204 = vtanh.pop %v7171
    %v7205 = vtanh.pop %v7172
    %v7206 = vtanh.pop %v7173
    %v7207 = vtanh.pop %v7174
    %v7208 = vtanh.pop %v7175
    %v7209 = vtanh.pop %v7176
    %v7210 = vtanh.pop %v7177
    %v7211 = vtanh.pop %v7178
    %v7212 = vtanh.pop %v7179
    %v7213 = vtanh.pop %v7180
    %v7214 = vtanh.pop %v7181
    %v7215 = vtanh.pop %v7182
    %v7216 = vtanh.pop %v7183
    %v7217 = vtanh.pop %v7184
    %v7218 = vtanh.pop %v7185
    %v7219 = vtanh.pop %v7186
    %v7220 = vtanh.pop %v7187
    %v7221 = vtanh.pop %v7188
    %v7222 = vtanh.pop %v7189
    %v7223 = vtanh.pop %v7190
    %v7224 = vtanh.pop %v7191
    %v7225 = vtanh.pop %v7192
    %v7226 = vtanh.pop %v7193
    %v7227 = vtanh.pop %v7194
    %v7228 = vtanh.pop %v7195
    %v7229 = vtanh.pop %v7196
    %v7230 = vtanh.pop %v7197
    %v7231 = vtanh.pop %v7198
    %v7232 = vtanh.pop %v7199
    %v7233 = vtanh.pop %v7200
    %v7234 = vadd.f32 %v7202, %v7204
    %v7235 = vadd.f32 %v7234, %v7206
    %v7236 = vadd.f32 %v7235, %v7208
    %v7237 = vadd.f32 %v7236, %v7210
    %v7238 = vadd.f32 %v7237, %v7212
    %v7239 = vadd.f32 %v7238, %v7214
    %v7240 = vadd.f32 %v7239, %v7216
    %v7241 = vadd.f32 %v7240, %v7218
    %v7242 = vadd.f32 %v7241, %v7220
    %v7243 = vadd.f32 %v7242, %v7222
    %v7244 = vadd.f32 %v7243, %v7224
    %v7245 = vadd.f32 %v7244, %v7226
    %v7246 = vadd.f32 %v7245, %v7228
    %v7247 = vadd.f32 %v7246, %v7230
    %v7248 = vadd.f32 %v7247, %v7232
    %v7249 = vadd.f32 %v7203, %v7205
    %v7250 = vadd.f32 %v7249, %v7207
    %v7251 = vadd.f32 %v7250, %v7209
    %v7252 = vadd.f32 %v7251, %v7211
    %v7253 = vadd.f32 %v7252, %v7213
    %v7254 = vadd.f32 %v7253, %v7215
    %v7255 = vadd.f32 %v7254, %v7217
    %v7256 = vadd.f32 %v7255, %v7219
    %v7257 = vadd.f32 %v7256, %v7221
    %v7258 = vadd.f32 %v7257, %v7223
    %v7259 = vadd.f32 %v7258, %v7225
    %v7260 = vadd.f32 %v7259, %v7227
    %v7261 = vadd.f32 %v7260, %v7229
    %v7262 = vadd.f32 %v7261, %v7231
    %v7263 = vadd.f32 %v7262, %v7233
    %v7264 = vstv %s7201
    %v7265 = vmul.f32 %v7264, %v7248
    %v7266 = vmul.f32 %v7264, %v7263
    %v7267 = vadd.f32 %v6999, %v7265
    %v7268 = vadd.f32 %v7000, %v7266
    %s7269 = sld [smem:[#allocation3 + $0x4b]]
    %v7270 = vstv %s7269
    %v7271 = vmul.f32 %v7270, %v475
    %v7272 = vmul.f32 %v7270, %v476
    %v7273 = vmul.f32 %v7270, %v477
    %v7274 = vmul.f32 %v7270, %v478
    %v7275 = vmul.f32 %v7270, %v479
    %v7276 = vmul.f32 %v7270, %v480
    %v7277 = vmul.f32 %v7270, %v481
    %v7278 = vmul.f32 %v7270, %v482
    %v7279 = vmul.f32 %v7270, %v483
    %v7280 = vmul.f32 %v7270, %v484
    %v7281 = vmul.f32 %v7270, %v485
    %v7282 = vmul.f32 %v7270, %v486
    %v7283 = vmul.f32 %v7270, %v487
    %v7284 = vmul.f32 %v7270, %v488
    %v7285 = vmul.f32 %v7270, %v489
    %v7286 = vmul.f32 %v7270, %v490
    %v7287 = vmul.f32 %v7270, %v491
    %v7288 = vmul.f32 %v7270, %v492
    %v7289 = vmul.f32 %v7270, %v493
    %v7290 = vmul.f32 %v7270, %v494
    %v7291 = vmul.f32 %v7270, %v495
    %v7292 = vmul.f32 %v7270, %v496
    %v7293 = vmul.f32 %v7270, %v497
    %v7294 = vmul.f32 %v7270, %v498
    %v7295 = vmul.f32 %v7270, %v499
    %v7296 = vmul.f32 %v7270, %v500
    %v7297 = vmul.f32 %v7270, %v501
    %v7298 = vmul.f32 %v7270, %v502
    %v7299 = vmul.f32 %v7270, %v503
    %v7300 = vmul.f32 %v7270, %v504
    %v7301 = vmul.f32 %v7270, %v505
    %v7302 = vmul.f32 %v7270, %v506
    %s7303 = sld [smem:[#allocation3 + $0x4c]]
    %v7304 = vstv %s7303
    %v7305 = vmul.f32 %v7304, %v507
    %v7306 = vmul.f32 %v7304, %v508
    %v7307 = vmul.f32 %v7304, %v509
    %v7308 = vmul.f32 %v7304, %v510
    %v7309 = vmul.f32 %v7304, %v511
    %v7310 = vmul.f32 %v7304, %v512
    %v7311 = vmul.f32 %v7304, %v513
    %v7312 = vmul.f32 %v7304, %v514
    %v7313 = vmul.f32 %v7304, %v515
    %v7314 = vmul.f32 %v7304, %v516
    %v7315 = vmul.f32 %v7304, %v517
    %v7316 = vmul.f32 %v7304, %v518
    %v7317 = vmul.f32 %v7304, %v519
    %v7318 = vmul.f32 %v7304, %v520
    %v7319 = vmul.f32 %v7304, %v521
    %v7320 = vmul.f32 %v7304, %v522
    %v7321 = vmul.f32 %v7304, %v523
    %v7322 = vmul.f32 %v7304, %v524
    %v7323 = vmul.f32 %v7304, %v525
    %v7324 = vmul.f32 %v7304, %v526
    %v7325 = vmul.f32 %v7304, %v527
    %v7326 = vmul.f32 %v7304, %v528
    %v7327 = vmul.f32 %v7304, %v529
    %v7328 = vmul.f32 %v7304, %v530
    %v7329 = vmul.f32 %v7304, %v531
    %v7330 = vmul.f32 %v7304, %v532
    %v7331 = vmul.f32 %v7304, %v533
    %v7332 = vmul.f32 %v7304, %v534
    %v7333 = vmul.f32 %v7304, %v535
    %v7334 = vmul.f32 %v7304, %v536
    %v7335 = vmul.f32 %v7304, %v537
    %v7336 = vmul.f32 %v7304, %v538
    %v7337 = vadd.f32 %v7271, %v7305
    %v7338 = vadd.f32 %v7272, %v7306
    %v7339 = vadd.f32 %v7273, %v7307
    %v7340 = vadd.f32 %v7274, %v7308
    %v7341 = vadd.f32 %v7275, %v7309
    %v7342 = vadd.f32 %v7276, %v7310
    %v7343 = vadd.f32 %v7277, %v7311
    %v7344 = vadd.f32 %v7278, %v7312
    %v7345 = vadd.f32 %v7279, %v7313
    %v7346 = vadd.f32 %v7280, %v7314
    %v7347 = vadd.f32 %v7281, %v7315
    %v7348 = vadd.f32 %v7282, %v7316
    %v7349 = vadd.f32 %v7283, %v7317
    %v7350 = vadd.f32 %v7284, %v7318
    %v7351 = vadd.f32 %v7285, %v7319
    %v7352 = vadd.f32 %v7286, %v7320
    %v7353 = vadd.f32 %v7287, %v7321
    %v7354 = vadd.f32 %v7288, %v7322
    %v7355 = vadd.f32 %v7289, %v7323
    %v7356 = vadd.f32 %v7290, %v7324
    %v7357 = vadd.f32 %v7291, %v7325
    %v7358 = vadd.f32 %v7292, %v7326
    %v7359 = vadd.f32 %v7293, %v7327
    %v7360 = vadd.f32 %v7294, %v7328
    %v7361 = vadd.f32 %v7295, %v7329
    %v7362 = vadd.f32 %v7296, %v7330
    %v7363 = vadd.f32 %v7297, %v7331
    %v7364 = vadd.f32 %v7298, %v7332
    %v7365 = vadd.f32 %v7299, %v7333
    %v7366 = vadd.f32 %v7300, %v7334
    %v7367 = vadd.f32 %v7301, %v7335
    %v7368 = vadd.f32 %v7302, %v7336
    %s7369 = sld [smem:[#allocation3 + $0x4d]]
    %v7370 = vstv %s7369
    %v7371 = vmul.f32 %v7370, %v539
    %v7372 = vmul.f32 %v7370, %v540
    %v7373 = vmul.f32 %v7370, %v541
    %v7374 = vmul.f32 %v7370, %v542
    %v7375 = vmul.f32 %v7370, %v543
    %v7376 = vmul.f32 %v7370, %v544
    %v7377 = vmul.f32 %v7370, %v545
    %v7378 = vmul.f32 %v7370, %v546
    %v7379 = vmul.f32 %v7370, %v547
    %v7380 = vmul.f32 %v7370, %v548
    %v7381 = vmul.f32 %v7370, %v549
    %v7382 = vmul.f32 %v7370, %v550
    %v7383 = vmul.f32 %v7370, %v551
    %v7384 = vmul.f32 %v7370, %v552
    %v7385 = vmul.f32 %v7370, %v553
    %v7386 = vmul.f32 %v7370, %v554
    %v7387 = vmul.f32 %v7370, %v555
    %v7388 = vmul.f32 %v7370, %v556
    %v7389 = vmul.f32 %v7370, %v557
    %v7390 = vmul.f32 %v7370, %v558
    %v7391 = vmul.f32 %v7370, %v559
    %v7392 = vmul.f32 %v7370, %v560
    %v7393 = vmul.f32 %v7370, %v561
    %v7394 = vmul.f32 %v7370, %v562
    %v7395 = vmul.f32 %v7370, %v563
    %v7396 = vmul.f32 %v7370, %v564
    %v7397 = vmul.f32 %v7370, %v565
    %v7398 = vmul.f32 %v7370, %v566
    %v7399 = vmul.f32 %v7370, %v567
    %v7400 = vmul.f32 %v7370, %v568
    %v7401 = vmul.f32 %v7370, %v569
    %v7402 = vmul.f32 %v7370, %v570
    %v7403 = vadd.f32 %v7337, %v7371
    %v7404 = vadd.f32 %v7338, %v7372
    %v7405 = vadd.f32 %v7339, %v7373
    %v7406 = vadd.f32 %v7340, %v7374
    %v7407 = vadd.f32 %v7341, %v7375
    %v7408 = vadd.f32 %v7342, %v7376
    %v7409 = vadd.f32 %v7343, %v7377
    %v7410 = vadd.f32 %v7344, %v7378
    %v7411 = vadd.f32 %v7345, %v7379
    %v7412 = vadd.f32 %v7346, %v7380
    %v7413 = vadd.f32 %v7347, %v7381
    %v7414 = vadd.f32 %v7348, %v7382
    %v7415 = vadd.f32 %v7349, %v7383
    %v7416 = vadd.f32 %v7350, %v7384
    %v7417 = vadd.f32 %v7351, %v7385
    %v7418 = vadd.f32 %v7352, %v7386
    %v7419 = vadd.f32 %v7353, %v7387
    %v7420 = vadd.f32 %v7354, %v7388
    %v7421 = vadd.f32 %v7355, %v7389
    %v7422 = vadd.f32 %v7356, %v7390
    %v7423 = vadd.f32 %v7357, %v7391
    %v7424 = vadd.f32 %v7358, %v7392
    %v7425 = vadd.f32 %v7359, %v7393
    %v7426 = vadd.f32 %v7360, %v7394
    %v7427 = vadd.f32 %v7361, %v7395
    %v7428 = vadd.f32 %v7362, %v7396
    %v7429 = vadd.f32 %v7363, %v7397
    %v7430 = vadd.f32 %v7364, %v7398
    %v7431 = vadd.f32 %v7365, %v7399
    %v7432 = vadd.f32 %v7366, %v7400
    %v7433 = vadd.f32 %v7367, %v7401
    %v7434 = vadd.f32 %v7368, %v7402
    %s7435 = sld [smem:[#allocation5 + $0x19]]
    %v7436 = vstv %s7435
    %v7437 = vadd.f32 %v7403, %v7436
    %v7438 = vadd.f32 %v7404, %v7436
    %v7439 = vadd.f32 %v7405, %v7436
    %v7440 = vadd.f32 %v7406, %v7436
    %v7441 = vadd.f32 %v7407, %v7436
    %v7442 = vadd.f32 %v7408, %v7436
    %v7443 = vadd.f32 %v7409, %v7436
    %v7444 = vadd.f32 %v7410, %v7436
    %v7445 = vadd.f32 %v7411, %v7436
    %v7446 = vadd.f32 %v7412, %v7436
    %v7447 = vadd.f32 %v7413, %v7436
    %v7448 = vadd.f32 %v7414, %v7436
    %v7449 = vadd.f32 %v7415, %v7436
    %v7450 = vadd.f32 %v7416, %v7436
    %v7451 = vadd.f32 %v7417, %v7436
    %v7452 = vadd.f32 %v7418, %v7436
    %v7453 = vadd.f32 %v7419, %v7436
    %v7454 = vadd.f32 %v7420, %v7436
    %v7455 = vadd.f32 %v7421, %v7436
    %v7456 = vadd.f32 %v7422, %v7436
    %v7457 = vadd.f32 %v7423, %v7436
    %v7458 = vadd.f32 %v7424, %v7436
    %v7459 = vadd.f32 %v7425, %v7436
    %v7460 = vadd.f32 %v7426, %v7436
    %v7461 = vadd.f32 %v7427, %v7436
    %v7462 = vadd.f32 %v7428, %v7436
    %v7463 = vadd.f32 %v7429, %v7436
    %v7464 = vadd.f32 %v7430, %v7436
    %v7465 = vadd.f32 %v7431, %v7436
    %v7466 = vadd.f32 %v7432, %v7436
    %v7467 = vadd.f32 %v7433, %v7436
    %v7468 = vadd.f32 %v7434, %v7436
    %s7469 = sld [smem:[#allocation7 + $0x19]]
    %v7470 = vtanh.pop %v7437
    %v7471 = vtanh.pop %v7438
    %v7472 = vtanh.pop %v7439
    %v7473 = vtanh.pop %v7440
    %v7474 = vtanh.pop %v7441
    %v7475 = vtanh.pop %v7442
    %v7476 = vtanh.pop %v7443
    %v7477 = vtanh.pop %v7444
    %v7478 = vtanh.pop %v7445
    %v7479 = vtanh.pop %v7446
    %v7480 = vtanh.pop %v7447
    %v7481 = vtanh.pop %v7448
    %v7482 = vtanh.pop %v7449
    %v7483 = vtanh.pop %v7450
    %v7484 = vtanh.pop %v7451
    %v7485 = vtanh.pop %v7452
    %v7486 = vtanh.pop %v7453
    %v7487 = vtanh.pop %v7454
    %v7488 = vtanh.pop %v7455
    %v7489 = vtanh.pop %v7456
    %v7490 = vtanh.pop %v7457
    %v7491 = vtanh.pop %v7458
    %v7492 = vtanh.pop %v7459
    %v7493 = vtanh.pop %v7460
    %v7494 = vtanh.pop %v7461
    %v7495 = vtanh.pop %v7462
    %v7496 = vtanh.pop %v7463
    %v7497 = vtanh.pop %v7464
    %v7498 = vtanh.pop %v7465
    %v7499 = vtanh.pop %v7466
    %v7500 = vtanh.pop %v7467
    %v7501 = vtanh.pop %v7468
    %v7502 = vadd.f32 %v7470, %v7472
    %v7503 = vadd.f32 %v7502, %v7474
    %v7504 = vadd.f32 %v7503, %v7476
    %v7505 = vadd.f32 %v7504, %v7478
    %v7506 = vadd.f32 %v7505, %v7480
    %v7507 = vadd.f32 %v7506, %v7482
    %v7508 = vadd.f32 %v7507, %v7484
    %v7509 = vadd.f32 %v7508, %v7486
    %v7510 = vadd.f32 %v7509, %v7488
    %v7511 = vadd.f32 %v7510, %v7490
    %v7512 = vadd.f32 %v7511, %v7492
    %v7513 = vadd.f32 %v7512, %v7494
    %v7514 = vadd.f32 %v7513, %v7496
    %v7515 = vadd.f32 %v7514, %v7498
    %v7516 = vadd.f32 %v7515, %v7500
    %v7517 = vadd.f32 %v7471, %v7473
    %v7518 = vadd.f32 %v7517, %v7475
    %v7519 = vadd.f32 %v7518, %v7477
    %v7520 = vadd.f32 %v7519, %v7479
    %v7521 = vadd.f32 %v7520, %v7481
    %v7522 = vadd.f32 %v7521, %v7483
    %v7523 = vadd.f32 %v7522, %v7485
    %v7524 = vadd.f32 %v7523, %v7487
    %v7525 = vadd.f32 %v7524, %v7489
    %v7526 = vadd.f32 %v7525, %v7491
    %v7527 = vadd.f32 %v7526, %v7493
    %v7528 = vadd.f32 %v7527, %v7495
    %v7529 = vadd.f32 %v7528, %v7497
    %v7530 = vadd.f32 %v7529, %v7499
    %v7531 = vadd.f32 %v7530, %v7501
    %v7532 = vstv %s7469
    %v7533 = vmul.f32 %v7532, %v7516
    %v7534 = vmul.f32 %v7532, %v7531
    %v7535 = vadd.f32 %v7267, %v7533
    %v7536 = vadd.f32 %v7268, %v7534
    %s7537 = sld [smem:[#allocation3 + $0x4e]]
    %v7538 = vstv %s7537
    %v7539 = vmul.f32 %v7538, %v475
    %v7540 = vmul.f32 %v7538, %v476
    %v7541 = vmul.f32 %v7538, %v477
    %v7542 = vmul.f32 %v7538, %v478
    %v7543 = vmul.f32 %v7538, %v479
    %v7544 = vmul.f32 %v7538, %v480
    %v7545 = vmul.f32 %v7538, %v481
    %v7546 = vmul.f32 %v7538, %v482
    %v7547 = vmul.f32 %v7538, %v483
    %v7548 = vmul.f32 %v7538, %v484
    %v7549 = vmul.f32 %v7538, %v485
    %v7550 = vmul.f32 %v7538, %v486
    %v7551 = vmul.f32 %v7538, %v487
    %v7552 = vmul.f32 %v7538, %v488
    %v7553 = vmul.f32 %v7538, %v489
    %v7554 = vmul.f32 %v7538, %v490
    %v7555 = vmul.f32 %v7538, %v491
    %v7556 = vmul.f32 %v7538, %v492
    %v7557 = vmul.f32 %v7538, %v493
    %v7558 = vmul.f32 %v7538, %v494
    %v7559 = vmul.f32 %v7538, %v495
    %v7560 = vmul.f32 %v7538, %v496
    %v7561 = vmul.f32 %v7538, %v497
    %v7562 = vmul.f32 %v7538, %v498
    %v7563 = vmul.f32 %v7538, %v499
    %v7564 = vmul.f32 %v7538, %v500
    %v7565 = vmul.f32 %v7538, %v501
    %v7566 = vmul.f32 %v7538, %v502
    %v7567 = vmul.f32 %v7538, %v503
    %v7568 = vmul.f32 %v7538, %v504
    %v7569 = vmul.f32 %v7538, %v505
    %v7570 = vmul.f32 %v7538, %v506
    %s7571 = sld [smem:[#allocation3 + $0x4f]]
    %v7572 = vstv %s7571
    %v7573 = vmul.f32 %v7572, %v507
    %v7574 = vmul.f32 %v7572, %v508
    %v7575 = vmul.f32 %v7572, %v509
    %v7576 = vmul.f32 %v7572, %v510
    %v7577 = vmul.f32 %v7572, %v511
    %v7578 = vmul.f32 %v7572, %v512
    %v7579 = vmul.f32 %v7572, %v513
    %v7580 = vmul.f32 %v7572, %v514
    %v7581 = vmul.f32 %v7572, %v515
    %v7582 = vmul.f32 %v7572, %v516
    %v7583 = vmul.f32 %v7572, %v517
    %v7584 = vmul.f32 %v7572, %v518
    %v7585 = vmul.f32 %v7572, %v519
    %v7586 = vmul.f32 %v7572, %v520
    %v7587 = vmul.f32 %v7572, %v521
    %v7588 = vmul.f32 %v7572, %v522
    %v7589 = vmul.f32 %v7572, %v523
    %v7590 = vmul.f32 %v7572, %v524
    %v7591 = vmul.f32 %v7572, %v525
    %v7592 = vmul.f32 %v7572, %v526
    %v7593 = vmul.f32 %v7572, %v527
    %v7594 = vmul.f32 %v7572, %v528
    %v7595 = vmul.f32 %v7572, %v529
    %v7596 = vmul.f32 %v7572, %v530
    %v7597 = vmul.f32 %v7572, %v531
    %v7598 = vmul.f32 %v7572, %v532
    %v7599 = vmul.f32 %v7572, %v533
    %v7600 = vmul.f32 %v7572, %v534
    %v7601 = vmul.f32 %v7572, %v535
    %v7602 = vmul.f32 %v7572, %v536
    %v7603 = vmul.f32 %v7572, %v537
    %v7604 = vmul.f32 %v7572, %v538
    %v7605 = vadd.f32 %v7539, %v7573
    %v7606 = vadd.f32 %v7540, %v7574
    %v7607 = vadd.f32 %v7541, %v7575
    %v7608 = vadd.f32 %v7542, %v7576
    %v7609 = vadd.f32 %v7543, %v7577
    %v7610 = vadd.f32 %v7544, %v7578
    %v7611 = vadd.f32 %v7545, %v7579
    %v7612 = vadd.f32 %v7546, %v7580
    %v7613 = vadd.f32 %v7547, %v7581
    %v7614 = vadd.f32 %v7548, %v7582
    %v7615 = vadd.f32 %v7549, %v7583
    %v7616 = vadd.f32 %v7550, %v7584
    %v7617 = vadd.f32 %v7551, %v7585
    %v7618 = vadd.f32 %v7552, %v7586
    %v7619 = vadd.f32 %v7553, %v7587
    %v7620 = vadd.f32 %v7554, %v7588
    %v7621 = vadd.f32 %v7555, %v7589
    %v7622 = vadd.f32 %v7556, %v7590
    %v7623 = vadd.f32 %v7557, %v7591
    %v7624 = vadd.f32 %v7558, %v7592
    %v7625 = vadd.f32 %v7559, %v7593
    %v7626 = vadd.f32 %v7560, %v7594
    %v7627 = vadd.f32 %v7561, %v7595
    %v7628 = vadd.f32 %v7562, %v7596
    %v7629 = vadd.f32 %v7563, %v7597
    %v7630 = vadd.f32 %v7564, %v7598
    %v7631 = vadd.f32 %v7565, %v7599
    %v7632 = vadd.f32 %v7566, %v7600
    %v7633 = vadd.f32 %v7567, %v7601
    %v7634 = vadd.f32 %v7568, %v7602
    %v7635 = vadd.f32 %v7569, %v7603
    %v7636 = vadd.f32 %v7570, %v7604
    %s7637 = sld [smem:[#allocation3 + $0x50]]
    %v7638 = vstv %s7637
    %v7639 = vmul.f32 %v7638, %v539
    %v7640 = vmul.f32 %v7638, %v540
    %v7641 = vmul.f32 %v7638, %v541
    %v7642 = vmul.f32 %v7638, %v542
    %v7643 = vmul.f32 %v7638, %v543
    %v7644 = vmul.f32 %v7638, %v544
    %v7645 = vmul.f32 %v7638, %v545
    %v7646 = vmul.f32 %v7638, %v546
    %v7647 = vmul.f32 %v7638, %v547
    %v7648 = vmul.f32 %v7638, %v548
    %v7649 = vmul.f32 %v7638, %v549
    %v7650 = vmul.f32 %v7638, %v550
    %v7651 = vmul.f32 %v7638, %v551
    %v7652 = vmul.f32 %v7638, %v552
    %v7653 = vmul.f32 %v7638, %v553
    %v7654 = vmul.f32 %v7638, %v554
    %v7655 = vmul.f32 %v7638, %v555
    %v7656 = vmul.f32 %v7638, %v556
    %v7657 = vmul.f32 %v7638, %v557
    %v7658 = vmul.f32 %v7638, %v558
    %v7659 = vmul.f32 %v7638, %v559
    %v7660 = vmul.f32 %v7638, %v560
    %v7661 = vmul.f32 %v7638, %v561
    %v7662 = vmul.f32 %v7638, %v562
    %v7663 = vmul.f32 %v7638, %v563
    %v7664 = vmul.f32 %v7638, %v564
    %v7665 = vmul.f32 %v7638, %v565
    %v7666 = vmul.f32 %v7638, %v566
    %v7667 = vmul.f32 %v7638, %v567
    %v7668 = vmul.f32 %v7638, %v568
    %v7669 = vmul.f32 %v7638, %v569
    %v7670 = vmul.f32 %v7638, %v570
    %v7671 = vadd.f32 %v7605, %v7639
    %v7672 = vadd.f32 %v7606, %v7640
    %v7673 = vadd.f32 %v7607, %v7641
    %v7674 = vadd.f32 %v7608, %v7642
    %v7675 = vadd.f32 %v7609, %v7643
    %v7676 = vadd.f32 %v7610, %v7644
    %v7677 = vadd.f32 %v7611, %v7645
    %v7678 = vadd.f32 %v7612, %v7646
    %v7679 = vadd.f32 %v7613, %v7647
    %v7680 = vadd.f32 %v7614, %v7648
    %v7681 = vadd.f32 %v7615, %v7649
    %v7682 = vadd.f32 %v7616, %v7650
    %v7683 = vadd.f32 %v7617, %v7651
    %v7684 = vadd.f32 %v7618, %v7652
    %v7685 = vadd.f32 %v7619, %v7653
    %v7686 = vadd.f32 %v7620, %v7654
    %v7687 = vadd.f32 %v7621, %v7655
    %v7688 = vadd.f32 %v7622, %v7656
    %v7689 = vadd.f32 %v7623, %v7657
    %v7690 = vadd.f32 %v7624, %v7658
    %v7691 = vadd.f32 %v7625, %v7659
    %v7692 = vadd.f32 %v7626, %v7660
    %v7693 = vadd.f32 %v7627, %v7661
    %v7694 = vadd.f32 %v7628, %v7662
    %v7695 = vadd.f32 %v7629, %v7663
    %v7696 = vadd.f32 %v7630, %v7664
    %v7697 = vadd.f32 %v7631, %v7665
    %v7698 = vadd.f32 %v7632, %v7666
    %v7699 = vadd.f32 %v7633, %v7667
    %v7700 = vadd.f32 %v7634, %v7668
    %v7701 = vadd.f32 %v7635, %v7669
    %v7702 = vadd.f32 %v7636, %v7670
    %s7703 = sld [smem:[#allocation5 + $0x1a]]
    %v7704 = vstv %s7703
    %v7705 = vadd.f32 %v7671, %v7704
    %v7706 = vadd.f32 %v7672, %v7704
    %v7707 = vadd.f32 %v7673, %v7704
    %v7708 = vadd.f32 %v7674, %v7704
    %v7709 = vadd.f32 %v7675, %v7704
    %v7710 = vadd.f32 %v7676, %v7704
    %v7711 = vadd.f32 %v7677, %v7704
    %v7712 = vadd.f32 %v7678, %v7704
    %v7713 = vadd.f32 %v7679, %v7704
    %v7714 = vadd.f32 %v7680, %v7704
    %v7715 = vadd.f32 %v7681, %v7704
    %v7716 = vadd.f32 %v7682, %v7704
    %v7717 = vadd.f32 %v7683, %v7704
    %v7718 = vadd.f32 %v7684, %v7704
    %v7719 = vadd.f32 %v7685, %v7704
    %v7720 = vadd.f32 %v7686, %v7704
    %v7721 = vadd.f32 %v7687, %v7704
    %v7722 = vadd.f32 %v7688, %v7704
    %v7723 = vadd.f32 %v7689, %v7704
    %v7724 = vadd.f32 %v7690, %v7704
    %v7725 = vadd.f32 %v7691, %v7704
    %v7726 = vadd.f32 %v7692, %v7704
    %v7727 = vadd.f32 %v7693, %v7704
    %v7728 = vadd.f32 %v7694, %v7704
    %v7729 = vadd.f32 %v7695, %v7704
    %v7730 = vadd.f32 %v7696, %v7704
    %v7731 = vadd.f32 %v7697, %v7704
    %v7732 = vadd.f32 %v7698, %v7704
    %v7733 = vadd.f32 %v7699, %v7704
    %v7734 = vadd.f32 %v7700, %v7704
    %v7735 = vadd.f32 %v7701, %v7704
    %v7736 = vadd.f32 %v7702, %v7704
    %s7737 = sld [smem:[#allocation7 + $0x1a]]
    %v7738 = vtanh.pop %v7705
    %v7739 = vtanh.pop %v7706
    %v7740 = vtanh.pop %v7707
    %v7741 = vtanh.pop %v7708
    %v7742 = vtanh.pop %v7709
    %v7743 = vtanh.pop %v7710
    %v7744 = vtanh.pop %v7711
    %v7745 = vtanh.pop %v7712
    %v7746 = vtanh.pop %v7713
    %v7747 = vtanh.pop %v7714
    %v7748 = vtanh.pop %v7715
    %v7749 = vtanh.pop %v7716
    %v7750 = vtanh.pop %v7717
    %v7751 = vtanh.pop %v7718
    %v7752 = vtanh.pop %v7719
    %v7753 = vtanh.pop %v7720
    %v7754 = vtanh.pop %v7721
    %v7755 = vtanh.pop %v7722
    %v7756 = vtanh.pop %v7723
    %v7757 = vtanh.pop %v7724
    %v7758 = vtanh.pop %v7725
    %v7759 = vtanh.pop %v7726
    %v7760 = vtanh.pop %v7727
    %v7761 = vtanh.pop %v7728
    %v7762 = vtanh.pop %v7729
    %v7763 = vtanh.pop %v7730
    %v7764 = vtanh.pop %v7731
    %v7765 = vtanh.pop %v7732
    %v7766 = vtanh.pop %v7733
    %v7767 = vtanh.pop %v7734
    %v7768 = vtanh.pop %v7735
    %v7769 = vtanh.pop %v7736
    %v7770 = vadd.f32 %v7738, %v7740
    %v7771 = vadd.f32 %v7770, %v7742
    %v7772 = vadd.f32 %v7771, %v7744
    %v7773 = vadd.f32 %v7772, %v7746
    %v7774 = vadd.f32 %v7773, %v7748
    %v7775 = vadd.f32 %v7774, %v7750
    %v7776 = vadd.f32 %v7775, %v7752
    %v7777 = vadd.f32 %v7776, %v7754
    %v7778 = vadd.f32 %v7777, %v7756
    %v7779 = vadd.f32 %v7778, %v7758
    %v7780 = vadd.f32 %v7779, %v7760
    %v7781 = vadd.f32 %v7780, %v7762
    %v7782 = vadd.f32 %v7781, %v7764
    %v7783 = vadd.f32 %v7782, %v7766
    %v7784 = vadd.f32 %v7783, %v7768
    %v7785 = vadd.f32 %v7739, %v7741
    %v7786 = vadd.f32 %v7785, %v7743
    %v7787 = vadd.f32 %v7786, %v7745
    %v7788 = vadd.f32 %v7787, %v7747
    %v7789 = vadd.f32 %v7788, %v7749
    %v7790 = vadd.f32 %v7789, %v7751
    %v7791 = vadd.f32 %v7790, %v7753
    %v7792 = vadd.f32 %v7791, %v7755
    %v7793 = vadd.f32 %v7792, %v7757
    %v7794 = vadd.f32 %v7793, %v7759
    %v7795 = vadd.f32 %v7794, %v7761
    %v7796 = vadd.f32 %v7795, %v7763
    %v7797 = vadd.f32 %v7796, %v7765
    %v7798 = vadd.f32 %v7797, %v7767
    %v7799 = vadd.f32 %v7798, %v7769
    %v7800 = vstv %s7737
    %v7801 = vmul.f32 %v7800, %v7784
    %v7802 = vmul.f32 %v7800, %v7799
    %v7803 = vadd.f32 %v7535, %v7801
    %v7804 = vadd.f32 %v7536, %v7802
    %s7805 = sld [smem:[#allocation3 + $0x51]]
    %v7806 = vstv %s7805
    %v7807 = vmul.f32 %v7806, %v475
    %v7808 = vmul.f32 %v7806, %v476
    %v7809 = vmul.f32 %v7806, %v477
    %v7810 = vmul.f32 %v7806, %v478
    %v7811 = vmul.f32 %v7806, %v479
    %v7812 = vmul.f32 %v7806, %v480
    %v7813 = vmul.f32 %v7806, %v481
    %v7814 = vmul.f32 %v7806, %v482
    %v7815 = vmul.f32 %v7806, %v483
    %v7816 = vmul.f32 %v7806, %v484
    %v7817 = vmul.f32 %v7806, %v485
    %v7818 = vmul.f32 %v7806, %v486
    %v7819 = vmul.f32 %v7806, %v487
    %v7820 = vmul.f32 %v7806, %v488
    %v7821 = vmul.f32 %v7806, %v489
    %v7822 = vmul.f32 %v7806, %v490
    %v7823 = vmul.f32 %v7806, %v491
    %v7824 = vmul.f32 %v7806, %v492
    %v7825 = vmul.f32 %v7806, %v493
    %v7826 = vmul.f32 %v7806, %v494
    %v7827 = vmul.f32 %v7806, %v495
    %v7828 = vmul.f32 %v7806, %v496
    %v7829 = vmul.f32 %v7806, %v497
    %v7830 = vmul.f32 %v7806, %v498
    %v7831 = vmul.f32 %v7806, %v499
    %v7832 = vmul.f32 %v7806, %v500
    %v7833 = vmul.f32 %v7806, %v501
    %v7834 = vmul.f32 %v7806, %v502
    %v7835 = vmul.f32 %v7806, %v503
    %v7836 = vmul.f32 %v7806, %v504
    %v7837 = vmul.f32 %v7806, %v505
    %v7838 = vmul.f32 %v7806, %v506
    %s7839 = sld [smem:[#allocation3 + $0x52]]
    %v7840 = vstv %s7839
    %v7841 = vmul.f32 %v7840, %v507
    %v7842 = vmul.f32 %v7840, %v508
    %v7843 = vmul.f32 %v7840, %v509
    %v7844 = vmul.f32 %v7840, %v510
    %v7845 = vmul.f32 %v7840, %v511
    %v7846 = vmul.f32 %v7840, %v512
    %v7847 = vmul.f32 %v7840, %v513
    %v7848 = vmul.f32 %v7840, %v514
    %v7849 = vmul.f32 %v7840, %v515
    %v7850 = vmul.f32 %v7840, %v516
    %v7851 = vmul.f32 %v7840, %v517
    %v7852 = vmul.f32 %v7840, %v518
    %v7853 = vmul.f32 %v7840, %v519
    %v7854 = vmul.f32 %v7840, %v520
    %v7855 = vmul.f32 %v7840, %v521
    %v7856 = vmul.f32 %v7840, %v522
    %v7857 = vmul.f32 %v7840, %v523
    %v7858 = vmul.f32 %v7840, %v524
    %v7859 = vmul.f32 %v7840, %v525
    %v7860 = vmul.f32 %v7840, %v526
    %v7861 = vmul.f32 %v7840, %v527
    %v7862 = vmul.f32 %v7840, %v528
    %v7863 = vmul.f32 %v7840, %v529
    %v7864 = vmul.f32 %v7840, %v530
    %v7865 = vmul.f32 %v7840, %v531
    %v7866 = vmul.f32 %v7840, %v532
    %v7867 = vmul.f32 %v7840, %v533
    %v7868 = vmul.f32 %v7840, %v534
    %v7869 = vmul.f32 %v7840, %v535
    %v7870 = vmul.f32 %v7840, %v536
    %v7871 = vmul.f32 %v7840, %v537
    %v7872 = vmul.f32 %v7840, %v538
    %v7873 = vadd.f32 %v7807, %v7841
    %v7874 = vadd.f32 %v7808, %v7842
    %v7875 = vadd.f32 %v7809, %v7843
    %v7876 = vadd.f32 %v7810, %v7844
    %v7877 = vadd.f32 %v7811, %v7845
    %v7878 = vadd.f32 %v7812, %v7846
    %v7879 = vadd.f32 %v7813, %v7847
    %v7880 = vadd.f32 %v7814, %v7848
    %v7881 = vadd.f32 %v7815, %v7849
    %v7882 = vadd.f32 %v7816, %v7850
    %v7883 = vadd.f32 %v7817, %v7851
    %v7884 = vadd.f32 %v7818, %v7852
    %v7885 = vadd.f32 %v7819, %v7853
    %v7886 = vadd.f32 %v7820, %v7854
    %v7887 = vadd.f32 %v7821, %v7855
    %v7888 = vadd.f32 %v7822, %v7856
    %v7889 = vadd.f32 %v7823, %v7857
    %v7890 = vadd.f32 %v7824, %v7858
    %v7891 = vadd.f32 %v7825, %v7859
    %v7892 = vadd.f32 %v7826, %v7860
    %v7893 = vadd.f32 %v7827, %v7861
    %v7894 = vadd.f32 %v7828, %v7862
    %v7895 = vadd.f32 %v7829, %v7863
    %v7896 = vadd.f32 %v7830, %v7864
    %v7897 = vadd.f32 %v7831, %v7865
    %v7898 = vadd.f32 %v7832, %v7866
    %v7899 = vadd.f32 %v7833, %v7867
    %v7900 = vadd.f32 %v7834, %v7868
    %v7901 = vadd.f32 %v7835, %v7869
    %v7902 = vadd.f32 %v7836, %v7870
    %v7903 = vadd.f32 %v7837, %v7871
    %v7904 = vadd.f32 %v7838, %v7872
    %s7905 = sld [smem:[#allocation3 + $0x53]]
    %v7906 = vstv %s7905
    %v7907 = vmul.f32 %v7906, %v539
    %v7908 = vmul.f32 %v7906, %v540
    %v7909 = vmul.f32 %v7906, %v541
    %v7910 = vmul.f32 %v7906, %v542
    %v7911 = vmul.f32 %v7906, %v543
    %v7912 = vmul.f32 %v7906, %v544
    %v7913 = vmul.f32 %v7906, %v545
    %v7914 = vmul.f32 %v7906, %v546
    %v7915 = vmul.f32 %v7906, %v547
    %v7916 = vmul.f32 %v7906, %v548
    %v7917 = vmul.f32 %v7906, %v549
    %v7918 = vmul.f32 %v7906, %v550
    %v7919 = vmul.f32 %v7906, %v551
    %v7920 = vmul.f32 %v7906, %v552
    %v7921 = vmul.f32 %v7906, %v553
    %v7922 = vmul.f32 %v7906, %v554
    %v7923 = vmul.f32 %v7906, %v555
    %v7924 = vmul.f32 %v7906, %v556
    %v7925 = vmul.f32 %v7906, %v557
    %v7926 = vmul.f32 %v7906, %v558
    %v7927 = vmul.f32 %v7906, %v559
    %v7928 = vmul.f32 %v7906, %v560
    %v7929 = vmul.f32 %v7906, %v561
    %v7930 = vmul.f32 %v7906, %v562
    %v7931 = vmul.f32 %v7906, %v563
    %v7932 = vmul.f32 %v7906, %v564
    %v7933 = vmul.f32 %v7906, %v565
    %v7934 = vmul.f32 %v7906, %v566
    %v7935 = vmul.f32 %v7906, %v567
    %v7936 = vmul.f32 %v7906, %v568
    %v7937 = vmul.f32 %v7906, %v569
    %v7938 = vmul.f32 %v7906, %v570
    %v7939 = vadd.f32 %v7873, %v7907
    %v7940 = vadd.f32 %v7874, %v7908
    %v7941 = vadd.f32 %v7875, %v7909
    %v7942 = vadd.f32 %v7876, %v7910
    %v7943 = vadd.f32 %v7877, %v7911
    %v7944 = vadd.f32 %v7878, %v7912
    %v7945 = vadd.f32 %v7879, %v7913
    %v7946 = vadd.f32 %v7880, %v7914
    %v7947 = vadd.f32 %v7881, %v7915
    %v7948 = vadd.f32 %v7882, %v7916
    %v7949 = vadd.f32 %v7883, %v7917
    %v7950 = vadd.f32 %v7884, %v7918
    %v7951 = vadd.f32 %v7885, %v7919
    %v7952 = vadd.f32 %v7886, %v7920
    %v7953 = vadd.f32 %v7887, %v7921
    %v7954 = vadd.f32 %v7888, %v7922
    %v7955 = vadd.f32 %v7889, %v7923
    %v7956 = vadd.f32 %v7890, %v7924
    %v7957 = vadd.f32 %v7891, %v7925
    %v7958 = vadd.f32 %v7892, %v7926
    %v7959 = vadd.f32 %v7893, %v7927
    %v7960 = vadd.f32 %v7894, %v7928
    %v7961 = vadd.f32 %v7895, %v7929
    %v7962 = vadd.f32 %v7896, %v7930
    %v7963 = vadd.f32 %v7897, %v7931
    %v7964 = vadd.f32 %v7898, %v7932
    %v7965 = vadd.f32 %v7899, %v7933
    %v7966 = vadd.f32 %v7900, %v7934
    %v7967 = vadd.f32 %v7901, %v7935
    %v7968 = vadd.f32 %v7902, %v7936
    %v7969 = vadd.f32 %v7903, %v7937
    %v7970 = vadd.f32 %v7904, %v7938
    %s7971 = sld [smem:[#allocation5 + $0x1b]]
    %v7972 = vstv %s7971
    %v7973 = vadd.f32 %v7939, %v7972
    %v7974 = vadd.f32 %v7940, %v7972
    %v7975 = vadd.f32 %v7941, %v7972
    %v7976 = vadd.f32 %v7942, %v7972
    %v7977 = vadd.f32 %v7943, %v7972
    %v7978 = vadd.f32 %v7944, %v7972
    %v7979 = vadd.f32 %v7945, %v7972
    %v7980 = vadd.f32 %v7946, %v7972
    %v7981 = vadd.f32 %v7947, %v7972
    %v7982 = vadd.f32 %v7948, %v7972
    %v7983 = vadd.f32 %v7949, %v7972
    %v7984 = vadd.f32 %v7950, %v7972
    %v7985 = vadd.f32 %v7951, %v7972
    %v7986 = vadd.f32 %v7952, %v7972
    %v7987 = vadd.f32 %v7953, %v7972
    %v7988 = vadd.f32 %v7954, %v7972
    %v7989 = vadd.f32 %v7955, %v7972
    %v7990 = vadd.f32 %v7956, %v7972
    %v7991 = vadd.f32 %v7957, %v7972
    %v7992 = vadd.f32 %v7958, %v7972
    %v7993 = vadd.f32 %v7959, %v7972
    %v7994 = vadd.f32 %v7960, %v7972
    %v7995 = vadd.f32 %v7961, %v7972
    %v7996 = vadd.f32 %v7962, %v7972
    %v7997 = vadd.f32 %v7963, %v7972
    %v7998 = vadd.f32 %v7964, %v7972
    %v7999 = vadd.f32 %v7965, %v7972
    %v8000 = vadd.f32 %v7966, %v7972
    %v8001 = vadd.f32 %v7967, %v7972
    %v8002 = vadd.f32 %v7968, %v7972
    %v8003 = vadd.f32 %v7969, %v7972
    %v8004 = vadd.f32 %v7970, %v7972
    %s8005 = sld [smem:[#allocation7 + $0x1b]]
    %v8006 = vtanh.pop %v7973
    %v8007 = vtanh.pop %v7974
    %v8008 = vtanh.pop %v7975
    %v8009 = vtanh.pop %v7976
    %v8010 = vtanh.pop %v7977
    %v8011 = vtanh.pop %v7978
    %v8012 = vtanh.pop %v7979
    %v8013 = vtanh.pop %v7980
    %v8014 = vtanh.pop %v7981
    %v8015 = vtanh.pop %v7982
    %v8016 = vtanh.pop %v7983
    %v8017 = vtanh.pop %v7984
    %v8018 = vtanh.pop %v7985
    %v8019 = vtanh.pop %v7986
    %v8020 = vtanh.pop %v7987
    %v8021 = vtanh.pop %v7988
    %v8022 = vtanh.pop %v7989
    %v8023 = vtanh.pop %v7990
    %v8024 = vtanh.pop %v7991
    %v8025 = vtanh.pop %v7992
    %v8026 = vtanh.pop %v7993
    %v8027 = vtanh.pop %v7994
    %v8028 = vtanh.pop %v7995
    %v8029 = vtanh.pop %v7996
    %v8030 = vtanh.pop %v7997
    %v8031 = vtanh.pop %v7998
    %v8032 = vtanh.pop %v7999
    %v8033 = vtanh.pop %v8000
    %v8034 = vtanh.pop %v8001
    %v8035 = vtanh.pop %v8002
    %v8036 = vtanh.pop %v8003
    %v8037 = vtanh.pop %v8004
    %v8038 = vadd.f32 %v8006, %v8008
    %v8039 = vadd.f32 %v8038, %v8010
    %v8040 = vadd.f32 %v8039, %v8012
    %v8041 = vadd.f32 %v8040, %v8014
    %v8042 = vadd.f32 %v8041, %v8016
    %v8043 = vadd.f32 %v8042, %v8018
    %v8044 = vadd.f32 %v8043, %v8020
    %v8045 = vadd.f32 %v8044, %v8022
    %v8046 = vadd.f32 %v8045, %v8024
    %v8047 = vadd.f32 %v8046, %v8026
    %v8048 = vadd.f32 %v8047, %v8028
    %v8049 = vadd.f32 %v8048, %v8030
    %v8050 = vadd.f32 %v8049, %v8032
    %v8051 = vadd.f32 %v8050, %v8034
    %v8052 = vadd.f32 %v8051, %v8036
    %v8053 = vadd.f32 %v8007, %v8009
    %v8054 = vadd.f32 %v8053, %v8011
    %v8055 = vadd.f32 %v8054, %v8013
    %v8056 = vadd.f32 %v8055, %v8015
    %v8057 = vadd.f32 %v8056, %v8017
    %v8058 = vadd.f32 %v8057, %v8019
    %v8059 = vadd.f32 %v8058, %v8021
    %v8060 = vadd.f32 %v8059, %v8023
    %v8061 = vadd.f32 %v8060, %v8025
    %v8062 = vadd.f32 %v8061, %v8027
    %v8063 = vadd.f32 %v8062, %v8029
    %v8064 = vadd.f32 %v8063, %v8031
    %v8065 = vadd.f32 %v8064, %v8033
    %v8066 = vadd.f32 %v8065, %v8035
    %v8067 = vadd.f32 %v8066, %v8037
    %v8068 = vstv %s8005
    %v8069 = vmul.f32 %v8068, %v8052
    %v8070 = vmul.f32 %v8068, %v8067
    %v8071 = vadd.f32 %v7803, %v8069
    %v8072 = vadd.f32 %v7804, %v8070
    %s8073 = sld [smem:[#allocation3 + $0x54]]
    %v8074 = vstv %s8073
    %v8075 = vmul.f32 %v8074, %v475
    %v8076 = vmul.f32 %v8074, %v476
    %v8077 = vmul.f32 %v8074, %v477
    %v8078 = vmul.f32 %v8074, %v478
    %v8079 = vmul.f32 %v8074, %v479
    %v8080 = vmul.f32 %v8074, %v480
    %v8081 = vmul.f32 %v8074, %v481
    %v8082 = vmul.f32 %v8074, %v482
    %v8083 = vmul.f32 %v8074, %v483
    %v8084 = vmul.f32 %v8074, %v484
    %v8085 = vmul.f32 %v8074, %v485
    %v8086 = vmul.f32 %v8074, %v486
    %v8087 = vmul.f32 %v8074, %v487
    %v8088 = vmul.f32 %v8074, %v488
    %v8089 = vmul.f32 %v8074, %v489
    %v8090 = vmul.f32 %v8074, %v490
    %v8091 = vmul.f32 %v8074, %v491
    %v8092 = vmul.f32 %v8074, %v492
    %v8093 = vmul.f32 %v8074, %v493
    %v8094 = vmul.f32 %v8074, %v494
    %v8095 = vmul.f32 %v8074, %v495
    %v8096 = vmul.f32 %v8074, %v496
    %v8097 = vmul.f32 %v8074, %v497
    %v8098 = vmul.f32 %v8074, %v498
    %v8099 = vmul.f32 %v8074, %v499
    %v8100 = vmul.f32 %v8074, %v500
    %v8101 = vmul.f32 %v8074, %v501
    %v8102 = vmul.f32 %v8074, %v502
    %v8103 = vmul.f32 %v8074, %v503
    %v8104 = vmul.f32 %v8074, %v504
    %v8105 = vmul.f32 %v8074, %v505
    %v8106 = vmul.f32 %v8074, %v506
    %s8107 = sld [smem:[#allocation3 + $0x55]]
    %v8108 = vstv %s8107
    %v8109 = vmul.f32 %v8108, %v507
    %v8110 = vmul.f32 %v8108, %v508
    %v8111 = vmul.f32 %v8108, %v509
    %v8112 = vmul.f32 %v8108, %v510
    %v8113 = vmul.f32 %v8108, %v511
    %v8114 = vmul.f32 %v8108, %v512
    %v8115 = vmul.f32 %v8108, %v513
    %v8116 = vmul.f32 %v8108, %v514
    %v8117 = vmul.f32 %v8108, %v515
    %v8118 = vmul.f32 %v8108, %v516
    %v8119 = vmul.f32 %v8108, %v517
    %v8120 = vmul.f32 %v8108, %v518
    %v8121 = vmul.f32 %v8108, %v519
    %v8122 = vmul.f32 %v8108, %v520
    %v8123 = vmul.f32 %v8108, %v521
    %v8124 = vmul.f32 %v8108, %v522
    %v8125 = vmul.f32 %v8108, %v523
    %v8126 = vmul.f32 %v8108, %v524
    %v8127 = vmul.f32 %v8108, %v525
    %v8128 = vmul.f32 %v8108, %v526
    %v8129 = vmul.f32 %v8108, %v527
    %v8130 = vmul.f32 %v8108, %v528
    %v8131 = vmul.f32 %v8108, %v529
    %v8132 = vmul.f32 %v8108, %v530
    %v8133 = vmul.f32 %v8108, %v531
    %v8134 = vmul.f32 %v8108, %v532
    %v8135 = vmul.f32 %v8108, %v533
    %v8136 = vmul.f32 %v8108, %v534
    %v8137 = vmul.f32 %v8108, %v535
    %v8138 = vmul.f32 %v8108, %v536
    %v8139 = vmul.f32 %v8108, %v537
    %v8140 = vmul.f32 %v8108, %v538
    %v8141 = vadd.f32 %v8075, %v8109
    %v8142 = vadd.f32 %v8076, %v8110
    %v8143 = vadd.f32 %v8077, %v8111
    %v8144 = vadd.f32 %v8078, %v8112
    %v8145 = vadd.f32 %v8079, %v8113
    %v8146 = vadd.f32 %v8080, %v8114
    %v8147 = vadd.f32 %v8081, %v8115
    %v8148 = vadd.f32 %v8082, %v8116
    %v8149 = vadd.f32 %v8083, %v8117
    %v8150 = vadd.f32 %v8084, %v8118
    %v8151 = vadd.f32 %v8085, %v8119
    %v8152 = vadd.f32 %v8086, %v8120
    %v8153 = vadd.f32 %v8087, %v8121
    %v8154 = vadd.f32 %v8088, %v8122
    %v8155 = vadd.f32 %v8089, %v8123
    %v8156 = vadd.f32 %v8090, %v8124
    %v8157 = vadd.f32 %v8091, %v8125
    %v8158 = vadd.f32 %v8092, %v8126
    %v8159 = vadd.f32 %v8093, %v8127
    %v8160 = vadd.f32 %v8094, %v8128
    %v8161 = vadd.f32 %v8095, %v8129
    %v8162 = vadd.f32 %v8096, %v8130
    %v8163 = vadd.f32 %v8097, %v8131
    %v8164 = vadd.f32 %v8098, %v8132
    %v8165 = vadd.f32 %v8099, %v8133
    %v8166 = vadd.f32 %v8100, %v8134
    %v8167 = vadd.f32 %v8101, %v8135
    %v8168 = vadd.f32 %v8102, %v8136
    %v8169 = vadd.f32 %v8103, %v8137
    %v8170 = vadd.f32 %v8104, %v8138
    %v8171 = vadd.f32 %v8105, %v8139
    %v8172 = vadd.f32 %v8106, %v8140
    %s8173 = sld [smem:[#allocation3 + $0x56]]
    %v8174 = vstv %s8173
    %v8175 = vmul.f32 %v8174, %v539
    %v8176 = vmul.f32 %v8174, %v540
    %v8177 = vmul.f32 %v8174, %v541
    %v8178 = vmul.f32 %v8174, %v542
    %v8179 = vmul.f32 %v8174, %v543
    %v8180 = vmul.f32 %v8174, %v544
    %v8181 = vmul.f32 %v8174, %v545
    %v8182 = vmul.f32 %v8174, %v546
    %v8183 = vmul.f32 %v8174, %v547
    %v8184 = vmul.f32 %v8174, %v548
    %v8185 = vmul.f32 %v8174, %v549
    %v8186 = vmul.f32 %v8174, %v550
    %v8187 = vmul.f32 %v8174, %v551
    %v8188 = vmul.f32 %v8174, %v552
    %v8189 = vmul.f32 %v8174, %v553
    %v8190 = vmul.f32 %v8174, %v554
    %v8191 = vmul.f32 %v8174, %v555
    %v8192 = vmul.f32 %v8174, %v556
    %v8193 = vmul.f32 %v8174, %v557
    %v8194 = vmul.f32 %v8174, %v558
    %v8195 = vmul.f32 %v8174, %v559
    %v8196 = vmul.f32 %v8174, %v560
    %v8197 = vmul.f32 %v8174, %v561
    %v8198 = vmul.f32 %v8174, %v562
    %v8199 = vmul.f32 %v8174, %v563
    %v8200 = vmul.f32 %v8174, %v564
    %v8201 = vmul.f32 %v8174, %v565
    %v8202 = vmul.f32 %v8174, %v566
    %v8203 = vmul.f32 %v8174, %v567
    %v8204 = vmul.f32 %v8174, %v568
    %v8205 = vmul.f32 %v8174, %v569
    %v8206 = vmul.f32 %v8174, %v570
    %v8207 = vadd.f32 %v8141, %v8175
    %v8208 = vadd.f32 %v8142, %v8176
    %v8209 = vadd.f32 %v8143, %v8177
    %v8210 = vadd.f32 %v8144, %v8178
    %v8211 = vadd.f32 %v8145, %v8179
    %v8212 = vadd.f32 %v8146, %v8180
    %v8213 = vadd.f32 %v8147, %v8181
    %v8214 = vadd.f32 %v8148, %v8182
    %v8215 = vadd.f32 %v8149, %v8183
    %v8216 = vadd.f32 %v8150, %v8184
    %v8217 = vadd.f32 %v8151, %v8185
    %v8218 = vadd.f32 %v8152, %v8186
    %v8219 = vadd.f32 %v8153, %v8187
    %v8220 = vadd.f32 %v8154, %v8188
    %v8221 = vadd.f32 %v8155, %v8189
    %v8222 = vadd.f32 %v8156, %v8190
    %v8223 = vadd.f32 %v8157, %v8191
    %v8224 = vadd.f32 %v8158, %v8192
    %v8225 = vadd.f32 %v8159, %v8193
    %v8226 = vadd.f32 %v8160, %v8194
    %v8227 = vadd.f32 %v8161, %v8195
    %v8228 = vadd.f32 %v8162, %v8196
    %v8229 = vadd.f32 %v8163, %v8197
    %v8230 = vadd.f32 %v8164, %v8198
    %v8231 = vadd.f32 %v8165, %v8199
    %v8232 = vadd.f32 %v8166, %v8200
    %v8233 = vadd.f32 %v8167, %v8201
    %v8234 = vadd.f32 %v8168, %v8202
    %v8235 = vadd.f32 %v8169, %v8203
    %v8236 = vadd.f32 %v8170, %v8204
    %v8237 = vadd.f32 %v8171, %v8205
    %v8238 = vadd.f32 %v8172, %v8206
    %s8239 = sld [smem:[#allocation5 + $0x1c]]
    %v8240 = vstv %s8239
    %v8241 = vadd.f32 %v8207, %v8240
    %v8242 = vadd.f32 %v8208, %v8240
    %v8243 = vadd.f32 %v8209, %v8240
    %v8244 = vadd.f32 %v8210, %v8240
    %v8245 = vadd.f32 %v8211, %v8240
    %v8246 = vadd.f32 %v8212, %v8240
    %v8247 = vadd.f32 %v8213, %v8240
    %v8248 = vadd.f32 %v8214, %v8240
    %v8249 = vadd.f32 %v8215, %v8240
    %v8250 = vadd.f32 %v8216, %v8240
    %v8251 = vadd.f32 %v8217, %v8240
    %v8252 = vadd.f32 %v8218, %v8240
    %v8253 = vadd.f32 %v8219, %v8240
    %v8254 = vadd.f32 %v8220, %v8240
    %v8255 = vadd.f32 %v8221, %v8240
    %v8256 = vadd.f32 %v8222, %v8240
    %v8257 = vadd.f32 %v8223, %v8240
    %v8258 = vadd.f32 %v8224, %v8240
    %v8259 = vadd.f32 %v8225, %v8240
    %v8260 = vadd.f32 %v8226, %v8240
    %v8261 = vadd.f32 %v8227, %v8240
    %v8262 = vadd.f32 %v8228, %v8240
    %v8263 = vadd.f32 %v8229, %v8240
    %v8264 = vadd.f32 %v8230, %v8240
    %v8265 = vadd.f32 %v8231, %v8240
    %v8266 = vadd.f32 %v8232, %v8240
    %v8267 = vadd.f32 %v8233, %v8240
    %v8268 = vadd.f32 %v8234, %v8240
    %v8269 = vadd.f32 %v8235, %v8240
    %v8270 = vadd.f32 %v8236, %v8240
    %v8271 = vadd.f32 %v8237, %v8240
    %v8272 = vadd.f32 %v8238, %v8240
    %s8273 = sld [smem:[#allocation7 + $0x1c]]
    %v8274 = vtanh.pop %v8241
    %v8275 = vtanh.pop %v8242
    %v8276 = vtanh.pop %v8243
    %v8277 = vtanh.pop %v8244
    %v8278 = vtanh.pop %v8245
    %v8279 = vtanh.pop %v8246
    %v8280 = vtanh.pop %v8247
    %v8281 = vtanh.pop %v8248
    %v8282 = vtanh.pop %v8249
    %v8283 = vtanh.pop %v8250
    %v8284 = vtanh.pop %v8251
    %v8285 = vtanh.pop %v8252
    %v8286 = vtanh.pop %v8253
    %v8287 = vtanh.pop %v8254
    %v8288 = vtanh.pop %v8255
    %v8289 = vtanh.pop %v8256
    %v8290 = vtanh.pop %v8257
    %v8291 = vtanh.pop %v8258
    %v8292 = vtanh.pop %v8259
    %v8293 = vtanh.pop %v8260
    %v8294 = vtanh.pop %v8261
    %v8295 = vtanh.pop %v8262
    %v8296 = vtanh.pop %v8263
    %v8297 = vtanh.pop %v8264
    %v8298 = vtanh.pop %v8265
    %v8299 = vtanh.pop %v8266
    %v8300 = vtanh.pop %v8267
    %v8301 = vtanh.pop %v8268
    %v8302 = vtanh.pop %v8269
    %v8303 = vtanh.pop %v8270
    %v8304 = vtanh.pop %v8271
    %v8305 = vtanh.pop %v8272
    %v8306 = vadd.f32 %v8274, %v8276
    %v8307 = vadd.f32 %v8306, %v8278
    %v8308 = vadd.f32 %v8307, %v8280
    %v8309 = vadd.f32 %v8308, %v8282
    %v8310 = vadd.f32 %v8309, %v8284
    %v8311 = vadd.f32 %v8310, %v8286
    %v8312 = vadd.f32 %v8311, %v8288
    %v8313 = vadd.f32 %v8312, %v8290
    %v8314 = vadd.f32 %v8313, %v8292
    %v8315 = vadd.f32 %v8314, %v8294
    %v8316 = vadd.f32 %v8315, %v8296
    %v8317 = vadd.f32 %v8316, %v8298
    %v8318 = vadd.f32 %v8317, %v8300
    %v8319 = vadd.f32 %v8318, %v8302
    %v8320 = vadd.f32 %v8319, %v8304
    %v8321 = vadd.f32 %v8275, %v8277
    %v8322 = vadd.f32 %v8321, %v8279
    %v8323 = vadd.f32 %v8322, %v8281
    %v8324 = vadd.f32 %v8323, %v8283
    %v8325 = vadd.f32 %v8324, %v8285
    %v8326 = vadd.f32 %v8325, %v8287
    %v8327 = vadd.f32 %v8326, %v8289
    %v8328 = vadd.f32 %v8327, %v8291
    %v8329 = vadd.f32 %v8328, %v8293
    %v8330 = vadd.f32 %v8329, %v8295
    %v8331 = vadd.f32 %v8330, %v8297
    %v8332 = vadd.f32 %v8331, %v8299
    %v8333 = vadd.f32 %v8332, %v8301
    %v8334 = vadd.f32 %v8333, %v8303
    %v8335 = vadd.f32 %v8334, %v8305
    %v8336 = vstv %s8273
    %v8337 = vmul.f32 %v8336, %v8320
    %v8338 = vmul.f32 %v8336, %v8335
    %v8339 = vadd.f32 %v8071, %v8337
    %v8340 = vadd.f32 %v8072, %v8338
    %s8341 = sld [smem:[#allocation3 + $0x57]]
    %v8342 = vstv %s8341
    %v8343 = vmul.f32 %v8342, %v475
    %v8344 = vmul.f32 %v8342, %v476
    %v8345 = vmul.f32 %v8342, %v477
    %v8346 = vmul.f32 %v8342, %v478
    %v8347 = vmul.f32 %v8342, %v479
    %v8348 = vmul.f32 %v8342, %v480
    %v8349 = vmul.f32 %v8342, %v481
    %v8350 = vmul.f32 %v8342, %v482
    %v8351 = vmul.f32 %v8342, %v483
    %v8352 = vmul.f32 %v8342, %v484
    %v8353 = vmul.f32 %v8342, %v485
    %v8354 = vmul.f32 %v8342, %v486
    %v8355 = vmul.f32 %v8342, %v487
    %v8356 = vmul.f32 %v8342, %v488
    %v8357 = vmul.f32 %v8342, %v489
    %v8358 = vmul.f32 %v8342, %v490
    %v8359 = vmul.f32 %v8342, %v491
    %v8360 = vmul.f32 %v8342, %v492
    %v8361 = vmul.f32 %v8342, %v493
    %v8362 = vmul.f32 %v8342, %v494
    %v8363 = vmul.f32 %v8342, %v495
    %v8364 = vmul.f32 %v8342, %v496
    %v8365 = vmul.f32 %v8342, %v497
    %v8366 = vmul.f32 %v8342, %v498
    %v8367 = vmul.f32 %v8342, %v499
    %v8368 = vmul.f32 %v8342, %v500
    %v8369 = vmul.f32 %v8342, %v501
    %v8370 = vmul.f32 %v8342, %v502
    %v8371 = vmul.f32 %v8342, %v503
    %v8372 = vmul.f32 %v8342, %v504
    %v8373 = vmul.f32 %v8342, %v505
    %v8374 = vmul.f32 %v8342, %v506
    %s8375 = sld [smem:[#allocation3 + $0x58]]
    %v8376 = vstv %s8375
    %v8377 = vmul.f32 %v8376, %v507
    %v8378 = vmul.f32 %v8376, %v508
    %v8379 = vmul.f32 %v8376, %v509
    %v8380 = vmul.f32 %v8376, %v510
    %v8381 = vmul.f32 %v8376, %v511
    %v8382 = vmul.f32 %v8376, %v512
    %v8383 = vmul.f32 %v8376, %v513
    %v8384 = vmul.f32 %v8376, %v514
    %v8385 = vmul.f32 %v8376, %v515
    %v8386 = vmul.f32 %v8376, %v516
    %v8387 = vmul.f32 %v8376, %v517
    %v8388 = vmul.f32 %v8376, %v518
    %v8389 = vmul.f32 %v8376, %v519
    %v8390 = vmul.f32 %v8376, %v520
    %v8391 = vmul.f32 %v8376, %v521
    %v8392 = vmul.f32 %v8376, %v522
    %v8393 = vmul.f32 %v8376, %v523
    %v8394 = vmul.f32 %v8376, %v524
    %v8395 = vmul.f32 %v8376, %v525
    %v8396 = vmul.f32 %v8376, %v526
    %v8397 = vmul.f32 %v8376, %v527
    %v8398 = vmul.f32 %v8376, %v528
    %v8399 = vmul.f32 %v8376, %v529
    %v8400 = vmul.f32 %v8376, %v530
    %v8401 = vmul.f32 %v8376, %v531
    %v8402 = vmul.f32 %v8376, %v532
    %v8403 = vmul.f32 %v8376, %v533
    %v8404 = vmul.f32 %v8376, %v534
    %v8405 = vmul.f32 %v8376, %v535
    %v8406 = vmul.f32 %v8376, %v536
    %v8407 = vmul.f32 %v8376, %v537
    %v8408 = vmul.f32 %v8376, %v538
    %v8409 = vadd.f32 %v8343, %v8377
    %v8410 = vadd.f32 %v8344, %v8378
    %v8411 = vadd.f32 %v8345, %v8379
    %v8412 = vadd.f32 %v8346, %v8380
    %v8413 = vadd.f32 %v8347, %v8381
    %v8414 = vadd.f32 %v8348, %v8382
    %v8415 = vadd.f32 %v8349, %v8383
    %v8416 = vadd.f32 %v8350, %v8384
    %v8417 = vadd.f32 %v8351, %v8385
    %v8418 = vadd.f32 %v8352, %v8386
    %v8419 = vadd.f32 %v8353, %v8387
    %v8420 = vadd.f32 %v8354, %v8388
    %v8421 = vadd.f32 %v8355, %v8389
    %v8422 = vadd.f32 %v8356, %v8390
    %v8423 = vadd.f32 %v8357, %v8391
    %v8424 = vadd.f32 %v8358, %v8392
    %v8425 = vadd.f32 %v8359, %v8393
    %v8426 = vadd.f32 %v8360, %v8394
    %v8427 = vadd.f32 %v8361, %v8395
    %v8428 = vadd.f32 %v8362, %v8396
    %v8429 = vadd.f32 %v8363, %v8397
    %v8430 = vadd.f32 %v8364, %v8398
    %v8431 = vadd.f32 %v8365, %v8399
    %v8432 = vadd.f32 %v8366, %v8400
    %v8433 = vadd.f32 %v8367, %v8401
    %v8434 = vadd.f32 %v8368, %v8402
    %v8435 = vadd.f32 %v8369, %v8403
    %v8436 = vadd.f32 %v8370, %v8404
    %v8437 = vadd.f32 %v8371, %v8405
    %v8438 = vadd.f32 %v8372, %v8406
    %v8439 = vadd.f32 %v8373, %v8407
    %v8440 = vadd.f32 %v8374, %v8408
    %s8441 = sld [smem:[#allocation3 + $0x59]]
    %v8442 = vstv %s8441
    %v8443 = vmul.f32 %v8442, %v539
    %v8444 = vmul.f32 %v8442, %v540
    %v8445 = vmul.f32 %v8442, %v541
    %v8446 = vmul.f32 %v8442, %v542
    %v8447 = vmul.f32 %v8442, %v543
    %v8448 = vmul.f32 %v8442, %v544
    %v8449 = vmul.f32 %v8442, %v545
    %v8450 = vmul.f32 %v8442, %v546
    %v8451 = vmul.f32 %v8442, %v547
    %v8452 = vmul.f32 %v8442, %v548
    %v8453 = vmul.f32 %v8442, %v549
    %v8454 = vmul.f32 %v8442, %v550
    %v8455 = vmul.f32 %v8442, %v551
    %v8456 = vmul.f32 %v8442, %v552
    %v8457 = vmul.f32 %v8442, %v553
    %v8458 = vmul.f32 %v8442, %v554
    %v8459 = vmul.f32 %v8442, %v555
    %v8460 = vmul.f32 %v8442, %v556
    %v8461 = vmul.f32 %v8442, %v557
    %v8462 = vmul.f32 %v8442, %v558
    %v8463 = vmul.f32 %v8442, %v559
    %v8464 = vmul.f32 %v8442, %v560
    %v8465 = vmul.f32 %v8442, %v561
    %v8466 = vmul.f32 %v8442, %v562
    %v8467 = vmul.f32 %v8442, %v563
    %v8468 = vmul.f32 %v8442, %v564
    %v8469 = vmul.f32 %v8442, %v565
    %v8470 = vmul.f32 %v8442, %v566
    %v8471 = vmul.f32 %v8442, %v567
    %v8472 = vmul.f32 %v8442, %v568
    %v8473 = vmul.f32 %v8442, %v569
    %v8474 = vmul.f32 %v8442, %v570
    %v8475 = vadd.f32 %v8409, %v8443
    %v8476 = vadd.f32 %v8410, %v8444
    %v8477 = vadd.f32 %v8411, %v8445
    %v8478 = vadd.f32 %v8412, %v8446
    %v8479 = vadd.f32 %v8413, %v8447
    %v8480 = vadd.f32 %v8414, %v8448
    %v8481 = vadd.f32 %v8415, %v8449
    %v8482 = vadd.f32 %v8416, %v8450
    %v8483 = vadd.f32 %v8417, %v8451
    %v8484 = vadd.f32 %v8418, %v8452
    %v8485 = vadd.f32 %v8419, %v8453
    %v8486 = vadd.f32 %v8420, %v8454
    %v8487 = vadd.f32 %v8421, %v8455
    %v8488 = vadd.f32 %v8422, %v8456
    %v8489 = vadd.f32 %v8423, %v8457
    %v8490 = vadd.f32 %v8424, %v8458
    %v8491 = vadd.f32 %v8425, %v8459
    %v8492 = vadd.f32 %v8426, %v8460
    %v8493 = vadd.f32 %v8427, %v8461
    %v8494 = vadd.f32 %v8428, %v8462
    %v8495 = vadd.f32 %v8429, %v8463
    %v8496 = vadd.f32 %v8430, %v8464
    %v8497 = vadd.f32 %v8431, %v8465
    %v8498 = vadd.f32 %v8432, %v8466
    %v8499 = vadd.f32 %v8433, %v8467
    %v8500 = vadd.f32 %v8434, %v8468
    %v8501 = vadd.f32 %v8435, %v8469
    %v8502 = vadd.f32 %v8436, %v8470
    %v8503 = vadd.f32 %v8437, %v8471
    %v8504 = vadd.f32 %v8438, %v8472
    %v8505 = vadd.f32 %v8439, %v8473
    %v8506 = vadd.f32 %v8440, %v8474
    %s8507 = sld [smem:[#allocation5 + $0x1d]]
    %v8508 = vstv %s8507
    %v8509 = vadd.f32 %v8475, %v8508
    %v8510 = vadd.f32 %v8476, %v8508
    %v8511 = vadd.f32 %v8477, %v8508
    %v8512 = vadd.f32 %v8478, %v8508
    %v8513 = vadd.f32 %v8479, %v8508
    %v8514 = vadd.f32 %v8480, %v8508
    %v8515 = vadd.f32 %v8481, %v8508
    %v8516 = vadd.f32 %v8482, %v8508
    %v8517 = vadd.f32 %v8483, %v8508
    %v8518 = vadd.f32 %v8484, %v8508
    %v8519 = vadd.f32 %v8485, %v8508
    %v8520 = vadd.f32 %v8486, %v8508
    %v8521 = vadd.f32 %v8487, %v8508
    %v8522 = vadd.f32 %v8488, %v8508
    %v8523 = vadd.f32 %v8489, %v8508
    %v8524 = vadd.f32 %v8490, %v8508
    %v8525 = vadd.f32 %v8491, %v8508
    %v8526 = vadd.f32 %v8492, %v8508
    %v8527 = vadd.f32 %v8493, %v8508
    %v8528 = vadd.f32 %v8494, %v8508
    %v8529 = vadd.f32 %v8495, %v8508
    %v8530 = vadd.f32 %v8496, %v8508
    %v8531 = vadd.f32 %v8497, %v8508
    %v8532 = vadd.f32 %v8498, %v8508
    %v8533 = vadd.f32 %v8499, %v8508
    %v8534 = vadd.f32 %v8500, %v8508
    %v8535 = vadd.f32 %v8501, %v8508
    %v8536 = vadd.f32 %v8502, %v8508
    %v8537 = vadd.f32 %v8503, %v8508
    %v8538 = vadd.f32 %v8504, %v8508
    %v8539 = vadd.f32 %v8505, %v8508
    %v8540 = vadd.f32 %v8506, %v8508
    %s8541 = sld [smem:[#allocation7 + $0x1d]]
    %v8542 = vtanh.pop %v8509
    %v8543 = vtanh.pop %v8510
    %v8544 = vtanh.pop %v8511
    %v8545 = vtanh.pop %v8512
    %v8546 = vtanh.pop %v8513
    %v8547 = vtanh.pop %v8514
    %v8548 = vtanh.pop %v8515
    %v8549 = vtanh.pop %v8516
    %v8550 = vtanh.pop %v8517
    %v8551 = vtanh.pop %v8518
    %v8552 = vtanh.pop %v8519
    %v8553 = vtanh.pop %v8520
    %v8554 = vtanh.pop %v8521
    %v8555 = vtanh.pop %v8522
    %v8556 = vtanh.pop %v8523
    %v8557 = vtanh.pop %v8524
    %v8558 = vtanh.pop %v8525
    %v8559 = vtanh.pop %v8526
    %v8560 = vtanh.pop %v8527
    %v8561 = vtanh.pop %v8528
    %v8562 = vtanh.pop %v8529
    %v8563 = vtanh.pop %v8530
    %v8564 = vtanh.pop %v8531
    %v8565 = vtanh.pop %v8532
    %v8566 = vtanh.pop %v8533
    %v8567 = vtanh.pop %v8534
    %v8568 = vtanh.pop %v8535
    %v8569 = vtanh.pop %v8536
    %v8570 = vtanh.pop %v8537
    %v8571 = vtanh.pop %v8538
    %v8572 = vtanh.pop %v8539
    %v8573 = vtanh.pop %v8540
    %v8574 = vadd.f32 %v8542, %v8544
    %v8575 = vadd.f32 %v8574, %v8546
    %v8576 = vadd.f32 %v8575, %v8548
    %v8577 = vadd.f32 %v8576, %v8550
    %v8578 = vadd.f32 %v8577, %v8552
    %v8579 = vadd.f32 %v8578, %v8554
    %v8580 = vadd.f32 %v8579, %v8556
    %v8581 = vadd.f32 %v8580, %v8558
    %v8582 = vadd.f32 %v8581, %v8560
    %v8583 = vadd.f32 %v8582, %v8562
    %v8584 = vadd.f32 %v8583, %v8564
    %v8585 = vadd.f32 %v8584, %v8566
    %v8586 = vadd.f32 %v8585, %v8568
    %v8587 = vadd.f32 %v8586, %v8570
    %v8588 = vadd.f32 %v8587, %v8572
    %v8589 = vadd.f32 %v8543, %v8545
    %v8590 = vadd.f32 %v8589, %v8547
    %v8591 = vadd.f32 %v8590, %v8549
    %v8592 = vadd.f32 %v8591, %v8551
    %v8593 = vadd.f32 %v8592, %v8553
    %v8594 = vadd.f32 %v8593, %v8555
    %v8595 = vadd.f32 %v8594, %v8557
    %v8596 = vadd.f32 %v8595, %v8559
    %v8597 = vadd.f32 %v8596, %v8561
    %v8598 = vadd.f32 %v8597, %v8563
    %v8599 = vadd.f32 %v8598, %v8565
    %v8600 = vadd.f32 %v8599, %v8567
    %v8601 = vadd.f32 %v8600, %v8569
    %v8602 = vadd.f32 %v8601, %v8571
    %v8603 = vadd.f32 %v8602, %v8573
    %v8604 = vstv %s8541
    %v8605 = vmul.f32 %v8604, %v8588
    %v8606 = vmul.f32 %v8604, %v8603
    %v8607 = vadd.f32 %v8339, %v8605
    %v8608 = vadd.f32 %v8340, %v8606
    %s8609 = sld [smem:[#allocation3 + $0x5a]]
    %v8610 = vstv %s8609
    %v8611 = vmul.f32 %v8610, %v475
    %v8612 = vmul.f32 %v8610, %v476
    %v8613 = vmul.f32 %v8610, %v477
    %v8614 = vmul.f32 %v8610, %v478
    %v8615 = vmul.f32 %v8610, %v479
    %v8616 = vmul.f32 %v8610, %v480
    %v8617 = vmul.f32 %v8610, %v481
    %v8618 = vmul.f32 %v8610, %v482
    %v8619 = vmul.f32 %v8610, %v483
    %v8620 = vmul.f32 %v8610, %v484
    %v8621 = vmul.f32 %v8610, %v485
    %v8622 = vmul.f32 %v8610, %v486
    %v8623 = vmul.f32 %v8610, %v487
    %v8624 = vmul.f32 %v8610, %v488
    %v8625 = vmul.f32 %v8610, %v489
    %v8626 = vmul.f32 %v8610, %v490
    %v8627 = vmul.f32 %v8610, %v491
    %v8628 = vmul.f32 %v8610, %v492
    %v8629 = vmul.f32 %v8610, %v493
    %v8630 = vmul.f32 %v8610, %v494
    %v8631 = vmul.f32 %v8610, %v495
    %v8632 = vmul.f32 %v8610, %v496
    %v8633 = vmul.f32 %v8610, %v497
    %v8634 = vmul.f32 %v8610, %v498
    %v8635 = vmul.f32 %v8610, %v499
    %v8636 = vmul.f32 %v8610, %v500
    %v8637 = vmul.f32 %v8610, %v501
    %v8638 = vmul.f32 %v8610, %v502
    %v8639 = vmul.f32 %v8610, %v503
    %v8640 = vmul.f32 %v8610, %v504
    %v8641 = vmul.f32 %v8610, %v505
    %v8642 = vmul.f32 %v8610, %v506
    %s8643 = sld [smem:[#allocation3 + $0x5b]]
    %v8644 = vstv %s8643
    %v8645 = vmul.f32 %v8644, %v507
    %v8646 = vmul.f32 %v8644, %v508
    %v8647 = vmul.f32 %v8644, %v509
    %v8648 = vmul.f32 %v8644, %v510
    %v8649 = vmul.f32 %v8644, %v511
    %v8650 = vmul.f32 %v8644, %v512
    %v8651 = vmul.f32 %v8644, %v513
    %v8652 = vmul.f32 %v8644, %v514
    %v8653 = vmul.f32 %v8644, %v515
    %v8654 = vmul.f32 %v8644, %v516
    %v8655 = vmul.f32 %v8644, %v517
    %v8656 = vmul.f32 %v8644, %v518
    %v8657 = vmul.f32 %v8644, %v519
    %v8658 = vmul.f32 %v8644, %v520
    %v8659 = vmul.f32 %v8644, %v521
    %v8660 = vmul.f32 %v8644, %v522
    %v8661 = vmul.f32 %v8644, %v523
    %v8662 = vmul.f32 %v8644, %v524
    %v8663 = vmul.f32 %v8644, %v525
    %v8664 = vmul.f32 %v8644, %v526
    %v8665 = vmul.f32 %v8644, %v527
    %v8666 = vmul.f32 %v8644, %v528
    %v8667 = vmul.f32 %v8644, %v529
    %v8668 = vmul.f32 %v8644, %v530
    %v8669 = vmul.f32 %v8644, %v531
    %v8670 = vmul.f32 %v8644, %v532
    %v8671 = vmul.f32 %v8644, %v533
    %v8672 = vmul.f32 %v8644, %v534
    %v8673 = vmul.f32 %v8644, %v535
    %v8674 = vmul.f32 %v8644, %v536
    %v8675 = vmul.f32 %v8644, %v537
    %v8676 = vmul.f32 %v8644, %v538
    %v8677 = vadd.f32 %v8611, %v8645
    %v8678 = vadd.f32 %v8612, %v8646
    %v8679 = vadd.f32 %v8613, %v8647
    %v8680 = vadd.f32 %v8614, %v8648
    %v8681 = vadd.f32 %v8615, %v8649
    %v8682 = vadd.f32 %v8616, %v8650
    %v8683 = vadd.f32 %v8617, %v8651
    %v8684 = vadd.f32 %v8618, %v8652
    %v8685 = vadd.f32 %v8619, %v8653
    %v8686 = vadd.f32 %v8620, %v8654
    %v8687 = vadd.f32 %v8621, %v8655
    %v8688 = vadd.f32 %v8622, %v8656
    %v8689 = vadd.f32 %v8623, %v8657
    %v8690 = vadd.f32 %v8624, %v8658
    %v8691 = vadd.f32 %v8625, %v8659
    %v8692 = vadd.f32 %v8626, %v8660
    %v8693 = vadd.f32 %v8627, %v8661
    %v8694 = vadd.f32 %v8628, %v8662
    %v8695 = vadd.f32 %v8629, %v8663
    %v8696 = vadd.f32 %v8630, %v8664
    %v8697 = vadd.f32 %v8631, %v8665
    %v8698 = vadd.f32 %v8632, %v8666
    %v8699 = vadd.f32 %v8633, %v8667
    %v8700 = vadd.f32 %v8634, %v8668
    %v8701 = vadd.f32 %v8635, %v8669
    %v8702 = vadd.f32 %v8636, %v8670
    %v8703 = vadd.f32 %v8637, %v8671
    %v8704 = vadd.f32 %v8638, %v8672
    %v8705 = vadd.f32 %v8639, %v8673
    %v8706 = vadd.f32 %v8640, %v8674
    %v8707 = vadd.f32 %v8641, %v8675
    %v8708 = vadd.f32 %v8642, %v8676
    %s8709 = sld [smem:[#allocation3 + $0x5c]]
    %v8710 = vstv %s8709
    %v8711 = vmul.f32 %v8710, %v539
    %v8712 = vmul.f32 %v8710, %v540
    %v8713 = vmul.f32 %v8710, %v541
    %v8714 = vmul.f32 %v8710, %v542
    %v8715 = vmul.f32 %v8710, %v543
    %v8716 = vmul.f32 %v8710, %v544
    %v8717 = vmul.f32 %v8710, %v545
    %v8718 = vmul.f32 %v8710, %v546
    %v8719 = vmul.f32 %v8710, %v547
    %v8720 = vmul.f32 %v8710, %v548
    %v8721 = vmul.f32 %v8710, %v549
    %v8722 = vmul.f32 %v8710, %v550
    %v8723 = vmul.f32 %v8710, %v551
    %v8724 = vmul.f32 %v8710, %v552
    %v8725 = vmul.f32 %v8710, %v553
    %v8726 = vmul.f32 %v8710, %v554
    %v8727 = vmul.f32 %v8710, %v555
    %v8728 = vmul.f32 %v8710, %v556
    %v8729 = vmul.f32 %v8710, %v557
    %v8730 = vmul.f32 %v8710, %v558
    %v8731 = vmul.f32 %v8710, %v559
    %v8732 = vmul.f32 %v8710, %v560
    %v8733 = vmul.f32 %v8710, %v561
    %v8734 = vmul.f32 %v8710, %v562
    %v8735 = vmul.f32 %v8710, %v563
    %v8736 = vmul.f32 %v8710, %v564
    %v8737 = vmul.f32 %v8710, %v565
    %v8738 = vmul.f32 %v8710, %v566
    %v8739 = vmul.f32 %v8710, %v567
    %v8740 = vmul.f32 %v8710, %v568
    %v8741 = vmul.f32 %v8710, %v569
    %v8742 = vmul.f32 %v8710, %v570
    %v8743 = vadd.f32 %v8677, %v8711
    %v8744 = vadd.f32 %v8678, %v8712
    %v8745 = vadd.f32 %v8679, %v8713
    %v8746 = vadd.f32 %v8680, %v8714
    %v8747 = vadd.f32 %v8681, %v8715
    %v8748 = vadd.f32 %v8682, %v8716
    %v8749 = vadd.f32 %v8683, %v8717
    %v8750 = vadd.f32 %v8684, %v8718
    %v8751 = vadd.f32 %v8685, %v8719
    %v8752 = vadd.f32 %v8686, %v8720
    %v8753 = vadd.f32 %v8687, %v8721
    %v8754 = vadd.f32 %v8688, %v8722
    %v8755 = vadd.f32 %v8689, %v8723
    %v8756 = vadd.f32 %v8690, %v8724
    %v8757 = vadd.f32 %v8691, %v8725
    %v8758 = vadd.f32 %v8692, %v8726
    %v8759 = vadd.f32 %v8693, %v8727
    %v8760 = vadd.f32 %v8694, %v8728
    %v8761 = vadd.f32 %v8695, %v8729
    %v8762 = vadd.f32 %v8696, %v8730
    %v8763 = vadd.f32 %v8697, %v8731
    %v8764 = vadd.f32 %v8698, %v8732
    %v8765 = vadd.f32 %v8699, %v8733
    %v8766 = vadd.f32 %v8700, %v8734
    %v8767 = vadd.f32 %v8701, %v8735
    %v8768 = vadd.f32 %v8702, %v8736
    %v8769 = vadd.f32 %v8703, %v8737
    %v8770 = vadd.f32 %v8704, %v8738
    %v8771 = vadd.f32 %v8705, %v8739
    %v8772 = vadd.f32 %v8706, %v8740
    %v8773 = vadd.f32 %v8707, %v8741
    %v8774 = vadd.f32 %v8708, %v8742
    %s8775 = sld [smem:[#allocation5 + $0x1e]]
    %v8776 = vstv %s8775
    %v8777 = vadd.f32 %v8743, %v8776
    %v8778 = vadd.f32 %v8744, %v8776
    %v8779 = vadd.f32 %v8745, %v8776
    %v8780 = vadd.f32 %v8746, %v8776
    %v8781 = vadd.f32 %v8747, %v8776
    %v8782 = vadd.f32 %v8748, %v8776
    %v8783 = vadd.f32 %v8749, %v8776
    %v8784 = vadd.f32 %v8750, %v8776
    %v8785 = vadd.f32 %v8751, %v8776
    %v8786 = vadd.f32 %v8752, %v8776
    %v8787 = vadd.f32 %v8753, %v8776
    %v8788 = vadd.f32 %v8754, %v8776
    %v8789 = vadd.f32 %v8755, %v8776
    %v8790 = vadd.f32 %v8756, %v8776
    %v8791 = vadd.f32 %v8757, %v8776
    %v8792 = vadd.f32 %v8758, %v8776
    %v8793 = vadd.f32 %v8759, %v8776
    %v8794 = vadd.f32 %v8760, %v8776
    %v8795 = vadd.f32 %v8761, %v8776
    %v8796 = vadd.f32 %v8762, %v8776
    %v8797 = vadd.f32 %v8763, %v8776
    %v8798 = vadd.f32 %v8764, %v8776
    %v8799 = vadd.f32 %v8765, %v8776
    %v8800 = vadd.f32 %v8766, %v8776
    %v8801 = vadd.f32 %v8767, %v8776
    %v8802 = vadd.f32 %v8768, %v8776
    %v8803 = vadd.f32 %v8769, %v8776
    %v8804 = vadd.f32 %v8770, %v8776
    %v8805 = vadd.f32 %v8771, %v8776
    %v8806 = vadd.f32 %v8772, %v8776
    %v8807 = vadd.f32 %v8773, %v8776
    %v8808 = vadd.f32 %v8774, %v8776
    %s8809 = sld [smem:[#allocation7 + $0x1e]]
    %v8810 = vtanh.pop %v8777
    %v8811 = vtanh.pop %v8778
    %v8812 = vtanh.pop %v8779
    %v8813 = vtanh.pop %v8780
    %v8814 = vtanh.pop %v8781
    %v8815 = vtanh.pop %v8782
    %v8816 = vtanh.pop %v8783
    %v8817 = vtanh.pop %v8784
    %v8818 = vtanh.pop %v8785
    %v8819 = vtanh.pop %v8786
    %v8820 = vtanh.pop %v8787
    %v8821 = vtanh.pop %v8788
    %v8822 = vtanh.pop %v8789
    %v8823 = vtanh.pop %v8790
    %v8824 = vtanh.pop %v8791
    %v8825 = vtanh.pop %v8792
    %v8826 = vtanh.pop %v8793
    %v8827 = vtanh.pop %v8794
    %v8828 = vtanh.pop %v8795
    %v8829 = vtanh.pop %v8796
    %v8830 = vtanh.pop %v8797
    %v8831 = vtanh.pop %v8798
    %v8832 = vtanh.pop %v8799
    %v8833 = vtanh.pop %v8800
    %v8834 = vtanh.pop %v8801
    %v8835 = vtanh.pop %v8802
    %v8836 = vtanh.pop %v8803
    %v8837 = vtanh.pop %v8804
    %v8838 = vtanh.pop %v8805
    %v8839 = vtanh.pop %v8806
    %v8840 = vtanh.pop %v8807
    %v8841 = vtanh.pop %v8808
    %v8842 = vadd.f32 %v8810, %v8812
    %v8843 = vadd.f32 %v8842, %v8814
    %v8844 = vadd.f32 %v8843, %v8816
    %v8845 = vadd.f32 %v8844, %v8818
    %v8846 = vadd.f32 %v8845, %v8820
    %v8847 = vadd.f32 %v8846, %v8822
    %v8848 = vadd.f32 %v8847, %v8824
    %v8849 = vadd.f32 %v8848, %v8826
    %v8850 = vadd.f32 %v8849, %v8828
    %v8851 = vadd.f32 %v8850, %v8830
    %v8852 = vadd.f32 %v8851, %v8832
    %v8853 = vadd.f32 %v8852, %v8834
    %v8854 = vadd.f32 %v8853, %v8836
    %v8855 = vadd.f32 %v8854, %v8838
    %v8856 = vadd.f32 %v8855, %v8840
    %v8857 = vadd.f32 %v8811, %v8813
    %v8858 = vadd.f32 %v8857, %v8815
    %v8859 = vadd.f32 %v8858, %v8817
    %v8860 = vadd.f32 %v8859, %v8819
    %v8861 = vadd.f32 %v8860, %v8821
    %v8862 = vadd.f32 %v8861, %v8823
    %v8863 = vadd.f32 %v8862, %v8825
    %v8864 = vadd.f32 %v8863, %v8827
    %v8865 = vadd.f32 %v8864, %v8829
    %v8866 = vadd.f32 %v8865, %v8831
    %v8867 = vadd.f32 %v8866, %v8833
    %v8868 = vadd.f32 %v8867, %v8835
    %v8869 = vadd.f32 %v8868, %v8837
    %v8870 = vadd.f32 %v8869, %v8839
    %v8871 = vadd.f32 %v8870, %v8841
    %v8872 = vstv %s8809
    %v8873 = vmul.f32 %v8872, %v8856
    %v8874 = vmul.f32 %v8872, %v8871
    %v8875 = vadd.f32 %v8607, %v8873
    %v8876 = vadd.f32 %v8608, %v8874
    %s8877 = sld [smem:[#allocation3 + $0x5d]]
    %v8878 = vstv %s8877
    %v8879 = vmul.f32 %v8878, %v475
    %v8880 = vmul.f32 %v8878, %v476
    %v8881 = vmul.f32 %v8878, %v477
    %v8882 = vmul.f32 %v8878, %v478
    %v8883 = vmul.f32 %v8878, %v479
    %v8884 = vmul.f32 %v8878, %v480
    %v8885 = vmul.f32 %v8878, %v481
    %v8886 = vmul.f32 %v8878, %v482
    %v8887 = vmul.f32 %v8878, %v483
    %v8888 = vmul.f32 %v8878, %v484
    %v8889 = vmul.f32 %v8878, %v485
    %v8890 = vmul.f32 %v8878, %v486
    %v8891 = vmul.f32 %v8878, %v487
    %v8892 = vmul.f32 %v8878, %v488
    %v8893 = vmul.f32 %v8878, %v489
    %v8894 = vmul.f32 %v8878, %v490
    %v8895 = vmul.f32 %v8878, %v491
    %v8896 = vmul.f32 %v8878, %v492
    %v8897 = vmul.f32 %v8878, %v493
    %v8898 = vmul.f32 %v8878, %v494
    %v8899 = vmul.f32 %v8878, %v495
    %v8900 = vmul.f32 %v8878, %v496
    %v8901 = vmul.f32 %v8878, %v497
    %v8902 = vmul.f32 %v8878, %v498
    %v8903 = vmul.f32 %v8878, %v499
    %v8904 = vmul.f32 %v8878, %v500
    %v8905 = vmul.f32 %v8878, %v501
    %v8906 = vmul.f32 %v8878, %v502
    %v8907 = vmul.f32 %v8878, %v503
    %v8908 = vmul.f32 %v8878, %v504
    %v8909 = vmul.f32 %v8878, %v505
    %v8910 = vmul.f32 %v8878, %v506
    %s8911 = sld [smem:[#allocation3 + $0x5e]]
    %v8912 = vstv %s8911
    %v8913 = vmul.f32 %v8912, %v507
    %v8914 = vmul.f32 %v8912, %v508
    %v8915 = vmul.f32 %v8912, %v509
    %v8916 = vmul.f32 %v8912, %v510
    %v8917 = vmul.f32 %v8912, %v511
    %v8918 = vmul.f32 %v8912, %v512
    %v8919 = vmul.f32 %v8912, %v513
    %v8920 = vmul.f32 %v8912, %v514
    %v8921 = vmul.f32 %v8912, %v515
    %v8922 = vmul.f32 %v8912, %v516
    %v8923 = vmul.f32 %v8912, %v517
    %v8924 = vmul.f32 %v8912, %v518
    %v8925 = vmul.f32 %v8912, %v519
    %v8926 = vmul.f32 %v8912, %v520
    %v8927 = vmul.f32 %v8912, %v521
    %v8928 = vmul.f32 %v8912, %v522
    %v8929 = vmul.f32 %v8912, %v523
    %v8930 = vmul.f32 %v8912, %v524
    %v8931 = vmul.f32 %v8912, %v525
    %v8932 = vmul.f32 %v8912, %v526
    %v8933 = vmul.f32 %v8912, %v527
    %v8934 = vmul.f32 %v8912, %v528
    %v8935 = vmul.f32 %v8912, %v529
    %v8936 = vmul.f32 %v8912, %v530
    %v8937 = vmul.f32 %v8912, %v531
    %v8938 = vmul.f32 %v8912, %v532
    %v8939 = vmul.f32 %v8912, %v533
    %v8940 = vmul.f32 %v8912, %v534
    %v8941 = vmul.f32 %v8912, %v535
    %v8942 = vmul.f32 %v8912, %v536
    %v8943 = vmul.f32 %v8912, %v537
    %v8944 = vmul.f32 %v8912, %v538
    %v8945 = vadd.f32 %v8879, %v8913
    %v8946 = vadd.f32 %v8880, %v8914
    %v8947 = vadd.f32 %v8881, %v8915
    %v8948 = vadd.f32 %v8882, %v8916
    %v8949 = vadd.f32 %v8883, %v8917
    %v8950 = vadd.f32 %v8884, %v8918
    %v8951 = vadd.f32 %v8885, %v8919
    %v8952 = vadd.f32 %v8886, %v8920
    %v8953 = vadd.f32 %v8887, %v8921
    %v8954 = vadd.f32 %v8888, %v8922
    %v8955 = vadd.f32 %v8889, %v8923
    %v8956 = vadd.f32 %v8890, %v8924
    %v8957 = vadd.f32 %v8891, %v8925
    %v8958 = vadd.f32 %v8892, %v8926
    %v8959 = vadd.f32 %v8893, %v8927
    %v8960 = vadd.f32 %v8894, %v8928
    %v8961 = vadd.f32 %v8895, %v8929
    %v8962 = vadd.f32 %v8896, %v8930
    %v8963 = vadd.f32 %v8897, %v8931
    %v8964 = vadd.f32 %v8898, %v8932
    %v8965 = vadd.f32 %v8899, %v8933
    %v8966 = vadd.f32 %v8900, %v8934
    %v8967 = vadd.f32 %v8901, %v8935
    %v8968 = vadd.f32 %v8902, %v8936
    %v8969 = vadd.f32 %v8903, %v8937
    %v8970 = vadd.f32 %v8904, %v8938
    %v8971 = vadd.f32 %v8905, %v8939
    %v8972 = vadd.f32 %v8906, %v8940
    %v8973 = vadd.f32 %v8907, %v8941
    %v8974 = vadd.f32 %v8908, %v8942
    %v8975 = vadd.f32 %v8909, %v8943
    %v8976 = vadd.f32 %v8910, %v8944
    %s8977 = sld [smem:[#allocation3 + $0x5f]]
    %v8978 = vstv %s8977
    %v8979 = vmul.f32 %v8978, %v539
    %v8980 = vmul.f32 %v8978, %v540
    %v8981 = vmul.f32 %v8978, %v541
    %v8982 = vmul.f32 %v8978, %v542
    %v8983 = vmul.f32 %v8978, %v543
    %v8984 = vmul.f32 %v8978, %v544
    %v8985 = vmul.f32 %v8978, %v545
    %v8986 = vmul.f32 %v8978, %v546
    %v8987 = vmul.f32 %v8978, %v547
    %v8988 = vmul.f32 %v8978, %v548
    %v8989 = vmul.f32 %v8978, %v549
    %v8990 = vmul.f32 %v8978, %v550
    %v8991 = vmul.f32 %v8978, %v551
    %v8992 = vmul.f32 %v8978, %v552
    %v8993 = vmul.f32 %v8978, %v553
    %v8994 = vmul.f32 %v8978, %v554
    %v8995 = vmul.f32 %v8978, %v555
    %v8996 = vmul.f32 %v8978, %v556
    %v8997 = vmul.f32 %v8978, %v557
    %v8998 = vmul.f32 %v8978, %v558
    %v8999 = vmul.f32 %v8978, %v559
    %v9000 = vmul.f32 %v8978, %v560
    %v9001 = vmul.f32 %v8978, %v561
    %v9002 = vmul.f32 %v8978, %v562
    %v9003 = vmul.f32 %v8978, %v563
    %v9004 = vmul.f32 %v8978, %v564
    %v9005 = vmul.f32 %v8978, %v565
    %v9006 = vmul.f32 %v8978, %v566
    %v9007 = vmul.f32 %v8978, %v567
    %v9008 = vmul.f32 %v8978, %v568
    %v9009 = vmul.f32 %v8978, %v569
    %v9010 = vmul.f32 %v8978, %v570
    %v9011 = vadd.f32 %v8945, %v8979
    %v9012 = vadd.f32 %v8946, %v8980
    %v9013 = vadd.f32 %v8947, %v8981
    %v9014 = vadd.f32 %v8948, %v8982
    %v9015 = vadd.f32 %v8949, %v8983
    %v9016 = vadd.f32 %v8950, %v8984
    %v9017 = vadd.f32 %v8951, %v8985
    %v9018 = vadd.f32 %v8952, %v8986
    %v9019 = vadd.f32 %v8953, %v8987
    %v9020 = vadd.f32 %v8954, %v8988
    %v9021 = vadd.f32 %v8955, %v8989
    %v9022 = vadd.f32 %v8956, %v8990
    %v9023 = vadd.f32 %v8957, %v8991
    %v9024 = vadd.f32 %v8958, %v8992
    %v9025 = vadd.f32 %v8959, %v8993
    %v9026 = vadd.f32 %v8960, %v8994
    %v9027 = vadd.f32 %v8961, %v8995
    %v9028 = vadd.f32 %v8962, %v8996
    %v9029 = vadd.f32 %v8963, %v8997
    %v9030 = vadd.f32 %v8964, %v8998
    %v9031 = vadd.f32 %v8965, %v8999
    %v9032 = vadd.f32 %v8966, %v9000
    %v9033 = vadd.f32 %v8967, %v9001
    %v9034 = vadd.f32 %v8968, %v9002
    %v9035 = vadd.f32 %v8969, %v9003
    %v9036 = vadd.f32 %v8970, %v9004
    %v9037 = vadd.f32 %v8971, %v9005
    %v9038 = vadd.f32 %v8972, %v9006
    %v9039 = vadd.f32 %v8973, %v9007
    %v9040 = vadd.f32 %v8974, %v9008
    %v9041 = vadd.f32 %v8975, %v9009
    %v9042 = vadd.f32 %v8976, %v9010
    %s9043 = sld [smem:[#allocation5 + $0x1f]]
    %v9044 = vstv %s9043
    %v9045 = vadd.f32 %v9011, %v9044
    %v9046 = vadd.f32 %v9012, %v9044
    %v9047 = vadd.f32 %v9013, %v9044
    %v9048 = vadd.f32 %v9014, %v9044
    %v9049 = vadd.f32 %v9015, %v9044
    %v9050 = vadd.f32 %v9016, %v9044
    %v9051 = vadd.f32 %v9017, %v9044
    %v9052 = vadd.f32 %v9018, %v9044
    %v9053 = vadd.f32 %v9019, %v9044
    %v9054 = vadd.f32 %v9020, %v9044
    %v9055 = vadd.f32 %v9021, %v9044
    %v9056 = vadd.f32 %v9022, %v9044
    %v9057 = vadd.f32 %v9023, %v9044
    %v9058 = vadd.f32 %v9024, %v9044
    %v9059 = vadd.f32 %v9025, %v9044
    %v9060 = vadd.f32 %v9026, %v9044
    %v9061 = vadd.f32 %v9027, %v9044
    %v9062 = vadd.f32 %v9028, %v9044
    %v9063 = vadd.f32 %v9029, %v9044
    %v9064 = vadd.f32 %v9030, %v9044
    %v9065 = vadd.f32 %v9031, %v9044
    %v9066 = vadd.f32 %v9032, %v9044
    %v9067 = vadd.f32 %v9033, %v9044
    %v9068 = vadd.f32 %v9034, %v9044
    %v9069 = vadd.f32 %v9035, %v9044
    %v9070 = vadd.f32 %v9036, %v9044
    %v9071 = vadd.f32 %v9037, %v9044
    %v9072 = vadd.f32 %v9038, %v9044
    %v9073 = vadd.f32 %v9039, %v9044
    %v9074 = vadd.f32 %v9040, %v9044
    %v9075 = vadd.f32 %v9041, %v9044
    %v9076 = vadd.f32 %v9042, %v9044
    %s9077 = sld [smem:[#allocation7 + $0x1f]]
    %v9078 = vtanh.pop %v9045
    %v9079 = vtanh.pop %v9046
    %v9080 = vtanh.pop %v9047
    %v9081 = vtanh.pop %v9048
    %v9082 = vtanh.pop %v9049
    %v9083 = vtanh.pop %v9050
    %v9084 = vtanh.pop %v9051
    %v9085 = vtanh.pop %v9052
    %v9086 = vtanh.pop %v9053
    %v9087 = vtanh.pop %v9054
    %v9088 = vtanh.pop %v9055
    %v9089 = vtanh.pop %v9056
    %v9090 = vtanh.pop %v9057
    %v9091 = vtanh.pop %v9058
    %v9092 = vtanh.pop %v9059
    %v9093 = vtanh.pop %v9060
    %v9094 = vtanh.pop %v9061
    %v9095 = vtanh.pop %v9062
    %v9096 = vtanh.pop %v9063
    %v9097 = vtanh.pop %v9064
    %v9098 = vtanh.pop %v9065
    %v9099 = vtanh.pop %v9066
    %v9100 = vtanh.pop %v9067
    %v9101 = vtanh.pop %v9068
    %v9102 = vtanh.pop %v9069
    %v9103 = vtanh.pop %v9070
    %v9104 = vtanh.pop %v9071
    %v9105 = vtanh.pop %v9072
    %v9106 = vtanh.pop %v9073
    %v9107 = vtanh.pop %v9074
    %v9108 = vtanh.pop %v9075
    %v9109 = vtanh.pop %v9076
    %v9110 = vadd.f32 %v9078, %v9080
    %v9111 = vadd.f32 %v9110, %v9082
    %v9112 = vadd.f32 %v9111, %v9084
    %v9113 = vadd.f32 %v9112, %v9086
    %v9114 = vadd.f32 %v9113, %v9088
    %v9115 = vadd.f32 %v9114, %v9090
    %v9116 = vadd.f32 %v9115, %v9092
    %v9117 = vadd.f32 %v9116, %v9094
    %v9118 = vadd.f32 %v9117, %v9096
    %v9119 = vadd.f32 %v9118, %v9098
    %v9120 = vadd.f32 %v9119, %v9100
    %v9121 = vadd.f32 %v9120, %v9102
    %v9122 = vadd.f32 %v9121, %v9104
    %v9123 = vadd.f32 %v9122, %v9106
    %v9124 = vadd.f32 %v9123, %v9108
    %v9125 = vadd.f32 %v9079, %v9081
    %v9126 = vadd.f32 %v9125, %v9083
    %v9127 = vadd.f32 %v9126, %v9085
    %v9128 = vadd.f32 %v9127, %v9087
    %v9129 = vadd.f32 %v9128, %v9089
    %v9130 = vadd.f32 %v9129, %v9091
    %v9131 = vadd.f32 %v9130, %v9093
    %v9132 = vadd.f32 %v9131, %v9095
    %v9133 = vadd.f32 %v9132, %v9097
    %v9134 = vadd.f32 %v9133, %v9099
    %v9135 = vadd.f32 %v9134, %v9101
    %v9136 = vadd.f32 %v9135, %v9103
    %v9137 = vadd.f32 %v9136, %v9105
    %v9138 = vadd.f32 %v9137, %v9107
    %v9139 = vadd.f32 %v9138, %v9109
    %v9140 = vstv %s9077
    %v9141 = vmul.f32 %v9140, %v9124
    %v9142 = vmul.f32 %v9140, %v9139
    %v9143 = vadd.f32 %v8875, %v9141
    %v9144 = vadd.f32 %v8876, %v9142
    %v9145 = vadd.f32 %v9143, %v9144
    %v9146 = vrot.slane %v9145, 4
    %v9147 = vadd.f32 %v9145, %v9146
    %v9148 = vrot.slane %v9147, 2
    %v9149 = vadd.f32 %v9147, %v9148
    %v9150 = vrot.slane %v9149, 1
    %v9151 = vadd.f32 %v9149, %v9150
    %s9152 = sld [smem:[#allocation2]]
    %s9153 = smul.f32 %s9152, 256.0
    %v9154 = vstv %s9153
    %v9155 = vadd.f32 %v9151, %v9154
    %9156 = vst [vmem:[%s5] sm:$0x1] %v9155
    // Predicated region
    $region34: #{funct2_forward.1} parent=1 // pred_check
      _
    $region35: #{funct2_forward.1} parent=1 // pred_check_branch
      %9158 = sbr.rel (0) target = $region37
    $region36: #{funct2_forward.1} parent=1 // pred_region
      _
    $region37: #{funct2_forward.1} parent=1 // pred_fallthru
      _
    // Predicated region
    $region38: #{funct2_forward.1} parent=1 // pred_check
      _
    $region39: #{funct2_forward.1} parent=1 // pred_check_branch
      %9160 = sbr.rel (0) target = $region41
    $region40: #{funct2_forward.1} parent=1 // pred_region
      _
    $region41: #{funct2_forward.1} parent=1 // pred_fallthru
      _
    %9161 = vsyncpa [#allocation4], 1
    %9162 = vsyncpa [#allocation6], 1

</llo_original>
